<compile_context>
chip_gen: v7x
topology: tpu7x:2x2x1
jax: 0.10.0
libtpu: 0.0.40
codegen_flags: <defaults>
</compile_context>

<pallas_src>
import jax
import jax.numpy as jnp
import numpy as np
from jax.experimental import pallas as pl
from jax.experimental.pallas import tpu as pltpu

PAD = 18  # max dilation; one halo of 18 covers the d=6 / d=12 / d=18 branches


def _make_assp_kernel(TH, W, Cin, Cout):
    """Kernel closure over static tile geometry."""
    TAPS = [(kh, kw) for kh in (-1, 0, 1) for kw in (-1, 0, 1)]   # HWIO tap order
    M = TH * W

    def kernel(x_ref, w1_ref, w2_ref, w3_ref, w4_ref, wf_ref, bias_ref, pool_ref, out_ref):
        f32 = jnp.float32
        rt = pl.program_id(1)
        row0 = rt * TH                      # first output row of this tile (unpadded coords)

        def slab(dh, dw):
            # (TH, W, Cin) window of the padded image, flattened to (TH*W, Cin)
            s = x_ref[pl.ds(row0 + PAD + dh, TH), pl.ds(PAD + dw, W), :]
            return s.reshape(M, Cin)

        def relu_bias(y, i):
            # BN scale already folded into the conv weights; only bias + ReLU remain.
            return jnp.maximum(y + bias_ref[i:i + 1, :], 0.0)

        # ---- branch 1: 1x1 conv -> (BN) -> ReLU, folded straight into the fusion conv ----
        b = relu_bias(jnp.dot(slab(0, 0), w1_ref[...], preferred_element_type=f32), 0)
        acc = jnp.dot(b.astype(wf_ref.dtype), wf_ref[0], preferred_element_type=f32)

        # ---- branches 2-4: dilated 3x3 convs (d = 6, 12, 18); taps generated in-kernel ----
        for bi, (w_ref, d) in enumerate(((w2_ref, 6), (w3_ref, 12), (w4_ref, 18)), start=1):
            part = None
            for t, (kh, kw) in enumerate(TAPS):
                c = jnp.dot(slab(kh * d, kw * d), w_ref[t], preferred_element_type=f32)
                part = c if part is None else part + c
            b = relu_bias(part, bi)
            acc = acc + jnp.dot(b.astype(wf_ref.dtype), wf_ref[bi],
                                preferred_element_type=f32)

        # ---- pooled-branch contribution (precomputed per batch) + final BN bias + ReLU ----
        out_ref[...] = jnp.maximum(acc + pool_ref[...] + bias_ref[4:5, :], 0.0)

    return kernel


def _pick_tile_rows(H, W, max_rows=1024):
    """Largest row-tile TH dividing H with a lane/sublane-friendly (TH*W, Cout) block.

    max_rows keeps the working set (tile + 27 tap slabs + weights, double-buffered)
    comfortably inside VMEM on all generations (halve it if targeting v7x's 64 MiB
    with very large Cin).
    """
    divs = [d for d in range(1, H + 1) if H % d == 0]
    cands = [d for d in divs if (d * W) % 8 == 0 and d * W <= max_rows]
    multi = [d for d in cands if H // d >= 2]        # prefer >=2 tiles for pipelining
    pool = multi or cands or [H]
    return max(pool)


def assp_forward(x_nchw, params):
    w1, w2, w3, w4, w5, wf, scales, biases = params
    N, Cin, H, W = x_nchw.shape
    Cout = w1.shape[1]
    HW = H * W
    TH = _pick_tile_rows(H, W)
    bf16 = jnp.bfloat16

    # NHWC activations.  TODO(synk): keep NHWC end-to-end in a full pipeline to avoid
    # this boundary transpose.
    x = jnp.transpose(x_nchw, (0, 2, 3, 1)).astype(jnp.float32)

    # Fold eval-mode BN scales into conv weights; cast weights to bf16 (f32 accumulate).
    w1s = (w1 * scales[0]).astype(bf16)                            # (Cin, Cout)
    w2s = (w2 * scales[1]).reshape(9, Cin, Cout).astype(bf16)      # (9, Cin, Cout), d=6
    w3s = (w3 * scales[2]).reshape(9, Cin, Cout).astype(bf16)      # d=12
    w4s = (w4 * scales[3]).reshape(9, Cin, Cout).astype(bf16)      # d=18
    wfs = wf * scales[5]                                           # (5*Cout, Cout) f32
    wf4 = wfs[:4 * Cout].reshape(4, Cout, Cout).astype(bf16)

    # Pooled branch hoisted out of the hot loop (tiny N x Cin work).  Its contribution
    # through convf is a per-batch (1, Cout) bias; bilinear upsample of a 1x1 map with
    # align_corners=False is an exact constant broadcast.
    pooled = jnp.mean(x, axis=(1, 2))                              # (N, Cin)
    b5 = jnp.maximum(pooled @ (w5 * scales[4]) + biases[4], 0.0)   # (N, Cout)
    pool_contrib = (b5 @ wfs[4 * Cout:]).reshape(N, 1, Cout)       # (N, 1, Cout) f32

    # Per-branch biases (branches 1-4) + final BN bias, kept in f32.
    bias_k = jnp.stack([biases[0], biases[1], biases[2], biases[3], biases[5]])  # (5, Cout)

    # One zero-pad (halo = 18) covers all three dilations; cast activations to bf16.
    xpad = jnp.pad(x, ((0, 0), (PAD, PAD), (PAD, PAD), (0, 0))).astype(bf16)
    Hp, Wp = H + 2 * PAD, W + 2 * PAD

    kernel = _make_assp_kernel(TH, W, Cin, Cout)

    def full_spec(a):
        return pl.BlockSpec(a.shape, lambda n, rt, _nd=a.ndim: (0,) * _nd)

    out_flat = pl.pallas_call(
        kernel,
        out_shape=jax.ShapeDtypeStruct((N, HW, Cout), jnp.float32),
        grid=(N, H // TH),
        in_specs=[
            # Whole padded image per batch; block index depends only on n, so it is
            # DMA'd once per batch and stays resident across the row-tile axis.
            pl.BlockSpec((None, Hp, Wp, Cin), lambda n, rt: (n, 0, 0, 0)),
            full_spec(w1s), full_spec(w2s), full_spec(w3s), full_spec(w4s),
            full_spec(wf4), full_spec(bias_k),
            pl.BlockSpec((None, 1, Cout), lambda n, rt: (n, 0, 0)),
        ],
        out_specs=pl.BlockSpec((None, TH * W, Cout), lambda n, rt: (n, rt, 0)),
        compiler_params=pltpu.CompilerParams(
            dimension_semantics=("parallel", "parallel"),
            vmem_limit_bytes=32 * 1024 * 1024,   # safe on v5e/v6e/v7x; toy working set ~2 MiB
        ),
    )(xpad, w1s, w2s, w3s, w4s, wf4, bias_k, pool_contrib)

    return out_flat.reshape(N, H, W, Cout).transpose(0, 3, 1, 2)   # back to NCHW


def init_params(key, Cin, Cout):
    ks = jax.random.split(key, 8)
    w1 = 0.10 * jax.random.normal(ks[0], (Cin, Cout), jnp.float32)          # 1x1
    w2 = 0.10 * jax.random.normal(ks[1], (3, 3, Cin, Cout), jnp.float32)    # d=6  (HWIO)
    w3 = 0.10 * jax.random.normal(ks[2], (3, 3, Cin, Cout), jnp.float32)    # d=12 (HWIO)
    w4 = 0.10 * jax.random.normal(ks[3], (3, 3, Cin, Cout), jnp.float32)    # d=18 (HWIO)
    w5 = 0.10 * jax.random.normal(ks[4], (Cin, Cout), jnp.float32)          # 1x1 (pool branch)
    wf = 0.05 * jax.random.normal(ks[5], (5 * Cout, Cout), jnp.float32)     # final 1x1
    gammas = 1.0 + 0.1 * jax.random.normal(ks[6], (6, Cout), jnp.float32)
    betas = 0.1 * jax.random.normal(ks[7], (6, Cout), jnp.float32)
    # eval-mode BN: running_mean=0, running_var=1 (PyTorch defaults), eps=1e-5
    eps = 1e-5
    scales = gammas / jnp.sqrt(1.0 + eps)
    biases = betas
    return (w1, w2, w3, w4, w5, wf, scales, biases)


def assp_reference(x_nchw, params):
    """Pure-JAX (XLA conv) f32 reference mirroring the PyTorch forward."""
    w1, w2, w3, w4, w5, wf, scales, biases = params
    N, Cin, H, W = x_nchw.shape
    Cout = w1.shape[1]
    x = x_nchw.astype(jnp.float32)
    dn = ('NCHW', 'HWIO', 'NCHW')

    def conv(inp, w, pad, dil):
        return jax.lax.conv_general_dilated(inp, w, (1, 1), [(pad, pad), (pad, pad)],
                                            rhs_dilation=(dil, dil), dimension_numbers=dn)

    def bn_relu(y, i):
        return jnp.maximum(y * scales[i][None, :, None, None]
                           + biases[i][None, :, None, None], 0.0)

    b1 = bn_relu(conv(x, w1.reshape(1, 1, Cin, Cout), 0, 1), 0)
    b2 = bn_relu(conv(x, w2, 6, 6), 1)
    b3 = bn_relu(conv(x, w3, 12, 12), 2)
    b4 = bn_relu(conv(x, w4, 18, 18), 3)
    pooled = jnp.mean(x, axis=(2, 3), keepdims=True)                       # adaptive avg pool 1x1
    b5 = bn_relu(conv(pooled, w5.reshape(1, 1, Cin, Cout), 0, 1), 4)
    b5 = jnp.broadcast_to(b5, (N, Cout, H, W))                             # bilinear from 1x1
    cat = jnp.concatenate([b1, b2, b3, b4, b5], axis=1)
    out = bn_relu(conv(cat, wf.reshape(1, 1, 5 * Cout, Cout), 0, 1), 5)
    return out


if __name__ == "__main__":
    key = jax.random.PRNGKey(0)
    kx, kp = jax.random.split(key)
    N, Cin, H, W, Cout = 2, 8, 16, 16, 128
    x = jax.random.normal(kx, (N, Cin, H, W), jnp.float32)
    params = init_params(kp, Cin, Cout)

    out = jax.block_until_ready(jax.jit(assp_forward)(x, params))
    ref = jax.block_until_ready(assp_reference(x, params))
    np.testing.assert_allclose(np.asarray(out), np.asarray(ref), rtol=5e-2, atol=5e-2)
    print("KERNEL_OK")
</pallas_src>

<mosaic_0001>
module attributes {stable_mosaic.version = 11 : i64} {
  func.func @kernel(%arg0: i32, %arg1: i32, %arg2: memref<1x52x52x8xbf16, #tpu.memory_space<vmem>>, %arg3: memref<8x128xbf16, #tpu.memory_space<vmem>>, %arg4: memref<9x8x128xbf16, #tpu.memory_space<vmem>>, %arg5: memref<9x8x128xbf16, #tpu.memory_space<vmem>>, %arg6: memref<9x8x128xbf16, #tpu.memory_space<vmem>>, %arg7: memref<4x128x128xbf16, #tpu.memory_space<vmem>>, %arg8: memref<5x128xf32, #tpu.memory_space<vmem>>, %arg9: memref<1x1x128xf32, #tpu.memory_space<vmem>>, %arg10: memref<1x128x128xf32, #tpu.memory_space<vmem>>) attributes {dimension_semantics = [#tpu.dimension_semantics<parallel>, #tpu.dimension_semantics<parallel>], iteration_bounds = array<i64: 2, 2>, scalar_prefetch = 0 : i64, scratch_operands = 0 : i64, tpu.core_type = #tpu.core_type<tc>, window_params = [{transform_indices = @transform_0, window_bounds = array<i64: 1, 52, 52, 8>}, {pipeline_mode = #tpu.pipeline_mode<synchronous>, transform_indices = @transform_1, window_bounds = array<i64: 8, 128>}, {pipeline_mode = #tpu.pipeline_mode<synchronous>, transform_indices = @transform_2, window_bounds = array<i64: 9, 8, 128>}, {pipeline_mode = #tpu.pipeline_mode<synchronous>, transform_indices = @transform_3, window_bounds = array<i64: 9, 8, 128>}, {pipeline_mode = #tpu.pipeline_mode<synchronous>, transform_indices = @transform_4, window_bounds = array<i64: 9, 8, 128>}, {pipeline_mode = #tpu.pipeline_mode<synchronous>, transform_indices = @transform_5, window_bounds = array<i64: 4, 128, 128>}, {pipeline_mode = #tpu.pipeline_mode<synchronous>, transform_indices = @transform_6, window_bounds = array<i64: 5, 128>}, {transform_indices = @transform_7, window_bounds = array<i64: 1, 1, 128>}, {transform_indices = @transform_8, window_bounds = array<i64: 1, 128, 128>}]} {
    %c8_i32 = arith.constant 8 : i32
    %0 = arith.muli %arg1, %c8_i32 : i32
    %c18_i32 = arith.constant 18 : i32
    %1 = arith.addi %0, %c18_i32 : i32
    %c0_i32 = arith.constant 0 : i32
    %2 = arith.addi %1, %c0_i32 : i32
    %c0 = arith.constant 0 : index
    %3 = arith.index_cast %2 : i32 to index
    %c18 = arith.constant 18 : index
    %c0_0 = arith.constant 0 : index
    %4 = vector.load %arg2[%c0, %3, %c18, %c0_0] : memref<1x52x52x8xbf16, #tpu.memory_space<vmem>>, vector<1x8x16x8xbf16>
    %5 = vector.shape_cast %4 : vector<1x8x16x8xbf16> to vector<8x16x8xbf16>
    %6 = vector.shape_cast %5 : vector<8x16x8xbf16> to vector<128x8xbf16>
    %c0_1 = arith.constant 0 : index
    %c0_2 = arith.constant 0 : index
    %7 = vector.load %arg3[%c0_1, %c0_2] : memref<8x128xbf16, #tpu.memory_space<vmem>>, vector<8x128xbf16>
    %cst = arith.constant dense<0.000000e+00> : vector<128x128xf32>
    %8 = tpu.matmul %6, %7, %cst {dimension_numbers = #tpu.dot_dimension_numbers<[1], [0], [0], [1], [0, 0, 1, 1], [], []>} : vector<128x8xbf16>, vector<8x128xbf16>, vector<128x128xf32> -> vector<128x128xf32>
    %c0_3 = arith.constant 0 : index
    %c0_4 = arith.constant 0 : index
    %9 = vector.load %arg8[%c0_3, %c0_4] : memref<5x128xf32, #tpu.memory_space<vmem>>, vector<1x128xf32>
    %10 = vector.broadcast %9 : vector<1x128xf32> to vector<128x128xf32>
    %11 = arith.addf %8, %10 : vector<128x128xf32>
    %cst_5 = arith.constant 0.000000e+00 : f32
    %12 = vector.broadcast %cst_5 : f32 to vector<128x128xf32>
    %13 = arith.maximumf %11, %12 : vector<128x128xf32>
    %14 = arith.truncf %13 : vector<128x128xf32> to vector<128x128xbf16>
    %c0_6 = arith.constant 0 : index
    %c0_7 = arith.constant 0 : index
    %c0_8 = arith.constant 0 : index
    %15 = vector.load %arg7[%c0_6, %c0_7, %c0_8] : memref<4x128x128xbf16, #tpu.memory_space<vmem>>, vector<1x128x128xbf16>
    %16 = vector.shape_cast %15 : vector<1x128x128xbf16> to vector<128x128xbf16>
    %cst_9 = arith.constant dense<0.000000e+00> : vector<128x128xf32>
    %17 = tpu.matmul %14, %16, %cst_9 {dimension_numbers = #tpu.dot_dimension_numbers<[1], [0], [0], [1], [0, 0, 1, 1], [], []>} : vector<128x128xbf16>, vector<128x128xbf16>, vector<128x128xf32> -> vector<128x128xf32>
    %c18_i32_10 = arith.constant 18 : i32
    %18 = arith.addi %0, %c18_i32_10 : i32
    %c-6_i32 = arith.constant -6 : i32
    %19 = arith.addi %18, %c-6_i32 : i32
    %c0_11 = arith.constant 0 : index
    %20 = arith.index_cast %19 : i32 to index
    %c12 = arith.constant 12 : index
    %c0_12 = arith.constant 0 : index
    %21 = vector.load %arg2[%c0_11, %20, %c12, %c0_12] : memref<1x52x52x8xbf16, #tpu.memory_space<vmem>>, vector<1x8x16x8xbf16>
    %22 = vector.shape_cast %21 : vector<1x8x16x8xbf16> to vector<8x16x8xbf16>
    %23 = vector.shape_cast %22 : vector<8x16x8xbf16> to vector<128x8xbf16>
    %c0_13 = arith.constant 0 : index
    %c0_14 = arith.constant 0 : index
    %c0_15 = arith.constant 0 : index
    %24 = vector.load %arg4[%c0_13, %c0_14, %c0_15] : memref<9x8x128xbf16, #tpu.memory_space<vmem>>, vector<1x8x128xbf16>
    %25 = vector.shape_cast %24 : vector<1x8x128xbf16> to vector<8x128xbf16>
    %cst_16 = arith.constant dense<0.000000e+00> : vector<128x128xf32>
    %26 = tpu.matmul %23, %25, %cst_16 {dimension_numbers = #tpu.dot_dimension_numbers<[1], [0], [0], [1], [0, 0, 1, 1], [], []>} : vector<128x8xbf16>, vector<8x128xbf16>, vector<128x128xf32> -> vector<128x128xf32>
    %c18_i32_17 = arith.constant 18 : i32
    %27 = arith.addi %0, %c18_i32_17 : i32
    %c-6_i32_18 = arith.constant -6 : i32
    %28 = arith.addi %27, %c-6_i32_18 : i32
    %c0_19 = arith.constant 0 : index
    %29 = arith.index_cast %28 : i32 to index
    %c18_20 = arith.constant 18 : index
    %c0_21 = arith.constant 0 : index
    %30 = vector.load %arg2[%c0_19, %29, %c18_20, %c0_21] : memref<1x52x52x8xbf16, #tpu.memory_space<vmem>>, vector<1x8x16x8xbf16>
    %31 = vector.shape_cast %30 : vector<1x8x16x8xbf16> to vector<8x16x8xbf16>
    %32 = vector.shape_cast %31 : vector<8x16x8xbf16> to vector<128x8xbf16>
    %c1 = arith.constant 1 : index
    %c0_22 = arith.constant 0 : index
    %c0_23 = arith.constant 0 : index
    %33 = vector.load %arg4[%c1, %c0_22, %c0_23] : memref<9x8x128xbf16, #tpu.memory_space<vmem>>, vector<1x8x128xbf16>
    %34 = vector.shape_cast %33 : vector<1x8x128xbf16> to vector<8x128xbf16>
    %cst_24 = arith.constant dense<0.000000e+00> : vector<128x128xf32>
    %35 = tpu.matmul %32, %34, %cst_24 {dimension_numbers = #tpu.dot_dimension_numbers<[1], [0], [0], [1], [0, 0, 1, 1], [], []>} : vector<128x8xbf16>, vector<8x128xbf16>, vector<128x128xf32> -> vector<128x128xf32>
    %36 = arith.addf %26, %35 : vector<128x128xf32>
    %c18_i32_25 = arith.constant 18 : i32
    %37 = arith.addi %0, %c18_i32_25 : i32
    %c-6_i32_26 = arith.constant -6 : i32
    %38 = arith.addi %37, %c-6_i32_26 : i32
    %c0_27 = arith.constant 0 : index
    %39 = arith.index_cast %38 : i32 to index
    %c24 = arith.constant 24 : index
    %c0_28 = arith.constant 0 : index
    %40 = vector.load %arg2[%c0_27, %39, %c24, %c0_28] : memref<1x52x52x8xbf16, #tpu.memory_space<vmem>>, vector<1x8x16x8xbf16>
    %41 = vector.shape_cast %40 : vector<1x8x16x8xbf16> to vector<8x16x8xbf16>
    %42 = vector.shape_cast %41 : vector<8x16x8xbf16> to vector<128x8xbf16>
    %c2 = arith.constant 2 : index
    %c0_29 = arith.constant 0 : index
    %c0_30 = arith.constant 0 : index
    %43 = vector.load %arg4[%c2, %c0_29, %c0_30] : memref<9x8x128xbf16, #tpu.memory_space<vmem>>, vector<1x8x128xbf16>
    %44 = vector.shape_cast %43 : vector<1x8x128xbf16> to vector<8x128xbf16>
    %cst_31 = arith.constant dense<0.000000e+00> : vector<128x128xf32>
    %45 = tpu.matmul %42, %44, %cst_31 {dimension_numbers = #tpu.dot_dimension_numbers<[1], [0], [0], [1], [0, 0, 1, 1], [], []>} : vector<128x8xbf16>, vector<8x128xbf16>, vector<128x128xf32> -> vector<128x128xf32>
    %46 = arith.addf %36, %45 : vector<128x128xf32>
    %c18_i32_32 = arith.constant 18 : i32
    %47 = arith.addi %0, %c18_i32_32 : i32
    %c0_i32_33 = arith.constant 0 : i32
    %48 = arith.addi %47, %c0_i32_33 : i32
    %c0_34 = arith.constant 0 : index
    %49 = arith.index_cast %48 : i32 to index
    %c12_35 = arith.constant 12 : index
    %c0_36 = arith.constant 0 : index
    %50 = vector.load %arg2[%c0_34, %49, %c12_35, %c0_36] : memref<1x52x52x8xbf16, #tpu.memory_space<vmem>>, vector<1x8x16x8xbf16>
    %51 = vector.shape_cast %50 : vector<1x8x16x8xbf16> to vector<8x16x8xbf16>
    %52 = vector.shape_cast %51 : vector<8x16x8xbf16> to vector<128x8xbf16>
    %c3 = arith.constant 3 : index
    %c0_37 = arith.constant 0 : index
    %c0_38 = arith.constant 0 : index
    %53 = vector.load %arg4[%c3, %c0_37, %c0_38] : memref<9x8x128xbf16, #tpu.memory_space<vmem>>, vector<1x8x128xbf16>
    %54 = vector.shape_cast %53 : vector<1x8x128xbf16> to vector<8x128xbf16>
    %cst_39 = arith.constant dense<0.000000e+00> : vector<128x128xf32>
    %55 = tpu.matmul %52, %54, %cst_39 {dimension_numbers = #tpu.dot_dimension_numbers<[1], [0], [0], [1], [0, 0, 1, 1], [], []>} : vector<128x8xbf16>, vector<8x128xbf16>, vector<128x128xf32> -> vector<128x128xf32>
    %56 = arith.addf %46, %55 : vector<128x128xf32>
    %c18_i32_40 = arith.constant 18 : i32
    %57 = arith.addi %0, %c18_i32_40 : i32
    %c0_i32_41 = arith.constant 0 : i32
    %58 = arith.addi %57, %c0_i32_41 : i32
    %c0_42 = arith.constant 0 : index
    %59 = arith.index_cast %58 : i32 to index
    %c18_43 = arith.constant 18 : index
    %c0_44 = arith.constant 0 : index
    %60 = vector.load %arg2[%c0_42, %59, %c18_43, %c0_44] : memref<1x52x52x8xbf16, #tpu.memory_space<vmem>>, vector<1x8x16x8xbf16>
    %61 = vector.shape_cast %60 : vector<1x8x16x8xbf16> to vector<8x16x8xbf16>
    %62 = vector.shape_cast %61 : vector<8x16x8xbf16> to vector<128x8xbf16>
    %c4 = arith.constant 4 : index
    %c0_45 = arith.constant 0 : index
    %c0_46 = arith.constant 0 : index
    %63 = vector.load %arg4[%c4, %c0_45, %c0_46] : memref<9x8x128xbf16, #tpu.memory_space<vmem>>, vector<1x8x128xbf16>
    %64 = vector.shape_cast %63 : vector<1x8x128xbf16> to vector<8x128xbf16>
    %cst_47 = arith.constant dense<0.000000e+00> : vector<128x128xf32>
    %65 = tpu.matmul %62, %64, %cst_47 {dimension_numbers = #tpu.dot_dimension_numbers<[1], [0], [0], [1], [0, 0, 1, 1], [], []>} : vector<128x8xbf16>, vector<8x128xbf16>, vector<128x128xf32> -> vector<128x128xf32>
    %66 = arith.addf %56, %65 : vector<128x128xf32>
    %c18_i32_48 = arith.constant 18 : i32
    %67 = arith.addi %0, %c18_i32_48 : i32
    %c0_i32_49 = arith.constant 0 : i32
    %68 = arith.addi %67, %c0_i32_49 : i32
    %c0_50 = arith.constant 0 : index
    %69 = arith.index_cast %68 : i32 to index
    %c24_51 = arith.constant 24 : index
    %c0_52 = arith.constant 0 : index
    %70 = vector.load %arg2[%c0_50, %69, %c24_51, %c0_52] : memref<1x52x52x8xbf16, #tpu.memory_space<vmem>>, vector<1x8x16x8xbf16>
    %71 = vector.shape_cast %70 : vector<1x8x16x8xbf16> to vector<8x16x8xbf16>
    %72 = vector.shape_cast %71 : vector<8x16x8xbf16> to vector<128x8xbf16>
    %c5 = arith.constant 5 : index
    %c0_53 = arith.constant 0 : index
    %c0_54 = arith.constant 0 : index
    %73 = vector.load %arg4[%c5, %c0_53, %c0_54] : memref<9x8x128xbf16, #tpu.memory_space<vmem>>, vector<1x8x128xbf16>
    %74 = vector.shape_cast %73 : vector<1x8x128xbf16> to vector<8x128xbf16>
    %cst_55 = arith.constant dense<0.000000e+00> : vector<128x128xf32>
    %75 = tpu.matmul %72, %74, %cst_55 {dimension_numbers = #tpu.dot_dimension_numbers<[1], [0], [0], [1], [0, 0, 1, 1], [], []>} : vector<128x8xbf16>, vector<8x128xbf16>, vector<128x128xf32> -> vector<128x128xf32>
    %76 = arith.addf %66, %75 : vector<128x128xf32>
    %c18_i32_56 = arith.constant 18 : i32
    %77 = arith.addi %0, %c18_i32_56 : i32
    %c6_i32 = arith.constant 6 : i32
    %78 = arith.addi %77, %c6_i32 : i32
    %c0_57 = arith.constant 0 : index
    %79 = arith.index_cast %78 : i32 to index
    %c12_58 = arith.constant 12 : index
    %c0_59 = arith.constant 0 : index
    %80 = vector.load %arg2[%c0_57, %79, %c12_58, %c0_59] : memref<1x52x52x8xbf16, #tpu.memory_space<vmem>>, vector<1x8x16x8xbf16>
    %81 = vector.shape_cast %80 : vector<1x8x16x8xbf16> to vector<8x16x8xbf16>
    %82 = vector.shape_cast %81 : vector<8x16x8xbf16> to vector<128x8xbf16>
    %c6 = arith.constant 6 : index
    %c0_60 = arith.constant 0 : index
    %c0_61 = arith.constant 0 : index
    %83 = vector.load %arg4[%c6, %c0_60, %c0_61] : memref<9x8x128xbf16, #tpu.memory_space<vmem>>, vector<1x8x128xbf16>
    %84 = vector.shape_cast %83 : vector<1x8x128xbf16> to vector<8x128xbf16>
    %cst_62 = arith.constant dense<0.000000e+00> : vector<128x128xf32>
    %85 = tpu.matmul %82, %84, %cst_62 {dimension_numbers = #tpu.dot_dimension_numbers<[1], [0], [0], [1], [0, 0, 1, 1], [], []>} : vector<128x8xbf16>, vector<8x128xbf16>, vector<128x128xf32> -> vector<128x128xf32>
    %86 = arith.addf %76, %85 : vector<128x128xf32>
    %c18_i32_63 = arith.constant 18 : i32
    %87 = arith.addi %0, %c18_i32_63 : i32
    %c6_i32_64 = arith.constant 6 : i32
    %88 = arith.addi %87, %c6_i32_64 : i32
    %c0_65 = arith.constant 0 : index
    %89 = arith.index_cast %88 : i32 to index
    %c18_66 = arith.constant 18 : index
    %c0_67 = arith.constant 0 : index
    %90 = vector.load %arg2[%c0_65, %89, %c18_66, %c0_67] : memref<1x52x52x8xbf16, #tpu.memory_space<vmem>>, vector<1x8x16x8xbf16>
    %91 = vector.shape_cast %90 : vector<1x8x16x8xbf16> to vector<8x16x8xbf16>
    %92 = vector.shape_cast %91 : vector<8x16x8xbf16> to vector<128x8xbf16>
    %c7 = arith.constant 7 : index
    %c0_68 = arith.constant 0 : index
    %c0_69 = arith.constant 0 : index
    %93 = vector.load %arg4[%c7, %c0_68, %c0_69] : memref<9x8x128xbf16, #tpu.memory_space<vmem>>, vector<1x8x128xbf16>
    %94 = vector.shape_cast %93 : vector<1x8x128xbf16> to vector<8x128xbf16>
    %cst_70 = arith.constant dense<0.000000e+00> : vector<128x128xf32>
    %95 = tpu.matmul %92, %94, %cst_70 {dimension_numbers = #tpu.dot_dimension_numbers<[1], [0], [0], [1], [0, 0, 1, 1], [], []>} : vector<128x8xbf16>, vector<8x128xbf16>, vector<128x128xf32> -> vector<128x128xf32>
    %96 = arith.addf %86, %95 : vector<128x128xf32>
    %c18_i32_71 = arith.constant 18 : i32
    %97 = arith.addi %0, %c18_i32_71 : i32
    %c6_i32_72 = arith.constant 6 : i32
    %98 = arith.addi %97, %c6_i32_72 : i32
    %c0_73 = arith.constant 0 : index
    %99 = arith.index_cast %98 : i32 to index
    %c24_74 = arith.constant 24 : index
    %c0_75 = arith.constant 0 : index
    %100 = vector.load %arg2[%c0_73, %99, %c24_74, %c0_75] : memref<1x52x52x8xbf16, #tpu.memory_space<vmem>>, vector<1x8x16x8xbf16>
    %101 = vector.shape_cast %100 : vector<1x8x16x8xbf16> to vector<8x16x8xbf16>
    %102 = vector.shape_cast %101 : vector<8x16x8xbf16> to vector<128x8xbf16>
    %c8 = arith.constant 8 : index
    %c0_76 = arith.constant 0 : index
    %c0_77 = arith.constant 0 : index
    %103 = vector.load %arg4[%c8, %c0_76, %c0_77] : memref<9x8x128xbf16, #tpu.memory_space<vmem>>, vector<1x8x128xbf16>
    %104 = vector.shape_cast %103 : vector<1x8x128xbf16> to vector<8x128xbf16>
    %cst_78 = arith.constant dense<0.000000e+00> : vector<128x128xf32>
    %105 = tpu.matmul %102, %104, %cst_78 {dimension_numbers = #tpu.dot_dimension_numbers<[1], [0], [0], [1], [0, 0, 1, 1], [], []>} : vector<128x8xbf16>, vector<8x128xbf16>, vector<128x128xf32> -> vector<128x128xf32>
    %106 = arith.addf %96, %105 : vector<128x128xf32>
    %c1_79 = arith.constant 1 : index
    %c0_80 = arith.constant 0 : index
    %107 = vector.load %arg8[%c1_79, %c0_80] : memref<5x128xf32, #tpu.memory_space<vmem>>, vector<1x128xf32>
    %108 = vector.broadcast %107 : vector<1x128xf32> to vector<128x128xf32>
    %109 = arith.addf %106, %108 : vector<128x128xf32>
    %cst_81 = arith.constant 0.000000e+00 : f32
    %110 = vector.broadcast %cst_81 : f32 to vector<128x128xf32>
    %111 = arith.maximumf %109, %110 : vector<128x128xf32>
    %112 = arith.truncf %111 : vector<128x128xf32> to vector<128x128xbf16>
    %c1_82 = arith.constant 1 : index
    %c0_83 = arith.constant 0 : index
    %c0_84 = arith.constant 0 : index
    %113 = vector.load %arg7[%c1_82, %c0_83, %c0_84] : memref<4x128x128xbf16, #tpu.memory_space<vmem>>, vector<1x128x128xbf16>
    %114 = vector.shape_cast %113 : vector<1x128x128xbf16> to vector<128x128xbf16>
    %cst_85 = arith.constant dense<0.000000e+00> : vector<128x128xf32>
    %115 = tpu.matmul %112, %114, %cst_85 {dimension_numbers = #tpu.dot_dimension_numbers<[1], [0], [0], [1], [0, 0, 1, 1], [], []>} : vector<128x128xbf16>, vector<128x128xbf16>, vector<128x128xf32> -> vector<128x128xf32>
    %116 = arith.addf %17, %115 : vector<128x128xf32>
    %c18_i32_86 = arith.constant 18 : i32
    %117 = arith.addi %0, %c18_i32_86 : i32
    %c-12_i32 = arith.constant -12 : i32
    %118 = arith.addi %117, %c-12_i32 : i32
    %c0_87 = arith.constant 0 : index
    %119 = arith.index_cast %118 : i32 to index
    %c6_88 = arith.constant 6 : index
    %c0_89 = arith.constant 0 : index
    %120 = vector.load %arg2[%c0_87, %119, %c6_88, %c0_89] : memref<1x52x52x8xbf16, #tpu.memory_space<vmem>>, vector<1x8x16x8xbf16>
    %121 = vector.shape_cast %120 : vector<1x8x16x8xbf16> to vector<8x16x8xbf16>
    %122 = vector.shape_cast %121 : vector<8x16x8xbf16> to vector<128x8xbf16>
    %c0_90 = arith.constant 0 : index
    %c0_91 = arith.constant 0 : index
    %c0_92 = arith.constant 0 : index
    %123 = vector.load %arg5[%c0_90, %c0_91, %c0_92] : memref<9x8x128xbf16, #tpu.memory_space<vmem>>, vector<1x8x128xbf16>
    %124 = vector.shape_cast %123 : vector<1x8x128xbf16> to vector<8x128xbf16>
    %cst_93 = arith.constant dense<0.000000e+00> : vector<128x128xf32>
    %125 = tpu.matmul %122, %124, %cst_93 {dimension_numbers = #tpu.dot_dimension_numbers<[1], [0], [0], [1], [0, 0, 1, 1], [], []>} : vector<128x8xbf16>, vector<8x128xbf16>, vector<128x128xf32> -> vector<128x128xf32>
    %c18_i32_94 = arith.constant 18 : i32
    %126 = arith.addi %0, %c18_i32_94 : i32
    %c-12_i32_95 = arith.constant -12 : i32
    %127 = arith.addi %126, %c-12_i32_95 : i32
    %c0_96 = arith.constant 0 : index
    %128 = arith.index_cast %127 : i32 to index
    %c18_97 = arith.constant 18 : index
    %c0_98 = arith.constant 0 : index
    %129 = vector.load %arg2[%c0_96, %128, %c18_97, %c0_98] : memref<1x52x52x8xbf16, #tpu.memory_space<vmem>>, vector<1x8x16x8xbf16>
    %130 = vector.shape_cast %129 : vector<1x8x16x8xbf16> to vector<8x16x8xbf16>
    %131 = vector.shape_cast %130 : vector<8x16x8xbf16> to vector<128x8xbf16>
    %c1_99 = arith.constant 1 : index
    %c0_100 = arith.constant 0 : index
    %c0_101 = arith.constant 0 : index
    %132 = vector.load %arg5[%c1_99, %c0_100, %c0_101] : memref<9x8x128xbf16, #tpu.memory_space<vmem>>, vector<1x8x128xbf16>
    %133 = vector.shape_cast %132 : vector<1x8x128xbf16> to vector<8x128xbf16>
    %cst_102 = arith.constant dense<0.000000e+00> : vector<128x128xf32>
    %134 = tpu.matmul %131, %133, %cst_102 {dimension_numbers = #tpu.dot_dimension_numbers<[1], [0], [0], [1], [0, 0, 1, 1], [], []>} : vector<128x8xbf16>, vector<8x128xbf16>, vector<128x128xf32> -> vector<128x128xf32>
    %135 = arith.addf %125, %134 : vector<128x128xf32>
    %c18_i32_103 = arith.constant 18 : i32
    %136 = arith.addi %0, %c18_i32_103 : i32
    %c-12_i32_104 = arith.constant -12 : i32
    %137 = arith.addi %136, %c-12_i32_104 : i32
    %c0_105 = arith.constant 0 : index
    %138 = arith.index_cast %137 : i32 to index
    %c30 = arith.constant 30 : index
    %c0_106 = arith.constant 0 : index
    %139 = vector.load %arg2[%c0_105, %138, %c30, %c0_106] : memref<1x52x52x8xbf16, #tpu.memory_space<vmem>>, vector<1x8x16x8xbf16>
    %140 = vector.shape_cast %139 : vector<1x8x16x8xbf16> to vector<8x16x8xbf16>
    %141 = vector.shape_cast %140 : vector<8x16x8xbf16> to vector<128x8xbf16>
    %c2_107 = arith.constant 2 : index
    %c0_108 = arith.constant 0 : index
    %c0_109 = arith.constant 0 : index
    %142 = vector.load %arg5[%c2_107, %c0_108, %c0_109] : memref<9x8x128xbf16, #tpu.memory_space<vmem>>, vector<1x8x128xbf16>
    %143 = vector.shape_cast %142 : vector<1x8x128xbf16> to vector<8x128xbf16>
    %cst_110 = arith.constant dense<0.000000e+00> : vector<128x128xf32>
    %144 = tpu.matmul %141, %143, %cst_110 {dimension_numbers = #tpu.dot_dimension_numbers<[1], [0], [0], [1], [0, 0, 1, 1], [], []>} : vector<128x8xbf16>, vector<8x128xbf16>, vector<128x128xf32> -> vector<128x128xf32>
    %145 = arith.addf %135, %144 : vector<128x128xf32>
    %c18_i32_111 = arith.constant 18 : i32
    %146 = arith.addi %0, %c18_i32_111 : i32
    %c0_i32_112 = arith.constant 0 : i32
    %147 = arith.addi %146, %c0_i32_112 : i32
    %c0_113 = arith.constant 0 : index
    %148 = arith.index_cast %147 : i32 to index
    %c6_114 = arith.constant 6 : index
    %c0_115 = arith.constant 0 : index
    %149 = vector.load %arg2[%c0_113, %148, %c6_114, %c0_115] : memref<1x52x52x8xbf16, #tpu.memory_space<vmem>>, vector<1x8x16x8xbf16>
    %150 = vector.shape_cast %149 : vector<1x8x16x8xbf16> to vector<8x16x8xbf16>
    %151 = vector.shape_cast %150 : vector<8x16x8xbf16> to vector<128x8xbf16>
    %c3_116 = arith.constant 3 : index
    %c0_117 = arith.constant 0 : index
    %c0_118 = arith.constant 0 : index
    %152 = vector.load %arg5[%c3_116, %c0_117, %c0_118] : memref<9x8x128xbf16, #tpu.memory_space<vmem>>, vector<1x8x128xbf16>
    %153 = vector.shape_cast %152 : vector<1x8x128xbf16> to vector<8x128xbf16>
    %cst_119 = arith.constant dense<0.000000e+00> : vector<128x128xf32>
    %154 = tpu.matmul %151, %153, %cst_119 {dimension_numbers = #tpu.dot_dimension_numbers<[1], [0], [0], [1], [0, 0, 1, 1], [], []>} : vector<128x8xbf16>, vector<8x128xbf16>, vector<128x128xf32> -> vector<128x128xf32>
    %155 = arith.addf %145, %154 : vector<128x128xf32>
    %c18_i32_120 = arith.constant 18 : i32
    %156 = arith.addi %0, %c18_i32_120 : i32
    %c0_i32_121 = arith.constant 0 : i32
    %157 = arith.addi %156, %c0_i32_121 : i32
    %c0_122 = arith.constant 0 : index
    %158 = arith.index_cast %157 : i32 to index
    %c18_123 = arith.constant 18 : index
    %c0_124 = arith.constant 0 : index
    %159 = vector.load %arg2[%c0_122, %158, %c18_123, %c0_124] : memref<1x52x52x8xbf16, #tpu.memory_space<vmem>>, vector<1x8x16x8xbf16>
    %160 = vector.shape_cast %159 : vector<1x8x16x8xbf16> to vector<8x16x8xbf16>
    %161 = vector.shape_cast %160 : vector<8x16x8xbf16> to vector<128x8xbf16>
    %c4_125 = arith.constant 4 : index
    %c0_126 = arith.constant 0 : index
    %c0_127 = arith.constant 0 : index
    %162 = vector.load %arg5[%c4_125, %c0_126, %c0_127] : memref<9x8x128xbf16, #tpu.memory_space<vmem>>, vector<1x8x128xbf16>
    %163 = vector.shape_cast %162 : vector<1x8x128xbf16> to vector<8x128xbf16>
    %cst_128 = arith.constant dense<0.000000e+00> : vector<128x128xf32>
    %164 = tpu.matmul %161, %163, %cst_128 {dimension_numbers = #tpu.dot_dimension_numbers<[1], [0], [0], [1], [0, 0, 1, 1], [], []>} : vector<128x8xbf16>, vector<8x128xbf16>, vector<128x128xf32> -> vector<128x128xf32>
    %165 = arith.addf %155, %164 : vector<128x128xf32>
    %c18_i32_129 = arith.constant 18 : i32
    %166 = arith.addi %0, %c18_i32_129 : i32
    %c0_i32_130 = arith.constant 0 : i32
    %167 = arith.addi %166, %c0_i32_130 : i32
    %c0_131 = arith.constant 0 : index
    %168 = arith.index_cast %167 : i32 to index
    %c30_132 = arith.constant 30 : index
    %c0_133 = arith.constant 0 : index
    %169 = vector.load %arg2[%c0_131, %168, %c30_132, %c0_133] : memref<1x52x52x8xbf16, #tpu.memory_space<vmem>>, vector<1x8x16x8xbf16>
    %170 = vector.shape_cast %169 : vector<1x8x16x8xbf16> to vector<8x16x8xbf16>
    %171 = vector.shape_cast %170 : vector<8x16x8xbf16> to vector<128x8xbf16>
    %c5_134 = arith.constant 5 : index
    %c0_135 = arith.constant 0 : index
    %c0_136 = arith.constant 0 : index
    %172 = vector.load %arg5[%c5_134, %c0_135, %c0_136] : memref<9x8x128xbf16, #tpu.memory_space<vmem>>, vector<1x8x128xbf16>
    %173 = vector.shape_cast %172 : vector<1x8x128xbf16> to vector<8x128xbf16>
    %cst_137 = arith.constant dense<0.000000e+00> : vector<128x128xf32>
    %174 = tpu.matmul %171, %173, %cst_137 {dimension_numbers = #tpu.dot_dimension_numbers<[1], [0], [0], [1], [0, 0, 1, 1], [], []>} : vector<128x8xbf16>, vector<8x128xbf16>, vector<128x128xf32> -> vector<128x128xf32>
    %175 = arith.addf %165, %174 : vector<128x128xf32>
    %c18_i32_138 = arith.constant 18 : i32
    %176 = arith.addi %0, %c18_i32_138 : i32
    %c12_i32 = arith.constant 12 : i32
    %177 = arith.addi %176, %c12_i32 : i32
    %c0_139 = arith.constant 0 : index
    %178 = arith.index_cast %177 : i32 to index
    %c6_140 = arith.constant 6 : index
    %c0_141 = arith.constant 0 : index
    %179 = vector.load %arg2[%c0_139, %178, %c6_140, %c0_141] : memref<1x52x52x8xbf16, #tpu.memory_space<vmem>>, vector<1x8x16x8xbf16>
    %180 = vector.shape_cast %179 : vector<1x8x16x8xbf16> to vector<8x16x8xbf16>
    %181 = vector.shape_cast %180 : vector<8x16x8xbf16> to vector<128x8xbf16>
    %c6_142 = arith.constant 6 : index
    %c0_143 = arith.constant 0 : index
    %c0_144 = arith.constant 0 : index
    %182 = vector.load %arg5[%c6_142, %c0_143, %c0_144] : memref<9x8x128xbf16, #tpu.memory_space<vmem>>, vector<1x8x128xbf16>
    %183 = vector.shape_cast %182 : vector<1x8x128xbf16> to vector<8x128xbf16>
    %cst_145 = arith.constant dense<0.000000e+00> : vector<128x128xf32>
    %184 = tpu.matmul %181, %183, %cst_145 {dimension_numbers = #tpu.dot_dimension_numbers<[1], [0], [0], [1], [0, 0, 1, 1], [], []>} : vector<128x8xbf16>, vector<8x128xbf16>, vector<128x128xf32> -> vector<128x128xf32>
    %185 = arith.addf %175, %184 : vector<128x128xf32>
    %c18_i32_146 = arith.constant 18 : i32
    %186 = arith.addi %0, %c18_i32_146 : i32
    %c12_i32_147 = arith.constant 12 : i32
    %187 = arith.addi %186, %c12_i32_147 : i32
    %c0_148 = arith.constant 0 : index
    %188 = arith.index_cast %187 : i32 to index
    %c18_149 = arith.constant 18 : index
    %c0_150 = arith.constant 0 : index
    %189 = vector.load %arg2[%c0_148, %188, %c18_149, %c0_150] : memref<1x52x52x8xbf16, #tpu.memory_space<vmem>>, vector<1x8x16x8xbf16>
    %190 = vector.shape_cast %189 : vector<1x8x16x8xbf16> to vector<8x16x8xbf16>
    %191 = vector.shape_cast %190 : vector<8x16x8xbf16> to vector<128x8xbf16>
    %c7_151 = arith.constant 7 : index
    %c0_152 = arith.constant 0 : index
    %c0_153 = arith.constant 0 : index
    %192 = vector.load %arg5[%c7_151, %c0_152, %c0_153] : memref<9x8x128xbf16, #tpu.memory_space<vmem>>, vector<1x8x128xbf16>
    %193 = vector.shape_cast %192 : vector<1x8x128xbf16> to vector<8x128xbf16>
    %cst_154 = arith.constant dense<0.000000e+00> : vector<128x128xf32>
    %194 = tpu.matmul %191, %193, %cst_154 {dimension_numbers = #tpu.dot_dimension_numbers<[1], [0], [0], [1], [0, 0, 1, 1], [], []>} : vector<128x8xbf16>, vector<8x128xbf16>, vector<128x128xf32> -> vector<128x128xf32>
    %195 = arith.addf %185, %194 : vector<128x128xf32>
    %c18_i32_155 = arith.constant 18 : i32
    %196 = arith.addi %0, %c18_i32_155 : i32
    %c12_i32_156 = arith.constant 12 : i32
    %197 = arith.addi %196, %c12_i32_156 : i32
    %c0_157 = arith.constant 0 : index
    %198 = arith.index_cast %197 : i32 to index
    %c30_158 = arith.constant 30 : index
    %c0_159 = arith.constant 0 : index
    %199 = vector.load %arg2[%c0_157, %198, %c30_158, %c0_159] : memref<1x52x52x8xbf16, #tpu.memory_space<vmem>>, vector<1x8x16x8xbf16>
    %200 = vector.shape_cast %199 : vector<1x8x16x8xbf16> to vector<8x16x8xbf16>
    %201 = vector.shape_cast %200 : vector<8x16x8xbf16> to vector<128x8xbf16>
    %c8_160 = arith.constant 8 : index
    %c0_161 = arith.constant 0 : index
    %c0_162 = arith.constant 0 : index
    %202 = vector.load %arg5[%c8_160, %c0_161, %c0_162] : memref<9x8x128xbf16, #tpu.memory_space<vmem>>, vector<1x8x128xbf16>
    %203 = vector.shape_cast %202 : vector<1x8x128xbf16> to vector<8x128xbf16>
    %cst_163 = arith.constant dense<0.000000e+00> : vector<128x128xf32>
    %204 = tpu.matmul %201, %203, %cst_163 {dimension_numbers = #tpu.dot_dimension_numbers<[1], [0], [0], [1], [0, 0, 1, 1], [], []>} : vector<128x8xbf16>, vector<8x128xbf16>, vector<128x128xf32> -> vector<128x128xf32>
    %205 = arith.addf %195, %204 : vector<128x128xf32>
    %c2_164 = arith.constant 2 : index
    %c0_165 = arith.constant 0 : index
    %206 = vector.load %arg8[%c2_164, %c0_165] : memref<5x128xf32, #tpu.memory_space<vmem>>, vector<1x128xf32>
    %207 = vector.broadcast %206 : vector<1x128xf32> to vector<128x128xf32>
    %208 = arith.addf %205, %207 : vector<128x128xf32>
    %cst_166 = arith.constant 0.000000e+00 : f32
    %209 = vector.broadcast %cst_166 : f32 to vector<128x128xf32>
    %210 = arith.maximumf %208, %209 : vector<128x128xf32>
    %211 = arith.truncf %210 : vector<128x128xf32> to vector<128x128xbf16>
    %c2_167 = arith.constant 2 : index
    %c0_168 = arith.constant 0 : index
    %c0_169 = arith.constant 0 : index
    %212 = vector.load %arg7[%c2_167, %c0_168, %c0_169] : memref<4x128x128xbf16, #tpu.memory_space<vmem>>, vector<1x128x128xbf16>
    %213 = vector.shape_cast %212 : vector<1x128x128xbf16> to vector<128x128xbf16>
    %cst_170 = arith.constant dense<0.000000e+00> : vector<128x128xf32>
    %214 = tpu.matmul %211, %213, %cst_170 {dimension_numbers = #tpu.dot_dimension_numbers<[1], [0], [0], [1], [0, 0, 1, 1], [], []>} : vector<128x128xbf16>, vector<128x128xbf16>, vector<128x128xf32> -> vector<128x128xf32>
    %215 = arith.addf %116, %214 : vector<128x128xf32>
    %c18_i32_171 = arith.constant 18 : i32
    %216 = arith.addi %0, %c18_i32_171 : i32
    %c-18_i32 = arith.constant -18 : i32
    %217 = arith.addi %216, %c-18_i32 : i32
    %c0_172 = arith.constant 0 : index
    %218 = arith.index_cast %217 : i32 to index
    %c0_173 = arith.constant 0 : index
    %c0_174 = arith.constant 0 : index
    %219 = vector.load %arg2[%c0_172, %218, %c0_173, %c0_174] : memref<1x52x52x8xbf16, #tpu.memory_space<vmem>>, vector<1x8x16x8xbf16>
    %220 = vector.shape_cast %219 : vector<1x8x16x8xbf16> to vector<8x16x8xbf16>
    %221 = vector.shape_cast %220 : vector<8x16x8xbf16> to vector<128x8xbf16>
    %c0_175 = arith.constant 0 : index
    %c0_176 = arith.constant 0 : index
    %c0_177 = arith.constant 0 : index
    %222 = vector.load %arg6[%c0_175, %c0_176, %c0_177] : memref<9x8x128xbf16, #tpu.memory_space<vmem>>, vector<1x8x128xbf16>
    %223 = vector.shape_cast %222 : vector<1x8x128xbf16> to vector<8x128xbf16>
    %cst_178 = arith.constant dense<0.000000e+00> : vector<128x128xf32>
    %224 = tpu.matmul %221, %223, %cst_178 {dimension_numbers = #tpu.dot_dimension_numbers<[1], [0], [0], [1], [0, 0, 1, 1], [], []>} : vector<128x8xbf16>, vector<8x128xbf16>, vector<128x128xf32> -> vector<128x128xf32>
    %c18_i32_179 = arith.constant 18 : i32
    %225 = arith.addi %0, %c18_i32_179 : i32
    %c-18_i32_180 = arith.constant -18 : i32
    %226 = arith.addi %225, %c-18_i32_180 : i32
    %c0_181 = arith.constant 0 : index
    %227 = arith.index_cast %226 : i32 to index
    %c18_182 = arith.constant 18 : index
    %c0_183 = arith.constant 0 : index
    %228 = vector.load %arg2[%c0_181, %227, %c18_182, %c0_183] : memref<1x52x52x8xbf16, #tpu.memory_space<vmem>>, vector<1x8x16x8xbf16>
    %229 = vector.shape_cast %228 : vector<1x8x16x8xbf16> to vector<8x16x8xbf16>
    %230 = vector.shape_cast %229 : vector<8x16x8xbf16> to vector<128x8xbf16>
    %c1_184 = arith.constant 1 : index
    %c0_185 = arith.constant 0 : index
    %c0_186 = arith.constant 0 : index
    %231 = vector.load %arg6[%c1_184, %c0_185, %c0_186] : memref<9x8x128xbf16, #tpu.memory_space<vmem>>, vector<1x8x128xbf16>
    %232 = vector.shape_cast %231 : vector<1x8x128xbf16> to vector<8x128xbf16>
    %cst_187 = arith.constant dense<0.000000e+00> : vector<128x128xf32>
    %233 = tpu.matmul %230, %232, %cst_187 {dimension_numbers = #tpu.dot_dimension_numbers<[1], [0], [0], [1], [0, 0, 1, 1], [], []>} : vector<128x8xbf16>, vector<8x128xbf16>, vector<128x128xf32> -> vector<128x128xf32>
    %234 = arith.addf %224, %233 : vector<128x128xf32>
    %c18_i32_188 = arith.constant 18 : i32
    %235 = arith.addi %0, %c18_i32_188 : i32
    %c-18_i32_189 = arith.constant -18 : i32
    %236 = arith.addi %235, %c-18_i32_189 : i32
    %c0_190 = arith.constant 0 : index
    %237 = arith.index_cast %236 : i32 to index
    %c36 = arith.constant 36 : index
    %c0_191 = arith.constant 0 : index
    %238 = vector.load %arg2[%c0_190, %237, %c36, %c0_191] : memref<1x52x52x8xbf16, #tpu.memory_space<vmem>>, vector<1x8x16x8xbf16>
    %239 = vector.shape_cast %238 : vector<1x8x16x8xbf16> to vector<8x16x8xbf16>
    %240 = vector.shape_cast %239 : vector<8x16x8xbf16> to vector<128x8xbf16>
    %c2_192 = arith.constant 2 : index
    %c0_193 = arith.constant 0 : index
    %c0_194 = arith.constant 0 : index
    %241 = vector.load %arg6[%c2_192, %c0_193, %c0_194] : memref<9x8x128xbf16, #tpu.memory_space<vmem>>, vector<1x8x128xbf16>
    %242 = vector.shape_cast %241 : vector<1x8x128xbf16> to vector<8x128xbf16>
    %cst_195 = arith.constant dense<0.000000e+00> : vector<128x128xf32>
    %243 = tpu.matmul %240, %242, %cst_195 {dimension_numbers = #tpu.dot_dimension_numbers<[1], [0], [0], [1], [0, 0, 1, 1], [], []>} : vector<128x8xbf16>, vector<8x128xbf16>, vector<128x128xf32> -> vector<128x128xf32>
    %244 = arith.addf %234, %243 : vector<128x128xf32>
    %c18_i32_196 = arith.constant 18 : i32
    %245 = arith.addi %0, %c18_i32_196 : i32
    %c0_i32_197 = arith.constant 0 : i32
    %246 = arith.addi %245, %c0_i32_197 : i32
    %c0_198 = arith.constant 0 : index
    %247 = arith.index_cast %246 : i32 to index
    %c0_199 = arith.constant 0 : index
    %c0_200 = arith.constant 0 : index
    %248 = vector.load %arg2[%c0_198, %247, %c0_199, %c0_200] : memref<1x52x52x8xbf16, #tpu.memory_space<vmem>>, vector<1x8x16x8xbf16>
    %249 = vector.shape_cast %248 : vector<1x8x16x8xbf16> to vector<8x16x8xbf16>
    %250 = vector.shape_cast %249 : vector<8x16x8xbf16> to vector<128x8xbf16>
    %c3_201 = arith.constant 3 : index
    %c0_202 = arith.constant 0 : index
    %c0_203 = arith.constant 0 : index
    %251 = vector.load %arg6[%c3_201, %c0_202, %c0_203] : memref<9x8x128xbf16, #tpu.memory_space<vmem>>, vector<1x8x128xbf16>
    %252 = vector.shape_cast %251 : vector<1x8x128xbf16> to vector<8x128xbf16>
    %cst_204 = arith.constant dense<0.000000e+00> : vector<128x128xf32>
    %253 = tpu.matmul %250, %252, %cst_204 {dimension_numbers = #tpu.dot_dimension_numbers<[1], [0], [0], [1], [0, 0, 1, 1], [], []>} : vector<128x8xbf16>, vector<8x128xbf16>, vector<128x128xf32> -> vector<128x128xf32>
    %254 = arith.addf %244, %253 : vector<128x128xf32>
    %c18_i32_205 = arith.constant 18 : i32
    %255 = arith.addi %0, %c18_i32_205 : i32
    %c0_i32_206 = arith.constant 0 : i32
    %256 = arith.addi %255, %c0_i32_206 : i32
    %c0_207 = arith.constant 0 : index
    %257 = arith.index_cast %256 : i32 to index
    %c18_208 = arith.constant 18 : index
    %c0_209 = arith.constant 0 : index
    %258 = vector.load %arg2[%c0_207, %257, %c18_208, %c0_209] : memref<1x52x52x8xbf16, #tpu.memory_space<vmem>>, vector<1x8x16x8xbf16>
    %259 = vector.shape_cast %258 : vector<1x8x16x8xbf16> to vector<8x16x8xbf16>
    %260 = vector.shape_cast %259 : vector<8x16x8xbf16> to vector<128x8xbf16>
    %c4_210 = arith.constant 4 : index
    %c0_211 = arith.constant 0 : index
    %c0_212 = arith.constant 0 : index
    %261 = vector.load %arg6[%c4_210, %c0_211, %c0_212] : memref<9x8x128xbf16, #tpu.memory_space<vmem>>, vector<1x8x128xbf16>
    %262 = vector.shape_cast %261 : vector<1x8x128xbf16> to vector<8x128xbf16>
    %cst_213 = arith.constant dense<0.000000e+00> : vector<128x128xf32>
    %263 = tpu.matmul %260, %262, %cst_213 {dimension_numbers = #tpu.dot_dimension_numbers<[1], [0], [0], [1], [0, 0, 1, 1], [], []>} : vector<128x8xbf16>, vector<8x128xbf16>, vector<128x128xf32> -> vector<128x128xf32>
    %264 = arith.addf %254, %263 : vector<128x128xf32>
    %c18_i32_214 = arith.constant 18 : i32
    %265 = arith.addi %0, %c18_i32_214 : i32
    %c0_i32_215 = arith.constant 0 : i32
    %266 = arith.addi %265, %c0_i32_215 : i32
    %c0_216 = arith.constant 0 : index
    %267 = arith.index_cast %266 : i32 to index
    %c36_217 = arith.constant 36 : index
    %c0_218 = arith.constant 0 : index
    %268 = vector.load %arg2[%c0_216, %267, %c36_217, %c0_218] : memref<1x52x52x8xbf16, #tpu.memory_space<vmem>>, vector<1x8x16x8xbf16>
    %269 = vector.shape_cast %268 : vector<1x8x16x8xbf16> to vector<8x16x8xbf16>
    %270 = vector.shape_cast %269 : vector<8x16x8xbf16> to vector<128x8xbf16>
    %c5_219 = arith.constant 5 : index
    %c0_220 = arith.constant 0 : index
    %c0_221 = arith.constant 0 : index
    %271 = vector.load %arg6[%c5_219, %c0_220, %c0_221] : memref<9x8x128xbf16, #tpu.memory_space<vmem>>, vector<1x8x128xbf16>
    %272 = vector.shape_cast %271 : vector<1x8x128xbf16> to vector<8x128xbf16>
    %cst_222 = arith.constant dense<0.000000e+00> : vector<128x128xf32>
    %273 = tpu.matmul %270, %272, %cst_222 {dimension_numbers = #tpu.dot_dimension_numbers<[1], [0], [0], [1], [0, 0, 1, 1], [], []>} : vector<128x8xbf16>, vector<8x128xbf16>, vector<128x128xf32> -> vector<128x128xf32>
    %274 = arith.addf %264, %273 : vector<128x128xf32>
    %c18_i32_223 = arith.constant 18 : i32
    %275 = arith.addi %0, %c18_i32_223 : i32
    %c18_i32_224 = arith.constant 18 : i32
    %276 = arith.addi %275, %c18_i32_224 : i32
    %c0_225 = arith.constant 0 : index
    %277 = arith.index_cast %276 : i32 to index
    %c0_226 = arith.constant 0 : index
    %c0_227 = arith.constant 0 : index
    %278 = vector.load %arg2[%c0_225, %277, %c0_226, %c0_227] : memref<1x52x52x8xbf16, #tpu.memory_space<vmem>>, vector<1x8x16x8xbf16>
    %279 = vector.shape_cast %278 : vector<1x8x16x8xbf16> to vector<8x16x8xbf16>
    %280 = vector.shape_cast %279 : vector<8x16x8xbf16> to vector<128x8xbf16>
    %c6_228 = arith.constant 6 : index
    %c0_229 = arith.constant 0 : index
    %c0_230 = arith.constant 0 : index
    %281 = vector.load %arg6[%c6_228, %c0_229, %c0_230] : memref<9x8x128xbf16, #tpu.memory_space<vmem>>, vector<1x8x128xbf16>
    %282 = vector.shape_cast %281 : vector<1x8x128xbf16> to vector<8x128xbf16>
    %cst_231 = arith.constant dense<0.000000e+00> : vector<128x128xf32>
    %283 = tpu.matmul %280, %282, %cst_231 {dimension_numbers = #tpu.dot_dimension_numbers<[1], [0], [0], [1], [0, 0, 1, 1], [], []>} : vector<128x8xbf16>, vector<8x128xbf16>, vector<128x128xf32> -> vector<128x128xf32>
    %284 = arith.addf %274, %283 : vector<128x128xf32>
    %c18_i32_232 = arith.constant 18 : i32
    %285 = arith.addi %0, %c18_i32_232 : i32
    %c18_i32_233 = arith.constant 18 : i32
    %286 = arith.addi %285, %c18_i32_233 : i32
    %c0_234 = arith.constant 0 : index
    %287 = arith.index_cast %286 : i32 to index
    %c18_235 = arith.constant 18 : index
    %c0_236 = arith.constant 0 : index
    %288 = vector.load %arg2[%c0_234, %287, %c18_235, %c0_236] : memref<1x52x52x8xbf16, #tpu.memory_space<vmem>>, vector<1x8x16x8xbf16>
    %289 = vector.shape_cast %288 : vector<1x8x16x8xbf16> to vector<8x16x8xbf16>
    %290 = vector.shape_cast %289 : vector<8x16x8xbf16> to vector<128x8xbf16>
    %c7_237 = arith.constant 7 : index
    %c0_238 = arith.constant 0 : index
    %c0_239 = arith.constant 0 : index
    %291 = vector.load %arg6[%c7_237, %c0_238, %c0_239] : memref<9x8x128xbf16, #tpu.memory_space<vmem>>, vector<1x8x128xbf16>
    %292 = vector.shape_cast %291 : vector<1x8x128xbf16> to vector<8x128xbf16>
    %cst_240 = arith.constant dense<0.000000e+00> : vector<128x128xf32>
    %293 = tpu.matmul %290, %292, %cst_240 {dimension_numbers = #tpu.dot_dimension_numbers<[1], [0], [0], [1], [0, 0, 1, 1], [], []>} : vector<128x8xbf16>, vector<8x128xbf16>, vector<128x128xf32> -> vector<128x128xf32>
    %294 = arith.addf %284, %293 : vector<128x128xf32>
    %c18_i32_241 = arith.constant 18 : i32
    %295 = arith.addi %0, %c18_i32_241 : i32
    %c18_i32_242 = arith.constant 18 : i32
    %296 = arith.addi %295, %c18_i32_242 : i32
    %c0_243 = arith.constant 0 : index
    %297 = arith.index_cast %296 : i32 to index
    %c36_244 = arith.constant 36 : index
    %c0_245 = arith.constant 0 : index
    %298 = vector.load %arg2[%c0_243, %297, %c36_244, %c0_245] : memref<1x52x52x8xbf16, #tpu.memory_space<vmem>>, vector<1x8x16x8xbf16>
    %299 = vector.shape_cast %298 : vector<1x8x16x8xbf16> to vector<8x16x8xbf16>
    %300 = vector.shape_cast %299 : vector<8x16x8xbf16> to vector<128x8xbf16>
    %c8_246 = arith.constant 8 : index
    %c0_247 = arith.constant 0 : index
    %c0_248 = arith.constant 0 : index
    %301 = vector.load %arg6[%c8_246, %c0_247, %c0_248] : memref<9x8x128xbf16, #tpu.memory_space<vmem>>, vector<1x8x128xbf16>
    %302 = vector.shape_cast %301 : vector<1x8x128xbf16> to vector<8x128xbf16>
    %cst_249 = arith.constant dense<0.000000e+00> : vector<128x128xf32>
    %303 = tpu.matmul %300, %302, %cst_249 {dimension_numbers = #tpu.dot_dimension_numbers<[1], [0], [0], [1], [0, 0, 1, 1], [], []>} : vector<128x8xbf16>, vector<8x128xbf16>, vector<128x128xf32> -> vector<128x128xf32>
    %304 = arith.addf %294, %303 : vector<128x128xf32>
    %c3_250 = arith.constant 3 : index
    %c0_251 = arith.constant 0 : index
    %305 = vector.load %arg8[%c3_250, %c0_251] : memref<5x128xf32, #tpu.memory_space<vmem>>, vector<1x128xf32>
    %306 = vector.broadcast %305 : vector<1x128xf32> to vector<128x128xf32>
    %307 = arith.addf %304, %306 : vector<128x128xf32>
    %cst_252 = arith.constant 0.000000e+00 : f32
    %308 = vector.broadcast %cst_252 : f32 to vector<128x128xf32>
    %309 = arith.maximumf %307, %308 : vector<128x128xf32>
    %310 = arith.truncf %309 : vector<128x128xf32> to vector<128x128xbf16>
    %c3_253 = arith.constant 3 : index
    %c0_254 = arith.constant 0 : index
    %c0_255 = arith.constant 0 : index
    %311 = vector.load %arg7[%c3_253, %c0_254, %c0_255] : memref<4x128x128xbf16, #tpu.memory_space<vmem>>, vector<1x128x128xbf16>
    %312 = vector.shape_cast %311 : vector<1x128x128xbf16> to vector<128x128xbf16>
    %cst_256 = arith.constant dense<0.000000e+00> : vector<128x128xf32>
    %313 = tpu.matmul %310, %312, %cst_256 {dimension_numbers = #tpu.dot_dimension_numbers<[1], [0], [0], [1], [0, 0, 1, 1], [], []>} : vector<128x128xbf16>, vector<128x128xbf16>, vector<128x128xf32> -> vector<128x128xf32>
    %314 = arith.addf %215, %313 : vector<128x128xf32>
    %c0_257 = arith.constant 0 : index
    %c0_258 = arith.constant 0 : index
    %c0_259 = arith.constant 0 : index
    %315 = vector.load %arg9[%c0_257, %c0_258, %c0_259] : memref<1x1x128xf32, #tpu.memory_space<vmem>>, vector<1x1x128xf32>
    %316 = vector.shape_cast %315 : vector<1x1x128xf32> to vector<1x128xf32>
    %317 = vector.broadcast %316 : vector<1x128xf32> to vector<128x128xf32>
    %318 = arith.addf %314, %317 : vector<128x128xf32>
    %c4_260 = arith.constant 4 : index
    %c0_261 = arith.constant 0 : index
    %319 = vector.load %arg8[%c4_260, %c0_261] : memref<5x128xf32, #tpu.memory_space<vmem>>, vector<1x128xf32>
    %320 = vector.broadcast %319 : vector<1x128xf32> to vector<128x128xf32>
    %321 = arith.addf %318, %320 : vector<128x128xf32>
    %cst_262 = arith.constant 0.000000e+00 : f32
    %322 = vector.broadcast %cst_262 : f32 to vector<128x128xf32>
    %323 = arith.maximumf %321, %322 : vector<128x128xf32>
    %c0_263 = arith.constant 0 : index
    %c0_264 = arith.constant 0 : index
    %c0_265 = arith.constant 0 : index
    %324 = vector.load %arg10[%c0_263, %c0_264, %c0_265] : memref<1x128x128xf32, #tpu.memory_space<vmem>>, vector<1x128x128xf32>
    %325 = vector.shape_cast %324 : vector<1x128x128xf32> to vector<128x128xf32>
    %326 = vector.shape_cast %323 : vector<128x128xf32> to vector<1x128x128xf32>
    tpu.vector_store %arg10[%c0_263, %c0_264, %c0_265], %326 {strides = array<i32>} : memref<1x128x128xf32, #tpu.memory_space<vmem>>, vector<1x128x128xf32>,
    return
  }
  func.func @transform_0(%arg0: i32, %arg1: i32) -> (i32, i32, i32, i32) {
    %c0_i32 = arith.constant 0 : i32
    %c0_i32_0 = arith.constant 0 : i32
    %c0_i32_1 = arith.constant 0 : i32
    %c0_i32_2 = arith.constant 0 : i32
    return %arg0, %c0_i32, %c0_i32_0, %c0_i32_1 : i32, i32, i32, i32
  }
  func.func @transform_1(%arg0: i32, %arg1: i32) -> (i32, i32) {
    %c0_i32 = arith.constant 0 : i32
    %c0_i32_0 = arith.constant 0 : i32
    %c0_i32_1 = arith.constant 0 : i32
    return %c0_i32, %c0_i32_0 : i32, i32
  }
  func.func @transform_2(%arg0: i32, %arg1: i32) -> (i32, i32, i32) {
    %c0_i32 = arith.constant 0 : i32
    %c0_i32_0 = arith.constant 0 : i32
    %c0_i32_1 = arith.constant 0 : i32
    %c0_i32_2 = arith.constant 0 : i32
    return %c0_i32, %c0_i32_0, %c0_i32_1 : i32, i32, i32
  }
  func.func @transform_3(%arg0: i32, %arg1: i32) -> (i32, i32, i32) {
    %c0_i32 = arith.constant 0 : i32
    %c0_i32_0 = arith.constant 0 : i32
    %c0_i32_1 = arith.constant 0 : i32
    %c0_i32_2 = arith.constant 0 : i32
    return %c0_i32, %c0_i32_0, %c0_i32_1 : i32, i32, i32
  }
  func.func @transform_4(%arg0: i32, %arg1: i32) -> (i32, i32, i32) {
    %c0_i32 = arith.constant 0 : i32
    %c0_i32_0 = arith.constant 0 : i32
    %c0_i32_1 = arith.constant 0 : i32
    %c0_i32_2 = arith.constant 0 : i32
    return %c0_i32, %c0_i32_0, %c0_i32_1 : i32, i32, i32
  }
  func.func @transform_5(%arg0: i32, %arg1: i32) -> (i32, i32, i32) {
    %c0_i32 = arith.constant 0 : i32
    %c0_i32_0 = arith.constant 0 : i32
    %c0_i32_1 = arith.constant 0 : i32
    %c0_i32_2 = arith.constant 0 : i32
    return %c0_i32, %c0_i32_0, %c0_i32_1 : i32, i32, i32
  }
  func.func @transform_6(%arg0: i32, %arg1: i32) -> (i32, i32) {
    %c0_i32 = arith.constant 0 : i32
    %c0_i32_0 = arith.constant 0 : i32
    %c0_i32_1 = arith.constant 0 : i32
    return %c0_i32, %c0_i32_0 : i32, i32
  }
  func.func @transform_7(%arg0: i32, %arg1: i32) -> (i32, i32, i32) {
    %c0_i32 = arith.constant 0 : i32
    %c0_i32_0 = arith.constant 0 : i32
    %c0_i32_1 = arith.constant 0 : i32
    return %arg0, %c0_i32, %c0_i32_0 : i32, i32, i32
  }
  func.func @transform_8(%arg0: i32, %arg1: i32) -> (i32, i32, i32) {
    %c0_i32 = arith.constant 0 : i32
    %c0_i32_0 = arith.constant 0 : i32
    return %arg0, %arg1, %c0_i32 : i32, i32, i32
  }
}

</mosaic_0001>

<llo_original>
// kernel: assp_forward.1
$region0: #{assp_forward.1}
  #allocation0 [shape = 'u32[]', space=smem, size = 0x4, offset = 0x4, fixed_abs, tag = 'smem constant byte address 0x4 - core index']
  #allocation1 [shape = 'u32[144,128]{1,0:T(1,128)}', space=vmem, size = 0x12000, scoped, tag = 'internal scratch']
  %s0 = inlined_call_operand.vmem [shape: bf16[2,52,52,8], index: 0, kind: input, shape index: {}]
  %s1 = inlined_call_operand.vmem [shape: bf16[8,128], index: 1, kind: input, shape index: {}]
  %s2 = inlined_call_operand.vmem [shape: bf16[9,8,128], index: 2, kind: input, shape index: {}]
  %s3 = inlined_call_operand.vmem [shape: bf16[9,8,128], index: 3, kind: input, shape index: {}]
  %s4 = inlined_call_operand.vmem [shape: bf16[9,8,128], index: 4, kind: input, shape index: {}]
  %s5 = inlined_call_operand.vmem [shape: bf16[4,128,128], index: 5, kind: input, shape index: {}]
  %s6 = inlined_call_operand.vmem [shape: f32[5,128], index: 6, kind: input, shape index: {}]
  %s7 = inlined_call_operand.vmem [shape: f32[2,1,128], index: 7, kind: input, shape index: {}]
  %s8 = inlined_call_operand.hbm [shape: f32[2,256,128], index: 8, kind: output, shape index: {}]
  %s9 = sld [smem:[#allocation0]]
  $region65: #{assp_forward.1} parent=0
    _
  %s11 = ssub.s32 1, %s9
  %s12 = scalar_select 0, %s11, %s9
  $region1: #{assp_forward.1} parent=0
    #allocation2 [shape = 'u8[131072]{0}', space=vmem, size = 0x20000, scoped, tag = 'output window, operand 0']
    #allocation3 [shape = 's32[2]{0}', space=sflag, size = 0x8, scoped, tag = 'scoped memory for assp_forward.1']
    %13 = vsyncpa [#allocation3], 0
    %s14 = scalar_lea.sflag [#allocation3], 1
    %15 = vsyncpa %s14, 0
    loop: start=0, step=1, limit=6
    $region2: #{assp_forward.1} parent=1 // loop_pre_header
      _
    $region3: #{assp_forward.1} parent=1 // loop_header
      %s17 = sphi 0, %s21
      %p18 = scmp.ge.s32.totalorder %s17, 6
      %s24 = sphi 0, %s36
      %s25 = sphi 0, %s32
      %s26 = sphi 0, %s24
      %s27 = sphi 0, %s25
      %s28 = sphi 0, %s26
      %s29 = sphi 0, %s27
      %s39 = sphi 0, %s41
      %s42 = sphi 0, %s39
      %s43 = sphi 0, %s42
      %s59 = sphi 0, %s43
      %s63 = sphi 0, %s63
      %s65 = sphi 0, %s63
      %s66 = sphi 0, %s65
      %s80 = sphi 0, %s66
      %s84 = sphi 0, %s84
      %s86 = sphi 0, %s84
      %s87 = sphi 0, %s86
      %s101 = sphi 0, %s87
      %s105 = sphi 0, %s105
      %s107 = sphi 0, %s105
      %s108 = sphi 0, %s107
      %s122 = sphi 0, %s108
      %s126 = sphi 0, %s126
      %s128 = sphi 0, %s126
      %s129 = sphi 0, %s128
      %s143 = sphi 0, %s129
      %s147 = sphi 0, %s147
      %s149 = sphi 0, %s147
      %s150 = sphi 0, %s149
      %s164 = sphi 0, %s150
      %s168 = sphi 0, %s168
      %s170 = sphi 0, %s168
      %s171 = sphi 0, %s170
      %s185 = sphi 0, %s171
      %s191 = sphi 0, %s193
      %s194 = sphi 0, %s191
      %s195 = sphi 0, %s194
      %s211 = sphi 0, %s195
      %s219 = sphi 0, %s221
      %s222 = sphi 0, %s219
      %s223 = sphi 0, %s222
      %s239 = sphi 0, %s223
    $region4: #{assp_forward.1} parent=1 // loop_header_branch
      %20 = sbr.rel (%p18) target = $region8
    $region5: #{assp_forward.1} parent=1 // loop_body
      %s22 = ssub.s32 %s17, 1
      %s23 = ssub.s32 %s17, 2
      %s30 = sadd.s32 1, %s25
      %p31 = scmp.ge.s32.totalorder %s30, 2
      %s32 = scalar_select %p31, 0, %s30
      %s33 = sadd.s32 1, %s24
      %s34 = scalar_select %p31, %s33, %s24
      %p35 = scmp.ge.s32.totalorder %s34, 2
      %s36 = scalar_select %p35, 0, %s34
      %s37 = ssub.s32 %s24, %s36
      %p38 = scmp.eq.s32.totalorder %s37, 0
      %s40 = sadd.s32 %s39, 1
      %s41 = scalar_select %p38, %s39, %s40
      %p44 = pneg %p38
      %p45 = scmp.eq.s32.totalorder %s17, 3
      %p46 = por %p44, %p45
      %p47 = scmp.ne.s32.totalorder %s39, %s42
      %p48 = scmp.eq.s32.totalorder %s17, 0
      %p49 = por %p47, %p48
      %p50 = scmp.ne.s32.totalorder %s39, %s42
      %p51 = scmp.eq.s32.totalorder %s22, 3
      %p52 = por %p50, %p51
      %p53 = scmp.ne.s32.totalorder %s42, %s43
      %p54 = scmp.eq.s32.totalorder %s22, 0
      %p55 = por %p53, %p54
      %p56 = scmp.ne.s32.totalorder %s42, %s43
      %p57 = scmp.eq.s32.totalorder %s23, 3
      %p58 = por %p56, %p57
      %p60 = scmp.ne.s32.totalorder %s43, %s59
      %p61 = scmp.eq.s32.totalorder %s23, 0
      %p62 = por %p60, %p61
      %s64 = sadd.s32 %s63, 1
      %p67 = scmp.eq.s32.totalorder %s17, 3
      %p68 = scmp.ne.s32.totalorder %s63, %s65
      %p69 = scmp.eq.s32.totalorder %s17, 0
      %p70 = por %p68, %p69
      %p71 = scmp.ne.s32.totalorder %s63, %s65
      %p72 = scmp.eq.s32.totalorder %s22, 3
      %p73 = por %p71, %p72
      %p74 = scmp.ne.s32.totalorder %s65, %s66
      %p75 = scmp.eq.s32.totalorder %s22, 0
      %p76 = por %p74, %p75
      %p77 = scmp.ne.s32.totalorder %s65, %s66
      %p78 = scmp.eq.s32.totalorder %s23, 3
      %p79 = por %p77, %p78
      %p81 = scmp.ne.s32.totalorder %s66, %s80
      %p82 = scmp.eq.s32.totalorder %s23, 0
      %p83 = por %p81, %p82
      %s85 = sadd.s32 %s84, 1
      %p88 = scmp.eq.s32.totalorder %s17, 3
      %p89 = scmp.ne.s32.totalorder %s84, %s86
      %p90 = scmp.eq.s32.totalorder %s17, 0
      %p91 = por %p89, %p90
      %p92 = scmp.ne.s32.totalorder %s84, %s86
      %p93 = scmp.eq.s32.totalorder %s22, 3
      %p94 = por %p92, %p93
      %p95 = scmp.ne.s32.totalorder %s86, %s87
      %p96 = scmp.eq.s32.totalorder %s22, 0
      %p97 = por %p95, %p96
      %p98 = scmp.ne.s32.totalorder %s86, %s87
      %p99 = scmp.eq.s32.totalorder %s23, 3
      %p100 = por %p98, %p99
      %p102 = scmp.ne.s32.totalorder %s87, %s101
      %p103 = scmp.eq.s32.totalorder %s23, 0
      %p104 = por %p102, %p103
      %s106 = sadd.s32 %s105, 1
      %p109 = scmp.eq.s32.totalorder %s17, 3
      %p110 = scmp.ne.s32.totalorder %s105, %s107
      %p111 = scmp.eq.s32.totalorder %s17, 0
      %p112 = por %p110, %p111
      %p113 = scmp.ne.s32.totalorder %s105, %s107
      %p114 = scmp.eq.s32.totalorder %s22, 3
      %p115 = por %p113, %p114
      %p116 = scmp.ne.s32.totalorder %s107, %s108
      %p117 = scmp.eq.s32.totalorder %s22, 0
      %p118 = por %p116, %p117
      %p119 = scmp.ne.s32.totalorder %s107, %s108
      %p120 = scmp.eq.s32.totalorder %s23, 3
      %p121 = por %p119, %p120
      %p123 = scmp.ne.s32.totalorder %s108, %s122
      %p124 = scmp.eq.s32.totalorder %s23, 0
      %p125 = por %p123, %p124
      %s127 = sadd.s32 %s126, 1
      %p130 = scmp.eq.s32.totalorder %s17, 3
      %p131 = scmp.ne.s32.totalorder %s126, %s128
      %p132 = scmp.eq.s32.totalorder %s17, 0
      %p133 = por %p131, %p132
      %p134 = scmp.ne.s32.totalorder %s126, %s128
      %p135 = scmp.eq.s32.totalorder %s22, 3
      %p136 = por %p134, %p135
      %p137 = scmp.ne.s32.totalorder %s128, %s129
      %p138 = scmp.eq.s32.totalorder %s22, 0
      %p139 = por %p137, %p138
      %p140 = scmp.ne.s32.totalorder %s128, %s129
      %p141 = scmp.eq.s32.totalorder %s23, 3
      %p142 = por %p140, %p141
      %p144 = scmp.ne.s32.totalorder %s129, %s143
      %p145 = scmp.eq.s32.totalorder %s23, 0
      %p146 = por %p144, %p145
      %s148 = sadd.s32 %s147, 1
      %p151 = scmp.eq.s32.totalorder %s17, 3
      %p152 = scmp.ne.s32.totalorder %s147, %s149
      %p153 = scmp.eq.s32.totalorder %s17, 0
      %p154 = por %p152, %p153
      %p155 = scmp.ne.s32.totalorder %s147, %s149
      %p156 = scmp.eq.s32.totalorder %s22, 3
      %p157 = por %p155, %p156
      %p158 = scmp.ne.s32.totalorder %s149, %s150
      %p159 = scmp.eq.s32.totalorder %s22, 0
      %p160 = por %p158, %p159
      %p161 = scmp.ne.s32.totalorder %s149, %s150
      %p162 = scmp.eq.s32.totalorder %s23, 3
      %p163 = por %p161, %p162
      %p165 = scmp.ne.s32.totalorder %s150, %s164
      %p166 = scmp.eq.s32.totalorder %s23, 0
      %p167 = por %p165, %p166
      %s169 = sadd.s32 %s168, 1
      %p172 = scmp.eq.s32.totalorder %s17, 3
      %p173 = scmp.ne.s32.totalorder %s168, %s170
      %p174 = scmp.eq.s32.totalorder %s17, 0
      %p175 = por %p173, %p174
      %p176 = scmp.ne.s32.totalorder %s168, %s170
      %p177 = scmp.eq.s32.totalorder %s22, 3
      %p178 = por %p176, %p177
      %p179 = scmp.ne.s32.totalorder %s170, %s171
      %p180 = scmp.eq.s32.totalorder %s22, 0
      %p181 = por %p179, %p180
      %p182 = scmp.ne.s32.totalorder %s170, %s171
      %p183 = scmp.eq.s32.totalorder %s23, 3
      %p184 = por %p182, %p183
      %p186 = scmp.ne.s32.totalorder %s171, %s185
      %p187 = scmp.eq.s32.totalorder %s23, 0
      %p188 = por %p186, %p187
      %s189 = ssub.s32 %s24, %s36
      %p190 = scmp.eq.s32.totalorder %s189, 0
      %s192 = sadd.s32 %s191, 1
      %s193 = scalar_select %p190, %s191, %s192
      %p196 = pneg %p190
      %p197 = scmp.eq.s32.totalorder %s17, 3
      %p198 = por %p196, %p197
      %p199 = scmp.ne.s32.totalorder %s191, %s194
      %p200 = scmp.eq.s32.totalorder %s17, 0
      %p201 = por %p199, %p200
      %p202 = scmp.ne.s32.totalorder %s191, %s194
      %p203 = scmp.eq.s32.totalorder %s22, 3
      %p204 = por %p202, %p203
      %p205 = scmp.ne.s32.totalorder %s194, %s195
      %p206 = scmp.eq.s32.totalorder %s22, 0
      %p207 = por %p205, %p206
      %p208 = scmp.ne.s32.totalorder %s194, %s195
      %p209 = scmp.eq.s32.totalorder %s23, 3
      %p210 = por %p208, %p209
      %p212 = scmp.ne.s32.totalorder %s195, %s211
      %p213 = scmp.eq.s32.totalorder %s23, 0
      %p214 = por %p212, %p213
      %s215 = ssub.s32 %s24, %s36
      %s216 = ssub.s32 %s25, %s32
      %s217 = sor.u32 %s215, %s216
      %p218 = scmp.eq.s32.totalorder %s217, 0
      %s220 = sadd.s32 %s219, 1
      %s221 = scalar_select %p218, %s219, %s220
      %p224 = pneg %p218
      %p225 = scmp.eq.s32.totalorder %s17, 3
      %p226 = por %p224, %p225
      %p227 = scmp.ne.s32.totalorder %s219, %s222
      %p228 = scmp.eq.s32.totalorder %s17, 0
      %p229 = por %p227, %p228
      %p230 = scmp.ne.s32.totalorder %s219, %s222
      %p231 = scmp.eq.s32.totalorder %s22, 3
      %p232 = por %p230, %p231
      %p233 = scmp.ne.s32.totalorder %s222, %s223
      %p234 = scmp.eq.s32.totalorder %s22, 0
      %p235 = por %p233, %p234
      %p236 = scmp.ne.s32.totalorder %s222, %s223
      %p237 = scmp.eq.s32.totalorder %s23, 3
      %p238 = por %p236, %p237
      %p240 = scmp.ne.s32.totalorder %s223, %s239
      %p241 = scmp.eq.s32.totalorder %s23, 0
      %p242 = por %p240, %p241
      %p243 = scmp.le.s32.totalorder 1, %s17
      %p244 = scmp.lt.s32.totalorder %s17, 5
      %p245 = pnand %p243, %p244
      %p246 = pneg %p245
      // Predicated region
      $region9: #{assp_forward.1} parent=5 // pred_check
        _
      $region10: #{assp_forward.1} parent=5 // pred_check_branch
        %248 = sbr.rel (%p245) target = $region12
      $region11: #{assp_forward.1} parent=5 // pred_region
        %s249 = ssub.s32 %s17, 1
        // Predicated region
        $region13: #{assp_forward.1} parent=11 // pred_check
          %p250 = pneg %p76
        $region14: #{assp_forward.1} parent=11 // pred_check_branch
          %252 = sbr.rel (%p250) target = $region16
        $region15: #{assp_forward.1} parent=11 // pred_region
          _
        $region16: #{assp_forward.1} parent=11 // pred_fallthru
          _
        // Predicated region
        $region17: #{assp_forward.1} parent=11 // pred_check
          %p253 = pneg %p97
        $region18: #{assp_forward.1} parent=11 // pred_check_branch
          %255 = sbr.rel (%p253) target = $region20
        $region19: #{assp_forward.1} parent=11 // pred_region
          _
        $region20: #{assp_forward.1} parent=11 // pred_fallthru
          _
        // Predicated region
        $region21: #{assp_forward.1} parent=11 // pred_check
          %p256 = pneg %p118
        $region22: #{assp_forward.1} parent=11 // pred_check_branch
          %258 = sbr.rel (%p256) target = $region24
        $region23: #{assp_forward.1} parent=11 // pred_region
          _
        $region24: #{assp_forward.1} parent=11 // pred_fallthru
          _
        // Predicated region
        $region25: #{assp_forward.1} parent=11 // pred_check
          %p259 = pneg %p139
        $region26: #{assp_forward.1} parent=11 // pred_check_branch
          %261 = sbr.rel (%p259) target = $region28
        $region27: #{assp_forward.1} parent=11 // pred_region
          _
        $region28: #{assp_forward.1} parent=11 // pred_fallthru
          _
        // Predicated region
        $region29: #{assp_forward.1} parent=11 // pred_check
          %p262 = pneg %p160
        $region30: #{assp_forward.1} parent=11 // pred_check_branch
          %264 = sbr.rel (%p262) target = $region32
        $region31: #{assp_forward.1} parent=11 // pred_region
          _
        $region32: #{assp_forward.1} parent=11 // pred_fallthru
          _
        // Predicated region
        $region33: #{assp_forward.1} parent=11 // pred_check
          %p265 = pneg %p181
        $region34: #{assp_forward.1} parent=11 // pred_check_branch
          %267 = sbr.rel (%p265) target = $region36
        $region35: #{assp_forward.1} parent=11 // pred_region
          _
        $region36: #{assp_forward.1} parent=11 // pred_fallthru
          _
      $region12: #{assp_forward.1} parent=5 // pred_fallthru
        _
      %p268 = scmp.lt.s32.totalorder %s17, 4
      // Predicated region
      $region37: #{assp_forward.1} parent=5 // pred_check
        %p269 = pneg %p268
      $region38: #{assp_forward.1} parent=5 // pred_check_branch
        %271 = sbr.rel (%p269) target = $region40
      $region39: #{assp_forward.1} parent=5 // pred_region
        // Predicated region
        $region41: #{assp_forward.1} parent=39 // pred_check
          %p272 = pneg %p49
        $region42: #{assp_forward.1} parent=39 // pred_check_branch
          %274 = sbr.rel (%p272) target = $region44
        $region43: #{assp_forward.1} parent=39 // pred_region
          %p275 = scmp.lt.s32.totalorder %s24, 1
          %s276 = scalar_select %p275, %s24, 1
          %s277 = smul.addr %s276, 364
          %s278 = smul.addr %s277, 4
          %s279 = scalar_lea.vmem %s0, %s278
        $region44: #{assp_forward.1} parent=39 // pred_fallthru
          _
        // Predicated region
        $region45: #{assp_forward.1} parent=39 // pred_check
          %p280 = pneg %p201
        $region46: #{assp_forward.1} parent=39 // pred_check_branch
          %282 = sbr.rel (%p280) target = $region48
        $region47: #{assp_forward.1} parent=39 // pred_region
          %p283 = scmp.lt.s32.totalorder %s24, 1
          %s284 = scalar_select %p283, %s24, 1
          %s285 = scalar_lea.vmem %s7, %s284
        $region48: #{assp_forward.1} parent=39 // pred_fallthru
          _
      $region40: #{assp_forward.1} parent=5 // pred_fallthru
        _
      %p286 = scmp.le.s32.totalorder 1, %s17
      %p287 = scmp.lt.s32.totalorder %s17, 5
      %p288 = pnand %p286, %p287
      %p289 = pneg %p288
      // Predicated region
      $region49: #{assp_forward.1} parent=5 // pred_check
        _
      $region50: #{assp_forward.1} parent=5 // pred_check_branch
        %291 = sbr.rel (%p288) target = $region52
      $region51: #{assp_forward.1} parent=5 // pred_region
        %s292 = ssub.s32 %s17, 1
        %p293 = scmp.lt.s32.totalorder %s26, 1
        %s294 = scalar_select %p293, %s26, 1
        %s295 = smul.addr %s294, 364
        %s296 = smul.addr %s295, 4
        %s297 = scalar_lea.vmem %s0, %s296
        %p298 = pneg %p55
        %p299 = pneg %p52
        %p300 = pneg %p76
        %p301 = pneg %p73
        %p302 = pneg %p97
        %p303 = pneg %p94
        %p304 = pneg %p118
        %p305 = pneg %p115
        %p306 = pneg %p139
        %p307 = pneg %p136
        %p308 = pneg %p160
        %p309 = pneg %p157
        %p310 = pneg %p181
        %p311 = pneg %p178
        %p312 = scmp.lt.s32.totalorder %s26, 1
        %s313 = scalar_select %p312, %s26, 1
        %s314 = scalar_lea.vmem %s7, %s313
        %p315 = pneg %p207
        %p316 = pneg %p204
        %p317 = pneg %p235
        %p318 = pneg %p232
        %s319 = sand.u32 %s222, 1
        %s320 = scalar_lea.sflag [#allocation3], %s319
        %s321 = sand.u32 %s222, 1
        %s322 = smul.addr %s321, 128
        %s323 = scalar_lea.vmem [#allocation2], %s322
        %p324 = scmp.lt.s32.totalorder %s26, 1
        %s325 = scalar_select %p324, %s26, 1
        %s326 = smul.addr %s325, 364
        %s327 = smul.addr %s326, 4
        %s328 = scalar_lea.vmem %s0, %s327
        %p329 = scmp.lt.s32.totalorder %s26, 1
        %s330 = scalar_select %p329, %s26, 1
        %s331 = scalar_lea.vmem %s7, %s330
        %s332 = smul.u32 16, %s27
        %s334 = smul.u32 %s27, 8
        %s335 = sadd.s32 %s334, 18
        %s336 = smul.u32 %s335, 7
        %s337 = smul.addr %s336, 4
        %s338 = scalar_lea.vmem %s328, %s337
        %v339 = vld [vmem:[%s338 + $0x8] sm:$0xe]
        %v340 = vld [vmem:[%s338 + $0xc] sm:$0xf]
        %v341 = vld [vmem:[%s338 + $0x10] sm:$0x1]
        %v342 = vld [vmem:[%s338 + $0x24] sm:$0xe]
        %v343 = vld [vmem:[%s338 + $0x28] sm:$0xf]
        %v344 = vld [vmem:[%s338 + $0x2c] sm:$0x1]
        %v345 = vld [vmem:[%s338 + $0x40] sm:$0xe]
        %v346 = vld [vmem:[%s338 + $0x44] sm:$0xf]
        %v347 = vld [vmem:[%s338 + $0x48] sm:$0x1]
        %v348 = vld [vmem:[%s338 + $0x5c] sm:$0xe]
        %v349 = vld [vmem:[%s338 + $0x60] sm:$0xf]
        %v350 = vld [vmem:[%s338 + $0x64] sm:$0x1]
        %v351 = vld [vmem:[%s338 + $0x78] sm:$0xe]
        %v352 = vld [vmem:[%s338 + $0x7c] sm:$0xf]
        %v353 = vld [vmem:[%s338 + $0x80] sm:$0x1]
        %v354 = vld [vmem:[%s338 + $0x94] sm:$0xe]
        %v355 = vld [vmem:[%s338 + $0x98] sm:$0xf]
        %v356 = vld [vmem:[%s338 + $0x9c] sm:$0x1]
        %v357 = vld [vmem:[%s338 + $0xb0] sm:$0xe]
        %v358 = vld [vmem:[%s338 + $0xb4] sm:$0xf]
        %v359 = vld [vmem:[%s338 + $0xb8] sm:$0x1]
        %v360 = vld [vmem:[%s338 + $0xcc] sm:$0xe]
        %v361 = vld [vmem:[%s338 + $0xd0] sm:$0xf]
        %v362 = vld [vmem:[%s338 + $0xd4] sm:$0x1]
        %vm387 = vcmask 1042432
        %vm388 = vcmask 1046532
        %vm389 = vmor %vm387, %vm388
        %v390 = vrot.slane %v339, 5
        %v391 = vrot.slane %v390, 4
        %v392 = vrot.slane %v340, 5
        %v393 = vsel %vm389, %v391, %v392
        %v394 = vrot.slane %v392, 4
        %v395 = vrot.slane %v341, 5
        %v396 = vsel %vm389, %v394, %v395
        %v397 = vrot.slane %v342, 5
        %v398 = vrot.slane %v397, 4
        %v399 = vrot.slane %v343, 5
        %v400 = vsel %vm389, %v398, %v399
        %v401 = vrot.slane %v399, 4
        %v402 = vrot.slane %v344, 5
        %v403 = vsel %vm389, %v401, %v402
        %v404 = vrot.slane %v345, 5
        %v405 = vrot.slane %v404, 4
        %v406 = vrot.slane %v346, 5
        %v407 = vsel %vm389, %v405, %v406
        %v408 = vrot.slane %v406, 4
        %v409 = vrot.slane %v347, 5
        %v410 = vsel %vm389, %v408, %v409
        %v411 = vrot.slane %v348, 5
        %v412 = vrot.slane %v411, 4
        %v413 = vrot.slane %v349, 5
        %v414 = vsel %vm389, %v412, %v413
        %v415 = vrot.slane %v413, 4
        %v416 = vrot.slane %v350, 5
        %v417 = vsel %vm389, %v415, %v416
        %v418 = vrot.slane %v351, 5
        %v419 = vrot.slane %v418, 4
        %v420 = vrot.slane %v352, 5
        %v421 = vsel %vm389, %v419, %v420
        %v422 = vrot.slane %v420, 4
        %v423 = vrot.slane %v353, 5
        %v424 = vsel %vm389, %v422, %v423
        %v425 = vrot.slane %v354, 5
        %v426 = vrot.slane %v425, 4
        %v427 = vrot.slane %v355, 5
        %v428 = vsel %vm389, %v426, %v427
        %v429 = vrot.slane %v427, 4
        %v430 = vrot.slane %v356, 5
        %v431 = vsel %vm389, %v429, %v430
        %v432 = vrot.slane %v357, 5
        %v433 = vrot.slane %v432, 4
        %v434 = vrot.slane %v358, 5
        %v435 = vsel %vm389, %v433, %v434
        %v436 = vrot.slane %v434, 4
        %v437 = vrot.slane %v359, 5
        %v438 = vsel %vm389, %v436, %v437
        %v439 = vrot.slane %v360, 5
        %v440 = vrot.slane %v439, 4
        %v441 = vrot.slane %v361, 5
        %v442 = vsel %vm389, %v440, %v441
        %v443 = vrot.slane %v441, 4
        %v444 = vrot.slane %v362, 5
        %v445 = vsel %vm389, %v443, %v444
        %v446 = vld [vmem:[%s1] sm:$0xf]
        %v447 = vld [vmem:[%s6] sm:$0x1]
        %v448 = vlaneseq
        %v449 = vshrl.u32 %v448, 7
        %v450 = vsub.s32 0, %v449
        %v451 = vrot.slane %v447, %v450
        %v452 = vunpack.c.l.b16 %v393
        %v453 = vunpack.c.l.b16 %v396
        %v454 = vunpack.c.l.b16 %v400
        %v455 = vunpack.c.l.b16 %v403
        %v456 = vunpack.c.l.b16 %v407
        %v457 = vunpack.c.l.b16 %v410
        %v458 = vunpack.c.l.b16 %v414
        %v459 = vunpack.c.l.b16 %v417
        %v460 = vunpack.c.l.b16 %v421
        %v461 = vunpack.c.l.b16 %v424
        %v462 = vunpack.c.l.b16 %v428
        %v463 = vunpack.c.l.b16 %v431
        %v464 = vunpack.c.l.b16 %v435
        %v465 = vunpack.c.l.b16 %v438
        %v466 = vunpack.c.l.b16 %v442
        %v467 = vunpack.c.l.b16 %v445
        %v468 = vpack.c.b16 %v453, %v452
        %v469 = vpack.c.b16 %v455, %v454
        %v470 = vpack.c.b16 %v457, %v456
        %v471 = vpack.c.b16 %v459, %v458
        %v472 = vpack.c.b16 %v461, %v460
        %v473 = vpack.c.b16 %v463, %v462
        %v474 = vpack.c.b16 %v465, %v464
        %v475 = vpack.c.b16 %v467, %v466
        %vm476 = vcmask 64512
        %v478 = vsel %vm476, %v468, 0
        %v481 = vsel %vm476, %v469, 0
        %v484 = vsel %vm476, %v470, 0
        %v487 = vsel %vm476, %v471, 0
        %v490 = vsel %vm476, %v472, 0
        %v493 = vsel %vm476, %v473, 0
        %v496 = vsel %vm476, %v474, 0
        %v499 = vsel %vm476, %v475, 0
        %vm501 = vcmask 1043456
        %v503 = vsel %vm501, %v446, 0
        %505 = vmatprep.subr.bf16.mxu0 0
        %506 = vmatpush1.bf16.msra.mxu0 %v503
        %507 = vmatprep.subr.bf16.mxu0 0
        %508 = vmatpush1.bf16.msra.mxu0 0
        %509 = vmatprep.subr.bf16.mxu0 0
        %510 = vmatpush1.bf16.msra.mxu0 0
        %511 = vmatprep.subr.bf16.mxu0 0
        %512 = vmatpush1.bf16.msra.mxu0 0
        %513 = vmatprep.subr.bf16.mxu0 0
        %514 = vmatpush1.bf16.msra.mxu0 0
        %515 = vmatprep.subr.bf16.mxu0 0
        %516 = vmatpush1.bf16.msra.mxu0 0
        %517 = vmatprep.subr.bf16.mxu0 0
        %518 = vmatpush1.bf16.msra.mxu0 0
        %519 = vmatprep.subr.bf16.mxu0 0
        %520 = vmatpush1.bf16.msra.mxu0 0
        %521 = vmatprep.subr.bf16.mxu0 0
        %522 = vmatpush1.bf16.msra.mxu0 0
        %523 = vmatprep.subr.bf16.mxu0 0
        %524 = vmatpush1.bf16.msra.mxu0 0
        %525 = vmatprep.subr.bf16.mxu0 0
        %526 = vmatpush1.bf16.msra.mxu0 0
        %527 = vmatprep.subr.bf16.mxu0 0
        %528 = vmatpush1.bf16.msra.mxu0 0
        %529 = vmatprep.subr.bf16.mxu0 0
        %530 = vmatpush1.bf16.msra.mxu0 0
        %531 = vmatprep.subr.bf16.mxu0 0
        %532 = vmatpush1.bf16.msra.mxu0 0
        %533 = vmatprep.subr.bf16.mxu0 0
        %534 = vmatpush1.bf16.msra.mxu0 0
        %535 = vmatprep.subr.bf16.mxu0 0
        %536 = vmatpush1.bf16.msra.mxu0 0
        %537 = vmatprep.mubr.bf16.mxu0 0
        %538 = vmatmul.mubr.bf16.gmra.mrb[0].mxu0 %v478
        %v539 = vpop.f32.mrb[0].mxu0
        %v540 = vadd.f32 %v451, %v539
        %v541 = vpop.f32.mrb[0].mxu0
        %v542 = vpop.f32.mrb[0].mxu0
        %v543 = vadd.f32 %v451, %v542
        %v544 = vpop.f32.mrb[0].mxu0
        %545 = vmatprep.mubr.bf16.mxu0 0
        %546 = vmatmul.mubr.bf16.gmra.mrb[0].mxu0 %v481
        %v547 = vpop.f32.mrb[0].mxu0
        %v548 = vadd.f32 %v451, %v547
        %v549 = vpop.f32.mrb[0].mxu0
        %v550 = vpop.f32.mrb[0].mxu0
        %v551 = vadd.f32 %v451, %v550
        %v552 = vpop.f32.mrb[0].mxu0
        %553 = vmatprep.mubr.bf16.mxu0 0
        %554 = vmatmul.mubr.bf16.gmra.mrb[0].mxu0 %v484
        %v555 = vpop.f32.mrb[0].mxu0
        %v556 = vadd.f32 %v451, %v555
        %v557 = vpop.f32.mrb[0].mxu0
        %v558 = vpop.f32.mrb[0].mxu0
        %v559 = vadd.f32 %v451, %v558
        %v560 = vpop.f32.mrb[0].mxu0
        %561 = vmatprep.mubr.bf16.mxu0 0
        %562 = vmatmul.mubr.bf16.gmra.mrb[0].mxu0 %v487
        %v563 = vpop.f32.mrb[0].mxu0
        %v564 = vadd.f32 %v451, %v563
        %v565 = vpop.f32.mrb[0].mxu0
        %v566 = vpop.f32.mrb[0].mxu0
        %v567 = vadd.f32 %v451, %v566
        %v568 = vpop.f32.mrb[0].mxu0
        %569 = vmatprep.mubr.bf16.mxu0 0
        %570 = vmatmul.mubr.bf16.gmra.mrb[0].mxu0 %v490
        %v571 = vpop.f32.mrb[0].mxu0
        %v572 = vadd.f32 %v451, %v571
        %v573 = vpop.f32.mrb[0].mxu0
        %v574 = vpop.f32.mrb[0].mxu0
        %v575 = vadd.f32 %v451, %v574
        %v576 = vpop.f32.mrb[0].mxu0
        %577 = vmatprep.mubr.bf16.mxu0 0
        %578 = vmatmul.mubr.bf16.gmra.mrb[0].mxu0 %v493
        %v579 = vpop.f32.mrb[0].mxu0
        %v580 = vadd.f32 %v451, %v579
        %v581 = vpop.f32.mrb[0].mxu0
        %v582 = vpop.f32.mrb[0].mxu0
        %v583 = vadd.f32 %v451, %v582
        %v584 = vpop.f32.mrb[0].mxu0
        %585 = vmatprep.mubr.bf16.mxu0 0
        %586 = vmatmul.mubr.bf16.gmra.mrb[0].mxu0 %v496
        %v587 = vpop.f32.mrb[0].mxu0
        %v588 = vadd.f32 %v451, %v587
        %v589 = vpop.f32.mrb[0].mxu0
        %v590 = vpop.f32.mrb[0].mxu0
        %v591 = vadd.f32 %v451, %v590
        %v592 = vpop.f32.mrb[0].mxu0
        %593 = vmatprep.mubr.bf16.mxu0 0
        %594 = vmatmul.mubr.bf16.gmra.mrb[0].mxu0 %v499
        %v595 = vpop.f32.mrb[0].mxu0
        %v596 = vadd.f32 %v451, %v595
        %v597 = vpop.f32.mrb[0].mxu0
        %v598 = vpop.f32.mrb[0].mxu0
        %v599 = vadd.f32 %v451, %v598
        %v600 = vpop.f32.mrb[0].mxu0
        %601 = vdwg.mxu0
        %v602 = vmax.f32 %v540, 0.0
        %v603 = vmax.f32 %v543, 0.0
        %v604 = vmax.f32 %v548, 0.0
        %v605 = vmax.f32 %v551, 0.0
        %v606 = vmax.f32 %v556, 0.0
        %v607 = vmax.f32 %v559, 0.0
        %v608 = vmax.f32 %v564, 0.0
        %v609 = vmax.f32 %v567, 0.0
        %v610 = vmax.f32 %v572, 0.0
        %v611 = vmax.f32 %v575, 0.0
        %v612 = vmax.f32 %v580, 0.0
        %v613 = vmax.f32 %v583, 0.0
        %v614 = vmax.f32 %v588, 0.0
        %v615 = vmax.f32 %v591, 0.0
        %v616 = vmax.f32 %v596, 0.0
        %v617 = vmax.f32 %v599, 0.0
        %v618 = vpack.c.bf16 %v603, %v602
        %v619 = vpack.c.bf16 %v605, %v604
        %v620 = vpack.c.bf16 %v607, %v606
        %v621 = vpack.c.bf16 %v609, %v608
        %v622 = vpack.c.bf16 %v611, %v610
        %v623 = vpack.c.bf16 %v613, %v612
        %v624 = vpack.c.bf16 %v615, %v614
        %v625 = vpack.c.bf16 %v617, %v616
        %v626 = vld [vmem:[%s5] sm:$0xf]
        %v627 = vld [vmem:[%s5 + $0x4] sm:$0xf]
        %v628 = vld [vmem:[%s5 + $0x8] sm:$0xf]
        %v629 = vld [vmem:[%s5 + $0xc] sm:$0xf]
        %v630 = vld [vmem:[%s5 + $0x10] sm:$0xf]
        %v631 = vld [vmem:[%s5 + $0x14] sm:$0xf]
        %v632 = vld [vmem:[%s5 + $0x18] sm:$0xf]
        %v633 = vld [vmem:[%s5 + $0x1c] sm:$0xf]
        %v634 = vld [vmem:[%s5 + $0x20] sm:$0xf]
        %v635 = vld [vmem:[%s5 + $0x24] sm:$0xf]
        %v636 = vld [vmem:[%s5 + $0x28] sm:$0xf]
        %v637 = vld [vmem:[%s5 + $0x2c] sm:$0xf]
        %v638 = vld [vmem:[%s5 + $0x30] sm:$0xf]
        %v639 = vld [vmem:[%s5 + $0x34] sm:$0xf]
        %v640 = vld [vmem:[%s5 + $0x38] sm:$0xf]
        %v641 = vld [vmem:[%s5 + $0x3c] sm:$0xf]
        %s642 = sadd.s32 %s334, 12
        %s643 = smul.u32 %s642, 7
        %s644 = smul.addr %s643, 4
        %s645 = scalar_lea.vmem %s328, %s644
        %v646 = vld [vmem:[%s645 + $0x4] sm:$0xc]
        %v647 = vld [vmem:[%s645 + $0x8] sm:$0xf]
        %v648 = vld [vmem:[%s645 + $0xc] sm:$0x3]
        %v649 = vld [vmem:[%s645 + $0x20] sm:$0xc]
        %v650 = vld [vmem:[%s645 + $0x24] sm:$0xf]
        %v651 = vld [vmem:[%s645 + $0x28] sm:$0x3]
        %v652 = vld [vmem:[%s645 + $0x3c] sm:$0xc]
        %v653 = vld [vmem:[%s645 + $0x40] sm:$0xf]
        %v654 = vld [vmem:[%s645 + $0x44] sm:$0x3]
        %v655 = vld [vmem:[%s645 + $0x58] sm:$0xc]
        %v656 = vld [vmem:[%s645 + $0x5c] sm:$0xf]
        %v657 = vld [vmem:[%s645 + $0x60] sm:$0x3]
        %v658 = vld [vmem:[%s645 + $0x74] sm:$0xc]
        %v659 = vld [vmem:[%s645 + $0x78] sm:$0xf]
        %v660 = vld [vmem:[%s645 + $0x7c] sm:$0x3]
        %v661 = vld [vmem:[%s645 + $0x90] sm:$0xc]
        %v662 = vld [vmem:[%s645 + $0x94] sm:$0xf]
        %v663 = vld [vmem:[%s645 + $0x98] sm:$0x3]
        %v664 = vld [vmem:[%s645 + $0xac] sm:$0xc]
        %v665 = vld [vmem:[%s645 + $0xb0] sm:$0xf]
        %v666 = vld [vmem:[%s645 + $0xb4] sm:$0x3]
        %v667 = vld [vmem:[%s645 + $0xc8] sm:$0xc]
        %v668 = vld [vmem:[%s645 + $0xcc] sm:$0xf]
        %v669 = vld [vmem:[%s645 + $0xd0] sm:$0x3]
        %vm694 = vcmask 1041408
        %vm695 = vcmask 1045508
        %vm696 = vmor %vm694, %vm695
        %v697 = vrot.slane %v646, 6
        %v698 = vrot.slane %v697, 4
        %v699 = vrot.slane %v647, 6
        %v700 = vsel %vm696, %v698, %v699
        %v701 = vrot.slane %v699, 4
        %v702 = vrot.slane %v648, 6
        %v703 = vsel %vm696, %v701, %v702
        %v704 = vrot.slane %v649, 6
        %v705 = vrot.slane %v704, 4
        %v706 = vrot.slane %v650, 6
        %v707 = vsel %vm696, %v705, %v706
        %v708 = vrot.slane %v706, 4
        %v709 = vrot.slane %v651, 6
        %v710 = vsel %vm696, %v708, %v709
        %v711 = vrot.slane %v652, 6
        %v712 = vrot.slane %v711, 4
        %v713 = vrot.slane %v653, 6
        %v714 = vsel %vm696, %v712, %v713
        %v715 = vrot.slane %v713, 4
        %v716 = vrot.slane %v654, 6
        %v717 = vsel %vm696, %v715, %v716
        %v718 = vrot.slane %v655, 6
        %v719 = vrot.slane %v718, 4
        %v720 = vrot.slane %v656, 6
        %v721 = vsel %vm696, %v719, %v720
        %v722 = vrot.slane %v720, 4
        %v723 = vrot.slane %v657, 6
        %v724 = vsel %vm696, %v722, %v723
        %v725 = vrot.slane %v658, 6
        %v726 = vrot.slane %v725, 4
        %v727 = vrot.slane %v659, 6
        %v728 = vsel %vm696, %v726, %v727
        %v729 = vrot.slane %v727, 4
        %v730 = vrot.slane %v660, 6
        %v731 = vsel %vm696, %v729, %v730
        %v732 = vrot.slane %v661, 6
        %v733 = vrot.slane %v732, 4
        %v734 = vrot.slane %v662, 6
        %v735 = vsel %vm696, %v733, %v734
        %v736 = vrot.slane %v734, 4
        %v737 = vrot.slane %v663, 6
        %v738 = vsel %vm696, %v736, %v737
        %v739 = vrot.slane %v664, 6
        %v740 = vrot.slane %v739, 4
        %v741 = vrot.slane %v665, 6
        %v742 = vsel %vm696, %v740, %v741
        %v743 = vrot.slane %v741, 4
        %v744 = vrot.slane %v666, 6
        %v745 = vsel %vm696, %v743, %v744
        %v746 = vrot.slane %v667, 6
        %v747 = vrot.slane %v746, 4
        %v748 = vrot.slane %v668, 6
        %v749 = vsel %vm696, %v747, %v748
        %v750 = vrot.slane %v748, 4
        %v751 = vrot.slane %v669, 6
        %v752 = vsel %vm696, %v750, %v751
        %v753 = vld [vmem:[%s2] sm:$0xf]
        %v754 = vld [vmem:[%s645 + $0x8] sm:$0xe]
        %v755 = vld [vmem:[%s645 + $0xc] sm:$0xf]
        %v756 = vld [vmem:[%s645 + $0x10] sm:$0x1]
        %v757 = vld [vmem:[%s645 + $0x24] sm:$0xe]
        %v758 = vld [vmem:[%s645 + $0x28] sm:$0xf]
        %v759 = vld [vmem:[%s645 + $0x2c] sm:$0x1]
        %v760 = vld [vmem:[%s645 + $0x40] sm:$0xe]
        %v761 = vld [vmem:[%s645 + $0x44] sm:$0xf]
        %v762 = vld [vmem:[%s645 + $0x48] sm:$0x1]
        %v763 = vld [vmem:[%s645 + $0x5c] sm:$0xe]
        %v764 = vld [vmem:[%s645 + $0x60] sm:$0xf]
        %v765 = vld [vmem:[%s645 + $0x64] sm:$0x1]
        %v766 = vld [vmem:[%s645 + $0x78] sm:$0xe]
        %v767 = vld [vmem:[%s645 + $0x7c] sm:$0xf]
        %v768 = vld [vmem:[%s645 + $0x80] sm:$0x1]
        %v769 = vld [vmem:[%s645 + $0x94] sm:$0xe]
        %v770 = vld [vmem:[%s645 + $0x98] sm:$0xf]
        %v771 = vld [vmem:[%s645 + $0x9c] sm:$0x1]
        %v772 = vld [vmem:[%s645 + $0xb0] sm:$0xe]
        %v773 = vld [vmem:[%s645 + $0xb4] sm:$0xf]
        %v774 = vld [vmem:[%s645 + $0xb8] sm:$0x1]
        %v775 = vld [vmem:[%s645 + $0xcc] sm:$0xe]
        %v776 = vld [vmem:[%s645 + $0xd0] sm:$0xf]
        %v777 = vld [vmem:[%s645 + $0xd4] sm:$0x1]
        %v802 = vrot.slane %v754, 5
        %v803 = vrot.slane %v802, 4
        %v804 = vrot.slane %v755, 5
        %v805 = vsel %vm389, %v803, %v804
        %v806 = vrot.slane %v804, 4
        %v807 = vrot.slane %v756, 5
        %v808 = vsel %vm389, %v806, %v807
        %v809 = vrot.slane %v757, 5
        %v810 = vrot.slane %v809, 4
        %v811 = vrot.slane %v758, 5
        %v812 = vsel %vm389, %v810, %v811
        %v813 = vrot.slane %v811, 4
        %v814 = vrot.slane %v759, 5
        %v815 = vsel %vm389, %v813, %v814
        %v816 = vrot.slane %v760, 5
        %v817 = vrot.slane %v816, 4
        %v818 = vrot.slane %v761, 5
        %v819 = vsel %vm389, %v817, %v818
        %v820 = vrot.slane %v818, 4
        %v821 = vrot.slane %v762, 5
        %v822 = vsel %vm389, %v820, %v821
        %v823 = vrot.slane %v763, 5
        %v824 = vrot.slane %v823, 4
        %v825 = vrot.slane %v764, 5
        %v826 = vsel %vm389, %v824, %v825
        %v827 = vrot.slane %v825, 4
        %v828 = vrot.slane %v765, 5
        %v829 = vsel %vm389, %v827, %v828
        %v830 = vrot.slane %v766, 5
        %v831 = vrot.slane %v830, 4
        %v832 = vrot.slane %v767, 5
        %v833 = vsel %vm389, %v831, %v832
        %v834 = vrot.slane %v832, 4
        %v835 = vrot.slane %v768, 5
        %v836 = vsel %vm389, %v834, %v835
        %v837 = vrot.slane %v769, 5
        %v838 = vrot.slane %v837, 4
        %v839 = vrot.slane %v770, 5
        %v840 = vsel %vm389, %v838, %v839
        %v841 = vrot.slane %v839, 4
        %v842 = vrot.slane %v771, 5
        %v843 = vsel %vm389, %v841, %v842
        %v844 = vrot.slane %v772, 5
        %v845 = vrot.slane %v844, 4
        %v846 = vrot.slane %v773, 5
        %v847 = vsel %vm389, %v845, %v846
        %v848 = vrot.slane %v846, 4
        %v849 = vrot.slane %v774, 5
        %v850 = vsel %vm389, %v848, %v849
        %v851 = vrot.slane %v775, 5
        %v852 = vrot.slane %v851, 4
        %v853 = vrot.slane %v776, 5
        %v854 = vsel %vm389, %v852, %v853
        %v855 = vrot.slane %v853, 4
        %v856 = vrot.slane %v777, 5
        %v857 = vsel %vm389, %v855, %v856
        %s858 = scalar_lea.vmem %s2, 4
        %v859 = vld [vmem:[%s858] sm:$0xf]
        %v860 = vunpack.c.l.b16 %v805
        %v861 = vunpack.c.l.b16 %v808
        %v862 = vunpack.c.l.b16 %v812
        %v863 = vunpack.c.l.b16 %v815
        %v864 = vunpack.c.l.b16 %v819
        %v865 = vunpack.c.l.b16 %v822
        %v866 = vunpack.c.l.b16 %v826
        %v867 = vunpack.c.l.b16 %v829
        %v868 = vunpack.c.l.b16 %v833
        %v869 = vunpack.c.l.b16 %v836
        %v870 = vunpack.c.l.b16 %v840
        %v871 = vunpack.c.l.b16 %v843
        %v872 = vunpack.c.l.b16 %v847
        %v873 = vunpack.c.l.b16 %v850
        %v874 = vunpack.c.l.b16 %v854
        %v875 = vunpack.c.l.b16 %v857
        %v876 = vpack.c.b16 %v861, %v860
        %v877 = vpack.c.b16 %v863, %v862
        %v878 = vpack.c.b16 %v865, %v864
        %v879 = vpack.c.b16 %v867, %v866
        %v880 = vpack.c.b16 %v869, %v868
        %v881 = vpack.c.b16 %v871, %v870
        %v882 = vpack.c.b16 %v873, %v872
        %v883 = vpack.c.b16 %v875, %v874
        %v885 = vsel %vm476, %v876, 0
        %v888 = vsel %vm476, %v877, 0
        %v891 = vsel %vm476, %v878, 0
        %v894 = vsel %vm476, %v879, 0
        %v897 = vsel %vm476, %v880, 0
        %v900 = vsel %vm476, %v881, 0
        %v903 = vsel %vm476, %v882, 0
        %v906 = vsel %vm476, %v883, 0
        %v909 = vsel %vm501, %v859, 0
        %911 = vmatprep.subr.bf16.mxu0 0
        %912 = vmatpush1.bf16.msra.mxu0 %v909
        %913 = vmatprep.subr.bf16.mxu0 0
        %914 = vmatpush1.bf16.msra.mxu0 0
        %915 = vmatprep.subr.bf16.mxu0 0
        %916 = vmatpush1.bf16.msra.mxu0 0
        %917 = vmatprep.subr.bf16.mxu0 0
        %918 = vmatpush1.bf16.msra.mxu0 0
        %919 = vmatprep.subr.bf16.mxu0 0
        %920 = vmatpush1.bf16.msra.mxu0 0
        %921 = vmatprep.subr.bf16.mxu0 0
        %922 = vmatpush1.bf16.msra.mxu0 0
        %923 = vmatprep.subr.bf16.mxu0 0
        %924 = vmatpush1.bf16.msra.mxu0 0
        %925 = vmatprep.subr.bf16.mxu0 0
        %926 = vmatpush1.bf16.msra.mxu0 0
        %927 = vmatprep.subr.bf16.mxu0 0
        %928 = vmatpush1.bf16.msra.mxu0 0
        %929 = vmatprep.subr.bf16.mxu0 0
        %930 = vmatpush1.bf16.msra.mxu0 0
        %931 = vmatprep.subr.bf16.mxu0 0
        %932 = vmatpush1.bf16.msra.mxu0 0
        %933 = vmatprep.subr.bf16.mxu0 0
        %934 = vmatpush1.bf16.msra.mxu0 0
        %935 = vmatprep.subr.bf16.mxu0 0
        %936 = vmatpush1.bf16.msra.mxu0 0
        %937 = vmatprep.subr.bf16.mxu0 0
        %938 = vmatpush1.bf16.msra.mxu0 0
        %939 = vmatprep.subr.bf16.mxu0 0
        %940 = vmatpush1.bf16.msra.mxu0 0
        %941 = vmatprep.subr.bf16.mxu0 0
        %942 = vmatpush1.bf16.msra.mxu0 0
        %943 = vmatprep.mubr.bf16.mxu0 0
        %944 = vmatmul.mubr.bf16.gmra.mrb[0].mxu0 %v885
        %v945 = vpop.f32.mrb[0].mxu0
        %v946 = vadd.f32 0.0, %v945
        %v947 = vpop.f32.mrb[0].mxu0
        %v948 = vpop.f32.mrb[0].mxu0
        %v949 = vadd.f32 0.0, %v948
        %v950 = vpop.f32.mrb[0].mxu0
        %951 = vmatprep.mubr.bf16.mxu0 0
        %952 = vmatmul.mubr.bf16.gmra.mrb[0].mxu0 %v888
        %v953 = vpop.f32.mrb[0].mxu0
        %v954 = vadd.f32 0.0, %v953
        %v955 = vpop.f32.mrb[0].mxu0
        %v956 = vpop.f32.mrb[0].mxu0
        %v957 = vadd.f32 0.0, %v956
        %v958 = vpop.f32.mrb[0].mxu0
        %959 = vmatprep.mubr.bf16.mxu0 0
        %960 = vmatmul.mubr.bf16.gmra.mrb[0].mxu0 %v891
        %v961 = vpop.f32.mrb[0].mxu0
        %v962 = vadd.f32 0.0, %v961
        %v963 = vpop.f32.mrb[0].mxu0
        %v964 = vpop.f32.mrb[0].mxu0
        %v965 = vadd.f32 0.0, %v964
        %v966 = vpop.f32.mrb[0].mxu0
        %967 = vmatprep.mubr.bf16.mxu0 0
        %968 = vmatmul.mubr.bf16.gmra.mrb[0].mxu0 %v894
        %v969 = vpop.f32.mrb[0].mxu0
        %v970 = vadd.f32 0.0, %v969
        %v971 = vpop.f32.mrb[0].mxu0
        %v972 = vpop.f32.mrb[0].mxu0
        %v973 = vadd.f32 0.0, %v972
        %v974 = vpop.f32.mrb[0].mxu0
        %975 = vmatprep.mubr.bf16.mxu0 0
        %976 = vmatmul.mubr.bf16.gmra.mrb[0].mxu0 %v897
        %v977 = vpop.f32.mrb[0].mxu0
        %v978 = vadd.f32 0.0, %v977
        %v979 = vpop.f32.mrb[0].mxu0
        %v980 = vpop.f32.mrb[0].mxu0
        %v981 = vadd.f32 0.0, %v980
        %v982 = vpop.f32.mrb[0].mxu0
        %983 = vmatprep.mubr.bf16.mxu0 0
        %984 = vmatmul.mubr.bf16.gmra.mrb[0].mxu0 %v900
        %v985 = vpop.f32.mrb[0].mxu0
        %v986 = vadd.f32 0.0, %v985
        %v987 = vpop.f32.mrb[0].mxu0
        %v988 = vpop.f32.mrb[0].mxu0
        %v989 = vadd.f32 0.0, %v988
        %v990 = vpop.f32.mrb[0].mxu0
        %991 = vmatprep.mubr.bf16.mxu0 0
        %992 = vmatmul.mubr.bf16.gmra.mrb[0].mxu0 %v903
        %v993 = vpop.f32.mrb[0].mxu0
        %v994 = vadd.f32 0.0, %v993
        %v995 = vpop.f32.mrb[0].mxu0
        %v996 = vpop.f32.mrb[0].mxu0
        %v997 = vadd.f32 0.0, %v996
        %v998 = vpop.f32.mrb[0].mxu0
        %999 = vmatprep.mubr.bf16.mxu0 0
        %1000 = vmatmul.mubr.bf16.gmra.mrb[0].mxu0 %v906
        %v1001 = vpop.f32.mrb[0].mxu0
        %v1002 = vadd.f32 0.0, %v1001
        %v1003 = vpop.f32.mrb[0].mxu0
        %v1004 = vpop.f32.mrb[0].mxu0
        %v1005 = vadd.f32 0.0, %v1004
        %v1006 = vpop.f32.mrb[0].mxu0
        %1007 = vdwg.mxu0
        %v1008 = vunpack.c.l.b16 %v700
        %v1009 = vunpack.c.l.b16 %v703
        %v1010 = vunpack.c.l.b16 %v707
        %v1011 = vunpack.c.l.b16 %v710
        %v1012 = vunpack.c.l.b16 %v714
        %v1013 = vunpack.c.l.b16 %v717
        %v1014 = vunpack.c.l.b16 %v721
        %v1015 = vunpack.c.l.b16 %v724
        %v1016 = vunpack.c.l.b16 %v728
        %v1017 = vunpack.c.l.b16 %v731
        %v1018 = vunpack.c.l.b16 %v735
        %v1019 = vunpack.c.l.b16 %v738
        %v1020 = vunpack.c.l.b16 %v742
        %v1021 = vunpack.c.l.b16 %v745
        %v1022 = vunpack.c.l.b16 %v749
        %v1023 = vunpack.c.l.b16 %v752
        %v1024 = vpack.c.b16 %v1009, %v1008
        %v1025 = vpack.c.b16 %v1011, %v1010
        %v1026 = vpack.c.b16 %v1013, %v1012
        %v1027 = vpack.c.b16 %v1015, %v1014
        %v1028 = vpack.c.b16 %v1017, %v1016
        %v1029 = vpack.c.b16 %v1019, %v1018
        %v1030 = vpack.c.b16 %v1021, %v1020
        %v1031 = vpack.c.b16 %v1023, %v1022
        %v1033 = vsel %vm476, %v1024, 0
        %v1036 = vsel %vm476, %v1025, 0
        %v1039 = vsel %vm476, %v1026, 0
        %v1042 = vsel %vm476, %v1027, 0
        %v1045 = vsel %vm476, %v1028, 0
        %v1048 = vsel %vm476, %v1029, 0
        %v1051 = vsel %vm476, %v1030, 0
        %v1054 = vsel %vm476, %v1031, 0
        %v1057 = vsel %vm501, %v753, 0
        %1059 = vmatprep.subr.bf16.mxu0 0
        %1060 = vmatpush1.bf16.msra.mxu0 %v1057
        %1061 = vmatprep.subr.bf16.mxu0 0
        %1062 = vmatpush1.bf16.msra.mxu0 0
        %1063 = vmatprep.subr.bf16.mxu0 0
        %1064 = vmatpush1.bf16.msra.mxu0 0
        %1065 = vmatprep.subr.bf16.mxu0 0
        %1066 = vmatpush1.bf16.msra.mxu0 0
        %1067 = vmatprep.subr.bf16.mxu0 0
        %1068 = vmatpush1.bf16.msra.mxu0 0
        %1069 = vmatprep.subr.bf16.mxu0 0
        %1070 = vmatpush1.bf16.msra.mxu0 0
        %1071 = vmatprep.subr.bf16.mxu0 0
        %1072 = vmatpush1.bf16.msra.mxu0 0
        %1073 = vmatprep.subr.bf16.mxu0 0
        %1074 = vmatpush1.bf16.msra.mxu0 0
        %1075 = vmatprep.subr.bf16.mxu0 0
        %1076 = vmatpush1.bf16.msra.mxu0 0
        %1077 = vmatprep.subr.bf16.mxu0 0
        %1078 = vmatpush1.bf16.msra.mxu0 0
        %1079 = vmatprep.subr.bf16.mxu0 0
        %1080 = vmatpush1.bf16.msra.mxu0 0
        %1081 = vmatprep.subr.bf16.mxu0 0
        %1082 = vmatpush1.bf16.msra.mxu0 0
        %1083 = vmatprep.subr.bf16.mxu0 0
        %1084 = vmatpush1.bf16.msra.mxu0 0
        %1085 = vmatprep.subr.bf16.mxu0 0
        %1086 = vmatpush1.bf16.msra.mxu0 0
        %1087 = vmatprep.subr.bf16.mxu0 0
        %1088 = vmatpush1.bf16.msra.mxu0 0
        %1089 = vmatprep.subr.bf16.mxu0 0
        %1090 = vmatpush1.bf16.msra.mxu0 0
        %1091 = vmatprep.mubr.bf16.mxu0 0
        %1092 = vmatmul.mubr.bf16.gmra.mrb[0].mxu0 %v1033
        %v1093 = vpop.f32.mrb[0].mxu0
        %v1094 = vadd.f32 %v946, %v1093
        %v1095 = vpop.f32.mrb[0].mxu0
        %v1096 = vpop.f32.mrb[0].mxu0
        %v1097 = vadd.f32 %v949, %v1096
        %v1098 = vpop.f32.mrb[0].mxu0
        %1099 = vmatprep.mubr.bf16.mxu0 0
        %1100 = vmatmul.mubr.bf16.gmra.mrb[0].mxu0 %v1036
        %v1101 = vpop.f32.mrb[0].mxu0
        %v1102 = vadd.f32 %v954, %v1101
        %v1103 = vpop.f32.mrb[0].mxu0
        %v1104 = vpop.f32.mrb[0].mxu0
        %v1105 = vadd.f32 %v957, %v1104
        %v1106 = vpop.f32.mrb[0].mxu0
        %1107 = vmatprep.mubr.bf16.mxu0 0
        %1108 = vmatmul.mubr.bf16.gmra.mrb[0].mxu0 %v1039
        %v1109 = vpop.f32.mrb[0].mxu0
        %v1110 = vadd.f32 %v962, %v1109
        %v1111 = vpop.f32.mrb[0].mxu0
        %v1112 = vpop.f32.mrb[0].mxu0
        %v1113 = vadd.f32 %v965, %v1112
        %v1114 = vpop.f32.mrb[0].mxu0
        %1115 = vmatprep.mubr.bf16.mxu0 0
        %1116 = vmatmul.mubr.bf16.gmra.mrb[0].mxu0 %v1042
        %v1117 = vpop.f32.mrb[0].mxu0
        %v1118 = vadd.f32 %v970, %v1117
        %v1119 = vpop.f32.mrb[0].mxu0
        %v1120 = vpop.f32.mrb[0].mxu0
        %v1121 = vadd.f32 %v973, %v1120
        %v1122 = vpop.f32.mrb[0].mxu0
        %1123 = vmatprep.mubr.bf16.mxu0 0
        %1124 = vmatmul.mubr.bf16.gmra.mrb[0].mxu0 %v1045
        %v1125 = vpop.f32.mrb[0].mxu0
        %v1126 = vadd.f32 %v978, %v1125
        %v1127 = vpop.f32.mrb[0].mxu0
        %v1128 = vpop.f32.mrb[0].mxu0
        %v1129 = vadd.f32 %v981, %v1128
        %v1130 = vpop.f32.mrb[0].mxu0
        %1131 = vmatprep.mubr.bf16.mxu0 0
        %1132 = vmatmul.mubr.bf16.gmra.mrb[0].mxu0 %v1048
        %v1133 = vpop.f32.mrb[0].mxu0
        %v1134 = vadd.f32 %v986, %v1133
        %v1135 = vpop.f32.mrb[0].mxu0
        %v1136 = vpop.f32.mrb[0].mxu0
        %v1137 = vadd.f32 %v989, %v1136
        %v1138 = vpop.f32.mrb[0].mxu0
        %1139 = vmatprep.mubr.bf16.mxu0 0
        %1140 = vmatmul.mubr.bf16.gmra.mrb[0].mxu0 %v1051
        %v1141 = vpop.f32.mrb[0].mxu0
        %v1142 = vadd.f32 %v994, %v1141
        %v1143 = vpop.f32.mrb[0].mxu0
        %v1144 = vpop.f32.mrb[0].mxu0
        %v1145 = vadd.f32 %v997, %v1144
        %v1146 = vpop.f32.mrb[0].mxu0
        %1147 = vmatprep.mubr.bf16.mxu0 0
        %1148 = vmatmul.mubr.bf16.gmra.mrb[0].mxu0 %v1054
        %v1149 = vpop.f32.mrb[0].mxu0
        %v1150 = vadd.f32 %v1002, %v1149
        %v1151 = vpop.f32.mrb[0].mxu0
        %v1152 = vpop.f32.mrb[0].mxu0
        %v1153 = vadd.f32 %v1005, %v1152
        %v1154 = vpop.f32.mrb[0].mxu0
        %1155 = vdwg.mxu0
        %v1156 = vld [vmem:[%s645 + $0x10] sm:$0xf]
        %v1157 = vld [vmem:[%s645 + $0x2c] sm:$0xf]
        %v1158 = vld [vmem:[%s645 + $0x48] sm:$0xf]
        %v1159 = vld [vmem:[%s645 + $0x64] sm:$0xf]
        %v1160 = vld [vmem:[%s645 + $0x80] sm:$0xf]
        %v1161 = vld [vmem:[%s645 + $0x9c] sm:$0xf]
        %v1162 = vld [vmem:[%s645 + $0xb8] sm:$0xf]
        %v1163 = vld [vmem:[%s645 + $0xd4] sm:$0xf]
        %s1164 = scalar_lea.vmem %s2, 8
        %v1165 = vld [vmem:[%s1164] sm:$0xf]
        %v1174 = vunpack.c.l.b16 %v755
        %v1175 = vunpack.c.l.b16 %v1156
        %v1176 = vunpack.c.l.b16 %v758
        %v1177 = vunpack.c.l.b16 %v1157
        %v1178 = vunpack.c.l.b16 %v761
        %v1179 = vunpack.c.l.b16 %v1158
        %v1180 = vunpack.c.l.b16 %v764
        %v1181 = vunpack.c.l.b16 %v1159
        %v1182 = vunpack.c.l.b16 %v767
        %v1183 = vunpack.c.l.b16 %v1160
        %v1184 = vunpack.c.l.b16 %v770
        %v1185 = vunpack.c.l.b16 %v1161
        %v1186 = vunpack.c.l.b16 %v773
        %v1187 = vunpack.c.l.b16 %v1162
        %v1188 = vunpack.c.l.b16 %v776
        %v1189 = vunpack.c.l.b16 %v1163
        %v1190 = vpack.c.b16 %v1175, %v1174
        %v1191 = vpack.c.b16 %v1177, %v1176
        %v1192 = vpack.c.b16 %v1179, %v1178
        %v1193 = vpack.c.b16 %v1181, %v1180
        %v1194 = vpack.c.b16 %v1183, %v1182
        %v1195 = vpack.c.b16 %v1185, %v1184
        %v1196 = vpack.c.b16 %v1187, %v1186
        %v1197 = vpack.c.b16 %v1189, %v1188
        %v1199 = vsel %vm476, %v1190, 0
        %v1202 = vsel %vm476, %v1191, 0
        %v1205 = vsel %vm476, %v1192, 0
        %v1208 = vsel %vm476, %v1193, 0
        %v1211 = vsel %vm476, %v1194, 0
        %v1214 = vsel %vm476, %v1195, 0
        %v1217 = vsel %vm476, %v1196, 0
        %v1220 = vsel %vm476, %v1197, 0
        %v1223 = vsel %vm501, %v1165, 0
        %1225 = vmatprep.subr.bf16.mxu0 0
        %1226 = vmatpush1.bf16.msra.mxu0 %v1223
        %1227 = vmatprep.subr.bf16.mxu0 0
        %1228 = vmatpush1.bf16.msra.mxu0 0
        %1229 = vmatprep.subr.bf16.mxu0 0
        %1230 = vmatpush1.bf16.msra.mxu0 0
        %1231 = vmatprep.subr.bf16.mxu0 0
        %1232 = vmatpush1.bf16.msra.mxu0 0
        %1233 = vmatprep.subr.bf16.mxu0 0
        %1234 = vmatpush1.bf16.msra.mxu0 0
        %1235 = vmatprep.subr.bf16.mxu0 0
        %1236 = vmatpush1.bf16.msra.mxu0 0
        %1237 = vmatprep.subr.bf16.mxu0 0
        %1238 = vmatpush1.bf16.msra.mxu0 0
        %1239 = vmatprep.subr.bf16.mxu0 0
        %1240 = vmatpush1.bf16.msra.mxu0 0
        %1241 = vmatprep.subr.bf16.mxu0 0
        %1242 = vmatpush1.bf16.msra.mxu0 0
        %1243 = vmatprep.subr.bf16.mxu0 0
        %1244 = vmatpush1.bf16.msra.mxu0 0
        %1245 = vmatprep.subr.bf16.mxu0 0
        %1246 = vmatpush1.bf16.msra.mxu0 0
        %1247 = vmatprep.subr.bf16.mxu0 0
        %1248 = vmatpush1.bf16.msra.mxu0 0
        %1249 = vmatprep.subr.bf16.mxu0 0
        %1250 = vmatpush1.bf16.msra.mxu0 0
        %1251 = vmatprep.subr.bf16.mxu0 0
        %1252 = vmatpush1.bf16.msra.mxu0 0
        %1253 = vmatprep.subr.bf16.mxu0 0
        %1254 = vmatpush1.bf16.msra.mxu0 0
        %1255 = vmatprep.subr.bf16.mxu0 0
        %1256 = vmatpush1.bf16.msra.mxu0 0
        %1257 = vmatprep.mubr.bf16.mxu0 0
        %1258 = vmatmul.mubr.bf16.gmra.mrb[0].mxu0 %v1199
        %v1259 = vpop.f32.mrb[0].mxu0
        %v1260 = vadd.f32 0.0, %v1259
        %v1261 = vpop.f32.mrb[0].mxu0
        %v1262 = vpop.f32.mrb[0].mxu0
        %v1263 = vadd.f32 0.0, %v1262
        %v1264 = vpop.f32.mrb[0].mxu0
        %1265 = vmatprep.mubr.bf16.mxu0 0
        %1266 = vmatmul.mubr.bf16.gmra.mrb[0].mxu0 %v1202
        %v1267 = vpop.f32.mrb[0].mxu0
        %v1268 = vadd.f32 0.0, %v1267
        %v1269 = vpop.f32.mrb[0].mxu0
        %v1270 = vpop.f32.mrb[0].mxu0
        %v1271 = vadd.f32 0.0, %v1270
        %v1272 = vpop.f32.mrb[0].mxu0
        %1273 = vmatprep.mubr.bf16.mxu0 0
        %1274 = vmatmul.mubr.bf16.gmra.mrb[0].mxu0 %v1205
        %v1275 = vpop.f32.mrb[0].mxu0
        %v1276 = vadd.f32 0.0, %v1275
        %v1277 = vpop.f32.mrb[0].mxu0
        %v1278 = vpop.f32.mrb[0].mxu0
        %v1279 = vadd.f32 0.0, %v1278
        %v1280 = vpop.f32.mrb[0].mxu0
        %1281 = vmatprep.mubr.bf16.mxu0 0
        %1282 = vmatmul.mubr.bf16.gmra.mrb[0].mxu0 %v1208
        %v1283 = vpop.f32.mrb[0].mxu0
        %v1284 = vadd.f32 0.0, %v1283
        %v1285 = vpop.f32.mrb[0].mxu0
        %v1286 = vpop.f32.mrb[0].mxu0
        %v1287 = vadd.f32 0.0, %v1286
        %v1288 = vpop.f32.mrb[0].mxu0
        %1289 = vmatprep.mubr.bf16.mxu0 0
        %1290 = vmatmul.mubr.bf16.gmra.mrb[0].mxu0 %v1211
        %v1291 = vpop.f32.mrb[0].mxu0
        %v1292 = vadd.f32 0.0, %v1291
        %v1293 = vpop.f32.mrb[0].mxu0
        %v1294 = vpop.f32.mrb[0].mxu0
        %v1295 = vadd.f32 0.0, %v1294
        %v1296 = vpop.f32.mrb[0].mxu0
        %1297 = vmatprep.mubr.bf16.mxu0 0
        %1298 = vmatmul.mubr.bf16.gmra.mrb[0].mxu0 %v1214
        %v1299 = vpop.f32.mrb[0].mxu0
        %v1300 = vadd.f32 0.0, %v1299
        %v1301 = vpop.f32.mrb[0].mxu0
        %v1302 = vpop.f32.mrb[0].mxu0
        %v1303 = vadd.f32 0.0, %v1302
        %v1304 = vpop.f32.mrb[0].mxu0
        %1305 = vmatprep.mubr.bf16.mxu0 0
        %1306 = vmatmul.mubr.bf16.gmra.mrb[0].mxu0 %v1217
        %v1307 = vpop.f32.mrb[0].mxu0
        %v1308 = vadd.f32 0.0, %v1307
        %v1309 = vpop.f32.mrb[0].mxu0
        %v1310 = vpop.f32.mrb[0].mxu0
        %v1311 = vadd.f32 0.0, %v1310
        %v1312 = vpop.f32.mrb[0].mxu0
        %1313 = vmatprep.mubr.bf16.mxu0 0
        %1314 = vmatmul.mubr.bf16.gmra.mrb[0].mxu0 %v1220
        %v1315 = vpop.f32.mrb[0].mxu0
        %v1316 = vadd.f32 0.0, %v1315
        %v1317 = vpop.f32.mrb[0].mxu0
        %v1318 = vpop.f32.mrb[0].mxu0
        %v1319 = vadd.f32 0.0, %v1318
        %v1320 = vpop.f32.mrb[0].mxu0
        %1321 = vdwg.mxu0
        %v1322 = vadd.f32 %v1094, %v1260
        %v1323 = vadd.f32 %v1097, %v1263
        %v1324 = vadd.f32 %v1102, %v1268
        %v1325 = vadd.f32 %v1105, %v1271
        %v1326 = vadd.f32 %v1110, %v1276
        %v1327 = vadd.f32 %v1113, %v1279
        %v1328 = vadd.f32 %v1118, %v1284
        %v1329 = vadd.f32 %v1121, %v1287
        %v1330 = vadd.f32 %v1126, %v1292
        %v1331 = vadd.f32 %v1129, %v1295
        %v1332 = vadd.f32 %v1134, %v1300
        %v1333 = vadd.f32 %v1137, %v1303
        %v1334 = vadd.f32 %v1142, %v1308
        %v1335 = vadd.f32 %v1145, %v1311
        %v1336 = vadd.f32 %v1150, %v1316
        %v1337 = vadd.f32 %v1153, %v1319
        %v1338 = vld [vmem:[%s338 + $0x4] sm:$0xc]
        %v1339 = vld [vmem:[%s338 + $0x8] sm:$0xf]
        %v1340 = vld [vmem:[%s338 + $0xc] sm:$0x3]
        %v1341 = vld [vmem:[%s338 + $0x20] sm:$0xc]
        %v1342 = vld [vmem:[%s338 + $0x24] sm:$0xf]
        %v1343 = vld [vmem:[%s338 + $0x28] sm:$0x3]
        %v1344 = vld [vmem:[%s338 + $0x3c] sm:$0xc]
        %v1345 = vld [vmem:[%s338 + $0x40] sm:$0xf]
        %v1346 = vld [vmem:[%s338 + $0x44] sm:$0x3]
        %v1347 = vld [vmem:[%s338 + $0x58] sm:$0xc]
        %v1348 = vld [vmem:[%s338 + $0x5c] sm:$0xf]
        %v1349 = vld [vmem:[%s338 + $0x60] sm:$0x3]
        %v1350 = vld [vmem:[%s338 + $0x74] sm:$0xc]
        %v1351 = vld [vmem:[%s338 + $0x78] sm:$0xf]
        %v1352 = vld [vmem:[%s338 + $0x7c] sm:$0x3]
        %v1353 = vld [vmem:[%s338 + $0x90] sm:$0xc]
        %v1354 = vld [vmem:[%s338 + $0x94] sm:$0xf]
        %v1355 = vld [vmem:[%s338 + $0x98] sm:$0x3]
        %v1356 = vld [vmem:[%s338 + $0xac] sm:$0xc]
        %v1357 = vld [vmem:[%s338 + $0xb0] sm:$0xf]
        %v1358 = vld [vmem:[%s338 + $0xb4] sm:$0x3]
        %v1359 = vld [vmem:[%s338 + $0xc8] sm:$0xc]
        %v1360 = vld [vmem:[%s338 + $0xcc] sm:$0xf]
        %v1361 = vld [vmem:[%s338 + $0xd0] sm:$0x3]
        %v1386 = vrot.slane %v1338, 6
        %v1387 = vrot.slane %v1386, 4
        %v1388 = vrot.slane %v1339, 6
        %v1389 = vsel %vm696, %v1387, %v1388
        %v1390 = vrot.slane %v1388, 4
        %v1391 = vrot.slane %v1340, 6
        %v1392 = vsel %vm696, %v1390, %v1391
        %v1393 = vrot.slane %v1341, 6
        %v1394 = vrot.slane %v1393, 4
        %v1395 = vrot.slane %v1342, 6
        %v1396 = vsel %vm696, %v1394, %v1395
        %v1397 = vrot.slane %v1395, 4
        %v1398 = vrot.slane %v1343, 6
        %v1399 = vsel %vm696, %v1397, %v1398
        %v1400 = vrot.slane %v1344, 6
        %v1401 = vrot.slane %v1400, 4
        %v1402 = vrot.slane %v1345, 6
        %v1403 = vsel %vm696, %v1401, %v1402
        %v1404 = vrot.slane %v1402, 4
        %v1405 = vrot.slane %v1346, 6
        %v1406 = vsel %vm696, %v1404, %v1405
        %v1407 = vrot.slane %v1347, 6
        %v1408 = vrot.slane %v1407, 4
        %v1409 = vrot.slane %v1348, 6
        %v1410 = vsel %vm696, %v1408, %v1409
        %v1411 = vrot.slane %v1409, 4
        %v1412 = vrot.slane %v1349, 6
        %v1413 = vsel %vm696, %v1411, %v1412
        %v1414 = vrot.slane %v1350, 6
        %v1415 = vrot.slane %v1414, 4
        %v1416 = vrot.slane %v1351, 6
        %v1417 = vsel %vm696, %v1415, %v1416
        %v1418 = vrot.slane %v1416, 4
        %v1419 = vrot.slane %v1352, 6
        %v1420 = vsel %vm696, %v1418, %v1419
        %v1421 = vrot.slane %v1353, 6
        %v1422 = vrot.slane %v1421, 4
        %v1423 = vrot.slane %v1354, 6
        %v1424 = vsel %vm696, %v1422, %v1423
        %v1425 = vrot.slane %v1423, 4
        %v1426 = vrot.slane %v1355, 6
        %v1427 = vsel %vm696, %v1425, %v1426
        %v1428 = vrot.slane %v1356, 6
        %v1429 = vrot.slane %v1428, 4
        %v1430 = vrot.slane %v1357, 6
        %v1431 = vsel %vm696, %v1429, %v1430
        %v1432 = vrot.slane %v1430, 4
        %v1433 = vrot.slane %v1358, 6
        %v1434 = vsel %vm696, %v1432, %v1433
        %v1435 = vrot.slane %v1359, 6
        %v1436 = vrot.slane %v1435, 4
        %v1437 = vrot.slane %v1360, 6
        %v1438 = vsel %vm696, %v1436, %v1437
        %v1439 = vrot.slane %v1437, 4
        %v1440 = vrot.slane %v1361, 6
        %v1441 = vsel %vm696, %v1439, %v1440
        %s1442 = scalar_lea.vmem %s2, 12
        %v1443 = vld [vmem:[%s1442] sm:$0xf]
        %v1444 = vunpack.c.l.b16 %v1389
        %v1445 = vunpack.c.l.b16 %v1392
        %v1446 = vunpack.c.l.b16 %v1396
        %v1447 = vunpack.c.l.b16 %v1399
        %v1448 = vunpack.c.l.b16 %v1403
        %v1449 = vunpack.c.l.b16 %v1406
        %v1450 = vunpack.c.l.b16 %v1410
        %v1451 = vunpack.c.l.b16 %v1413
        %v1452 = vunpack.c.l.b16 %v1417
        %v1453 = vunpack.c.l.b16 %v1420
        %v1454 = vunpack.c.l.b16 %v1424
        %v1455 = vunpack.c.l.b16 %v1427
        %v1456 = vunpack.c.l.b16 %v1431
        %v1457 = vunpack.c.l.b16 %v1434
        %v1458 = vunpack.c.l.b16 %v1438
        %v1459 = vunpack.c.l.b16 %v1441
        %v1460 = vpack.c.b16 %v1445, %v1444
        %v1461 = vpack.c.b16 %v1447, %v1446
        %v1462 = vpack.c.b16 %v1449, %v1448
        %v1463 = vpack.c.b16 %v1451, %v1450
        %v1464 = vpack.c.b16 %v1453, %v1452
        %v1465 = vpack.c.b16 %v1455, %v1454
        %v1466 = vpack.c.b16 %v1457, %v1456
        %v1467 = vpack.c.b16 %v1459, %v1458
        %v1469 = vsel %vm476, %v1460, 0
        %v1472 = vsel %vm476, %v1461, 0
        %v1475 = vsel %vm476, %v1462, 0
        %v1478 = vsel %vm476, %v1463, 0
        %v1481 = vsel %vm476, %v1464, 0
        %v1484 = vsel %vm476, %v1465, 0
        %v1487 = vsel %vm476, %v1466, 0
        %v1490 = vsel %vm476, %v1467, 0
        %v1493 = vsel %vm501, %v1443, 0
        %1495 = vmatprep.subr.bf16.mxu0 0
        %1496 = vmatpush1.bf16.msra.mxu0 %v1493
        %1497 = vmatprep.subr.bf16.mxu0 0
        %1498 = vmatpush1.bf16.msra.mxu0 0
        %1499 = vmatprep.subr.bf16.mxu0 0
        %1500 = vmatpush1.bf16.msra.mxu0 0
        %1501 = vmatprep.subr.bf16.mxu0 0
        %1502 = vmatpush1.bf16.msra.mxu0 0
        %1503 = vmatprep.subr.bf16.mxu0 0
        %1504 = vmatpush1.bf16.msra.mxu0 0
        %1505 = vmatprep.subr.bf16.mxu0 0
        %1506 = vmatpush1.bf16.msra.mxu0 0
        %1507 = vmatprep.subr.bf16.mxu0 0
        %1508 = vmatpush1.bf16.msra.mxu0 0
        %1509 = vmatprep.subr.bf16.mxu0 0
        %1510 = vmatpush1.bf16.msra.mxu0 0
        %1511 = vmatprep.subr.bf16.mxu0 0
        %1512 = vmatpush1.bf16.msra.mxu0 0
        %1513 = vmatprep.subr.bf16.mxu0 0
        %1514 = vmatpush1.bf16.msra.mxu0 0
        %1515 = vmatprep.subr.bf16.mxu0 0
        %1516 = vmatpush1.bf16.msra.mxu0 0
        %1517 = vmatprep.subr.bf16.mxu0 0
        %1518 = vmatpush1.bf16.msra.mxu0 0
        %1519 = vmatprep.subr.bf16.mxu0 0
        %1520 = vmatpush1.bf16.msra.mxu0 0
        %1521 = vmatprep.subr.bf16.mxu0 0
        %1522 = vmatpush1.bf16.msra.mxu0 0
        %1523 = vmatprep.subr.bf16.mxu0 0
        %1524 = vmatpush1.bf16.msra.mxu0 0
        %1525 = vmatprep.subr.bf16.mxu0 0
        %1526 = vmatpush1.bf16.msra.mxu0 0
        %1527 = vmatprep.mubr.bf16.mxu0 0
        %1528 = vmatmul.mubr.bf16.gmra.mrb[0].mxu0 %v1469
        %v1529 = vpop.f32.mrb[0].mxu0
        %v1530 = vadd.f32 0.0, %v1529
        %v1531 = vpop.f32.mrb[0].mxu0
        %v1532 = vpop.f32.mrb[0].mxu0
        %v1533 = vadd.f32 0.0, %v1532
        %v1534 = vpop.f32.mrb[0].mxu0
        %1535 = vmatprep.mubr.bf16.mxu0 0
        %1536 = vmatmul.mubr.bf16.gmra.mrb[0].mxu0 %v1472
        %v1537 = vpop.f32.mrb[0].mxu0
        %v1538 = vadd.f32 0.0, %v1537
        %v1539 = vpop.f32.mrb[0].mxu0
        %v1540 = vpop.f32.mrb[0].mxu0
        %v1541 = vadd.f32 0.0, %v1540
        %v1542 = vpop.f32.mrb[0].mxu0
        %1543 = vmatprep.mubr.bf16.mxu0 0
        %1544 = vmatmul.mubr.bf16.gmra.mrb[0].mxu0 %v1475
        %v1545 = vpop.f32.mrb[0].mxu0
        %v1546 = vadd.f32 0.0, %v1545
        %v1547 = vpop.f32.mrb[0].mxu0
        %v1548 = vpop.f32.mrb[0].mxu0
        %v1549 = vadd.f32 0.0, %v1548
        %v1550 = vpop.f32.mrb[0].mxu0
        %1551 = vmatprep.mubr.bf16.mxu0 0
        %1552 = vmatmul.mubr.bf16.gmra.mrb[0].mxu0 %v1478
        %v1553 = vpop.f32.mrb[0].mxu0
        %v1554 = vadd.f32 0.0, %v1553
        %v1555 = vpop.f32.mrb[0].mxu0
        %v1556 = vpop.f32.mrb[0].mxu0
        %v1557 = vadd.f32 0.0, %v1556
        %v1558 = vpop.f32.mrb[0].mxu0
        %1559 = vmatprep.mubr.bf16.mxu0 0
        %1560 = vmatmul.mubr.bf16.gmra.mrb[0].mxu0 %v1481
        %v1561 = vpop.f32.mrb[0].mxu0
        %v1562 = vadd.f32 0.0, %v1561
        %v1563 = vpop.f32.mrb[0].mxu0
        %v1564 = vpop.f32.mrb[0].mxu0
        %v1565 = vadd.f32 0.0, %v1564
        %v1566 = vpop.f32.mrb[0].mxu0
        %1567 = vmatprep.mubr.bf16.mxu0 0
        %1568 = vmatmul.mubr.bf16.gmra.mrb[0].mxu0 %v1484
        %v1569 = vpop.f32.mrb[0].mxu0
        %v1570 = vadd.f32 0.0, %v1569
        %v1571 = vpop.f32.mrb[0].mxu0
        %v1572 = vpop.f32.mrb[0].mxu0
        %v1573 = vadd.f32 0.0, %v1572
        %v1574 = vpop.f32.mrb[0].mxu0
        %1575 = vmatprep.mubr.bf16.mxu0 0
        %1576 = vmatmul.mubr.bf16.gmra.mrb[0].mxu0 %v1487
        %v1577 = vpop.f32.mrb[0].mxu0
        %v1578 = vadd.f32 0.0, %v1577
        %v1579 = vpop.f32.mrb[0].mxu0
        %v1580 = vpop.f32.mrb[0].mxu0
        %v1581 = vadd.f32 0.0, %v1580
        %v1582 = vpop.f32.mrb[0].mxu0
        %1583 = vmatprep.mubr.bf16.mxu0 0
        %1584 = vmatmul.mubr.bf16.gmra.mrb[0].mxu0 %v1490
        %v1585 = vpop.f32.mrb[0].mxu0
        %v1586 = vadd.f32 0.0, %v1585
        %v1587 = vpop.f32.mrb[0].mxu0
        %v1588 = vpop.f32.mrb[0].mxu0
        %v1589 = vadd.f32 0.0, %v1588
        %v1590 = vpop.f32.mrb[0].mxu0
        %1591 = vdwg.mxu0
        %v1592 = vadd.f32 %v1322, %v1530
        %v1593 = vadd.f32 %v1323, %v1533
        %v1594 = vadd.f32 %v1324, %v1538
        %v1595 = vadd.f32 %v1325, %v1541
        %v1596 = vadd.f32 %v1326, %v1546
        %v1597 = vadd.f32 %v1327, %v1549
        %v1598 = vadd.f32 %v1328, %v1554
        %v1599 = vadd.f32 %v1329, %v1557
        %v1600 = vadd.f32 %v1330, %v1562
        %v1601 = vadd.f32 %v1331, %v1565
        %v1602 = vadd.f32 %v1332, %v1570
        %v1603 = vadd.f32 %v1333, %v1573
        %v1604 = vadd.f32 %v1334, %v1578
        %v1605 = vadd.f32 %v1335, %v1581
        %v1606 = vadd.f32 %v1336, %v1586
        %v1607 = vadd.f32 %v1337, %v1589
        %s1608 = scalar_lea.vmem %s2, 16
        %v1609 = vld [vmem:[%s1608] sm:$0xf]
        %v1611 = vsel %vm501, %v1609, 0
        %1613 = vmatprep.subr.bf16.mxu0 0
        %1614 = vmatpush1.bf16.msra.mxu0 %v1611
        %1615 = vmatprep.subr.bf16.mxu0 0
        %1616 = vmatpush1.bf16.msra.mxu0 0
        %1617 = vmatprep.subr.bf16.mxu0 0
        %1618 = vmatpush1.bf16.msra.mxu0 0
        %1619 = vmatprep.subr.bf16.mxu0 0
        %1620 = vmatpush1.bf16.msra.mxu0 0
        %1621 = vmatprep.subr.bf16.mxu0 0
        %1622 = vmatpush1.bf16.msra.mxu0 0
        %1623 = vmatprep.subr.bf16.mxu0 0
        %1624 = vmatpush1.bf16.msra.mxu0 0
        %1625 = vmatprep.subr.bf16.mxu0 0
        %1626 = vmatpush1.bf16.msra.mxu0 0
        %1627 = vmatprep.subr.bf16.mxu0 0
        %1628 = vmatpush1.bf16.msra.mxu0 0
        %1629 = vmatprep.subr.bf16.mxu0 0
        %1630 = vmatpush1.bf16.msra.mxu0 0
        %1631 = vmatprep.subr.bf16.mxu0 0
        %1632 = vmatpush1.bf16.msra.mxu0 0
        %1633 = vmatprep.subr.bf16.mxu0 0
        %1634 = vmatpush1.bf16.msra.mxu0 0
        %1635 = vmatprep.subr.bf16.mxu0 0
        %1636 = vmatpush1.bf16.msra.mxu0 0
        %1637 = vmatprep.subr.bf16.mxu0 0
        %1638 = vmatpush1.bf16.msra.mxu0 0
        %1639 = vmatprep.subr.bf16.mxu0 0
        %1640 = vmatpush1.bf16.msra.mxu0 0
        %1641 = vmatprep.subr.bf16.mxu0 0
        %1642 = vmatpush1.bf16.msra.mxu0 0
        %1643 = vmatprep.subr.bf16.mxu0 0
        %1644 = vmatpush1.bf16.msra.mxu0 0
        %1645 = vmatprep.mubr.bf16.mxu0 0
        %1646 = vmatmul.mubr.bf16.gmra.mrb[0].mxu0 %v478
        %v1647 = vpop.f32.mrb[0].mxu0
        %v1648 = vadd.f32 0.0, %v1647
        %v1649 = vpop.f32.mrb[0].mxu0
        %v1650 = vpop.f32.mrb[0].mxu0
        %v1651 = vadd.f32 0.0, %v1650
        %v1652 = vpop.f32.mrb[0].mxu0
        %1653 = vmatprep.mubr.bf16.mxu0 0
        %1654 = vmatmul.mubr.bf16.gmra.mrb[0].mxu0 %v481
        %v1655 = vpop.f32.mrb[0].mxu0
        %v1656 = vadd.f32 0.0, %v1655
        %v1657 = vpop.f32.mrb[0].mxu0
        %v1658 = vpop.f32.mrb[0].mxu0
        %v1659 = vadd.f32 0.0, %v1658
        %v1660 = vpop.f32.mrb[0].mxu0
        %1661 = vmatprep.mubr.bf16.mxu0 0
        %1662 = vmatmul.mubr.bf16.gmra.mrb[0].mxu0 %v484
        %v1663 = vpop.f32.mrb[0].mxu0
        %v1664 = vadd.f32 0.0, %v1663
        %v1665 = vpop.f32.mrb[0].mxu0
        %v1666 = vpop.f32.mrb[0].mxu0
        %v1667 = vadd.f32 0.0, %v1666
        %v1668 = vpop.f32.mrb[0].mxu0
        %1669 = vmatprep.mubr.bf16.mxu0 0
        %1670 = vmatmul.mubr.bf16.gmra.mrb[0].mxu0 %v487
        %v1671 = vpop.f32.mrb[0].mxu0
        %v1672 = vadd.f32 0.0, %v1671
        %v1673 = vpop.f32.mrb[0].mxu0
        %v1674 = vpop.f32.mrb[0].mxu0
        %v1675 = vadd.f32 0.0, %v1674
        %v1676 = vpop.f32.mrb[0].mxu0
        %1677 = vmatprep.mubr.bf16.mxu0 0
        %1678 = vmatmul.mubr.bf16.gmra.mrb[0].mxu0 %v490
        %v1679 = vpop.f32.mrb[0].mxu0
        %v1680 = vadd.f32 0.0, %v1679
        %v1681 = vpop.f32.mrb[0].mxu0
        %v1682 = vpop.f32.mrb[0].mxu0
        %v1683 = vadd.f32 0.0, %v1682
        %v1684 = vpop.f32.mrb[0].mxu0
        %1685 = vmatprep.mubr.bf16.mxu0 0
        %1686 = vmatmul.mubr.bf16.gmra.mrb[0].mxu0 %v493
        %v1687 = vpop.f32.mrb[0].mxu0
        %v1688 = vadd.f32 0.0, %v1687
        %v1689 = vpop.f32.mrb[0].mxu0
        %v1690 = vpop.f32.mrb[0].mxu0
        %v1691 = vadd.f32 0.0, %v1690
        %v1692 = vpop.f32.mrb[0].mxu0
        %1693 = vmatprep.mubr.bf16.mxu0 0
        %1694 = vmatmul.mubr.bf16.gmra.mrb[0].mxu0 %v496
        %v1695 = vpop.f32.mrb[0].mxu0
        %v1696 = vadd.f32 0.0, %v1695
        %v1697 = vpop.f32.mrb[0].mxu0
        %v1698 = vpop.f32.mrb[0].mxu0
        %v1699 = vadd.f32 0.0, %v1698
        %v1700 = vpop.f32.mrb[0].mxu0
        %1701 = vmatprep.mubr.bf16.mxu0 0
        %1702 = vmatmul.mubr.bf16.gmra.mrb[0].mxu0 %v499
        %v1703 = vpop.f32.mrb[0].mxu0
        %v1704 = vadd.f32 0.0, %v1703
        %v1705 = vpop.f32.mrb[0].mxu0
        %v1706 = vpop.f32.mrb[0].mxu0
        %v1707 = vadd.f32 0.0, %v1706
        %v1708 = vpop.f32.mrb[0].mxu0
        %1709 = vdwg.mxu0
        %v1710 = vadd.f32 %v1592, %v1648
        %v1711 = vadd.f32 %v1593, %v1651
        %v1712 = vadd.f32 %v1594, %v1656
        %v1713 = vadd.f32 %v1595, %v1659
        %v1714 = vadd.f32 %v1596, %v1664
        %v1715 = vadd.f32 %v1597, %v1667
        %v1716 = vadd.f32 %v1598, %v1672
        %v1717 = vadd.f32 %v1599, %v1675
        %v1718 = vadd.f32 %v1600, %v1680
        %v1719 = vadd.f32 %v1601, %v1683
        %v1720 = vadd.f32 %v1602, %v1688
        %v1721 = vadd.f32 %v1603, %v1691
        %v1722 = vadd.f32 %v1604, %v1696
        %v1723 = vadd.f32 %v1605, %v1699
        %v1724 = vadd.f32 %v1606, %v1704
        %v1725 = vadd.f32 %v1607, %v1707
        %v1726 = vld [vmem:[%s338 + $0x10] sm:$0xf]
        %v1727 = vld [vmem:[%s338 + $0x2c] sm:$0xf]
        %v1728 = vld [vmem:[%s338 + $0x48] sm:$0xf]
        %v1729 = vld [vmem:[%s338 + $0x64] sm:$0xf]
        %v1730 = vld [vmem:[%s338 + $0x80] sm:$0xf]
        %v1731 = vld [vmem:[%s338 + $0x9c] sm:$0xf]
        %v1732 = vld [vmem:[%s338 + $0xb8] sm:$0xf]
        %v1733 = vld [vmem:[%s338 + $0xd4] sm:$0xf]
        %s1734 = scalar_lea.vmem %s2, 20
        %v1735 = vld [vmem:[%s1734] sm:$0xf]
        %v1744 = vunpack.c.l.b16 %v340
        %v1745 = vunpack.c.l.b16 %v1726
        %v1746 = vunpack.c.l.b16 %v343
        %v1747 = vunpack.c.l.b16 %v1727
        %v1748 = vunpack.c.l.b16 %v346
        %v1749 = vunpack.c.l.b16 %v1728
        %v1750 = vunpack.c.l.b16 %v349
        %v1751 = vunpack.c.l.b16 %v1729
        %v1752 = vunpack.c.l.b16 %v352
        %v1753 = vunpack.c.l.b16 %v1730
        %v1754 = vunpack.c.l.b16 %v355
        %v1755 = vunpack.c.l.b16 %v1731
        %v1756 = vunpack.c.l.b16 %v358
        %v1757 = vunpack.c.l.b16 %v1732
        %v1758 = vunpack.c.l.b16 %v361
        %v1759 = vunpack.c.l.b16 %v1733
        %v1760 = vpack.c.b16 %v1745, %v1744
        %v1761 = vpack.c.b16 %v1747, %v1746
        %v1762 = vpack.c.b16 %v1749, %v1748
        %v1763 = vpack.c.b16 %v1751, %v1750
        %v1764 = vpack.c.b16 %v1753, %v1752
        %v1765 = vpack.c.b16 %v1755, %v1754
        %v1766 = vpack.c.b16 %v1757, %v1756
        %v1767 = vpack.c.b16 %v1759, %v1758
        %v1769 = vsel %vm476, %v1760, 0
        %v1772 = vsel %vm476, %v1761, 0
        %v1775 = vsel %vm476, %v1762, 0
        %v1778 = vsel %vm476, %v1763, 0
        %v1781 = vsel %vm476, %v1764, 0
        %v1784 = vsel %vm476, %v1765, 0
        %v1787 = vsel %vm476, %v1766, 0
        %v1790 = vsel %vm476, %v1767, 0
        %v1793 = vsel %vm501, %v1735, 0
        %1795 = vmatprep.subr.bf16.mxu0 0
        %1796 = vmatpush1.bf16.msra.mxu0 %v1793
        %1797 = vmatprep.subr.bf16.mxu0 0
        %1798 = vmatpush1.bf16.msra.mxu0 0
        %1799 = vmatprep.subr.bf16.mxu0 0
        %1800 = vmatpush1.bf16.msra.mxu0 0
        %1801 = vmatprep.subr.bf16.mxu0 0
        %1802 = vmatpush1.bf16.msra.mxu0 0
        %1803 = vmatprep.subr.bf16.mxu0 0
        %1804 = vmatpush1.bf16.msra.mxu0 0
        %1805 = vmatprep.subr.bf16.mxu0 0
        %1806 = vmatpush1.bf16.msra.mxu0 0
        %1807 = vmatprep.subr.bf16.mxu0 0
        %1808 = vmatpush1.bf16.msra.mxu0 0
        %1809 = vmatprep.subr.bf16.mxu0 0
        %1810 = vmatpush1.bf16.msra.mxu0 0
        %1811 = vmatprep.subr.bf16.mxu0 0
        %1812 = vmatpush1.bf16.msra.mxu0 0
        %1813 = vmatprep.subr.bf16.mxu0 0
        %1814 = vmatpush1.bf16.msra.mxu0 0
        %1815 = vmatprep.subr.bf16.mxu0 0
        %1816 = vmatpush1.bf16.msra.mxu0 0
        %1817 = vmatprep.subr.bf16.mxu0 0
        %1818 = vmatpush1.bf16.msra.mxu0 0
        %1819 = vmatprep.subr.bf16.mxu0 0
        %1820 = vmatpush1.bf16.msra.mxu0 0
        %1821 = vmatprep.subr.bf16.mxu0 0
        %1822 = vmatpush1.bf16.msra.mxu0 0
        %1823 = vmatprep.subr.bf16.mxu0 0
        %1824 = vmatpush1.bf16.msra.mxu0 0
        %1825 = vmatprep.subr.bf16.mxu0 0
        %1826 = vmatpush1.bf16.msra.mxu0 0
        %1827 = vmatprep.mubr.bf16.mxu0 0
        %1828 = vmatmul.mubr.bf16.gmra.mrb[0].mxu0 %v1769
        %v1829 = vpop.f32.mrb[0].mxu0
        %v1830 = vadd.f32 0.0, %v1829
        %v1831 = vpop.f32.mrb[0].mxu0
        %v1832 = vpop.f32.mrb[0].mxu0
        %v1833 = vadd.f32 0.0, %v1832
        %v1834 = vpop.f32.mrb[0].mxu0
        %1835 = vmatprep.mubr.bf16.mxu0 0
        %1836 = vmatmul.mubr.bf16.gmra.mrb[0].mxu0 %v1772
        %v1837 = vpop.f32.mrb[0].mxu0
        %v1838 = vadd.f32 0.0, %v1837
        %v1839 = vpop.f32.mrb[0].mxu0
        %v1840 = vpop.f32.mrb[0].mxu0
        %v1841 = vadd.f32 0.0, %v1840
        %v1842 = vpop.f32.mrb[0].mxu0
        %1843 = vmatprep.mubr.bf16.mxu0 0
        %1844 = vmatmul.mubr.bf16.gmra.mrb[0].mxu0 %v1775
        %v1845 = vpop.f32.mrb[0].mxu0
        %v1846 = vadd.f32 0.0, %v1845
        %v1847 = vpop.f32.mrb[0].mxu0
        %v1848 = vpop.f32.mrb[0].mxu0
        %v1849 = vadd.f32 0.0, %v1848
        %v1850 = vpop.f32.mrb[0].mxu0
        %1851 = vmatprep.mubr.bf16.mxu0 0
        %1852 = vmatmul.mubr.bf16.gmra.mrb[0].mxu0 %v1778
        %v1853 = vpop.f32.mrb[0].mxu0
        %v1854 = vadd.f32 0.0, %v1853
        %v1855 = vpop.f32.mrb[0].mxu0
        %v1856 = vpop.f32.mrb[0].mxu0
        %v1857 = vadd.f32 0.0, %v1856
        %v1858 = vpop.f32.mrb[0].mxu0
        %1859 = vmatprep.mubr.bf16.mxu0 0
        %1860 = vmatmul.mubr.bf16.gmra.mrb[0].mxu0 %v1781
        %v1861 = vpop.f32.mrb[0].mxu0
        %v1862 = vadd.f32 0.0, %v1861
        %v1863 = vpop.f32.mrb[0].mxu0
        %v1864 = vpop.f32.mrb[0].mxu0
        %v1865 = vadd.f32 0.0, %v1864
        %v1866 = vpop.f32.mrb[0].mxu0
        %1867 = vmatprep.mubr.bf16.mxu0 0
        %1868 = vmatmul.mubr.bf16.gmra.mrb[0].mxu0 %v1784
        %v1869 = vpop.f32.mrb[0].mxu0
        %v1870 = vadd.f32 0.0, %v1869
        %v1871 = vpop.f32.mrb[0].mxu0
        %v1872 = vpop.f32.mrb[0].mxu0
        %v1873 = vadd.f32 0.0, %v1872
        %v1874 = vpop.f32.mrb[0].mxu0
        %1875 = vmatprep.mubr.bf16.mxu0 0
        %1876 = vmatmul.mubr.bf16.gmra.mrb[0].mxu0 %v1787
        %v1877 = vpop.f32.mrb[0].mxu0
        %v1878 = vadd.f32 0.0, %v1877
        %v1879 = vpop.f32.mrb[0].mxu0
        %v1880 = vpop.f32.mrb[0].mxu0
        %v1881 = vadd.f32 0.0, %v1880
        %v1882 = vpop.f32.mrb[0].mxu0
        %1883 = vmatprep.mubr.bf16.mxu0 0
        %1884 = vmatmul.mubr.bf16.gmra.mrb[0].mxu0 %v1790
        %v1885 = vpop.f32.mrb[0].mxu0
        %v1886 = vadd.f32 0.0, %v1885
        %v1887 = vpop.f32.mrb[0].mxu0
        %v1888 = vpop.f32.mrb[0].mxu0
        %v1889 = vadd.f32 0.0, %v1888
        %v1890 = vpop.f32.mrb[0].mxu0
        %1891 = vdwg.mxu0
        %v1892 = vadd.f32 %v1710, %v1830
        %v1893 = vadd.f32 %v1711, %v1833
        %v1894 = vadd.f32 %v1712, %v1838
        %v1895 = vadd.f32 %v1713, %v1841
        %v1896 = vadd.f32 %v1714, %v1846
        %v1897 = vadd.f32 %v1715, %v1849
        %v1898 = vadd.f32 %v1716, %v1854
        %v1899 = vadd.f32 %v1717, %v1857
        %v1900 = vadd.f32 %v1718, %v1862
        %v1901 = vadd.f32 %v1719, %v1865
        %v1902 = vadd.f32 %v1720, %v1870
        %v1903 = vadd.f32 %v1721, %v1873
        %v1904 = vadd.f32 %v1722, %v1878
        %v1905 = vadd.f32 %v1723, %v1881
        %v1906 = vadd.f32 %v1724, %v1886
        %v1907 = vadd.f32 %v1725, %v1889
        %s1908 = sadd.s32 %s334, 24
        %s1909 = smul.u32 %s1908, 7
        %s1910 = smul.addr %s1909, 4
        %s1911 = scalar_lea.vmem %s328, %s1910
        %v1912 = vld [vmem:[%s1911 + $0x4] sm:$0xc]
        %v1913 = vld [vmem:[%s1911 + $0x8] sm:$0xf]
        %v1914 = vld [vmem:[%s1911 + $0xc] sm:$0x3]
        %v1915 = vld [vmem:[%s1911 + $0x20] sm:$0xc]
        %v1916 = vld [vmem:[%s1911 + $0x24] sm:$0xf]
        %v1917 = vld [vmem:[%s1911 + $0x28] sm:$0x3]
        %v1918 = vld [vmem:[%s1911 + $0x3c] sm:$0xc]
        %v1919 = vld [vmem:[%s1911 + $0x40] sm:$0xf]
        %v1920 = vld [vmem:[%s1911 + $0x44] sm:$0x3]
        %v1921 = vld [vmem:[%s1911 + $0x58] sm:$0xc]
        %v1922 = vld [vmem:[%s1911 + $0x5c] sm:$0xf]
        %v1923 = vld [vmem:[%s1911 + $0x60] sm:$0x3]
        %v1924 = vld [vmem:[%s1911 + $0x74] sm:$0xc]
        %v1925 = vld [vmem:[%s1911 + $0x78] sm:$0xf]
        %v1926 = vld [vmem:[%s1911 + $0x7c] sm:$0x3]
        %v1927 = vld [vmem:[%s1911 + $0x90] sm:$0xc]
        %v1928 = vld [vmem:[%s1911 + $0x94] sm:$0xf]
        %v1929 = vld [vmem:[%s1911 + $0x98] sm:$0x3]
        %v1930 = vld [vmem:[%s1911 + $0xac] sm:$0xc]
        %v1931 = vld [vmem:[%s1911 + $0xb0] sm:$0xf]
        %v1932 = vld [vmem:[%s1911 + $0xb4] sm:$0x3]
        %v1933 = vld [vmem:[%s1911 + $0xc8] sm:$0xc]
        %v1934 = vld [vmem:[%s1911 + $0xcc] sm:$0xf]
        %v1935 = vld [vmem:[%s1911 + $0xd0] sm:$0x3]
        %v1960 = vrot.slane %v1912, 6
        %v1961 = vrot.slane %v1960, 4
        %v1962 = vrot.slane %v1913, 6
        %v1963 = vsel %vm696, %v1961, %v1962
        %v1964 = vrot.slane %v1962, 4
        %v1965 = vrot.slane %v1914, 6
        %v1966 = vsel %vm696, %v1964, %v1965
        %v1967 = vrot.slane %v1915, 6
        %v1968 = vrot.slane %v1967, 4
        %v1969 = vrot.slane %v1916, 6
        %v1970 = vsel %vm696, %v1968, %v1969
        %v1971 = vrot.slane %v1969, 4
        %v1972 = vrot.slane %v1917, 6
        %v1973 = vsel %vm696, %v1971, %v1972
        %v1974 = vrot.slane %v1918, 6
        %v1975 = vrot.slane %v1974, 4
        %v1976 = vrot.slane %v1919, 6
        %v1977 = vsel %vm696, %v1975, %v1976
        %v1978 = vrot.slane %v1976, 4
        %v1979 = vrot.slane %v1920, 6
        %v1980 = vsel %vm696, %v1978, %v1979
        %v1981 = vrot.slane %v1921, 6
        %v1982 = vrot.slane %v1981, 4
        %v1983 = vrot.slane %v1922, 6
        %v1984 = vsel %vm696, %v1982, %v1983
        %v1985 = vrot.slane %v1983, 4
        %v1986 = vrot.slane %v1923, 6
        %v1987 = vsel %vm696, %v1985, %v1986
        %v1988 = vrot.slane %v1924, 6
        %v1989 = vrot.slane %v1988, 4
        %v1990 = vrot.slane %v1925, 6
        %v1991 = vsel %vm696, %v1989, %v1990
        %v1992 = vrot.slane %v1990, 4
        %v1993 = vrot.slane %v1926, 6
        %v1994 = vsel %vm696, %v1992, %v1993
        %v1995 = vrot.slane %v1927, 6
        %v1996 = vrot.slane %v1995, 4
        %v1997 = vrot.slane %v1928, 6
        %v1998 = vsel %vm696, %v1996, %v1997
        %v1999 = vrot.slane %v1997, 4
        %v2000 = vrot.slane %v1929, 6
        %v2001 = vsel %vm696, %v1999, %v2000
        %v2002 = vrot.slane %v1930, 6
        %v2003 = vrot.slane %v2002, 4
        %v2004 = vrot.slane %v1931, 6
        %v2005 = vsel %vm696, %v2003, %v2004
        %v2006 = vrot.slane %v2004, 4
        %v2007 = vrot.slane %v1932, 6
        %v2008 = vsel %vm696, %v2006, %v2007
        %v2009 = vrot.slane %v1933, 6
        %v2010 = vrot.slane %v2009, 4
        %v2011 = vrot.slane %v1934, 6
        %v2012 = vsel %vm696, %v2010, %v2011
        %v2013 = vrot.slane %v2011, 4
        %v2014 = vrot.slane %v1935, 6
        %v2015 = vsel %vm696, %v2013, %v2014
        %s2016 = scalar_lea.vmem %s2, 24
        %v2017 = vld [vmem:[%s2016] sm:$0xf]
        %v2018 = vunpack.c.l.b16 %v1963
        %v2019 = vunpack.c.l.b16 %v1966
        %v2020 = vunpack.c.l.b16 %v1970
        %v2021 = vunpack.c.l.b16 %v1973
        %v2022 = vunpack.c.l.b16 %v1977
        %v2023 = vunpack.c.l.b16 %v1980
        %v2024 = vunpack.c.l.b16 %v1984
        %v2025 = vunpack.c.l.b16 %v1987
        %v2026 = vunpack.c.l.b16 %v1991
        %v2027 = vunpack.c.l.b16 %v1994
        %v2028 = vunpack.c.l.b16 %v1998
        %v2029 = vunpack.c.l.b16 %v2001
        %v2030 = vunpack.c.l.b16 %v2005
        %v2031 = vunpack.c.l.b16 %v2008
        %v2032 = vunpack.c.l.b16 %v2012
        %v2033 = vunpack.c.l.b16 %v2015
        %v2034 = vpack.c.b16 %v2019, %v2018
        %v2035 = vpack.c.b16 %v2021, %v2020
        %v2036 = vpack.c.b16 %v2023, %v2022
        %v2037 = vpack.c.b16 %v2025, %v2024
        %v2038 = vpack.c.b16 %v2027, %v2026
        %v2039 = vpack.c.b16 %v2029, %v2028
        %v2040 = vpack.c.b16 %v2031, %v2030
        %v2041 = vpack.c.b16 %v2033, %v2032
        %v2043 = vsel %vm476, %v2034, 0
        %v2046 = vsel %vm476, %v2035, 0
        %v2049 = vsel %vm476, %v2036, 0
        %v2052 = vsel %vm476, %v2037, 0
        %v2055 = vsel %vm476, %v2038, 0
        %v2058 = vsel %vm476, %v2039, 0
        %v2061 = vsel %vm476, %v2040, 0
        %v2064 = vsel %vm476, %v2041, 0
        %v2067 = vsel %vm501, %v2017, 0
        %2069 = vmatprep.subr.bf16.mxu0 0
        %2070 = vmatpush1.bf16.msra.mxu0 %v2067
        %2071 = vmatprep.subr.bf16.mxu0 0
        %2072 = vmatpush1.bf16.msra.mxu0 0
        %2073 = vmatprep.subr.bf16.mxu0 0
        %2074 = vmatpush1.bf16.msra.mxu0 0
        %2075 = vmatprep.subr.bf16.mxu0 0
        %2076 = vmatpush1.bf16.msra.mxu0 0
        %2077 = vmatprep.subr.bf16.mxu0 0
        %2078 = vmatpush1.bf16.msra.mxu0 0
        %2079 = vmatprep.subr.bf16.mxu0 0
        %2080 = vmatpush1.bf16.msra.mxu0 0
        %2081 = vmatprep.subr.bf16.mxu0 0
        %2082 = vmatpush1.bf16.msra.mxu0 0
        %2083 = vmatprep.subr.bf16.mxu0 0
        %2084 = vmatpush1.bf16.msra.mxu0 0
        %2085 = vmatprep.subr.bf16.mxu0 0
        %2086 = vmatpush1.bf16.msra.mxu0 0
        %2087 = vmatprep.subr.bf16.mxu0 0
        %2088 = vmatpush1.bf16.msra.mxu0 0
        %2089 = vmatprep.subr.bf16.mxu0 0
        %2090 = vmatpush1.bf16.msra.mxu0 0
        %2091 = vmatprep.subr.bf16.mxu0 0
        %2092 = vmatpush1.bf16.msra.mxu0 0
        %2093 = vmatprep.subr.bf16.mxu0 0
        %2094 = vmatpush1.bf16.msra.mxu0 0
        %2095 = vmatprep.subr.bf16.mxu0 0
        %2096 = vmatpush1.bf16.msra.mxu0 0
        %2097 = vmatprep.subr.bf16.mxu0 0
        %2098 = vmatpush1.bf16.msra.mxu0 0
        %2099 = vmatprep.subr.bf16.mxu0 0
        %2100 = vmatpush1.bf16.msra.mxu0 0
        %2101 = vmatprep.mubr.bf16.mxu0 0
        %2102 = vmatmul.mubr.bf16.gmra.mrb[0].mxu0 %v2043
        %v2103 = vpop.f32.mrb[0].mxu0
        %v2104 = vadd.f32 0.0, %v2103
        %v2105 = vpop.f32.mrb[0].mxu0
        %v2106 = vpop.f32.mrb[0].mxu0
        %v2107 = vadd.f32 0.0, %v2106
        %v2108 = vpop.f32.mrb[0].mxu0
        %2109 = vmatprep.mubr.bf16.mxu0 0
        %2110 = vmatmul.mubr.bf16.gmra.mrb[0].mxu0 %v2046
        %v2111 = vpop.f32.mrb[0].mxu0
        %v2112 = vadd.f32 0.0, %v2111
        %v2113 = vpop.f32.mrb[0].mxu0
        %v2114 = vpop.f32.mrb[0].mxu0
        %v2115 = vadd.f32 0.0, %v2114
        %v2116 = vpop.f32.mrb[0].mxu0
        %2117 = vmatprep.mubr.bf16.mxu0 0
        %2118 = vmatmul.mubr.bf16.gmra.mrb[0].mxu0 %v2049
        %v2119 = vpop.f32.mrb[0].mxu0
        %v2120 = vadd.f32 0.0, %v2119
        %v2121 = vpop.f32.mrb[0].mxu0
        %v2122 = vpop.f32.mrb[0].mxu0
        %v2123 = vadd.f32 0.0, %v2122
        %v2124 = vpop.f32.mrb[0].mxu0
        %2125 = vmatprep.mubr.bf16.mxu0 0
        %2126 = vmatmul.mubr.bf16.gmra.mrb[0].mxu0 %v2052
        %v2127 = vpop.f32.mrb[0].mxu0
        %v2128 = vadd.f32 0.0, %v2127
        %v2129 = vpop.f32.mrb[0].mxu0
        %v2130 = vpop.f32.mrb[0].mxu0
        %v2131 = vadd.f32 0.0, %v2130
        %v2132 = vpop.f32.mrb[0].mxu0
        %2133 = vmatprep.mubr.bf16.mxu0 0
        %2134 = vmatmul.mubr.bf16.gmra.mrb[0].mxu0 %v2055
        %v2135 = vpop.f32.mrb[0].mxu0
        %v2136 = vadd.f32 0.0, %v2135
        %v2137 = vpop.f32.mrb[0].mxu0
        %v2138 = vpop.f32.mrb[0].mxu0
        %v2139 = vadd.f32 0.0, %v2138
        %v2140 = vpop.f32.mrb[0].mxu0
        %2141 = vmatprep.mubr.bf16.mxu0 0
        %2142 = vmatmul.mubr.bf16.gmra.mrb[0].mxu0 %v2058
        %v2143 = vpop.f32.mrb[0].mxu0
        %v2144 = vadd.f32 0.0, %v2143
        %v2145 = vpop.f32.mrb[0].mxu0
        %v2146 = vpop.f32.mrb[0].mxu0
        %v2147 = vadd.f32 0.0, %v2146
        %v2148 = vpop.f32.mrb[0].mxu0
        %2149 = vmatprep.mubr.bf16.mxu0 0
        %2150 = vmatmul.mubr.bf16.gmra.mrb[0].mxu0 %v2061
        %v2151 = vpop.f32.mrb[0].mxu0
        %v2152 = vadd.f32 0.0, %v2151
        %v2153 = vpop.f32.mrb[0].mxu0
        %v2154 = vpop.f32.mrb[0].mxu0
        %v2155 = vadd.f32 0.0, %v2154
        %v2156 = vpop.f32.mrb[0].mxu0
        %2157 = vmatprep.mubr.bf16.mxu0 0
        %2158 = vmatmul.mubr.bf16.gmra.mrb[0].mxu0 %v2064
        %v2159 = vpop.f32.mrb[0].mxu0
        %v2160 = vadd.f32 0.0, %v2159
        %v2161 = vpop.f32.mrb[0].mxu0
        %v2162 = vpop.f32.mrb[0].mxu0
        %v2163 = vadd.f32 0.0, %v2162
        %v2164 = vpop.f32.mrb[0].mxu0
        %2165 = vdwg.mxu0
        %v2166 = vadd.f32 %v1892, %v2104
        %v2167 = vadd.f32 %v1893, %v2107
        %v2168 = vadd.f32 %v1894, %v2112
        %v2169 = vadd.f32 %v1895, %v2115
        %v2170 = vadd.f32 %v1896, %v2120
        %v2171 = vadd.f32 %v1897, %v2123
        %v2172 = vadd.f32 %v1898, %v2128
        %v2173 = vadd.f32 %v1899, %v2131
        %v2174 = vadd.f32 %v1900, %v2136
        %v2175 = vadd.f32 %v1901, %v2139
        %v2176 = vadd.f32 %v1902, %v2144
        %v2177 = vadd.f32 %v1903, %v2147
        %v2178 = vadd.f32 %v1904, %v2152
        %v2179 = vadd.f32 %v1905, %v2155
        %v2180 = vadd.f32 %v1906, %v2160
        %v2181 = vadd.f32 %v1907, %v2163
        %v2182 = vld [vmem:[%s1911 + $0x8] sm:$0xe]
        %v2183 = vld [vmem:[%s1911 + $0xc] sm:$0xf]
        %v2184 = vld [vmem:[%s1911 + $0x10] sm:$0x1]
        %v2185 = vld [vmem:[%s1911 + $0x24] sm:$0xe]
        %v2186 = vld [vmem:[%s1911 + $0x28] sm:$0xf]
        %v2187 = vld [vmem:[%s1911 + $0x2c] sm:$0x1]
        %v2188 = vld [vmem:[%s1911 + $0x40] sm:$0xe]
        %v2189 = vld [vmem:[%s1911 + $0x44] sm:$0xf]
        %v2190 = vld [vmem:[%s1911 + $0x48] sm:$0x1]
        %v2191 = vld [vmem:[%s1911 + $0x5c] sm:$0xe]
        %v2192 = vld [vmem:[%s1911 + $0x60] sm:$0xf]
        %v2193 = vld [vmem:[%s1911 + $0x64] sm:$0x1]
        %v2194 = vld [vmem:[%s1911 + $0x78] sm:$0xe]
        %v2195 = vld [vmem:[%s1911 + $0x7c] sm:$0xf]
        %v2196 = vld [vmem:[%s1911 + $0x80] sm:$0x1]
        %v2197 = vld [vmem:[%s1911 + $0x94] sm:$0xe]
        %v2198 = vld [vmem:[%s1911 + $0x98] sm:$0xf]
        %v2199 = vld [vmem:[%s1911 + $0x9c] sm:$0x1]
        %v2200 = vld [vmem:[%s1911 + $0xb0] sm:$0xe]
        %v2201 = vld [vmem:[%s1911 + $0xb4] sm:$0xf]
        %v2202 = vld [vmem:[%s1911 + $0xb8] sm:$0x1]
        %v2203 = vld [vmem:[%s1911 + $0xcc] sm:$0xe]
        %v2204 = vld [vmem:[%s1911 + $0xd0] sm:$0xf]
        %v2205 = vld [vmem:[%s1911 + $0xd4] sm:$0x1]
        %v2230 = vrot.slane %v2182, 5
        %v2231 = vrot.slane %v2230, 4
        %v2232 = vrot.slane %v2183, 5
        %v2233 = vsel %vm389, %v2231, %v2232
        %v2234 = vrot.slane %v2232, 4
        %v2235 = vrot.slane %v2184, 5
        %v2236 = vsel %vm389, %v2234, %v2235
        %v2237 = vrot.slane %v2185, 5
        %v2238 = vrot.slane %v2237, 4
        %v2239 = vrot.slane %v2186, 5
        %v2240 = vsel %vm389, %v2238, %v2239
        %v2241 = vrot.slane %v2239, 4
        %v2242 = vrot.slane %v2187, 5
        %v2243 = vsel %vm389, %v2241, %v2242
        %v2244 = vrot.slane %v2188, 5
        %v2245 = vrot.slane %v2244, 4
        %v2246 = vrot.slane %v2189, 5
        %v2247 = vsel %vm389, %v2245, %v2246
        %v2248 = vrot.slane %v2246, 4
        %v2249 = vrot.slane %v2190, 5
        %v2250 = vsel %vm389, %v2248, %v2249
        %v2251 = vrot.slane %v2191, 5
        %v2252 = vrot.slane %v2251, 4
        %v2253 = vrot.slane %v2192, 5
        %v2254 = vsel %vm389, %v2252, %v2253
        %v2255 = vrot.slane %v2253, 4
        %v2256 = vrot.slane %v2193, 5
        %v2257 = vsel %vm389, %v2255, %v2256
        %v2258 = vrot.slane %v2194, 5
        %v2259 = vrot.slane %v2258, 4
        %v2260 = vrot.slane %v2195, 5
        %v2261 = vsel %vm389, %v2259, %v2260
        %v2262 = vrot.slane %v2260, 4
        %v2263 = vrot.slane %v2196, 5
        %v2264 = vsel %vm389, %v2262, %v2263
        %v2265 = vrot.slane %v2197, 5
        %v2266 = vrot.slane %v2265, 4
        %v2267 = vrot.slane %v2198, 5
        %v2268 = vsel %vm389, %v2266, %v2267
        %v2269 = vrot.slane %v2267, 4
        %v2270 = vrot.slane %v2199, 5
        %v2271 = vsel %vm389, %v2269, %v2270
        %v2272 = vrot.slane %v2200, 5
        %v2273 = vrot.slane %v2272, 4
        %v2274 = vrot.slane %v2201, 5
        %v2275 = vsel %vm389, %v2273, %v2274
        %v2276 = vrot.slane %v2274, 4
        %v2277 = vrot.slane %v2202, 5
        %v2278 = vsel %vm389, %v2276, %v2277
        %v2279 = vrot.slane %v2203, 5
        %v2280 = vrot.slane %v2279, 4
        %v2281 = vrot.slane %v2204, 5
        %v2282 = vsel %vm389, %v2280, %v2281
        %v2283 = vrot.slane %v2281, 4
        %v2284 = vrot.slane %v2205, 5
        %v2285 = vsel %vm389, %v2283, %v2284
        %s2286 = scalar_lea.vmem %s2, 28
        %v2287 = vld [vmem:[%s2286] sm:$0xf]
        %v2288 = vunpack.c.l.b16 %v2233
        %v2289 = vunpack.c.l.b16 %v2236
        %v2290 = vunpack.c.l.b16 %v2240
        %v2291 = vunpack.c.l.b16 %v2243
        %v2292 = vunpack.c.l.b16 %v2247
        %v2293 = vunpack.c.l.b16 %v2250
        %v2294 = vunpack.c.l.b16 %v2254
        %v2295 = vunpack.c.l.b16 %v2257
        %v2296 = vunpack.c.l.b16 %v2261
        %v2297 = vunpack.c.l.b16 %v2264
        %v2298 = vunpack.c.l.b16 %v2268
        %v2299 = vunpack.c.l.b16 %v2271
        %v2300 = vunpack.c.l.b16 %v2275
        %v2301 = vunpack.c.l.b16 %v2278
        %v2302 = vunpack.c.l.b16 %v2282
        %v2303 = vunpack.c.l.b16 %v2285
        %v2304 = vpack.c.b16 %v2289, %v2288
        %v2305 = vpack.c.b16 %v2291, %v2290
        %v2306 = vpack.c.b16 %v2293, %v2292
        %v2307 = vpack.c.b16 %v2295, %v2294
        %v2308 = vpack.c.b16 %v2297, %v2296
        %v2309 = vpack.c.b16 %v2299, %v2298
        %v2310 = vpack.c.b16 %v2301, %v2300
        %v2311 = vpack.c.b16 %v2303, %v2302
        %v2313 = vsel %vm476, %v2304, 0
        %v2316 = vsel %vm476, %v2305, 0
        %v2319 = vsel %vm476, %v2306, 0
        %v2322 = vsel %vm476, %v2307, 0
        %v2325 = vsel %vm476, %v2308, 0
        %v2328 = vsel %vm476, %v2309, 0
        %v2331 = vsel %vm476, %v2310, 0
        %v2334 = vsel %vm476, %v2311, 0
        %v2337 = vsel %vm501, %v2287, 0
        %2339 = vmatprep.subr.bf16.mxu0 0
        %2340 = vmatpush1.bf16.msra.mxu0 %v2337
        %2341 = vmatprep.subr.bf16.mxu0 0
        %2342 = vmatpush1.bf16.msra.mxu0 0
        %2343 = vmatprep.subr.bf16.mxu0 0
        %2344 = vmatpush1.bf16.msra.mxu0 0
        %2345 = vmatprep.subr.bf16.mxu0 0
        %2346 = vmatpush1.bf16.msra.mxu0 0
        %2347 = vmatprep.subr.bf16.mxu0 0
        %2348 = vmatpush1.bf16.msra.mxu0 0
        %2349 = vmatprep.subr.bf16.mxu0 0
        %2350 = vmatpush1.bf16.msra.mxu0 0
        %2351 = vmatprep.subr.bf16.mxu0 0
        %2352 = vmatpush1.bf16.msra.mxu0 0
        %2353 = vmatprep.subr.bf16.mxu0 0
        %2354 = vmatpush1.bf16.msra.mxu0 0
        %2355 = vmatprep.subr.bf16.mxu0 0
        %2356 = vmatpush1.bf16.msra.mxu0 0
        %2357 = vmatprep.subr.bf16.mxu0 0
        %2358 = vmatpush1.bf16.msra.mxu0 0
        %2359 = vmatprep.subr.bf16.mxu0 0
        %2360 = vmatpush1.bf16.msra.mxu0 0
        %2361 = vmatprep.subr.bf16.mxu0 0
        %2362 = vmatpush1.bf16.msra.mxu0 0
        %2363 = vmatprep.subr.bf16.mxu0 0
        %2364 = vmatpush1.bf16.msra.mxu0 0
        %2365 = vmatprep.subr.bf16.mxu0 0
        %2366 = vmatpush1.bf16.msra.mxu0 0
        %2367 = vmatprep.subr.bf16.mxu0 0
        %2368 = vmatpush1.bf16.msra.mxu0 0
        %2369 = vmatprep.subr.bf16.mxu0 0
        %2370 = vmatpush1.bf16.msra.mxu0 0
        %2371 = vmatprep.mubr.bf16.mxu0 0
        %2372 = vmatmul.mubr.bf16.gmra.mrb[0].mxu0 %v2313
        %v2373 = vpop.f32.mrb[0].mxu0
        %v2374 = vadd.f32 0.0, %v2373
        %v2375 = vpop.f32.mrb[0].mxu0
        %v2376 = vpop.f32.mrb[0].mxu0
        %v2377 = vadd.f32 0.0, %v2376
        %v2378 = vpop.f32.mrb[0].mxu0
        %2379 = vmatprep.mubr.bf16.mxu0 0
        %2380 = vmatmul.mubr.bf16.gmra.mrb[0].mxu0 %v2316
        %v2381 = vpop.f32.mrb[0].mxu0
        %v2382 = vadd.f32 0.0, %v2381
        %v2383 = vpop.f32.mrb[0].mxu0
        %v2384 = vpop.f32.mrb[0].mxu0
        %v2385 = vadd.f32 0.0, %v2384
        %v2386 = vpop.f32.mrb[0].mxu0
        %2387 = vmatprep.mubr.bf16.mxu0 0
        %2388 = vmatmul.mubr.bf16.gmra.mrb[0].mxu0 %v2319
        %v2389 = vpop.f32.mrb[0].mxu0
        %v2390 = vadd.f32 0.0, %v2389
        %v2391 = vpop.f32.mrb[0].mxu0
        %v2392 = vpop.f32.mrb[0].mxu0
        %v2393 = vadd.f32 0.0, %v2392
        %v2394 = vpop.f32.mrb[0].mxu0
        %2395 = vmatprep.mubr.bf16.mxu0 0
        %2396 = vmatmul.mubr.bf16.gmra.mrb[0].mxu0 %v2322
        %v2397 = vpop.f32.mrb[0].mxu0
        %v2398 = vadd.f32 0.0, %v2397
        %v2399 = vpop.f32.mrb[0].mxu0
        %v2400 = vpop.f32.mrb[0].mxu0
        %v2401 = vadd.f32 0.0, %v2400
        %v2402 = vpop.f32.mrb[0].mxu0
        %2403 = vmatprep.mubr.bf16.mxu0 0
        %2404 = vmatmul.mubr.bf16.gmra.mrb[0].mxu0 %v2325
        %v2405 = vpop.f32.mrb[0].mxu0
        %v2406 = vadd.f32 0.0, %v2405
        %v2407 = vpop.f32.mrb[0].mxu0
        %v2408 = vpop.f32.mrb[0].mxu0
        %v2409 = vadd.f32 0.0, %v2408
        %v2410 = vpop.f32.mrb[0].mxu0
        %2411 = vmatprep.mubr.bf16.mxu0 0
        %2412 = vmatmul.mubr.bf16.gmra.mrb[0].mxu0 %v2328
        %v2413 = vpop.f32.mrb[0].mxu0
        %v2414 = vadd.f32 0.0, %v2413
        %v2415 = vpop.f32.mrb[0].mxu0
        %v2416 = vpop.f32.mrb[0].mxu0
        %v2417 = vadd.f32 0.0, %v2416
        %v2418 = vpop.f32.mrb[0].mxu0
        %2419 = vmatprep.mubr.bf16.mxu0 0
        %2420 = vmatmul.mubr.bf16.gmra.mrb[0].mxu0 %v2331
        %v2421 = vpop.f32.mrb[0].mxu0
        %v2422 = vadd.f32 0.0, %v2421
        %v2423 = vpop.f32.mrb[0].mxu0
        %v2424 = vpop.f32.mrb[0].mxu0
        %v2425 = vadd.f32 0.0, %v2424
        %v2426 = vpop.f32.mrb[0].mxu0
        %2427 = vmatprep.mubr.bf16.mxu0 0
        %2428 = vmatmul.mubr.bf16.gmra.mrb[0].mxu0 %v2334
        %v2429 = vpop.f32.mrb[0].mxu0
        %v2430 = vadd.f32 0.0, %v2429
        %v2431 = vpop.f32.mrb[0].mxu0
        %v2432 = vpop.f32.mrb[0].mxu0
        %v2433 = vadd.f32 0.0, %v2432
        %v2434 = vpop.f32.mrb[0].mxu0
        %2435 = vdwg.mxu0
        %v2436 = vadd.f32 %v2166, %v2374
        %v2437 = vadd.f32 %v2167, %v2377
        %v2438 = vadd.f32 %v2168, %v2382
        %v2439 = vadd.f32 %v2169, %v2385
        %v2440 = vadd.f32 %v2170, %v2390
        %v2441 = vadd.f32 %v2171, %v2393
        %v2442 = vadd.f32 %v2172, %v2398
        %v2443 = vadd.f32 %v2173, %v2401
        %v2444 = vadd.f32 %v2174, %v2406
        %v2445 = vadd.f32 %v2175, %v2409
        %v2446 = vadd.f32 %v2176, %v2414
        %v2447 = vadd.f32 %v2177, %v2417
        %v2448 = vadd.f32 %v2178, %v2422
        %v2449 = vadd.f32 %v2179, %v2425
        %v2450 = vadd.f32 %v2180, %v2430
        %v2451 = vadd.f32 %v2181, %v2433
        %v2452 = vld [vmem:[%s1911 + $0x10] sm:$0xf]
        %v2453 = vld [vmem:[%s1911 + $0x2c] sm:$0xf]
        %v2454 = vld [vmem:[%s1911 + $0x48] sm:$0xf]
        %v2455 = vld [vmem:[%s1911 + $0x64] sm:$0xf]
        %v2456 = vld [vmem:[%s1911 + $0x80] sm:$0xf]
        %v2457 = vld [vmem:[%s1911 + $0x9c] sm:$0xf]
        %v2458 = vld [vmem:[%s1911 + $0xb8] sm:$0xf]
        %v2459 = vld [vmem:[%s1911 + $0xd4] sm:$0xf]
        %s2460 = scalar_lea.vmem %s2, 32
        %v2461 = vld [vmem:[%s2460] sm:$0xf]
        %v2470 = vunpack.c.l.b16 %v2183
        %v2471 = vunpack.c.l.b16 %v2452
        %v2472 = vunpack.c.l.b16 %v2186
        %v2473 = vunpack.c.l.b16 %v2453
        %v2474 = vunpack.c.l.b16 %v2189
        %v2475 = vunpack.c.l.b16 %v2454
        %v2476 = vunpack.c.l.b16 %v2192
        %v2477 = vunpack.c.l.b16 %v2455
        %v2478 = vunpack.c.l.b16 %v2195
        %v2479 = vunpack.c.l.b16 %v2456
        %v2480 = vunpack.c.l.b16 %v2198
        %v2481 = vunpack.c.l.b16 %v2457
        %v2482 = vunpack.c.l.b16 %v2201
        %v2483 = vunpack.c.l.b16 %v2458
        %v2484 = vunpack.c.l.b16 %v2204
        %v2485 = vunpack.c.l.b16 %v2459
        %v2486 = vpack.c.b16 %v2471, %v2470
        %v2487 = vpack.c.b16 %v2473, %v2472
        %v2488 = vpack.c.b16 %v2475, %v2474
        %v2489 = vpack.c.b16 %v2477, %v2476
        %v2490 = vpack.c.b16 %v2479, %v2478
        %v2491 = vpack.c.b16 %v2481, %v2480
        %v2492 = vpack.c.b16 %v2483, %v2482
        %v2493 = vpack.c.b16 %v2485, %v2484
        %v2495 = vsel %vm476, %v2486, 0
        %v2498 = vsel %vm476, %v2487, 0
        %v2501 = vsel %vm476, %v2488, 0
        %v2504 = vsel %vm476, %v2489, 0
        %v2507 = vsel %vm476, %v2490, 0
        %v2510 = vsel %vm476, %v2491, 0
        %v2513 = vsel %vm476, %v2492, 0
        %v2516 = vsel %vm476, %v2493, 0
        %v2519 = vsel %vm501, %v2461, 0
        %2521 = vmatprep.subr.bf16.mxu0 0
        %2522 = vmatpush1.bf16.msra.mxu0 %v2519
        %2523 = vmatprep.subr.bf16.mxu0 0
        %2524 = vmatpush1.bf16.msra.mxu0 0
        %2525 = vmatprep.subr.bf16.mxu0 0
        %2526 = vmatpush1.bf16.msra.mxu0 0
        %2527 = vmatprep.subr.bf16.mxu0 0
        %2528 = vmatpush1.bf16.msra.mxu0 0
        %2529 = vmatprep.subr.bf16.mxu0 0
        %2530 = vmatpush1.bf16.msra.mxu0 0
        %2531 = vmatprep.subr.bf16.mxu0 0
        %2532 = vmatpush1.bf16.msra.mxu0 0
        %2533 = vmatprep.subr.bf16.mxu0 0
        %2534 = vmatpush1.bf16.msra.mxu0 0
        %2535 = vmatprep.subr.bf16.mxu0 0
        %2536 = vmatpush1.bf16.msra.mxu0 0
        %2537 = vmatprep.subr.bf16.mxu0 0
        %2538 = vmatpush1.bf16.msra.mxu0 0
        %2539 = vmatprep.subr.bf16.mxu0 0
        %2540 = vmatpush1.bf16.msra.mxu0 0
        %2541 = vmatprep.subr.bf16.mxu0 0
        %2542 = vmatpush1.bf16.msra.mxu0 0
        %2543 = vmatprep.subr.bf16.mxu0 0
        %2544 = vmatpush1.bf16.msra.mxu0 0
        %2545 = vmatprep.subr.bf16.mxu0 0
        %2546 = vmatpush1.bf16.msra.mxu0 0
        %2547 = vmatprep.subr.bf16.mxu0 0
        %2548 = vmatpush1.bf16.msra.mxu0 0
        %2549 = vmatprep.subr.bf16.mxu0 0
        %2550 = vmatpush1.bf16.msra.mxu0 0
        %2551 = vmatprep.subr.bf16.mxu0 0
        %2552 = vmatpush1.bf16.msra.mxu0 0
        %2553 = vmatprep.mubr.bf16.mxu0 0
        %2554 = vmatmul.mubr.bf16.gmra.mrb[0].mxu0 %v2495
        %v2555 = vpop.f32.mrb[0].mxu0
        %v2556 = vadd.f32 0.0, %v2555
        %v2557 = vpop.f32.mrb[0].mxu0
        %v2558 = vpop.f32.mrb[0].mxu0
        %v2559 = vadd.f32 0.0, %v2558
        %v2560 = vpop.f32.mrb[0].mxu0
        %2561 = vmatprep.mubr.bf16.mxu0 0
        %2562 = vmatmul.mubr.bf16.gmra.mrb[0].mxu0 %v2498
        %v2563 = vpop.f32.mrb[0].mxu0
        %v2564 = vadd.f32 0.0, %v2563
        %v2565 = vpop.f32.mrb[0].mxu0
        %v2566 = vpop.f32.mrb[0].mxu0
        %v2567 = vadd.f32 0.0, %v2566
        %v2568 = vpop.f32.mrb[0].mxu0
        %2569 = vmatprep.mubr.bf16.mxu0 0
        %2570 = vmatmul.mubr.bf16.gmra.mrb[0].mxu0 %v2501
        %v2571 = vpop.f32.mrb[0].mxu0
        %v2572 = vadd.f32 0.0, %v2571
        %v2573 = vpop.f32.mrb[0].mxu0
        %v2574 = vpop.f32.mrb[0].mxu0
        %v2575 = vadd.f32 0.0, %v2574
        %v2576 = vpop.f32.mrb[0].mxu0
        %2577 = vmatprep.mubr.bf16.mxu0 0
        %2578 = vmatmul.mubr.bf16.gmra.mrb[0].mxu0 %v2504
        %v2579 = vpop.f32.mrb[0].mxu0
        %v2580 = vadd.f32 0.0, %v2579
        %v2581 = vpop.f32.mrb[0].mxu0
        %v2582 = vpop.f32.mrb[0].mxu0
        %v2583 = vadd.f32 0.0, %v2582
        %v2584 = vpop.f32.mrb[0].mxu0
        %2585 = vmatprep.mubr.bf16.mxu0 0
        %2586 = vmatmul.mubr.bf16.gmra.mrb[0].mxu0 %v2507
        %v2587 = vpop.f32.mrb[0].mxu0
        %v2588 = vadd.f32 0.0, %v2587
        %v2589 = vpop.f32.mrb[0].mxu0
        %v2590 = vpop.f32.mrb[0].mxu0
        %v2591 = vadd.f32 0.0, %v2590
        %v2592 = vpop.f32.mrb[0].mxu0
        %2593 = vmatprep.mubr.bf16.mxu0 0
        %2594 = vmatmul.mubr.bf16.gmra.mrb[0].mxu0 %v2510
        %v2595 = vpop.f32.mrb[0].mxu0
        %v2596 = vadd.f32 0.0, %v2595
        %v2597 = vpop.f32.mrb[0].mxu0
        %v2598 = vpop.f32.mrb[0].mxu0
        %v2599 = vadd.f32 0.0, %v2598
        %v2600 = vpop.f32.mrb[0].mxu0
        %2601 = vmatprep.mubr.bf16.mxu0 0
        %2602 = vmatmul.mubr.bf16.gmra.mrb[0].mxu0 %v2513
        %v2603 = vpop.f32.mrb[0].mxu0
        %v2604 = vadd.f32 0.0, %v2603
        %v2605 = vpop.f32.mrb[0].mxu0
        %v2606 = vpop.f32.mrb[0].mxu0
        %v2607 = vadd.f32 0.0, %v2606
        %v2608 = vpop.f32.mrb[0].mxu0
        %2609 = vmatprep.mubr.bf16.mxu0 0
        %2610 = vmatmul.mubr.bf16.gmra.mrb[0].mxu0 %v2516
        %v2611 = vpop.f32.mrb[0].mxu0
        %v2612 = vadd.f32 0.0, %v2611
        %v2613 = vpop.f32.mrb[0].mxu0
        %v2614 = vpop.f32.mrb[0].mxu0
        %v2615 = vadd.f32 0.0, %v2614
        %v2616 = vpop.f32.mrb[0].mxu0
        %2617 = vdwg.mxu0
        %v2618 = vadd.f32 %v2436, %v2556
        %v2619 = vadd.f32 %v2437, %v2559
        %v2620 = vadd.f32 %v2438, %v2564
        %v2621 = vadd.f32 %v2439, %v2567
        %v2622 = vadd.f32 %v2440, %v2572
        %v2623 = vadd.f32 %v2441, %v2575
        %v2624 = vadd.f32 %v2442, %v2580
        %v2625 = vadd.f32 %v2443, %v2583
        %v2626 = vadd.f32 %v2444, %v2588
        %v2627 = vadd.f32 %v2445, %v2591
        %v2628 = vadd.f32 %v2446, %v2596
        %v2629 = vadd.f32 %v2447, %v2599
        %v2630 = vadd.f32 %v2448, %v2604
        %v2631 = vadd.f32 %v2449, %v2607
        %v2632 = vadd.f32 %v2450, %v2612
        %v2633 = vadd.f32 %v2451, %v2615
        %v2634 = vld [vmem:[%s6 + $0x1] sm:$0x1]
        %v2635 = vlaneseq
        %v2636 = vshrl.u32 %v2635, 7
        %v2637 = vsub.s32 0, %v2636
        %v2638 = vrot.slane %v2634, %v2637
        %v2639 = vadd.f32 %v2618, %v2638
        %v2640 = vadd.f32 %v2619, %v2638
        %v2641 = vadd.f32 %v2620, %v2638
        %v2642 = vadd.f32 %v2621, %v2638
        %v2643 = vadd.f32 %v2622, %v2638
        %v2644 = vadd.f32 %v2623, %v2638
        %v2645 = vadd.f32 %v2624, %v2638
        %v2646 = vadd.f32 %v2625, %v2638
        %v2647 = vadd.f32 %v2626, %v2638
        %v2648 = vadd.f32 %v2627, %v2638
        %v2649 = vadd.f32 %v2628, %v2638
        %v2650 = vadd.f32 %v2629, %v2638
        %v2651 = vadd.f32 %v2630, %v2638
        %v2652 = vadd.f32 %v2631, %v2638
        %v2653 = vadd.f32 %v2632, %v2638
        %v2654 = vadd.f32 %v2633, %v2638
        %v2655 = vmax.f32 %v2639, 0.0
        %v2656 = vmax.f32 %v2640, 0.0
        %v2657 = vmax.f32 %v2641, 0.0
        %v2658 = vmax.f32 %v2642, 0.0
        %v2659 = vmax.f32 %v2643, 0.0
        %v2660 = vmax.f32 %v2644, 0.0
        %v2661 = vmax.f32 %v2645, 0.0
        %v2662 = vmax.f32 %v2646, 0.0
        %v2663 = vmax.f32 %v2647, 0.0
        %v2664 = vmax.f32 %v2648, 0.0
        %v2665 = vmax.f32 %v2649, 0.0
        %v2666 = vmax.f32 %v2650, 0.0
        %v2667 = vmax.f32 %v2651, 0.0
        %v2668 = vmax.f32 %v2652, 0.0
        %v2669 = vmax.f32 %v2653, 0.0
        %v2670 = vmax.f32 %v2654, 0.0
        %v2671 = vpack.c.bf16 %v2656, %v2655
        %v2672 = vpack.c.bf16 %v2658, %v2657
        %v2673 = vpack.c.bf16 %v2660, %v2659
        %v2674 = vpack.c.bf16 %v2662, %v2661
        %v2675 = vpack.c.bf16 %v2664, %v2663
        %v2676 = vpack.c.bf16 %v2666, %v2665
        %v2677 = vpack.c.bf16 %v2668, %v2667
        %v2678 = vpack.c.bf16 %v2670, %v2669
        %s2679 = scalar_lea.vmem %s5, 64
        %v2680 = vld [vmem:[%s2679] sm:$0xf]
        %v2681 = vld [vmem:[%s2679 + $0x4] sm:$0xf]
        %v2682 = vld [vmem:[%s2679 + $0x8] sm:$0xf]
        %v2683 = vld [vmem:[%s2679 + $0xc] sm:$0xf]
        %v2684 = vld [vmem:[%s2679 + $0x10] sm:$0xf]
        %v2685 = vld [vmem:[%s2679 + $0x14] sm:$0xf]
        %v2686 = vld [vmem:[%s2679 + $0x18] sm:$0xf]
        %v2687 = vld [vmem:[%s2679 + $0x1c] sm:$0xf]
        %v2688 = vld [vmem:[%s2679 + $0x20] sm:$0xf]
        %v2689 = vld [vmem:[%s2679 + $0x24] sm:$0xf]
        %v2690 = vld [vmem:[%s2679 + $0x28] sm:$0xf]
        %v2691 = vld [vmem:[%s2679 + $0x2c] sm:$0xf]
        %v2692 = vld [vmem:[%s2679 + $0x30] sm:$0xf]
        %v2693 = vld [vmem:[%s2679 + $0x34] sm:$0xf]
        %v2694 = vld [vmem:[%s2679 + $0x38] sm:$0xf]
        %v2695 = vld [vmem:[%s2679 + $0x3c] sm:$0xf]
        %v2712 = vunpack.c.l.b16 %v2680
        %v2713 = vunpack.c.l.b16 %v2681
        %v2714 = vunpack.c.l.b16 %v2682
        %v2715 = vunpack.c.l.b16 %v2683
        %v2716 = vunpack.c.l.b16 %v2684
        %v2717 = vunpack.c.l.b16 %v2685
        %v2718 = vunpack.c.l.b16 %v2686
        %v2719 = vunpack.c.l.b16 %v2687
        %v2720 = vunpack.c.l.b16 %v2688
        %v2721 = vunpack.c.l.b16 %v2689
        %v2722 = vunpack.c.l.b16 %v2690
        %v2723 = vunpack.c.l.b16 %v2691
        %v2724 = vunpack.c.l.b16 %v2692
        %v2725 = vunpack.c.l.b16 %v2693
        %v2726 = vunpack.c.l.b16 %v2694
        %v2727 = vunpack.c.l.b16 %v2695
        %v2728 = vpack.c.b16 %v2713, %v2712
        %v2729 = vpack.c.b16 %v2715, %v2714
        %v2730 = vpack.c.b16 %v2717, %v2716
        %v2731 = vpack.c.b16 %v2719, %v2718
        %v2732 = vpack.c.b16 %v2721, %v2720
        %v2733 = vpack.c.b16 %v2723, %v2722
        %v2734 = vpack.c.b16 %v2725, %v2724
        %v2735 = vpack.c.b16 %v2727, %v2726
        %2744 = vmatprep.subr.bf16.mxu0 0
        %2745 = vmatpush1.bf16.msra.mxu0 %v2728
        %2746 = vmatprep.subr.bf16.mxu0 0
        %2747 = vmatpush1.bf16.msra.mxu0 %v2729
        %2748 = vmatprep.subr.bf16.mxu0 0
        %2749 = vmatpush1.bf16.msra.mxu0 %v2730
        %2750 = vmatprep.subr.bf16.mxu0 0
        %2751 = vmatpush1.bf16.msra.mxu0 %v2731
        %2752 = vmatprep.subr.bf16.mxu0 0
        %2753 = vmatpush1.bf16.msra.mxu0 %v2732
        %2754 = vmatprep.subr.bf16.mxu0 0
        %2755 = vmatpush1.bf16.msra.mxu0 %v2733
        %2756 = vmatprep.subr.bf16.mxu0 0
        %2757 = vmatpush1.bf16.msra.mxu0 %v2734
        %2758 = vmatprep.subr.bf16.mxu0 0
        %2759 = vmatpush1.bf16.msra.mxu0 %v2735
        %2760 = vmatprep.subr.bf16.mxu0 0
        %2761 = vmatpush1.bf16.msra.mxu0 0
        %2762 = vmatprep.subr.bf16.mxu0 0
        %2763 = vmatpush1.bf16.msra.mxu0 0
        %2764 = vmatprep.subr.bf16.mxu0 0
        %2765 = vmatpush1.bf16.msra.mxu0 0
        %2766 = vmatprep.subr.bf16.mxu0 0
        %2767 = vmatpush1.bf16.msra.mxu0 0
        %2768 = vmatprep.subr.bf16.mxu0 0
        %2769 = vmatpush1.bf16.msra.mxu0 0
        %2770 = vmatprep.subr.bf16.mxu0 0
        %2771 = vmatpush1.bf16.msra.mxu0 0
        %2772 = vmatprep.subr.bf16.mxu0 0
        %2773 = vmatpush1.bf16.msra.mxu0 0
        %2774 = vmatprep.subr.bf16.mxu0 0
        %2775 = vmatpush1.bf16.msra.mxu0 0
        %2776 = vmatprep.mubr.bf16.mxu0 0
        %2777 = vmatmul.mubr.bf16.gmra.mrb[0].mxu0 %v2671
        %v2778 = vpop.f32.mrb[0].mxu0
        %v2779 = vadd.f32 0.0, %v2778
        %v2780 = vpop.f32.mrb[0].mxu0
        %v2781 = vpop.f32.mrb[0].mxu0
        %v2782 = vadd.f32 0.0, %v2781
        %v2783 = vpop.f32.mrb[0].mxu0
        %2784 = vmatprep.mubr.bf16.mxu0 0
        %2785 = vmatmul.mubr.bf16.gmra.mrb[0].mxu0 %v2672
        %v2786 = vpop.f32.mrb[0].mxu0
        %v2787 = vadd.f32 0.0, %v2786
        %v2788 = vpop.f32.mrb[0].mxu0
        %v2789 = vpop.f32.mrb[0].mxu0
        %v2790 = vadd.f32 0.0, %v2789
        %v2791 = vpop.f32.mrb[0].mxu0
        %2792 = vmatprep.mubr.bf16.mxu0 0
        %2793 = vmatmul.mubr.bf16.gmra.mrb[0].mxu0 %v2673
        %v2794 = vpop.f32.mrb[0].mxu0
        %v2795 = vadd.f32 0.0, %v2794
        %v2796 = vpop.f32.mrb[0].mxu0
        %v2797 = vpop.f32.mrb[0].mxu0
        %v2798 = vadd.f32 0.0, %v2797
        %v2799 = vpop.f32.mrb[0].mxu0
        %2800 = vmatprep.mubr.bf16.mxu0 0
        %2801 = vmatmul.mubr.bf16.gmra.mrb[0].mxu0 %v2674
        %v2802 = vpop.f32.mrb[0].mxu0
        %v2803 = vadd.f32 0.0, %v2802
        %v2804 = vpop.f32.mrb[0].mxu0
        %v2805 = vpop.f32.mrb[0].mxu0
        %v2806 = vadd.f32 0.0, %v2805
        %v2807 = vpop.f32.mrb[0].mxu0
        %2808 = vmatprep.mubr.bf16.mxu0 0
        %2809 = vmatmul.mubr.bf16.gmra.mrb[0].mxu0 %v2675
        %v2810 = vpop.f32.mrb[0].mxu0
        %v2811 = vadd.f32 0.0, %v2810
        %v2812 = vpop.f32.mrb[0].mxu0
        %v2813 = vpop.f32.mrb[0].mxu0
        %v2814 = vadd.f32 0.0, %v2813
        %v2815 = vpop.f32.mrb[0].mxu0
        %2816 = vmatprep.mubr.bf16.mxu0 0
        %2817 = vmatmul.mubr.bf16.gmra.mrb[0].mxu0 %v2676
        %v2818 = vpop.f32.mrb[0].mxu0
        %v2819 = vadd.f32 0.0, %v2818
        %v2820 = vpop.f32.mrb[0].mxu0
        %v2821 = vpop.f32.mrb[0].mxu0
        %v2822 = vadd.f32 0.0, %v2821
        %v2823 = vpop.f32.mrb[0].mxu0
        %2824 = vmatprep.mubr.bf16.mxu0 0
        %2825 = vmatmul.mubr.bf16.gmra.mrb[0].mxu0 %v2677
        %v2826 = vpop.f32.mrb[0].mxu0
        %v2827 = vadd.f32 0.0, %v2826
        %v2828 = vpop.f32.mrb[0].mxu0
        %v2829 = vpop.f32.mrb[0].mxu0
        %v2830 = vadd.f32 0.0, %v2829
        %v2831 = vpop.f32.mrb[0].mxu0
        %2832 = vmatprep.mubr.bf16.mxu0 0
        %2833 = vmatmul.mubr.bf16.gmra.mrb[0].mxu0 %v2678
        %v2834 = vpop.f32.mrb[0].mxu0
        %v2835 = vadd.f32 0.0, %v2834
        %v2836 = vpop.f32.mrb[0].mxu0
        %v2837 = vpop.f32.mrb[0].mxu0
        %v2838 = vadd.f32 0.0, %v2837
        %v2839 = vpop.f32.mrb[0].mxu0
        %2840 = vdwg.mxu0
        %v2857 = vunpack.c.l.b16 %v626
        %v2858 = vunpack.c.l.b16 %v627
        %v2859 = vunpack.c.l.b16 %v628
        %v2860 = vunpack.c.l.b16 %v629
        %v2861 = vunpack.c.l.b16 %v630
        %v2862 = vunpack.c.l.b16 %v631
        %v2863 = vunpack.c.l.b16 %v632
        %v2864 = vunpack.c.l.b16 %v633
        %v2865 = vunpack.c.l.b16 %v634
        %v2866 = vunpack.c.l.b16 %v635
        %v2867 = vunpack.c.l.b16 %v636
        %v2868 = vunpack.c.l.b16 %v637
        %v2869 = vunpack.c.l.b16 %v638
        %v2870 = vunpack.c.l.b16 %v639
        %v2871 = vunpack.c.l.b16 %v640
        %v2872 = vunpack.c.l.b16 %v641
        %v2873 = vpack.c.b16 %v2858, %v2857
        %v2874 = vpack.c.b16 %v2860, %v2859
        %v2875 = vpack.c.b16 %v2862, %v2861
        %v2876 = vpack.c.b16 %v2864, %v2863
        %v2877 = vpack.c.b16 %v2866, %v2865
        %v2878 = vpack.c.b16 %v2868, %v2867
        %v2879 = vpack.c.b16 %v2870, %v2869
        %v2880 = vpack.c.b16 %v2872, %v2871
        %2889 = vmatprep.subr.bf16.mxu0 0
        %2890 = vmatpush1.bf16.msra.mxu0 %v2873
        %2891 = vmatprep.subr.bf16.mxu0 0
        %2892 = vmatpush1.bf16.msra.mxu0 %v2874
        %2893 = vmatprep.subr.bf16.mxu0 0
        %2894 = vmatpush1.bf16.msra.mxu0 %v2875
        %2895 = vmatprep.subr.bf16.mxu0 0
        %2896 = vmatpush1.bf16.msra.mxu0 %v2876
        %2897 = vmatprep.subr.bf16.mxu0 0
        %2898 = vmatpush1.bf16.msra.mxu0 %v2877
        %2899 = vmatprep.subr.bf16.mxu0 0
        %2900 = vmatpush1.bf16.msra.mxu0 %v2878
        %2901 = vmatprep.subr.bf16.mxu0 0
        %2902 = vmatpush1.bf16.msra.mxu0 %v2879
        %2903 = vmatprep.subr.bf16.mxu0 0
        %2904 = vmatpush1.bf16.msra.mxu0 %v2880
        %2905 = vmatprep.subr.bf16.mxu0 0
        %2906 = vmatpush1.bf16.msra.mxu0 0
        %2907 = vmatprep.subr.bf16.mxu0 0
        %2908 = vmatpush1.bf16.msra.mxu0 0
        %2909 = vmatprep.subr.bf16.mxu0 0
        %2910 = vmatpush1.bf16.msra.mxu0 0
        %2911 = vmatprep.subr.bf16.mxu0 0
        %2912 = vmatpush1.bf16.msra.mxu0 0
        %2913 = vmatprep.subr.bf16.mxu0 0
        %2914 = vmatpush1.bf16.msra.mxu0 0
        %2915 = vmatprep.subr.bf16.mxu0 0
        %2916 = vmatpush1.bf16.msra.mxu0 0
        %2917 = vmatprep.subr.bf16.mxu0 0
        %2918 = vmatpush1.bf16.msra.mxu0 0
        %2919 = vmatprep.subr.bf16.mxu0 0
        %2920 = vmatpush1.bf16.msra.mxu0 0
        %2921 = vmatprep.mubr.bf16.mxu0 0
        %2922 = vmatmul.mubr.bf16.gmra.mrb[0].mxu0 %v618
        %v2923 = vpop.f32.mrb[0].mxu0
        %v2924 = vadd.f32 %v2779, %v2923
        %v2925 = vpop.f32.mrb[0].mxu0
        %v2926 = vpop.f32.mrb[0].mxu0
        %v2927 = vadd.f32 %v2782, %v2926
        %v2928 = vpop.f32.mrb[0].mxu0
        %2929 = vmatprep.mubr.bf16.mxu0 0
        %2930 = vmatmul.mubr.bf16.gmra.mrb[0].mxu0 %v619
        %v2931 = vpop.f32.mrb[0].mxu0
        %v2932 = vadd.f32 %v2787, %v2931
        %v2933 = vpop.f32.mrb[0].mxu0
        %v2934 = vpop.f32.mrb[0].mxu0
        %v2935 = vadd.f32 %v2790, %v2934
        %v2936 = vpop.f32.mrb[0].mxu0
        %2937 = vmatprep.mubr.bf16.mxu0 0
        %2938 = vmatmul.mubr.bf16.gmra.mrb[0].mxu0 %v620
        %v2939 = vpop.f32.mrb[0].mxu0
        %v2940 = vadd.f32 %v2795, %v2939
        %v2941 = vpop.f32.mrb[0].mxu0
        %v2942 = vpop.f32.mrb[0].mxu0
        %v2943 = vadd.f32 %v2798, %v2942
        %v2944 = vpop.f32.mrb[0].mxu0
        %2945 = vmatprep.mubr.bf16.mxu0 0
        %2946 = vmatmul.mubr.bf16.gmra.mrb[0].mxu0 %v621
        %v2947 = vpop.f32.mrb[0].mxu0
        %v2948 = vadd.f32 %v2803, %v2947
        %v2949 = vpop.f32.mrb[0].mxu0
        %v2950 = vpop.f32.mrb[0].mxu0
        %v2951 = vadd.f32 %v2806, %v2950
        %v2952 = vpop.f32.mrb[0].mxu0
        %2953 = vmatprep.mubr.bf16.mxu0 0
        %2954 = vmatmul.mubr.bf16.gmra.mrb[0].mxu0 %v622
        %v2955 = vpop.f32.mrb[0].mxu0
        %v2956 = vadd.f32 %v2811, %v2955
        %v2957 = vpop.f32.mrb[0].mxu0
        %v2958 = vpop.f32.mrb[0].mxu0
        %v2959 = vadd.f32 %v2814, %v2958
        %v2960 = vpop.f32.mrb[0].mxu0
        %2961 = vmatprep.mubr.bf16.mxu0 0
        %2962 = vmatmul.mubr.bf16.gmra.mrb[0].mxu0 %v623
        %v2963 = vpop.f32.mrb[0].mxu0
        %v2964 = vadd.f32 %v2819, %v2963
        %v2965 = vpop.f32.mrb[0].mxu0
        %v2966 = vpop.f32.mrb[0].mxu0
        %v2967 = vadd.f32 %v2822, %v2966
        %v2968 = vpop.f32.mrb[0].mxu0
        %2969 = vmatprep.mubr.bf16.mxu0 0
        %2970 = vmatmul.mubr.bf16.gmra.mrb[0].mxu0 %v624
        %v2971 = vpop.f32.mrb[0].mxu0
        %v2972 = vadd.f32 %v2827, %v2971
        %v2973 = vpop.f32.mrb[0].mxu0
        %v2974 = vpop.f32.mrb[0].mxu0
        %v2975 = vadd.f32 %v2830, %v2974
        %v2976 = vpop.f32.mrb[0].mxu0
        %2977 = vmatprep.mubr.bf16.mxu0 0
        %2978 = vmatmul.mubr.bf16.gmra.mrb[0].mxu0 %v625
        %v2979 = vpop.f32.mrb[0].mxu0
        %v2980 = vadd.f32 %v2835, %v2979
        %v2981 = vpop.f32.mrb[0].mxu0
        %v2982 = vpop.f32.mrb[0].mxu0
        %v2983 = vadd.f32 %v2838, %v2982
        %v2984 = vpop.f32.mrb[0].mxu0
        %2985 = vdwg.mxu0
        %s2986 = sadd.s32 %s334, 6
        %s2987 = smul.u32 %s2986, 7
        %s2988 = smul.addr %s2987, 4
        %s2989 = scalar_lea.vmem %s328, %s2988
        %v2990 = vld [vmem:[%s2989] sm:$0x8]
        %v2991 = vld [vmem:[%s2989 + $0x4] sm:$0xf]
        %v2992 = vld [vmem:[%s2989 + $0x8] sm:$0x7]
        %v2993 = vld [vmem:[%s2989 + $0x1c] sm:$0x8]
        %v2994 = vld [vmem:[%s2989 + $0x20] sm:$0xf]
        %v2995 = vld [vmem:[%s2989 + $0x24] sm:$0x7]
        %v2996 = vld [vmem:[%s2989 + $0x38] sm:$0x8]
        %v2997 = vld [vmem:[%s2989 + $0x3c] sm:$0xf]
        %v2998 = vld [vmem:[%s2989 + $0x40] sm:$0x7]
        %v2999 = vld [vmem:[%s2989 + $0x54] sm:$0x8]
        %v3000 = vld [vmem:[%s2989 + $0x58] sm:$0xf]
        %v3001 = vld [vmem:[%s2989 + $0x5c] sm:$0x7]
        %v3002 = vld [vmem:[%s2989 + $0x70] sm:$0x8]
        %v3003 = vld [vmem:[%s2989 + $0x74] sm:$0xf]
        %v3004 = vld [vmem:[%s2989 + $0x78] sm:$0x7]
        %v3005 = vld [vmem:[%s2989 + $0x8c] sm:$0x8]
        %v3006 = vld [vmem:[%s2989 + $0x90] sm:$0xf]
        %v3007 = vld [vmem:[%s2989 + $0x94] sm:$0x7]
        %v3008 = vld [vmem:[%s2989 + $0xa8] sm:$0x8]
        %v3009 = vld [vmem:[%s2989 + $0xac] sm:$0xf]
        %v3010 = vld [vmem:[%s2989 + $0xb0] sm:$0x7]
        %v3011 = vld [vmem:[%s2989 + $0xc4] sm:$0x8]
        %v3012 = vld [vmem:[%s2989 + $0xc8] sm:$0xf]
        %v3013 = vld [vmem:[%s2989 + $0xcc] sm:$0x7]
        %vm3038 = vcmask 1040384
        %vm3039 = vcmask 1044484
        %vm3040 = vmor %vm3038, %vm3039
        %v3041 = vrot.slane %v2990, 7
        %v3042 = vrot.slane %v3041, 4
        %v3043 = vrot.slane %v2991, 7
        %v3044 = vsel %vm3040, %v3042, %v3043
        %v3045 = vrot.slane %v3043, 4
        %v3046 = vrot.slane %v2992, 7
        %v3047 = vsel %vm3040, %v3045, %v3046
        %v3048 = vrot.slane %v2993, 7
        %v3049 = vrot.slane %v3048, 4
        %v3050 = vrot.slane %v2994, 7
        %v3051 = vsel %vm3040, %v3049, %v3050
        %v3052 = vrot.slane %v3050, 4
        %v3053 = vrot.slane %v2995, 7
        %v3054 = vsel %vm3040, %v3052, %v3053
        %v3055 = vrot.slane %v2996, 7
        %v3056 = vrot.slane %v3055, 4
        %v3057 = vrot.slane %v2997, 7
        %v3058 = vsel %vm3040, %v3056, %v3057
        %v3059 = vrot.slane %v3057, 4
        %v3060 = vrot.slane %v2998, 7
        %v3061 = vsel %vm3040, %v3059, %v3060
        %v3062 = vrot.slane %v2999, 7
        %v3063 = vrot.slane %v3062, 4
        %v3064 = vrot.slane %v3000, 7
        %v3065 = vsel %vm3040, %v3063, %v3064
        %v3066 = vrot.slane %v3064, 4
        %v3067 = vrot.slane %v3001, 7
        %v3068 = vsel %vm3040, %v3066, %v3067
        %v3069 = vrot.slane %v3002, 7
        %v3070 = vrot.slane %v3069, 4
        %v3071 = vrot.slane %v3003, 7
        %v3072 = vsel %vm3040, %v3070, %v3071
        %v3073 = vrot.slane %v3071, 4
        %v3074 = vrot.slane %v3004, 7
        %v3075 = vsel %vm3040, %v3073, %v3074
        %v3076 = vrot.slane %v3005, 7
        %v3077 = vrot.slane %v3076, 4
        %v3078 = vrot.slane %v3006, 7
        %v3079 = vsel %vm3040, %v3077, %v3078
        %v3080 = vrot.slane %v3078, 4
        %v3081 = vrot.slane %v3007, 7
        %v3082 = vsel %vm3040, %v3080, %v3081
        %v3083 = vrot.slane %v3008, 7
        %v3084 = vrot.slane %v3083, 4
        %v3085 = vrot.slane %v3009, 7
        %v3086 = vsel %vm3040, %v3084, %v3085
        %v3087 = vrot.slane %v3085, 4
        %v3088 = vrot.slane %v3010, 7
        %v3089 = vsel %vm3040, %v3087, %v3088
        %v3090 = vrot.slane %v3011, 7
        %v3091 = vrot.slane %v3090, 4
        %v3092 = vrot.slane %v3012, 7
        %v3093 = vsel %vm3040, %v3091, %v3092
        %v3094 = vrot.slane %v3092, 4
        %v3095 = vrot.slane %v3013, 7
        %v3096 = vsel %vm3040, %v3094, %v3095
        %v3097 = vld [vmem:[%s3] sm:$0xf]
        %v3098 = vld [vmem:[%s2989 + $0x8] sm:$0xe]
        %v3099 = vld [vmem:[%s2989 + $0xc] sm:$0xf]
        %v3100 = vld [vmem:[%s2989 + $0x10] sm:$0x1]
        %v3101 = vld [vmem:[%s2989 + $0x24] sm:$0xe]
        %v3102 = vld [vmem:[%s2989 + $0x28] sm:$0xf]
        %v3103 = vld [vmem:[%s2989 + $0x2c] sm:$0x1]
        %v3104 = vld [vmem:[%s2989 + $0x40] sm:$0xe]
        %v3105 = vld [vmem:[%s2989 + $0x44] sm:$0xf]
        %v3106 = vld [vmem:[%s2989 + $0x48] sm:$0x1]
        %v3107 = vld [vmem:[%s2989 + $0x5c] sm:$0xe]
        %v3108 = vld [vmem:[%s2989 + $0x60] sm:$0xf]
        %v3109 = vld [vmem:[%s2989 + $0x64] sm:$0x1]
        %v3110 = vld [vmem:[%s2989 + $0x78] sm:$0xe]
        %v3111 = vld [vmem:[%s2989 + $0x7c] sm:$0xf]
        %v3112 = vld [vmem:[%s2989 + $0x80] sm:$0x1]
        %v3113 = vld [vmem:[%s2989 + $0x94] sm:$0xe]
        %v3114 = vld [vmem:[%s2989 + $0x98] sm:$0xf]
        %v3115 = vld [vmem:[%s2989 + $0x9c] sm:$0x1]
        %v3116 = vld [vmem:[%s2989 + $0xb0] sm:$0xe]
        %v3117 = vld [vmem:[%s2989 + $0xb4] sm:$0xf]
        %v3118 = vld [vmem:[%s2989 + $0xb8] sm:$0x1]
        %v3119 = vld [vmem:[%s2989 + $0xcc] sm:$0xe]
        %v3120 = vld [vmem:[%s2989 + $0xd0] sm:$0xf]
        %v3121 = vld [vmem:[%s2989 + $0xd4] sm:$0x1]
        %v3146 = vrot.slane %v3098, 5
        %v3147 = vrot.slane %v3146, 4
        %v3148 = vrot.slane %v3099, 5
        %v3149 = vsel %vm389, %v3147, %v3148
        %v3150 = vrot.slane %v3148, 4
        %v3151 = vrot.slane %v3100, 5
        %v3152 = vsel %vm389, %v3150, %v3151
        %v3153 = vrot.slane %v3101, 5
        %v3154 = vrot.slane %v3153, 4
        %v3155 = vrot.slane %v3102, 5
        %v3156 = vsel %vm389, %v3154, %v3155
        %v3157 = vrot.slane %v3155, 4
        %v3158 = vrot.slane %v3103, 5
        %v3159 = vsel %vm389, %v3157, %v3158
        %v3160 = vrot.slane %v3104, 5
        %v3161 = vrot.slane %v3160, 4
        %v3162 = vrot.slane %v3105, 5
        %v3163 = vsel %vm389, %v3161, %v3162
        %v3164 = vrot.slane %v3162, 4
        %v3165 = vrot.slane %v3106, 5
        %v3166 = vsel %vm389, %v3164, %v3165
        %v3167 = vrot.slane %v3107, 5
        %v3168 = vrot.slane %v3167, 4
        %v3169 = vrot.slane %v3108, 5
        %v3170 = vsel %vm389, %v3168, %v3169
        %v3171 = vrot.slane %v3169, 4
        %v3172 = vrot.slane %v3109, 5
        %v3173 = vsel %vm389, %v3171, %v3172
        %v3174 = vrot.slane %v3110, 5
        %v3175 = vrot.slane %v3174, 4
        %v3176 = vrot.slane %v3111, 5
        %v3177 = vsel %vm389, %v3175, %v3176
        %v3178 = vrot.slane %v3176, 4
        %v3179 = vrot.slane %v3112, 5
        %v3180 = vsel %vm389, %v3178, %v3179
        %v3181 = vrot.slane %v3113, 5
        %v3182 = vrot.slane %v3181, 4
        %v3183 = vrot.slane %v3114, 5
        %v3184 = vsel %vm389, %v3182, %v3183
        %v3185 = vrot.slane %v3183, 4
        %v3186 = vrot.slane %v3115, 5
        %v3187 = vsel %vm389, %v3185, %v3186
        %v3188 = vrot.slane %v3116, 5
        %v3189 = vrot.slane %v3188, 4
        %v3190 = vrot.slane %v3117, 5
        %v3191 = vsel %vm389, %v3189, %v3190
        %v3192 = vrot.slane %v3190, 4
        %v3193 = vrot.slane %v3118, 5
        %v3194 = vsel %vm389, %v3192, %v3193
        %v3195 = vrot.slane %v3119, 5
        %v3196 = vrot.slane %v3195, 4
        %v3197 = vrot.slane %v3120, 5
        %v3198 = vsel %vm389, %v3196, %v3197
        %v3199 = vrot.slane %v3197, 4
        %v3200 = vrot.slane %v3121, 5
        %v3201 = vsel %vm389, %v3199, %v3200
        %s3202 = scalar_lea.vmem %s3, 4
        %v3203 = vld [vmem:[%s3202] sm:$0xf]
        %v3204 = vunpack.c.l.b16 %v3149
        %v3205 = vunpack.c.l.b16 %v3152
        %v3206 = vunpack.c.l.b16 %v3156
        %v3207 = vunpack.c.l.b16 %v3159
        %v3208 = vunpack.c.l.b16 %v3163
        %v3209 = vunpack.c.l.b16 %v3166
        %v3210 = vunpack.c.l.b16 %v3170
        %v3211 = vunpack.c.l.b16 %v3173
        %v3212 = vunpack.c.l.b16 %v3177
        %v3213 = vunpack.c.l.b16 %v3180
        %v3214 = vunpack.c.l.b16 %v3184
        %v3215 = vunpack.c.l.b16 %v3187
        %v3216 = vunpack.c.l.b16 %v3191
        %v3217 = vunpack.c.l.b16 %v3194
        %v3218 = vunpack.c.l.b16 %v3198
        %v3219 = vunpack.c.l.b16 %v3201
        %v3220 = vpack.c.b16 %v3205, %v3204
        %v3221 = vpack.c.b16 %v3207, %v3206
        %v3222 = vpack.c.b16 %v3209, %v3208
        %v3223 = vpack.c.b16 %v3211, %v3210
        %v3224 = vpack.c.b16 %v3213, %v3212
        %v3225 = vpack.c.b16 %v3215, %v3214
        %v3226 = vpack.c.b16 %v3217, %v3216
        %v3227 = vpack.c.b16 %v3219, %v3218
        %v3229 = vsel %vm476, %v3220, 0
        %v3232 = vsel %vm476, %v3221, 0
        %v3235 = vsel %vm476, %v3222, 0
        %v3238 = vsel %vm476, %v3223, 0
        %v3241 = vsel %vm476, %v3224, 0
        %v3244 = vsel %vm476, %v3225, 0
        %v3247 = vsel %vm476, %v3226, 0
        %v3250 = vsel %vm476, %v3227, 0
        %v3253 = vsel %vm501, %v3203, 0
        %3255 = vmatprep.subr.bf16.mxu0 0
        %3256 = vmatpush1.bf16.msra.mxu0 %v3253
        %3257 = vmatprep.subr.bf16.mxu0 0
        %3258 = vmatpush1.bf16.msra.mxu0 0
        %3259 = vmatprep.subr.bf16.mxu0 0
        %3260 = vmatpush1.bf16.msra.mxu0 0
        %3261 = vmatprep.subr.bf16.mxu0 0
        %3262 = vmatpush1.bf16.msra.mxu0 0
        %3263 = vmatprep.subr.bf16.mxu0 0
        %3264 = vmatpush1.bf16.msra.mxu0 0
        %3265 = vmatprep.subr.bf16.mxu0 0
        %3266 = vmatpush1.bf16.msra.mxu0 0
        %3267 = vmatprep.subr.bf16.mxu0 0
        %3268 = vmatpush1.bf16.msra.mxu0 0
        %3269 = vmatprep.subr.bf16.mxu0 0
        %3270 = vmatpush1.bf16.msra.mxu0 0
        %3271 = vmatprep.subr.bf16.mxu0 0
        %3272 = vmatpush1.bf16.msra.mxu0 0
        %3273 = vmatprep.subr.bf16.mxu0 0
        %3274 = vmatpush1.bf16.msra.mxu0 0
        %3275 = vmatprep.subr.bf16.mxu0 0
        %3276 = vmatpush1.bf16.msra.mxu0 0
        %3277 = vmatprep.subr.bf16.mxu0 0
        %3278 = vmatpush1.bf16.msra.mxu0 0
        %3279 = vmatprep.subr.bf16.mxu0 0
        %3280 = vmatpush1.bf16.msra.mxu0 0
        %3281 = vmatprep.subr.bf16.mxu0 0
        %3282 = vmatpush1.bf16.msra.mxu0 0
        %3283 = vmatprep.subr.bf16.mxu0 0
        %3284 = vmatpush1.bf16.msra.mxu0 0
        %3285 = vmatprep.subr.bf16.mxu0 0
        %3286 = vmatpush1.bf16.msra.mxu0 0
        %3287 = vmatprep.mubr.bf16.mxu0 0
        %3288 = vmatmul.mubr.bf16.gmra.mrb[0].mxu0 %v3229
        %v3289 = vpop.f32.mrb[0].mxu0
        %v3290 = vadd.f32 0.0, %v3289
        %v3291 = vpop.f32.mrb[0].mxu0
        %v3292 = vpop.f32.mrb[0].mxu0
        %v3293 = vadd.f32 0.0, %v3292
        %v3294 = vpop.f32.mrb[0].mxu0
        %3295 = vmatprep.mubr.bf16.mxu0 0
        %3296 = vmatmul.mubr.bf16.gmra.mrb[0].mxu0 %v3232
        %v3297 = vpop.f32.mrb[0].mxu0
        %v3298 = vadd.f32 0.0, %v3297
        %v3299 = vpop.f32.mrb[0].mxu0
        %v3300 = vpop.f32.mrb[0].mxu0
        %v3301 = vadd.f32 0.0, %v3300
        %v3302 = vpop.f32.mrb[0].mxu0
        %3303 = vmatprep.mubr.bf16.mxu0 0
        %3304 = vmatmul.mubr.bf16.gmra.mrb[0].mxu0 %v3235
        %v3305 = vpop.f32.mrb[0].mxu0
        %v3306 = vadd.f32 0.0, %v3305
        %v3307 = vpop.f32.mrb[0].mxu0
        %v3308 = vpop.f32.mrb[0].mxu0
        %v3309 = vadd.f32 0.0, %v3308
        %v3310 = vpop.f32.mrb[0].mxu0
        %3311 = vmatprep.mubr.bf16.mxu0 0
        %3312 = vmatmul.mubr.bf16.gmra.mrb[0].mxu0 %v3238
        %v3313 = vpop.f32.mrb[0].mxu0
        %v3314 = vadd.f32 0.0, %v3313
        %v3315 = vpop.f32.mrb[0].mxu0
        %v3316 = vpop.f32.mrb[0].mxu0
        %v3317 = vadd.f32 0.0, %v3316
        %v3318 = vpop.f32.mrb[0].mxu0
        %3319 = vmatprep.mubr.bf16.mxu0 0
        %3320 = vmatmul.mubr.bf16.gmra.mrb[0].mxu0 %v3241
        %v3321 = vpop.f32.mrb[0].mxu0
        %v3322 = vadd.f32 0.0, %v3321
        %v3323 = vpop.f32.mrb[0].mxu0
        %v3324 = vpop.f32.mrb[0].mxu0
        %v3325 = vadd.f32 0.0, %v3324
        %v3326 = vpop.f32.mrb[0].mxu0
        %3327 = vmatprep.mubr.bf16.mxu0 0
        %3328 = vmatmul.mubr.bf16.gmra.mrb[0].mxu0 %v3244
        %v3329 = vpop.f32.mrb[0].mxu0
        %v3330 = vadd.f32 0.0, %v3329
        %v3331 = vpop.f32.mrb[0].mxu0
        %v3332 = vpop.f32.mrb[0].mxu0
        %v3333 = vadd.f32 0.0, %v3332
        %v3334 = vpop.f32.mrb[0].mxu0
        %3335 = vmatprep.mubr.bf16.mxu0 0
        %3336 = vmatmul.mubr.bf16.gmra.mrb[0].mxu0 %v3247
        %v3337 = vpop.f32.mrb[0].mxu0
        %v3338 = vadd.f32 0.0, %v3337
        %v3339 = vpop.f32.mrb[0].mxu0
        %v3340 = vpop.f32.mrb[0].mxu0
        %v3341 = vadd.f32 0.0, %v3340
        %v3342 = vpop.f32.mrb[0].mxu0
        %3343 = vmatprep.mubr.bf16.mxu0 0
        %3344 = vmatmul.mubr.bf16.gmra.mrb[0].mxu0 %v3250
        %v3345 = vpop.f32.mrb[0].mxu0
        %v3346 = vadd.f32 0.0, %v3345
        %v3347 = vpop.f32.mrb[0].mxu0
        %v3348 = vpop.f32.mrb[0].mxu0
        %v3349 = vadd.f32 0.0, %v3348
        %v3350 = vpop.f32.mrb[0].mxu0
        %3351 = vdwg.mxu0
        %v3352 = vunpack.c.l.b16 %v3044
        %v3353 = vunpack.c.l.b16 %v3047
        %v3354 = vunpack.c.l.b16 %v3051
        %v3355 = vunpack.c.l.b16 %v3054
        %v3356 = vunpack.c.l.b16 %v3058
        %v3357 = vunpack.c.l.b16 %v3061
        %v3358 = vunpack.c.l.b16 %v3065
        %v3359 = vunpack.c.l.b16 %v3068
        %v3360 = vunpack.c.l.b16 %v3072
        %v3361 = vunpack.c.l.b16 %v3075
        %v3362 = vunpack.c.l.b16 %v3079
        %v3363 = vunpack.c.l.b16 %v3082
        %v3364 = vunpack.c.l.b16 %v3086
        %v3365 = vunpack.c.l.b16 %v3089
        %v3366 = vunpack.c.l.b16 %v3093
        %v3367 = vunpack.c.l.b16 %v3096
        %v3368 = vpack.c.b16 %v3353, %v3352
        %v3369 = vpack.c.b16 %v3355, %v3354
        %v3370 = vpack.c.b16 %v3357, %v3356
        %v3371 = vpack.c.b16 %v3359, %v3358
        %v3372 = vpack.c.b16 %v3361, %v3360
        %v3373 = vpack.c.b16 %v3363, %v3362
        %v3374 = vpack.c.b16 %v3365, %v3364
        %v3375 = vpack.c.b16 %v3367, %v3366
        %v3377 = vsel %vm476, %v3368, 0
        %v3380 = vsel %vm476, %v3369, 0
        %v3383 = vsel %vm476, %v3370, 0
        %v3386 = vsel %vm476, %v3371, 0
        %v3389 = vsel %vm476, %v3372, 0
        %v3392 = vsel %vm476, %v3373, 0
        %v3395 = vsel %vm476, %v3374, 0
        %v3398 = vsel %vm476, %v3375, 0
        %v3401 = vsel %vm501, %v3097, 0
        %3403 = vmatprep.subr.bf16.mxu0 0
        %3404 = vmatpush1.bf16.msra.mxu0 %v3401
        %3405 = vmatprep.subr.bf16.mxu0 0
        %3406 = vmatpush1.bf16.msra.mxu0 0
        %3407 = vmatprep.subr.bf16.mxu0 0
        %3408 = vmatpush1.bf16.msra.mxu0 0
        %3409 = vmatprep.subr.bf16.mxu0 0
        %3410 = vmatpush1.bf16.msra.mxu0 0
        %3411 = vmatprep.subr.bf16.mxu0 0
        %3412 = vmatpush1.bf16.msra.mxu0 0
        %3413 = vmatprep.subr.bf16.mxu0 0
        %3414 = vmatpush1.bf16.msra.mxu0 0
        %3415 = vmatprep.subr.bf16.mxu0 0
        %3416 = vmatpush1.bf16.msra.mxu0 0
        %3417 = vmatprep.subr.bf16.mxu0 0
        %3418 = vmatpush1.bf16.msra.mxu0 0
        %3419 = vmatprep.subr.bf16.mxu0 0
        %3420 = vmatpush1.bf16.msra.mxu0 0
        %3421 = vmatprep.subr.bf16.mxu0 0
        %3422 = vmatpush1.bf16.msra.mxu0 0
        %3423 = vmatprep.subr.bf16.mxu0 0
        %3424 = vmatpush1.bf16.msra.mxu0 0
        %3425 = vmatprep.subr.bf16.mxu0 0
        %3426 = vmatpush1.bf16.msra.mxu0 0
        %3427 = vmatprep.subr.bf16.mxu0 0
        %3428 = vmatpush1.bf16.msra.mxu0 0
        %3429 = vmatprep.subr.bf16.mxu0 0
        %3430 = vmatpush1.bf16.msra.mxu0 0
        %3431 = vmatprep.subr.bf16.mxu0 0
        %3432 = vmatpush1.bf16.msra.mxu0 0
        %3433 = vmatprep.subr.bf16.mxu0 0
        %3434 = vmatpush1.bf16.msra.mxu0 0
        %3435 = vmatprep.mubr.bf16.mxu0 0
        %3436 = vmatmul.mubr.bf16.gmra.mrb[0].mxu0 %v3377
        %v3437 = vpop.f32.mrb[0].mxu0
        %v3438 = vadd.f32 %v3290, %v3437
        %v3439 = vpop.f32.mrb[0].mxu0
        %v3440 = vpop.f32.mrb[0].mxu0
        %v3441 = vadd.f32 %v3293, %v3440
        %v3442 = vpop.f32.mrb[0].mxu0
        %3443 = vmatprep.mubr.bf16.mxu0 0
        %3444 = vmatmul.mubr.bf16.gmra.mrb[0].mxu0 %v3380
        %v3445 = vpop.f32.mrb[0].mxu0
        %v3446 = vadd.f32 %v3298, %v3445
        %v3447 = vpop.f32.mrb[0].mxu0
        %v3448 = vpop.f32.mrb[0].mxu0
        %v3449 = vadd.f32 %v3301, %v3448
        %v3450 = vpop.f32.mrb[0].mxu0
        %3451 = vmatprep.mubr.bf16.mxu0 0
        %3452 = vmatmul.mubr.bf16.gmra.mrb[0].mxu0 %v3383
        %v3453 = vpop.f32.mrb[0].mxu0
        %v3454 = vadd.f32 %v3306, %v3453
        %v3455 = vpop.f32.mrb[0].mxu0
        %v3456 = vpop.f32.mrb[0].mxu0
        %v3457 = vadd.f32 %v3309, %v3456
        %v3458 = vpop.f32.mrb[0].mxu0
        %3459 = vmatprep.mubr.bf16.mxu0 0
        %3460 = vmatmul.mubr.bf16.gmra.mrb[0].mxu0 %v3386
        %v3461 = vpop.f32.mrb[0].mxu0
        %v3462 = vadd.f32 %v3314, %v3461
        %v3463 = vpop.f32.mrb[0].mxu0
        %v3464 = vpop.f32.mrb[0].mxu0
        %v3465 = vadd.f32 %v3317, %v3464
        %v3466 = vpop.f32.mrb[0].mxu0
        %3467 = vmatprep.mubr.bf16.mxu0 0
        %3468 = vmatmul.mubr.bf16.gmra.mrb[0].mxu0 %v3389
        %v3469 = vpop.f32.mrb[0].mxu0
        %v3470 = vadd.f32 %v3322, %v3469
        %v3471 = vpop.f32.mrb[0].mxu0
        %v3472 = vpop.f32.mrb[0].mxu0
        %v3473 = vadd.f32 %v3325, %v3472
        %v3474 = vpop.f32.mrb[0].mxu0
        %3475 = vmatprep.mubr.bf16.mxu0 0
        %3476 = vmatmul.mubr.bf16.gmra.mrb[0].mxu0 %v3392
        %v3477 = vpop.f32.mrb[0].mxu0
        %v3478 = vadd.f32 %v3330, %v3477
        %v3479 = vpop.f32.mrb[0].mxu0
        %v3480 = vpop.f32.mrb[0].mxu0
        %v3481 = vadd.f32 %v3333, %v3480
        %v3482 = vpop.f32.mrb[0].mxu0
        %3483 = vmatprep.mubr.bf16.mxu0 0
        %3484 = vmatmul.mubr.bf16.gmra.mrb[0].mxu0 %v3395
        %v3485 = vpop.f32.mrb[0].mxu0
        %v3486 = vadd.f32 %v3338, %v3485
        %v3487 = vpop.f32.mrb[0].mxu0
        %v3488 = vpop.f32.mrb[0].mxu0
        %v3489 = vadd.f32 %v3341, %v3488
        %v3490 = vpop.f32.mrb[0].mxu0
        %3491 = vmatprep.mubr.bf16.mxu0 0
        %3492 = vmatmul.mubr.bf16.gmra.mrb[0].mxu0 %v3398
        %v3493 = vpop.f32.mrb[0].mxu0
        %v3494 = vadd.f32 %v3346, %v3493
        %v3495 = vpop.f32.mrb[0].mxu0
        %v3496 = vpop.f32.mrb[0].mxu0
        %v3497 = vadd.f32 %v3349, %v3496
        %v3498 = vpop.f32.mrb[0].mxu0
        %3499 = vdwg.mxu0
        %v3500 = vld [vmem:[%s2989 + $0xc] sm:$0x8]
        %v3501 = vld [vmem:[%s2989 + $0x10] sm:$0xf]
        %v3502 = vld [vmem:[%s2989 + $0x14] sm:$0x7]
        %v3503 = vld [vmem:[%s2989 + $0x28] sm:$0x8]
        %v3504 = vld [vmem:[%s2989 + $0x2c] sm:$0xf]
        %v3505 = vld [vmem:[%s2989 + $0x30] sm:$0x7]
        %v3506 = vld [vmem:[%s2989 + $0x44] sm:$0x8]
        %v3507 = vld [vmem:[%s2989 + $0x48] sm:$0xf]
        %v3508 = vld [vmem:[%s2989 + $0x4c] sm:$0x7]
        %v3509 = vld [vmem:[%s2989 + $0x60] sm:$0x8]
        %v3510 = vld [vmem:[%s2989 + $0x64] sm:$0xf]
        %v3511 = vld [vmem:[%s2989 + $0x68] sm:$0x7]
        %v3512 = vld [vmem:[%s2989 + $0x7c] sm:$0x8]
        %v3513 = vld [vmem:[%s2989 + $0x80] sm:$0xf]
        %v3514 = vld [vmem:[%s2989 + $0x84] sm:$0x7]
        %v3515 = vld [vmem:[%s2989 + $0x98] sm:$0x8]
        %v3516 = vld [vmem:[%s2989 + $0x9c] sm:$0xf]
        %v3517 = vld [vmem:[%s2989 + $0xa0] sm:$0x7]
        %v3518 = vld [vmem:[%s2989 + $0xb4] sm:$0x8]
        %v3519 = vld [vmem:[%s2989 + $0xb8] sm:$0xf]
        %v3520 = vld [vmem:[%s2989 + $0xbc] sm:$0x7]
        %v3521 = vld [vmem:[%s2989 + $0xd0] sm:$0x8]
        %v3522 = vld [vmem:[%s2989 + $0xd4] sm:$0xf]
        %v3523 = vld [vmem:[%s2989 + $0xd8] sm:$0x7]
        %v3548 = vrot.slane %v3500, 7
        %v3549 = vrot.slane %v3548, 4
        %v3550 = vrot.slane %v3501, 7
        %v3551 = vsel %vm3040, %v3549, %v3550
        %v3552 = vrot.slane %v3550, 4
        %v3553 = vrot.slane %v3502, 7
        %v3554 = vsel %vm3040, %v3552, %v3553
        %v3555 = vrot.slane %v3503, 7
        %v3556 = vrot.slane %v3555, 4
        %v3557 = vrot.slane %v3504, 7
        %v3558 = vsel %vm3040, %v3556, %v3557
        %v3559 = vrot.slane %v3557, 4
        %v3560 = vrot.slane %v3505, 7
        %v3561 = vsel %vm3040, %v3559, %v3560
        %v3562 = vrot.slane %v3506, 7
        %v3563 = vrot.slane %v3562, 4
        %v3564 = vrot.slane %v3507, 7
        %v3565 = vsel %vm3040, %v3563, %v3564
        %v3566 = vrot.slane %v3564, 4
        %v3567 = vrot.slane %v3508, 7
        %v3568 = vsel %vm3040, %v3566, %v3567
        %v3569 = vrot.slane %v3509, 7
        %v3570 = vrot.slane %v3569, 4
        %v3571 = vrot.slane %v3510, 7
        %v3572 = vsel %vm3040, %v3570, %v3571
        %v3573 = vrot.slane %v3571, 4
        %v3574 = vrot.slane %v3511, 7
        %v3575 = vsel %vm3040, %v3573, %v3574
        %v3576 = vrot.slane %v3512, 7
        %v3577 = vrot.slane %v3576, 4
        %v3578 = vrot.slane %v3513, 7
        %v3579 = vsel %vm3040, %v3577, %v3578
        %v3580 = vrot.slane %v3578, 4
        %v3581 = vrot.slane %v3514, 7
        %v3582 = vsel %vm3040, %v3580, %v3581
        %v3583 = vrot.slane %v3515, 7
        %v3584 = vrot.slane %v3583, 4
        %v3585 = vrot.slane %v3516, 7
        %v3586 = vsel %vm3040, %v3584, %v3585
        %v3587 = vrot.slane %v3585, 4
        %v3588 = vrot.slane %v3517, 7
        %v3589 = vsel %vm3040, %v3587, %v3588
        %v3590 = vrot.slane %v3518, 7
        %v3591 = vrot.slane %v3590, 4
        %v3592 = vrot.slane %v3519, 7
        %v3593 = vsel %vm3040, %v3591, %v3592
        %v3594 = vrot.slane %v3592, 4
        %v3595 = vrot.slane %v3520, 7
        %v3596 = vsel %vm3040, %v3594, %v3595
        %v3597 = vrot.slane %v3521, 7
        %v3598 = vrot.slane %v3597, 4
        %v3599 = vrot.slane %v3522, 7
        %v3600 = vsel %vm3040, %v3598, %v3599
        %v3601 = vrot.slane %v3599, 4
        %v3602 = vrot.slane %v3523, 7
        %v3603 = vsel %vm3040, %v3601, %v3602
        %s3604 = scalar_lea.vmem %s3, 8
        %v3605 = vld [vmem:[%s3604] sm:$0xf]
        %v3606 = vunpack.c.l.b16 %v3551
        %v3607 = vunpack.c.l.b16 %v3554
        %v3608 = vunpack.c.l.b16 %v3558
        %v3609 = vunpack.c.l.b16 %v3561
        %v3610 = vunpack.c.l.b16 %v3565
        %v3611 = vunpack.c.l.b16 %v3568
        %v3612 = vunpack.c.l.b16 %v3572
        %v3613 = vunpack.c.l.b16 %v3575
        %v3614 = vunpack.c.l.b16 %v3579
        %v3615 = vunpack.c.l.b16 %v3582
        %v3616 = vunpack.c.l.b16 %v3586
        %v3617 = vunpack.c.l.b16 %v3589
        %v3618 = vunpack.c.l.b16 %v3593
        %v3619 = vunpack.c.l.b16 %v3596
        %v3620 = vunpack.c.l.b16 %v3600
        %v3621 = vunpack.c.l.b16 %v3603
        %v3622 = vpack.c.b16 %v3607, %v3606
        %v3623 = vpack.c.b16 %v3609, %v3608
        %v3624 = vpack.c.b16 %v3611, %v3610
        %v3625 = vpack.c.b16 %v3613, %v3612
        %v3626 = vpack.c.b16 %v3615, %v3614
        %v3627 = vpack.c.b16 %v3617, %v3616
        %v3628 = vpack.c.b16 %v3619, %v3618
        %v3629 = vpack.c.b16 %v3621, %v3620
        %v3631 = vsel %vm476, %v3622, 0
        %v3634 = vsel %vm476, %v3623, 0
        %v3637 = vsel %vm476, %v3624, 0
        %v3640 = vsel %vm476, %v3625, 0
        %v3643 = vsel %vm476, %v3626, 0
        %v3646 = vsel %vm476, %v3627, 0
        %v3649 = vsel %vm476, %v3628, 0
        %v3652 = vsel %vm476, %v3629, 0
        %v3655 = vsel %vm501, %v3605, 0
        %3657 = vmatprep.subr.bf16.mxu0 0
        %3658 = vmatpush1.bf16.msra.mxu0 %v3655
        %3659 = vmatprep.subr.bf16.mxu0 0
        %3660 = vmatpush1.bf16.msra.mxu0 0
        %3661 = vmatprep.subr.bf16.mxu0 0
        %3662 = vmatpush1.bf16.msra.mxu0 0
        %3663 = vmatprep.subr.bf16.mxu0 0
        %3664 = vmatpush1.bf16.msra.mxu0 0
        %3665 = vmatprep.subr.bf16.mxu0 0
        %3666 = vmatpush1.bf16.msra.mxu0 0
        %3667 = vmatprep.subr.bf16.mxu0 0
        %3668 = vmatpush1.bf16.msra.mxu0 0
        %3669 = vmatprep.subr.bf16.mxu0 0
        %3670 = vmatpush1.bf16.msra.mxu0 0
        %3671 = vmatprep.subr.bf16.mxu0 0
        %3672 = vmatpush1.bf16.msra.mxu0 0
        %3673 = vmatprep.subr.bf16.mxu0 0
        %3674 = vmatpush1.bf16.msra.mxu0 0
        %3675 = vmatprep.subr.bf16.mxu0 0
        %3676 = vmatpush1.bf16.msra.mxu0 0
        %3677 = vmatprep.subr.bf16.mxu0 0
        %3678 = vmatpush1.bf16.msra.mxu0 0
        %3679 = vmatprep.subr.bf16.mxu0 0
        %3680 = vmatpush1.bf16.msra.mxu0 0
        %3681 = vmatprep.subr.bf16.mxu0 0
        %3682 = vmatpush1.bf16.msra.mxu0 0
        %3683 = vmatprep.subr.bf16.mxu0 0
        %3684 = vmatpush1.bf16.msra.mxu0 0
        %3685 = vmatprep.subr.bf16.mxu0 0
        %3686 = vmatpush1.bf16.msra.mxu0 0
        %3687 = vmatprep.subr.bf16.mxu0 0
        %3688 = vmatpush1.bf16.msra.mxu0 0
        %3689 = vmatprep.mubr.bf16.mxu0 0
        %3690 = vmatmul.mubr.bf16.gmra.mrb[0].mxu0 %v3631
        %v3691 = vpop.f32.mrb[0].mxu0
        %v3692 = vadd.f32 0.0, %v3691
        %v3693 = vpop.f32.mrb[0].mxu0
        %v3694 = vpop.f32.mrb[0].mxu0
        %v3695 = vadd.f32 0.0, %v3694
        %v3696 = vpop.f32.mrb[0].mxu0
        %3697 = vmatprep.mubr.bf16.mxu0 0
        %3698 = vmatmul.mubr.bf16.gmra.mrb[0].mxu0 %v3634
        %v3699 = vpop.f32.mrb[0].mxu0
        %v3700 = vadd.f32 0.0, %v3699
        %v3701 = vpop.f32.mrb[0].mxu0
        %v3702 = vpop.f32.mrb[0].mxu0
        %v3703 = vadd.f32 0.0, %v3702
        %v3704 = vpop.f32.mrb[0].mxu0
        %3705 = vmatprep.mubr.bf16.mxu0 0
        %3706 = vmatmul.mubr.bf16.gmra.mrb[0].mxu0 %v3637
        %v3707 = vpop.f32.mrb[0].mxu0
        %v3708 = vadd.f32 0.0, %v3707
        %v3709 = vpop.f32.mrb[0].mxu0
        %v3710 = vpop.f32.mrb[0].mxu0
        %v3711 = vadd.f32 0.0, %v3710
        %v3712 = vpop.f32.mrb[0].mxu0
        %3713 = vmatprep.mubr.bf16.mxu0 0
        %3714 = vmatmul.mubr.bf16.gmra.mrb[0].mxu0 %v3640
        %v3715 = vpop.f32.mrb[0].mxu0
        %v3716 = vadd.f32 0.0, %v3715
        %v3717 = vpop.f32.mrb[0].mxu0
        %v3718 = vpop.f32.mrb[0].mxu0
        %v3719 = vadd.f32 0.0, %v3718
        %v3720 = vpop.f32.mrb[0].mxu0
        %3721 = vmatprep.mubr.bf16.mxu0 0
        %3722 = vmatmul.mubr.bf16.gmra.mrb[0].mxu0 %v3643
        %v3723 = vpop.f32.mrb[0].mxu0
        %v3724 = vadd.f32 0.0, %v3723
        %v3725 = vpop.f32.mrb[0].mxu0
        %v3726 = vpop.f32.mrb[0].mxu0
        %v3727 = vadd.f32 0.0, %v3726
        %v3728 = vpop.f32.mrb[0].mxu0
        %3729 = vmatprep.mubr.bf16.mxu0 0
        %3730 = vmatmul.mubr.bf16.gmra.mrb[0].mxu0 %v3646
        %v3731 = vpop.f32.mrb[0].mxu0
        %v3732 = vadd.f32 0.0, %v3731
        %v3733 = vpop.f32.mrb[0].mxu0
        %v3734 = vpop.f32.mrb[0].mxu0
        %v3735 = vadd.f32 0.0, %v3734
        %v3736 = vpop.f32.mrb[0].mxu0
        %3737 = vmatprep.mubr.bf16.mxu0 0
        %3738 = vmatmul.mubr.bf16.gmra.mrb[0].mxu0 %v3649
        %v3739 = vpop.f32.mrb[0].mxu0
        %v3740 = vadd.f32 0.0, %v3739
        %v3741 = vpop.f32.mrb[0].mxu0
        %v3742 = vpop.f32.mrb[0].mxu0
        %v3743 = vadd.f32 0.0, %v3742
        %v3744 = vpop.f32.mrb[0].mxu0
        %3745 = vmatprep.mubr.bf16.mxu0 0
        %3746 = vmatmul.mubr.bf16.gmra.mrb[0].mxu0 %v3652
        %v3747 = vpop.f32.mrb[0].mxu0
        %v3748 = vadd.f32 0.0, %v3747
        %v3749 = vpop.f32.mrb[0].mxu0
        %v3750 = vpop.f32.mrb[0].mxu0
        %v3751 = vadd.f32 0.0, %v3750
        %v3752 = vpop.f32.mrb[0].mxu0
        %3753 = vdwg.mxu0
        %v3754 = vadd.f32 %v3438, %v3692
        %v3755 = vadd.f32 %v3441, %v3695
        %v3756 = vadd.f32 %v3446, %v3700
        %v3757 = vadd.f32 %v3449, %v3703
        %v3758 = vadd.f32 %v3454, %v3708
        %v3759 = vadd.f32 %v3457, %v3711
        %v3760 = vadd.f32 %v3462, %v3716
        %v3761 = vadd.f32 %v3465, %v3719
        %v3762 = vadd.f32 %v3470, %v3724
        %v3763 = vadd.f32 %v3473, %v3727
        %v3764 = vadd.f32 %v3478, %v3732
        %v3765 = vadd.f32 %v3481, %v3735
        %v3766 = vadd.f32 %v3486, %v3740
        %v3767 = vadd.f32 %v3489, %v3743
        %v3768 = vadd.f32 %v3494, %v3748
        %v3769 = vadd.f32 %v3497, %v3751
        %v3770 = vld [vmem:[%s338] sm:$0x8]
        %v3771 = vld [vmem:[%s338 + $0x4] sm:$0xf]
        %v3772 = vld [vmem:[%s338 + $0x8] sm:$0x7]
        %v3773 = vld [vmem:[%s338 + $0x1c] sm:$0x8]
        %v3774 = vld [vmem:[%s338 + $0x20] sm:$0xf]
        %v3775 = vld [vmem:[%s338 + $0x24] sm:$0x7]
        %v3776 = vld [vmem:[%s338 + $0x38] sm:$0x8]
        %v3777 = vld [vmem:[%s338 + $0x3c] sm:$0xf]
        %v3778 = vld [vmem:[%s338 + $0x40] sm:$0x7]
        %v3779 = vld [vmem:[%s338 + $0x54] sm:$0x8]
        %v3780 = vld [vmem:[%s338 + $0x58] sm:$0xf]
        %v3781 = vld [vmem:[%s338 + $0x5c] sm:$0x7]
        %v3782 = vld [vmem:[%s338 + $0x70] sm:$0x8]
        %v3783 = vld [vmem:[%s338 + $0x74] sm:$0xf]
        %v3784 = vld [vmem:[%s338 + $0x78] sm:$0x7]
        %v3785 = vld [vmem:[%s338 + $0x8c] sm:$0x8]
        %v3786 = vld [vmem:[%s338 + $0x90] sm:$0xf]
        %v3787 = vld [vmem:[%s338 + $0x94] sm:$0x7]
        %v3788 = vld [vmem:[%s338 + $0xa8] sm:$0x8]
        %v3789 = vld [vmem:[%s338 + $0xac] sm:$0xf]
        %v3790 = vld [vmem:[%s338 + $0xb0] sm:$0x7]
        %v3791 = vld [vmem:[%s338 + $0xc4] sm:$0x8]
        %v3792 = vld [vmem:[%s338 + $0xc8] sm:$0xf]
        %v3793 = vld [vmem:[%s338 + $0xcc] sm:$0x7]
        %v3818 = vrot.slane %v3770, 7
        %v3819 = vrot.slane %v3818, 4
        %v3820 = vrot.slane %v3771, 7
        %v3821 = vsel %vm3040, %v3819, %v3820
        %v3822 = vrot.slane %v3820, 4
        %v3823 = vrot.slane %v3772, 7
        %v3824 = vsel %vm3040, %v3822, %v3823
        %v3825 = vrot.slane %v3773, 7
        %v3826 = vrot.slane %v3825, 4
        %v3827 = vrot.slane %v3774, 7
        %v3828 = vsel %vm3040, %v3826, %v3827
        %v3829 = vrot.slane %v3827, 4
        %v3830 = vrot.slane %v3775, 7
        %v3831 = vsel %vm3040, %v3829, %v3830
        %v3832 = vrot.slane %v3776, 7
        %v3833 = vrot.slane %v3832, 4
        %v3834 = vrot.slane %v3777, 7
        %v3835 = vsel %vm3040, %v3833, %v3834
        %v3836 = vrot.slane %v3834, 4
        %v3837 = vrot.slane %v3778, 7
        %v3838 = vsel %vm3040, %v3836, %v3837
        %v3839 = vrot.slane %v3779, 7
        %v3840 = vrot.slane %v3839, 4
        %v3841 = vrot.slane %v3780, 7
        %v3842 = vsel %vm3040, %v3840, %v3841
        %v3843 = vrot.slane %v3841, 4
        %v3844 = vrot.slane %v3781, 7
        %v3845 = vsel %vm3040, %v3843, %v3844
        %v3846 = vrot.slane %v3782, 7
        %v3847 = vrot.slane %v3846, 4
        %v3848 = vrot.slane %v3783, 7
        %v3849 = vsel %vm3040, %v3847, %v3848
        %v3850 = vrot.slane %v3848, 4
        %v3851 = vrot.slane %v3784, 7
        %v3852 = vsel %vm3040, %v3850, %v3851
        %v3853 = vrot.slane %v3785, 7
        %v3854 = vrot.slane %v3853, 4
        %v3855 = vrot.slane %v3786, 7
        %v3856 = vsel %vm3040, %v3854, %v3855
        %v3857 = vrot.slane %v3855, 4
        %v3858 = vrot.slane %v3787, 7
        %v3859 = vsel %vm3040, %v3857, %v3858
        %v3860 = vrot.slane %v3788, 7
        %v3861 = vrot.slane %v3860, 4
        %v3862 = vrot.slane %v3789, 7
        %v3863 = vsel %vm3040, %v3861, %v3862
        %v3864 = vrot.slane %v3862, 4
        %v3865 = vrot.slane %v3790, 7
        %v3866 = vsel %vm3040, %v3864, %v3865
        %v3867 = vrot.slane %v3791, 7
        %v3868 = vrot.slane %v3867, 4
        %v3869 = vrot.slane %v3792, 7
        %v3870 = vsel %vm3040, %v3868, %v3869
        %v3871 = vrot.slane %v3869, 4
        %v3872 = vrot.slane %v3793, 7
        %v3873 = vsel %vm3040, %v3871, %v3872
        %s3874 = scalar_lea.vmem %s3, 12
        %v3875 = vld [vmem:[%s3874] sm:$0xf]
        %v3876 = vunpack.c.l.b16 %v3821
        %v3877 = vunpack.c.l.b16 %v3824
        %v3878 = vunpack.c.l.b16 %v3828
        %v3879 = vunpack.c.l.b16 %v3831
        %v3880 = vunpack.c.l.b16 %v3835
        %v3881 = vunpack.c.l.b16 %v3838
        %v3882 = vunpack.c.l.b16 %v3842
        %v3883 = vunpack.c.l.b16 %v3845
        %v3884 = vunpack.c.l.b16 %v3849
        %v3885 = vunpack.c.l.b16 %v3852
        %v3886 = vunpack.c.l.b16 %v3856
        %v3887 = vunpack.c.l.b16 %v3859
        %v3888 = vunpack.c.l.b16 %v3863
        %v3889 = vunpack.c.l.b16 %v3866
        %v3890 = vunpack.c.l.b16 %v3870
        %v3891 = vunpack.c.l.b16 %v3873
        %v3892 = vpack.c.b16 %v3877, %v3876
        %v3893 = vpack.c.b16 %v3879, %v3878
        %v3894 = vpack.c.b16 %v3881, %v3880
        %v3895 = vpack.c.b16 %v3883, %v3882
        %v3896 = vpack.c.b16 %v3885, %v3884
        %v3897 = vpack.c.b16 %v3887, %v3886
        %v3898 = vpack.c.b16 %v3889, %v3888
        %v3899 = vpack.c.b16 %v3891, %v3890
        %v3901 = vsel %vm476, %v3892, 0
        %v3904 = vsel %vm476, %v3893, 0
        %v3907 = vsel %vm476, %v3894, 0
        %v3910 = vsel %vm476, %v3895, 0
        %v3913 = vsel %vm476, %v3896, 0
        %v3916 = vsel %vm476, %v3897, 0
        %v3919 = vsel %vm476, %v3898, 0
        %v3922 = vsel %vm476, %v3899, 0
        %v3925 = vsel %vm501, %v3875, 0
        %3927 = vmatprep.subr.bf16.mxu0 0
        %3928 = vmatpush1.bf16.msra.mxu0 %v3925
        %3929 = vmatprep.subr.bf16.mxu0 0
        %3930 = vmatpush1.bf16.msra.mxu0 0
        %3931 = vmatprep.subr.bf16.mxu0 0
        %3932 = vmatpush1.bf16.msra.mxu0 0
        %3933 = vmatprep.subr.bf16.mxu0 0
        %3934 = vmatpush1.bf16.msra.mxu0 0
        %3935 = vmatprep.subr.bf16.mxu0 0
        %3936 = vmatpush1.bf16.msra.mxu0 0
        %3937 = vmatprep.subr.bf16.mxu0 0
        %3938 = vmatpush1.bf16.msra.mxu0 0
        %3939 = vmatprep.subr.bf16.mxu0 0
        %3940 = vmatpush1.bf16.msra.mxu0 0
        %3941 = vmatprep.subr.bf16.mxu0 0
        %3942 = vmatpush1.bf16.msra.mxu0 0
        %3943 = vmatprep.subr.bf16.mxu0 0
        %3944 = vmatpush1.bf16.msra.mxu0 0
        %3945 = vmatprep.subr.bf16.mxu0 0
        %3946 = vmatpush1.bf16.msra.mxu0 0
        %3947 = vmatprep.subr.bf16.mxu0 0
        %3948 = vmatpush1.bf16.msra.mxu0 0
        %3949 = vmatprep.subr.bf16.mxu0 0
        %3950 = vmatpush1.bf16.msra.mxu0 0
        %3951 = vmatprep.subr.bf16.mxu0 0
        %3952 = vmatpush1.bf16.msra.mxu0 0
        %3953 = vmatprep.subr.bf16.mxu0 0
        %3954 = vmatpush1.bf16.msra.mxu0 0
        %3955 = vmatprep.subr.bf16.mxu0 0
        %3956 = vmatpush1.bf16.msra.mxu0 0
        %3957 = vmatprep.subr.bf16.mxu0 0
        %3958 = vmatpush1.bf16.msra.mxu0 0
        %3959 = vmatprep.mubr.bf16.mxu0 0
        %3960 = vmatmul.mubr.bf16.gmra.mrb[0].mxu0 %v3901
        %v3961 = vpop.f32.mrb[0].mxu0
        %v3962 = vadd.f32 0.0, %v3961
        %v3963 = vpop.f32.mrb[0].mxu0
        %v3964 = vpop.f32.mrb[0].mxu0
        %v3965 = vadd.f32 0.0, %v3964
        %v3966 = vpop.f32.mrb[0].mxu0
        %3967 = vmatprep.mubr.bf16.mxu0 0
        %3968 = vmatmul.mubr.bf16.gmra.mrb[0].mxu0 %v3904
        %v3969 = vpop.f32.mrb[0].mxu0
        %v3970 = vadd.f32 0.0, %v3969
        %v3971 = vpop.f32.mrb[0].mxu0
        %v3972 = vpop.f32.mrb[0].mxu0
        %v3973 = vadd.f32 0.0, %v3972
        %v3974 = vpop.f32.mrb[0].mxu0
        %3975 = vmatprep.mubr.bf16.mxu0 0
        %3976 = vmatmul.mubr.bf16.gmra.mrb[0].mxu0 %v3907
        %v3977 = vpop.f32.mrb[0].mxu0
        %v3978 = vadd.f32 0.0, %v3977
        %v3979 = vpop.f32.mrb[0].mxu0
        %v3980 = vpop.f32.mrb[0].mxu0
        %v3981 = vadd.f32 0.0, %v3980
        %v3982 = vpop.f32.mrb[0].mxu0
        %3983 = vmatprep.mubr.bf16.mxu0 0
        %3984 = vmatmul.mubr.bf16.gmra.mrb[0].mxu0 %v3910
        %v3985 = vpop.f32.mrb[0].mxu0
        %v3986 = vadd.f32 0.0, %v3985
        %v3987 = vpop.f32.mrb[0].mxu0
        %v3988 = vpop.f32.mrb[0].mxu0
        %v3989 = vadd.f32 0.0, %v3988
        %v3990 = vpop.f32.mrb[0].mxu0
        %3991 = vmatprep.mubr.bf16.mxu0 0
        %3992 = vmatmul.mubr.bf16.gmra.mrb[0].mxu0 %v3913
        %v3993 = vpop.f32.mrb[0].mxu0
        %v3994 = vadd.f32 0.0, %v3993
        %v3995 = vpop.f32.mrb[0].mxu0
        %v3996 = vpop.f32.mrb[0].mxu0
        %v3997 = vadd.f32 0.0, %v3996
        %v3998 = vpop.f32.mrb[0].mxu0
        %3999 = vmatprep.mubr.bf16.mxu0 0
        %4000 = vmatmul.mubr.bf16.gmra.mrb[0].mxu0 %v3916
        %v4001 = vpop.f32.mrb[0].mxu0
        %v4002 = vadd.f32 0.0, %v4001
        %v4003 = vpop.f32.mrb[0].mxu0
        %v4004 = vpop.f32.mrb[0].mxu0
        %v4005 = vadd.f32 0.0, %v4004
        %v4006 = vpop.f32.mrb[0].mxu0
        %4007 = vmatprep.mubr.bf16.mxu0 0
        %4008 = vmatmul.mubr.bf16.gmra.mrb[0].mxu0 %v3919
        %v4009 = vpop.f32.mrb[0].mxu0
        %v4010 = vadd.f32 0.0, %v4009
        %v4011 = vpop.f32.mrb[0].mxu0
        %v4012 = vpop.f32.mrb[0].mxu0
        %v4013 = vadd.f32 0.0, %v4012
        %v4014 = vpop.f32.mrb[0].mxu0
        %4015 = vmatprep.mubr.bf16.mxu0 0
        %4016 = vmatmul.mubr.bf16.gmra.mrb[0].mxu0 %v3922
        %v4017 = vpop.f32.mrb[0].mxu0
        %v4018 = vadd.f32 0.0, %v4017
        %v4019 = vpop.f32.mrb[0].mxu0
        %v4020 = vpop.f32.mrb[0].mxu0
        %v4021 = vadd.f32 0.0, %v4020
        %v4022 = vpop.f32.mrb[0].mxu0
        %4023 = vdwg.mxu0
        %v4024 = vadd.f32 %v3754, %v3962
        %v4025 = vadd.f32 %v3755, %v3965
        %v4026 = vadd.f32 %v3756, %v3970
        %v4027 = vadd.f32 %v3757, %v3973
        %v4028 = vadd.f32 %v3758, %v3978
        %v4029 = vadd.f32 %v3759, %v3981
        %v4030 = vadd.f32 %v3760, %v3986
        %v4031 = vadd.f32 %v3761, %v3989
        %v4032 = vadd.f32 %v3762, %v3994
        %v4033 = vadd.f32 %v3763, %v3997
        %v4034 = vadd.f32 %v3764, %v4002
        %v4035 = vadd.f32 %v3765, %v4005
        %v4036 = vadd.f32 %v3766, %v4010
        %v4037 = vadd.f32 %v3767, %v4013
        %v4038 = vadd.f32 %v3768, %v4018
        %v4039 = vadd.f32 %v3769, %v4021
        %s4040 = scalar_lea.vmem %s3, 16
        %v4041 = vld [vmem:[%s4040] sm:$0xf]
        %v4043 = vsel %vm501, %v4041, 0
        %4045 = vmatprep.subr.bf16.mxu0 0
        %4046 = vmatpush1.bf16.msra.mxu0 %v4043
        %4047 = vmatprep.subr.bf16.mxu0 0
        %4048 = vmatpush1.bf16.msra.mxu0 0
        %4049 = vmatprep.subr.bf16.mxu0 0
        %4050 = vmatpush1.bf16.msra.mxu0 0
        %4051 = vmatprep.subr.bf16.mxu0 0
        %4052 = vmatpush1.bf16.msra.mxu0 0
        %4053 = vmatprep.subr.bf16.mxu0 0
        %4054 = vmatpush1.bf16.msra.mxu0 0
        %4055 = vmatprep.subr.bf16.mxu0 0
        %4056 = vmatpush1.bf16.msra.mxu0 0
        %4057 = vmatprep.subr.bf16.mxu0 0
        %4058 = vmatpush1.bf16.msra.mxu0 0
        %4059 = vmatprep.subr.bf16.mxu0 0
        %4060 = vmatpush1.bf16.msra.mxu0 0
        %4061 = vmatprep.subr.bf16.mxu0 0
        %4062 = vmatpush1.bf16.msra.mxu0 0
        %4063 = vmatprep.subr.bf16.mxu0 0
        %4064 = vmatpush1.bf16.msra.mxu0 0
        %4065 = vmatprep.subr.bf16.mxu0 0
        %4066 = vmatpush1.bf16.msra.mxu0 0
        %4067 = vmatprep.subr.bf16.mxu0 0
        %4068 = vmatpush1.bf16.msra.mxu0 0
        %4069 = vmatprep.subr.bf16.mxu0 0
        %4070 = vmatpush1.bf16.msra.mxu0 0
        %4071 = vmatprep.subr.bf16.mxu0 0
        %4072 = vmatpush1.bf16.msra.mxu0 0
        %4073 = vmatprep.subr.bf16.mxu0 0
        %4074 = vmatpush1.bf16.msra.mxu0 0
        %4075 = vmatprep.subr.bf16.mxu0 0
        %4076 = vmatpush1.bf16.msra.mxu0 0
        %4077 = vmatprep.mubr.bf16.mxu0 0
        %4078 = vmatmul.mubr.bf16.gmra.mrb[0].mxu0 %v478
        %v4079 = vpop.f32.mrb[0].mxu0
        %v4080 = vadd.f32 0.0, %v4079
        %v4081 = vpop.f32.mrb[0].mxu0
        %v4082 = vpop.f32.mrb[0].mxu0
        %v4083 = vadd.f32 0.0, %v4082
        %v4084 = vpop.f32.mrb[0].mxu0
        %4085 = vmatprep.mubr.bf16.mxu0 0
        %4086 = vmatmul.mubr.bf16.gmra.mrb[0].mxu0 %v481
        %v4087 = vpop.f32.mrb[0].mxu0
        %v4088 = vadd.f32 0.0, %v4087
        %v4089 = vpop.f32.mrb[0].mxu0
        %v4090 = vpop.f32.mrb[0].mxu0
        %v4091 = vadd.f32 0.0, %v4090
        %v4092 = vpop.f32.mrb[0].mxu0
        %4093 = vmatprep.mubr.bf16.mxu0 0
        %4094 = vmatmul.mubr.bf16.gmra.mrb[0].mxu0 %v484
        %v4095 = vpop.f32.mrb[0].mxu0
        %v4096 = vadd.f32 0.0, %v4095
        %v4097 = vpop.f32.mrb[0].mxu0
        %v4098 = vpop.f32.mrb[0].mxu0
        %v4099 = vadd.f32 0.0, %v4098
        %v4100 = vpop.f32.mrb[0].mxu0
        %4101 = vmatprep.mubr.bf16.mxu0 0
        %4102 = vmatmul.mubr.bf16.gmra.mrb[0].mxu0 %v487
        %v4103 = vpop.f32.mrb[0].mxu0
        %v4104 = vadd.f32 0.0, %v4103
        %v4105 = vpop.f32.mrb[0].mxu0
        %v4106 = vpop.f32.mrb[0].mxu0
        %v4107 = vadd.f32 0.0, %v4106
        %v4108 = vpop.f32.mrb[0].mxu0
        %4109 = vmatprep.mubr.bf16.mxu0 0
        %4110 = vmatmul.mubr.bf16.gmra.mrb[0].mxu0 %v490
        %v4111 = vpop.f32.mrb[0].mxu0
        %v4112 = vadd.f32 0.0, %v4111
        %v4113 = vpop.f32.mrb[0].mxu0
        %v4114 = vpop.f32.mrb[0].mxu0
        %v4115 = vadd.f32 0.0, %v4114
        %v4116 = vpop.f32.mrb[0].mxu0
        %4117 = vmatprep.mubr.bf16.mxu0 0
        %4118 = vmatmul.mubr.bf16.gmra.mrb[0].mxu0 %v493
        %v4119 = vpop.f32.mrb[0].mxu0
        %v4120 = vadd.f32 0.0, %v4119
        %v4121 = vpop.f32.mrb[0].mxu0
        %v4122 = vpop.f32.mrb[0].mxu0
        %v4123 = vadd.f32 0.0, %v4122
        %v4124 = vpop.f32.mrb[0].mxu0
        %4125 = vmatprep.mubr.bf16.mxu0 0
        %4126 = vmatmul.mubr.bf16.gmra.mrb[0].mxu0 %v496
        %v4127 = vpop.f32.mrb[0].mxu0
        %v4128 = vadd.f32 0.0, %v4127
        %v4129 = vpop.f32.mrb[0].mxu0
        %v4130 = vpop.f32.mrb[0].mxu0
        %v4131 = vadd.f32 0.0, %v4130
        %v4132 = vpop.f32.mrb[0].mxu0
        %4133 = vmatprep.mubr.bf16.mxu0 0
        %4134 = vmatmul.mubr.bf16.gmra.mrb[0].mxu0 %v499
        %v4135 = vpop.f32.mrb[0].mxu0
        %v4136 = vadd.f32 0.0, %v4135
        %v4137 = vpop.f32.mrb[0].mxu0
        %v4138 = vpop.f32.mrb[0].mxu0
        %v4139 = vadd.f32 0.0, %v4138
        %v4140 = vpop.f32.mrb[0].mxu0
        %4141 = vdwg.mxu0
        %v4142 = vadd.f32 %v4024, %v4080
        %v4143 = vadd.f32 %v4025, %v4083
        %v4144 = vadd.f32 %v4026, %v4088
        %v4145 = vadd.f32 %v4027, %v4091
        %v4146 = vadd.f32 %v4028, %v4096
        %v4147 = vadd.f32 %v4029, %v4099
        %v4148 = vadd.f32 %v4030, %v4104
        %v4149 = vadd.f32 %v4031, %v4107
        %v4150 = vadd.f32 %v4032, %v4112
        %v4151 = vadd.f32 %v4033, %v4115
        %v4152 = vadd.f32 %v4034, %v4120
        %v4153 = vadd.f32 %v4035, %v4123
        %v4154 = vadd.f32 %v4036, %v4128
        %v4155 = vadd.f32 %v4037, %v4131
        %v4156 = vadd.f32 %v4038, %v4136
        %v4157 = vadd.f32 %v4039, %v4139
        %v4158 = vld [vmem:[%s338 + $0xc] sm:$0x8]
        %v4159 = vld [vmem:[%s338 + $0x10] sm:$0xf]
        %v4160 = vld [vmem:[%s338 + $0x14] sm:$0x7]
        %v4161 = vld [vmem:[%s338 + $0x28] sm:$0x8]
        %v4162 = vld [vmem:[%s338 + $0x2c] sm:$0xf]
        %v4163 = vld [vmem:[%s338 + $0x30] sm:$0x7]
        %v4164 = vld [vmem:[%s338 + $0x44] sm:$0x8]
        %v4165 = vld [vmem:[%s338 + $0x48] sm:$0xf]
        %v4166 = vld [vmem:[%s338 + $0x4c] sm:$0x7]
        %v4167 = vld [vmem:[%s338 + $0x60] sm:$0x8]
        %v4168 = vld [vmem:[%s338 + $0x64] sm:$0xf]
        %v4169 = vld [vmem:[%s338 + $0x68] sm:$0x7]
        %v4170 = vld [vmem:[%s338 + $0x7c] sm:$0x8]
        %v4171 = vld [vmem:[%s338 + $0x80] sm:$0xf]
        %v4172 = vld [vmem:[%s338 + $0x84] sm:$0x7]
        %v4173 = vld [vmem:[%s338 + $0x98] sm:$0x8]
        %v4174 = vld [vmem:[%s338 + $0x9c] sm:$0xf]
        %v4175 = vld [vmem:[%s338 + $0xa0] sm:$0x7]
        %v4176 = vld [vmem:[%s338 + $0xb4] sm:$0x8]
        %v4177 = vld [vmem:[%s338 + $0xb8] sm:$0xf]
        %v4178 = vld [vmem:[%s338 + $0xbc] sm:$0x7]
        %v4179 = vld [vmem:[%s338 + $0xd0] sm:$0x8]
        %v4180 = vld [vmem:[%s338 + $0xd4] sm:$0xf]
        %v4181 = vld [vmem:[%s338 + $0xd8] sm:$0x7]
        %v4206 = vrot.slane %v4158, 7
        %v4207 = vrot.slane %v4206, 4
        %v4208 = vrot.slane %v4159, 7
        %v4209 = vsel %vm3040, %v4207, %v4208
        %v4210 = vrot.slane %v4208, 4
        %v4211 = vrot.slane %v4160, 7
        %v4212 = vsel %vm3040, %v4210, %v4211
        %v4213 = vrot.slane %v4161, 7
        %v4214 = vrot.slane %v4213, 4
        %v4215 = vrot.slane %v4162, 7
        %v4216 = vsel %vm3040, %v4214, %v4215
        %v4217 = vrot.slane %v4215, 4
        %v4218 = vrot.slane %v4163, 7
        %v4219 = vsel %vm3040, %v4217, %v4218
        %v4220 = vrot.slane %v4164, 7
        %v4221 = vrot.slane %v4220, 4
        %v4222 = vrot.slane %v4165, 7
        %v4223 = vsel %vm3040, %v4221, %v4222
        %v4224 = vrot.slane %v4222, 4
        %v4225 = vrot.slane %v4166, 7
        %v4226 = vsel %vm3040, %v4224, %v4225
        %v4227 = vrot.slane %v4167, 7
        %v4228 = vrot.slane %v4227, 4
        %v4229 = vrot.slane %v4168, 7
        %v4230 = vsel %vm3040, %v4228, %v4229
        %v4231 = vrot.slane %v4229, 4
        %v4232 = vrot.slane %v4169, 7
        %v4233 = vsel %vm3040, %v4231, %v4232
        %v4234 = vrot.slane %v4170, 7
        %v4235 = vrot.slane %v4234, 4
        %v4236 = vrot.slane %v4171, 7
        %v4237 = vsel %vm3040, %v4235, %v4236
        %v4238 = vrot.slane %v4236, 4
        %v4239 = vrot.slane %v4172, 7
        %v4240 = vsel %vm3040, %v4238, %v4239
        %v4241 = vrot.slane %v4173, 7
        %v4242 = vrot.slane %v4241, 4
        %v4243 = vrot.slane %v4174, 7
        %v4244 = vsel %vm3040, %v4242, %v4243
        %v4245 = vrot.slane %v4243, 4
        %v4246 = vrot.slane %v4175, 7
        %v4247 = vsel %vm3040, %v4245, %v4246
        %v4248 = vrot.slane %v4176, 7
        %v4249 = vrot.slane %v4248, 4
        %v4250 = vrot.slane %v4177, 7
        %v4251 = vsel %vm3040, %v4249, %v4250
        %v4252 = vrot.slane %v4250, 4
        %v4253 = vrot.slane %v4178, 7
        %v4254 = vsel %vm3040, %v4252, %v4253
        %v4255 = vrot.slane %v4179, 7
        %v4256 = vrot.slane %v4255, 4
        %v4257 = vrot.slane %v4180, 7
        %v4258 = vsel %vm3040, %v4256, %v4257
        %v4259 = vrot.slane %v4257, 4
        %v4260 = vrot.slane %v4181, 7
        %v4261 = vsel %vm3040, %v4259, %v4260
        %s4262 = scalar_lea.vmem %s3, 20
        %v4263 = vld [vmem:[%s4262] sm:$0xf]
        %v4264 = vunpack.c.l.b16 %v4209
        %v4265 = vunpack.c.l.b16 %v4212
        %v4266 = vunpack.c.l.b16 %v4216
        %v4267 = vunpack.c.l.b16 %v4219
        %v4268 = vunpack.c.l.b16 %v4223
        %v4269 = vunpack.c.l.b16 %v4226
        %v4270 = vunpack.c.l.b16 %v4230
        %v4271 = vunpack.c.l.b16 %v4233
        %v4272 = vunpack.c.l.b16 %v4237
        %v4273 = vunpack.c.l.b16 %v4240
        %v4274 = vunpack.c.l.b16 %v4244
        %v4275 = vunpack.c.l.b16 %v4247
        %v4276 = vunpack.c.l.b16 %v4251
        %v4277 = vunpack.c.l.b16 %v4254
        %v4278 = vunpack.c.l.b16 %v4258
        %v4279 = vunpack.c.l.b16 %v4261
        %v4280 = vpack.c.b16 %v4265, %v4264
        %v4281 = vpack.c.b16 %v4267, %v4266
        %v4282 = vpack.c.b16 %v4269, %v4268
        %v4283 = vpack.c.b16 %v4271, %v4270
        %v4284 = vpack.c.b16 %v4273, %v4272
        %v4285 = vpack.c.b16 %v4275, %v4274
        %v4286 = vpack.c.b16 %v4277, %v4276
        %v4287 = vpack.c.b16 %v4279, %v4278
        %v4289 = vsel %vm476, %v4280, 0
        %v4292 = vsel %vm476, %v4281, 0
        %v4295 = vsel %vm476, %v4282, 0
        %v4298 = vsel %vm476, %v4283, 0
        %v4301 = vsel %vm476, %v4284, 0
        %v4304 = vsel %vm476, %v4285, 0
        %v4307 = vsel %vm476, %v4286, 0
        %v4310 = vsel %vm476, %v4287, 0
        %v4313 = vsel %vm501, %v4263, 0
        %4315 = vmatprep.subr.bf16.mxu0 0
        %4316 = vmatpush1.bf16.msra.mxu0 %v4313
        %4317 = vmatprep.subr.bf16.mxu0 0
        %4318 = vmatpush1.bf16.msra.mxu0 0
        %4319 = vmatprep.subr.bf16.mxu0 0
        %4320 = vmatpush1.bf16.msra.mxu0 0
        %4321 = vmatprep.subr.bf16.mxu0 0
        %4322 = vmatpush1.bf16.msra.mxu0 0
        %4323 = vmatprep.subr.bf16.mxu0 0
        %4324 = vmatpush1.bf16.msra.mxu0 0
        %4325 = vmatprep.subr.bf16.mxu0 0
        %4326 = vmatpush1.bf16.msra.mxu0 0
        %4327 = vmatprep.subr.bf16.mxu0 0
        %4328 = vmatpush1.bf16.msra.mxu0 0
        %4329 = vmatprep.subr.bf16.mxu0 0
        %4330 = vmatpush1.bf16.msra.mxu0 0
        %4331 = vmatprep.subr.bf16.mxu0 0
        %4332 = vmatpush1.bf16.msra.mxu0 0
        %4333 = vmatprep.subr.bf16.mxu0 0
        %4334 = vmatpush1.bf16.msra.mxu0 0
        %4335 = vmatprep.subr.bf16.mxu0 0
        %4336 = vmatpush1.bf16.msra.mxu0 0
        %4337 = vmatprep.subr.bf16.mxu0 0
        %4338 = vmatpush1.bf16.msra.mxu0 0
        %4339 = vmatprep.subr.bf16.mxu0 0
        %4340 = vmatpush1.bf16.msra.mxu0 0
        %4341 = vmatprep.subr.bf16.mxu0 0
        %4342 = vmatpush1.bf16.msra.mxu0 0
        %4343 = vmatprep.subr.bf16.mxu0 0
        %4344 = vmatpush1.bf16.msra.mxu0 0
        %4345 = vmatprep.subr.bf16.mxu0 0
        %4346 = vmatpush1.bf16.msra.mxu0 0
        %4347 = vmatprep.mubr.bf16.mxu0 0
        %4348 = vmatmul.mubr.bf16.gmra.mrb[0].mxu0 %v4289
        %v4349 = vpop.f32.mrb[0].mxu0
        %v4350 = vadd.f32 0.0, %v4349
        %v4351 = vpop.f32.mrb[0].mxu0
        %v4352 = vpop.f32.mrb[0].mxu0
        %v4353 = vadd.f32 0.0, %v4352
        %v4354 = vpop.f32.mrb[0].mxu0
        %4355 = vmatprep.mubr.bf16.mxu0 0
        %4356 = vmatmul.mubr.bf16.gmra.mrb[0].mxu0 %v4292
        %v4357 = vpop.f32.mrb[0].mxu0
        %v4358 = vadd.f32 0.0, %v4357
        %v4359 = vpop.f32.mrb[0].mxu0
        %v4360 = vpop.f32.mrb[0].mxu0
        %v4361 = vadd.f32 0.0, %v4360
        %v4362 = vpop.f32.mrb[0].mxu0
        %4363 = vmatprep.mubr.bf16.mxu0 0
        %4364 = vmatmul.mubr.bf16.gmra.mrb[0].mxu0 %v4295
        %v4365 = vpop.f32.mrb[0].mxu0
        %v4366 = vadd.f32 0.0, %v4365
        %v4367 = vpop.f32.mrb[0].mxu0
        %v4368 = vpop.f32.mrb[0].mxu0
        %v4369 = vadd.f32 0.0, %v4368
        %v4370 = vpop.f32.mrb[0].mxu0
        %4371 = vmatprep.mubr.bf16.mxu0 0
        %4372 = vmatmul.mubr.bf16.gmra.mrb[0].mxu0 %v4298
        %v4373 = vpop.f32.mrb[0].mxu0
        %v4374 = vadd.f32 0.0, %v4373
        %v4375 = vpop.f32.mrb[0].mxu0
        %v4376 = vpop.f32.mrb[0].mxu0
        %v4377 = vadd.f32 0.0, %v4376
        %v4378 = vpop.f32.mrb[0].mxu0
        %4379 = vmatprep.mubr.bf16.mxu0 0
        %4380 = vmatmul.mubr.bf16.gmra.mrb[0].mxu0 %v4301
        %v4381 = vpop.f32.mrb[0].mxu0
        %v4382 = vadd.f32 0.0, %v4381
        %v4383 = vpop.f32.mrb[0].mxu0
        %v4384 = vpop.f32.mrb[0].mxu0
        %v4385 = vadd.f32 0.0, %v4384
        %v4386 = vpop.f32.mrb[0].mxu0
        %4387 = vmatprep.mubr.bf16.mxu0 0
        %4388 = vmatmul.mubr.bf16.gmra.mrb[0].mxu0 %v4304
        %v4389 = vpop.f32.mrb[0].mxu0
        %v4390 = vadd.f32 0.0, %v4389
        %v4391 = vpop.f32.mrb[0].mxu0
        %v4392 = vpop.f32.mrb[0].mxu0
        %v4393 = vadd.f32 0.0, %v4392
        %v4394 = vpop.f32.mrb[0].mxu0
        %4395 = vmatprep.mubr.bf16.mxu0 0
        %4396 = vmatmul.mubr.bf16.gmra.mrb[0].mxu0 %v4307
        %v4397 = vpop.f32.mrb[0].mxu0
        %v4398 = vadd.f32 0.0, %v4397
        %v4399 = vpop.f32.mrb[0].mxu0
        %v4400 = vpop.f32.mrb[0].mxu0
        %v4401 = vadd.f32 0.0, %v4400
        %v4402 = vpop.f32.mrb[0].mxu0
        %4403 = vmatprep.mubr.bf16.mxu0 0
        %4404 = vmatmul.mubr.bf16.gmra.mrb[0].mxu0 %v4310
        %v4405 = vpop.f32.mrb[0].mxu0
        %v4406 = vadd.f32 0.0, %v4405
        %v4407 = vpop.f32.mrb[0].mxu0
        %v4408 = vpop.f32.mrb[0].mxu0
        %v4409 = vadd.f32 0.0, %v4408
        %v4410 = vpop.f32.mrb[0].mxu0
        %4411 = vdwg.mxu0
        %v4412 = vadd.f32 %v4142, %v4350
        %v4413 = vadd.f32 %v4143, %v4353
        %v4414 = vadd.f32 %v4144, %v4358
        %v4415 = vadd.f32 %v4145, %v4361
        %v4416 = vadd.f32 %v4146, %v4366
        %v4417 = vadd.f32 %v4147, %v4369
        %v4418 = vadd.f32 %v4148, %v4374
        %v4419 = vadd.f32 %v4149, %v4377
        %v4420 = vadd.f32 %v4150, %v4382
        %v4421 = vadd.f32 %v4151, %v4385
        %v4422 = vadd.f32 %v4152, %v4390
        %v4423 = vadd.f32 %v4153, %v4393
        %v4424 = vadd.f32 %v4154, %v4398
        %v4425 = vadd.f32 %v4155, %v4401
        %v4426 = vadd.f32 %v4156, %v4406
        %v4427 = vadd.f32 %v4157, %v4409
        %s4428 = sadd.s32 %s334, 30
        %s4429 = smul.u32 %s4428, 7
        %s4430 = smul.addr %s4429, 4
        %s4431 = scalar_lea.vmem %s328, %s4430
        %v4432 = vld [vmem:[%s4431] sm:$0x8]
        %v4433 = vld [vmem:[%s4431 + $0x4] sm:$0xf]
        %v4434 = vld [vmem:[%s4431 + $0x8] sm:$0x7]
        %v4435 = vld [vmem:[%s4431 + $0x1c] sm:$0x8]
        %v4436 = vld [vmem:[%s4431 + $0x20] sm:$0xf]
        %v4437 = vld [vmem:[%s4431 + $0x24] sm:$0x7]
        %v4438 = vld [vmem:[%s4431 + $0x38] sm:$0x8]
        %v4439 = vld [vmem:[%s4431 + $0x3c] sm:$0xf]
        %v4440 = vld [vmem:[%s4431 + $0x40] sm:$0x7]
        %v4441 = vld [vmem:[%s4431 + $0x54] sm:$0x8]
        %v4442 = vld [vmem:[%s4431 + $0x58] sm:$0xf]
        %v4443 = vld [vmem:[%s4431 + $0x5c] sm:$0x7]
        %v4444 = vld [vmem:[%s4431 + $0x70] sm:$0x8]
        %v4445 = vld [vmem:[%s4431 + $0x74] sm:$0xf]
        %v4446 = vld [vmem:[%s4431 + $0x78] sm:$0x7]
        %v4447 = vld [vmem:[%s4431 + $0x8c] sm:$0x8]
        %v4448 = vld [vmem:[%s4431 + $0x90] sm:$0xf]
        %v4449 = vld [vmem:[%s4431 + $0x94] sm:$0x7]
        %v4450 = vld [vmem:[%s4431 + $0xa8] sm:$0x8]
        %v4451 = vld [vmem:[%s4431 + $0xac] sm:$0xf]
        %v4452 = vld [vmem:[%s4431 + $0xb0] sm:$0x7]
        %v4453 = vld [vmem:[%s4431 + $0xc4] sm:$0x8]
        %v4454 = vld [vmem:[%s4431 + $0xc8] sm:$0xf]
        %v4455 = vld [vmem:[%s4431 + $0xcc] sm:$0x7]
        %v4480 = vrot.slane %v4432, 7
        %v4481 = vrot.slane %v4480, 4
        %v4482 = vrot.slane %v4433, 7
        %v4483 = vsel %vm3040, %v4481, %v4482
        %v4484 = vrot.slane %v4482, 4
        %v4485 = vrot.slane %v4434, 7
        %v4486 = vsel %vm3040, %v4484, %v4485
        %v4487 = vrot.slane %v4435, 7
        %v4488 = vrot.slane %v4487, 4
        %v4489 = vrot.slane %v4436, 7
        %v4490 = vsel %vm3040, %v4488, %v4489
        %v4491 = vrot.slane %v4489, 4
        %v4492 = vrot.slane %v4437, 7
        %v4493 = vsel %vm3040, %v4491, %v4492
        %v4494 = vrot.slane %v4438, 7
        %v4495 = vrot.slane %v4494, 4
        %v4496 = vrot.slane %v4439, 7
        %v4497 = vsel %vm3040, %v4495, %v4496
        %v4498 = vrot.slane %v4496, 4
        %v4499 = vrot.slane %v4440, 7
        %v4500 = vsel %vm3040, %v4498, %v4499
        %v4501 = vrot.slane %v4441, 7
        %v4502 = vrot.slane %v4501, 4
        %v4503 = vrot.slane %v4442, 7
        %v4504 = vsel %vm3040, %v4502, %v4503
        %v4505 = vrot.slane %v4503, 4
        %v4506 = vrot.slane %v4443, 7
        %v4507 = vsel %vm3040, %v4505, %v4506
        %v4508 = vrot.slane %v4444, 7
        %v4509 = vrot.slane %v4508, 4
        %v4510 = vrot.slane %v4445, 7
        %v4511 = vsel %vm3040, %v4509, %v4510
        %v4512 = vrot.slane %v4510, 4
        %v4513 = vrot.slane %v4446, 7
        %v4514 = vsel %vm3040, %v4512, %v4513
        %v4515 = vrot.slane %v4447, 7
        %v4516 = vrot.slane %v4515, 4
        %v4517 = vrot.slane %v4448, 7
        %v4518 = vsel %vm3040, %v4516, %v4517
        %v4519 = vrot.slane %v4517, 4
        %v4520 = vrot.slane %v4449, 7
        %v4521 = vsel %vm3040, %v4519, %v4520
        %v4522 = vrot.slane %v4450, 7
        %v4523 = vrot.slane %v4522, 4
        %v4524 = vrot.slane %v4451, 7
        %v4525 = vsel %vm3040, %v4523, %v4524
        %v4526 = vrot.slane %v4524, 4
        %v4527 = vrot.slane %v4452, 7
        %v4528 = vsel %vm3040, %v4526, %v4527
        %v4529 = vrot.slane %v4453, 7
        %v4530 = vrot.slane %v4529, 4
        %v4531 = vrot.slane %v4454, 7
        %v4532 = vsel %vm3040, %v4530, %v4531
        %v4533 = vrot.slane %v4531, 4
        %v4534 = vrot.slane %v4455, 7
        %v4535 = vsel %vm3040, %v4533, %v4534
        %s4536 = scalar_lea.vmem %s3, 24
        %v4537 = vld [vmem:[%s4536] sm:$0xf]
        %v4538 = vunpack.c.l.b16 %v4483
        %v4539 = vunpack.c.l.b16 %v4486
        %v4540 = vunpack.c.l.b16 %v4490
        %v4541 = vunpack.c.l.b16 %v4493
        %v4542 = vunpack.c.l.b16 %v4497
        %v4543 = vunpack.c.l.b16 %v4500
        %v4544 = vunpack.c.l.b16 %v4504
        %v4545 = vunpack.c.l.b16 %v4507
        %v4546 = vunpack.c.l.b16 %v4511
        %v4547 = vunpack.c.l.b16 %v4514
        %v4548 = vunpack.c.l.b16 %v4518
        %v4549 = vunpack.c.l.b16 %v4521
        %v4550 = vunpack.c.l.b16 %v4525
        %v4551 = vunpack.c.l.b16 %v4528
        %v4552 = vunpack.c.l.b16 %v4532
        %v4553 = vunpack.c.l.b16 %v4535
        %v4554 = vpack.c.b16 %v4539, %v4538
        %v4555 = vpack.c.b16 %v4541, %v4540
        %v4556 = vpack.c.b16 %v4543, %v4542
        %v4557 = vpack.c.b16 %v4545, %v4544
        %v4558 = vpack.c.b16 %v4547, %v4546
        %v4559 = vpack.c.b16 %v4549, %v4548
        %v4560 = vpack.c.b16 %v4551, %v4550
        %v4561 = vpack.c.b16 %v4553, %v4552
        %v4563 = vsel %vm476, %v4554, 0
        %v4566 = vsel %vm476, %v4555, 0
        %v4569 = vsel %vm476, %v4556, 0
        %v4572 = vsel %vm476, %v4557, 0
        %v4575 = vsel %vm476, %v4558, 0
        %v4578 = vsel %vm476, %v4559, 0
        %v4581 = vsel %vm476, %v4560, 0
        %v4584 = vsel %vm476, %v4561, 0
        %v4587 = vsel %vm501, %v4537, 0
        %4589 = vmatprep.subr.bf16.mxu0 0
        %4590 = vmatpush1.bf16.msra.mxu0 %v4587
        %4591 = vmatprep.subr.bf16.mxu0 0
        %4592 = vmatpush1.bf16.msra.mxu0 0
        %4593 = vmatprep.subr.bf16.mxu0 0
        %4594 = vmatpush1.bf16.msra.mxu0 0
        %4595 = vmatprep.subr.bf16.mxu0 0
        %4596 = vmatpush1.bf16.msra.mxu0 0
        %4597 = vmatprep.subr.bf16.mxu0 0
        %4598 = vmatpush1.bf16.msra.mxu0 0
        %4599 = vmatprep.subr.bf16.mxu0 0
        %4600 = vmatpush1.bf16.msra.mxu0 0
        %4601 = vmatprep.subr.bf16.mxu0 0
        %4602 = vmatpush1.bf16.msra.mxu0 0
        %4603 = vmatprep.subr.bf16.mxu0 0
        %4604 = vmatpush1.bf16.msra.mxu0 0
        %4605 = vmatprep.subr.bf16.mxu0 0
        %4606 = vmatpush1.bf16.msra.mxu0 0
        %4607 = vmatprep.subr.bf16.mxu0 0
        %4608 = vmatpush1.bf16.msra.mxu0 0
        %4609 = vmatprep.subr.bf16.mxu0 0
        %4610 = vmatpush1.bf16.msra.mxu0 0
        %4611 = vmatprep.subr.bf16.mxu0 0
        %4612 = vmatpush1.bf16.msra.mxu0 0
        %4613 = vmatprep.subr.bf16.mxu0 0
        %4614 = vmatpush1.bf16.msra.mxu0 0
        %4615 = vmatprep.subr.bf16.mxu0 0
        %4616 = vmatpush1.bf16.msra.mxu0 0
        %4617 = vmatprep.subr.bf16.mxu0 0
        %4618 = vmatpush1.bf16.msra.mxu0 0
        %4619 = vmatprep.subr.bf16.mxu0 0
        %4620 = vmatpush1.bf16.msra.mxu0 0
        %4621 = vmatprep.mubr.bf16.mxu0 0
        %4622 = vmatmul.mubr.bf16.gmra.mrb[0].mxu0 %v4563
        %v4623 = vpop.f32.mrb[0].mxu0
        %v4624 = vadd.f32 0.0, %v4623
        %v4625 = vpop.f32.mrb[0].mxu0
        %v4626 = vpop.f32.mrb[0].mxu0
        %v4627 = vadd.f32 0.0, %v4626
        %v4628 = vpop.f32.mrb[0].mxu0
        %4629 = vmatprep.mubr.bf16.mxu0 0
        %4630 = vmatmul.mubr.bf16.gmra.mrb[0].mxu0 %v4566
        %v4631 = vpop.f32.mrb[0].mxu0
        %v4632 = vadd.f32 0.0, %v4631
        %v4633 = vpop.f32.mrb[0].mxu0
        %v4634 = vpop.f32.mrb[0].mxu0
        %v4635 = vadd.f32 0.0, %v4634
        %v4636 = vpop.f32.mrb[0].mxu0
        %4637 = vmatprep.mubr.bf16.mxu0 0
        %4638 = vmatmul.mubr.bf16.gmra.mrb[0].mxu0 %v4569
        %v4639 = vpop.f32.mrb[0].mxu0
        %v4640 = vadd.f32 0.0, %v4639
        %v4641 = vpop.f32.mrb[0].mxu0
        %v4642 = vpop.f32.mrb[0].mxu0
        %v4643 = vadd.f32 0.0, %v4642
        %v4644 = vpop.f32.mrb[0].mxu0
        %4645 = vmatprep.mubr.bf16.mxu0 0
        %4646 = vmatmul.mubr.bf16.gmra.mrb[0].mxu0 %v4572
        %v4647 = vpop.f32.mrb[0].mxu0
        %v4648 = vadd.f32 0.0, %v4647
        %v4649 = vpop.f32.mrb[0].mxu0
        %v4650 = vpop.f32.mrb[0].mxu0
        %v4651 = vadd.f32 0.0, %v4650
        %v4652 = vpop.f32.mrb[0].mxu0
        %4653 = vmatprep.mubr.bf16.mxu0 0
        %4654 = vmatmul.mubr.bf16.gmra.mrb[0].mxu0 %v4575
        %v4655 = vpop.f32.mrb[0].mxu0
        %v4656 = vadd.f32 0.0, %v4655
        %v4657 = vpop.f32.mrb[0].mxu0
        %v4658 = vpop.f32.mrb[0].mxu0
        %v4659 = vadd.f32 0.0, %v4658
        %v4660 = vpop.f32.mrb[0].mxu0
        %4661 = vmatprep.mubr.bf16.mxu0 0
        %4662 = vmatmul.mubr.bf16.gmra.mrb[0].mxu0 %v4578
        %v4663 = vpop.f32.mrb[0].mxu0
        %v4664 = vadd.f32 0.0, %v4663
        %v4665 = vpop.f32.mrb[0].mxu0
        %v4666 = vpop.f32.mrb[0].mxu0
        %v4667 = vadd.f32 0.0, %v4666
        %v4668 = vpop.f32.mrb[0].mxu0
        %4669 = vmatprep.mubr.bf16.mxu0 0
        %4670 = vmatmul.mubr.bf16.gmra.mrb[0].mxu0 %v4581
        %v4671 = vpop.f32.mrb[0].mxu0
        %v4672 = vadd.f32 0.0, %v4671
        %v4673 = vpop.f32.mrb[0].mxu0
        %v4674 = vpop.f32.mrb[0].mxu0
        %v4675 = vadd.f32 0.0, %v4674
        %v4676 = vpop.f32.mrb[0].mxu0
        %4677 = vmatprep.mubr.bf16.mxu0 0
        %4678 = vmatmul.mubr.bf16.gmra.mrb[0].mxu0 %v4584
        %v4679 = vpop.f32.mrb[0].mxu0
        %v4680 = vadd.f32 0.0, %v4679
        %v4681 = vpop.f32.mrb[0].mxu0
        %v4682 = vpop.f32.mrb[0].mxu0
        %v4683 = vadd.f32 0.0, %v4682
        %v4684 = vpop.f32.mrb[0].mxu0
        %4685 = vdwg.mxu0
        %v4686 = vadd.f32 %v4412, %v4624
        %v4687 = vadd.f32 %v4413, %v4627
        %v4688 = vadd.f32 %v4414, %v4632
        %v4689 = vadd.f32 %v4415, %v4635
        %v4690 = vadd.f32 %v4416, %v4640
        %v4691 = vadd.f32 %v4417, %v4643
        %v4692 = vadd.f32 %v4418, %v4648
        %v4693 = vadd.f32 %v4419, %v4651
        %v4694 = vadd.f32 %v4420, %v4656
        %v4695 = vadd.f32 %v4421, %v4659
        %v4696 = vadd.f32 %v4422, %v4664
        %v4697 = vadd.f32 %v4423, %v4667
        %v4698 = vadd.f32 %v4424, %v4672
        %v4699 = vadd.f32 %v4425, %v4675
        %v4700 = vadd.f32 %v4426, %v4680
        %v4701 = vadd.f32 %v4427, %v4683
        %v4702 = vld [vmem:[%s4431 + $0x8] sm:$0xe]
        %v4703 = vld [vmem:[%s4431 + $0xc] sm:$0xf]
        %v4704 = vld [vmem:[%s4431 + $0x10] sm:$0x1]
        %v4705 = vld [vmem:[%s4431 + $0x24] sm:$0xe]
        %v4706 = vld [vmem:[%s4431 + $0x28] sm:$0xf]
        %v4707 = vld [vmem:[%s4431 + $0x2c] sm:$0x1]
        %v4708 = vld [vmem:[%s4431 + $0x40] sm:$0xe]
        %v4709 = vld [vmem:[%s4431 + $0x44] sm:$0xf]
        %v4710 = vld [vmem:[%s4431 + $0x48] sm:$0x1]
        %v4711 = vld [vmem:[%s4431 + $0x5c] sm:$0xe]
        %v4712 = vld [vmem:[%s4431 + $0x60] sm:$0xf]
        %v4713 = vld [vmem:[%s4431 + $0x64] sm:$0x1]
        %v4714 = vld [vmem:[%s4431 + $0x78] sm:$0xe]
        %v4715 = vld [vmem:[%s4431 + $0x7c] sm:$0xf]
        %v4716 = vld [vmem:[%s4431 + $0x80] sm:$0x1]
        %v4717 = vld [vmem:[%s4431 + $0x94] sm:$0xe]
        %v4718 = vld [vmem:[%s4431 + $0x98] sm:$0xf]
        %v4719 = vld [vmem:[%s4431 + $0x9c] sm:$0x1]
        %v4720 = vld [vmem:[%s4431 + $0xb0] sm:$0xe]
        %v4721 = vld [vmem:[%s4431 + $0xb4] sm:$0xf]
        %v4722 = vld [vmem:[%s4431 + $0xb8] sm:$0x1]
        %v4723 = vld [vmem:[%s4431 + $0xcc] sm:$0xe]
        %v4724 = vld [vmem:[%s4431 + $0xd0] sm:$0xf]
        %v4725 = vld [vmem:[%s4431 + $0xd4] sm:$0x1]
        %v4750 = vrot.slane %v4702, 5
        %v4751 = vrot.slane %v4750, 4
        %v4752 = vrot.slane %v4703, 5
        %v4753 = vsel %vm389, %v4751, %v4752
        %v4754 = vrot.slane %v4752, 4
        %v4755 = vrot.slane %v4704, 5
        %v4756 = vsel %vm389, %v4754, %v4755
        %v4757 = vrot.slane %v4705, 5
        %v4758 = vrot.slane %v4757, 4
        %v4759 = vrot.slane %v4706, 5
        %v4760 = vsel %vm389, %v4758, %v4759
        %v4761 = vrot.slane %v4759, 4
        %v4762 = vrot.slane %v4707, 5
        %v4763 = vsel %vm389, %v4761, %v4762
        %v4764 = vrot.slane %v4708, 5
        %v4765 = vrot.slane %v4764, 4
        %v4766 = vrot.slane %v4709, 5
        %v4767 = vsel %vm389, %v4765, %v4766
        %v4768 = vrot.slane %v4766, 4
        %v4769 = vrot.slane %v4710, 5
        %v4770 = vsel %vm389, %v4768, %v4769
        %v4771 = vrot.slane %v4711, 5
        %v4772 = vrot.slane %v4771, 4
        %v4773 = vrot.slane %v4712, 5
        %v4774 = vsel %vm389, %v4772, %v4773
        %v4775 = vrot.slane %v4773, 4
        %v4776 = vrot.slane %v4713, 5
        %v4777 = vsel %vm389, %v4775, %v4776
        %v4778 = vrot.slane %v4714, 5
        %v4779 = vrot.slane %v4778, 4
        %v4780 = vrot.slane %v4715, 5
        %v4781 = vsel %vm389, %v4779, %v4780
        %v4782 = vrot.slane %v4780, 4
        %v4783 = vrot.slane %v4716, 5
        %v4784 = vsel %vm389, %v4782, %v4783
        %v4785 = vrot.slane %v4717, 5
        %v4786 = vrot.slane %v4785, 4
        %v4787 = vrot.slane %v4718, 5
        %v4788 = vsel %vm389, %v4786, %v4787
        %v4789 = vrot.slane %v4787, 4
        %v4790 = vrot.slane %v4719, 5
        %v4791 = vsel %vm389, %v4789, %v4790
        %v4792 = vrot.slane %v4720, 5
        %v4793 = vrot.slane %v4792, 4
        %v4794 = vrot.slane %v4721, 5
        %v4795 = vsel %vm389, %v4793, %v4794
        %v4796 = vrot.slane %v4794, 4
        %v4797 = vrot.slane %v4722, 5
        %v4798 = vsel %vm389, %v4796, %v4797
        %v4799 = vrot.slane %v4723, 5
        %v4800 = vrot.slane %v4799, 4
        %v4801 = vrot.slane %v4724, 5
        %v4802 = vsel %vm389, %v4800, %v4801
        %v4803 = vrot.slane %v4801, 4
        %v4804 = vrot.slane %v4725, 5
        %v4805 = vsel %vm389, %v4803, %v4804
        %s4806 = scalar_lea.vmem %s3, 28
        %v4807 = vld [vmem:[%s4806] sm:$0xf]
        %v4808 = vunpack.c.l.b16 %v4753
        %v4809 = vunpack.c.l.b16 %v4756
        %v4810 = vunpack.c.l.b16 %v4760
        %v4811 = vunpack.c.l.b16 %v4763
        %v4812 = vunpack.c.l.b16 %v4767
        %v4813 = vunpack.c.l.b16 %v4770
        %v4814 = vunpack.c.l.b16 %v4774
        %v4815 = vunpack.c.l.b16 %v4777
        %v4816 = vunpack.c.l.b16 %v4781
        %v4817 = vunpack.c.l.b16 %v4784
        %v4818 = vunpack.c.l.b16 %v4788
        %v4819 = vunpack.c.l.b16 %v4791
        %v4820 = vunpack.c.l.b16 %v4795
        %v4821 = vunpack.c.l.b16 %v4798
        %v4822 = vunpack.c.l.b16 %v4802
        %v4823 = vunpack.c.l.b16 %v4805
        %v4824 = vpack.c.b16 %v4809, %v4808
        %v4825 = vpack.c.b16 %v4811, %v4810
        %v4826 = vpack.c.b16 %v4813, %v4812
        %v4827 = vpack.c.b16 %v4815, %v4814
        %v4828 = vpack.c.b16 %v4817, %v4816
        %v4829 = vpack.c.b16 %v4819, %v4818
        %v4830 = vpack.c.b16 %v4821, %v4820
        %v4831 = vpack.c.b16 %v4823, %v4822
        %v4833 = vsel %vm476, %v4824, 0
        %v4836 = vsel %vm476, %v4825, 0
        %v4839 = vsel %vm476, %v4826, 0
        %v4842 = vsel %vm476, %v4827, 0
        %v4845 = vsel %vm476, %v4828, 0
        %v4848 = vsel %vm476, %v4829, 0
        %v4851 = vsel %vm476, %v4830, 0
        %v4854 = vsel %vm476, %v4831, 0
        %v4857 = vsel %vm501, %v4807, 0
        %4859 = vmatprep.subr.bf16.mxu0 0
        %4860 = vmatpush1.bf16.msra.mxu0 %v4857
        %4861 = vmatprep.subr.bf16.mxu0 0
        %4862 = vmatpush1.bf16.msra.mxu0 0
        %4863 = vmatprep.subr.bf16.mxu0 0
        %4864 = vmatpush1.bf16.msra.mxu0 0
        %4865 = vmatprep.subr.bf16.mxu0 0
        %4866 = vmatpush1.bf16.msra.mxu0 0
        %4867 = vmatprep.subr.bf16.mxu0 0
        %4868 = vmatpush1.bf16.msra.mxu0 0
        %4869 = vmatprep.subr.bf16.mxu0 0
        %4870 = vmatpush1.bf16.msra.mxu0 0
        %4871 = vmatprep.subr.bf16.mxu0 0
        %4872 = vmatpush1.bf16.msra.mxu0 0
        %4873 = vmatprep.subr.bf16.mxu0 0
        %4874 = vmatpush1.bf16.msra.mxu0 0
        %4875 = vmatprep.subr.bf16.mxu0 0
        %4876 = vmatpush1.bf16.msra.mxu0 0
        %4877 = vmatprep.subr.bf16.mxu0 0
        %4878 = vmatpush1.bf16.msra.mxu0 0
        %4879 = vmatprep.subr.bf16.mxu0 0
        %4880 = vmatpush1.bf16.msra.mxu0 0
        %4881 = vmatprep.subr.bf16.mxu0 0
        %4882 = vmatpush1.bf16.msra.mxu0 0
        %4883 = vmatprep.subr.bf16.mxu0 0
        %4884 = vmatpush1.bf16.msra.mxu0 0
        %4885 = vmatprep.subr.bf16.mxu0 0
        %4886 = vmatpush1.bf16.msra.mxu0 0
        %4887 = vmatprep.subr.bf16.mxu0 0
        %4888 = vmatpush1.bf16.msra.mxu0 0
        %4889 = vmatprep.subr.bf16.mxu0 0
        %4890 = vmatpush1.bf16.msra.mxu0 0
        %4891 = vmatprep.mubr.bf16.mxu0 0
        %4892 = vmatmul.mubr.bf16.gmra.mrb[0].mxu0 %v4833
        %v4893 = vpop.f32.mrb[0].mxu0
        %v4894 = vadd.f32 0.0, %v4893
        %v4895 = vpop.f32.mrb[0].mxu0
        %v4896 = vpop.f32.mrb[0].mxu0
        %v4897 = vadd.f32 0.0, %v4896
        %v4898 = vpop.f32.mrb[0].mxu0
        %4899 = vmatprep.mubr.bf16.mxu0 0
        %4900 = vmatmul.mubr.bf16.gmra.mrb[0].mxu0 %v4836
        %v4901 = vpop.f32.mrb[0].mxu0
        %v4902 = vadd.f32 0.0, %v4901
        %v4903 = vpop.f32.mrb[0].mxu0
        %v4904 = vpop.f32.mrb[0].mxu0
        %v4905 = vadd.f32 0.0, %v4904
        %v4906 = vpop.f32.mrb[0].mxu0
        %4907 = vmatprep.mubr.bf16.mxu0 0
        %4908 = vmatmul.mubr.bf16.gmra.mrb[0].mxu0 %v4839
        %v4909 = vpop.f32.mrb[0].mxu0
        %v4910 = vadd.f32 0.0, %v4909
        %v4911 = vpop.f32.mrb[0].mxu0
        %v4912 = vpop.f32.mrb[0].mxu0
        %v4913 = vadd.f32 0.0, %v4912
        %v4914 = vpop.f32.mrb[0].mxu0
        %4915 = vmatprep.mubr.bf16.mxu0 0
        %4916 = vmatmul.mubr.bf16.gmra.mrb[0].mxu0 %v4842
        %v4917 = vpop.f32.mrb[0].mxu0
        %v4918 = vadd.f32 0.0, %v4917
        %v4919 = vpop.f32.mrb[0].mxu0
        %v4920 = vpop.f32.mrb[0].mxu0
        %v4921 = vadd.f32 0.0, %v4920
        %v4922 = vpop.f32.mrb[0].mxu0
        %4923 = vmatprep.mubr.bf16.mxu0 0
        %4924 = vmatmul.mubr.bf16.gmra.mrb[0].mxu0 %v4845
        %v4925 = vpop.f32.mrb[0].mxu0
        %v4926 = vadd.f32 0.0, %v4925
        %v4927 = vpop.f32.mrb[0].mxu0
        %v4928 = vpop.f32.mrb[0].mxu0
        %v4929 = vadd.f32 0.0, %v4928
        %v4930 = vpop.f32.mrb[0].mxu0
        %4931 = vmatprep.mubr.bf16.mxu0 0
        %4932 = vmatmul.mubr.bf16.gmra.mrb[0].mxu0 %v4848
        %v4933 = vpop.f32.mrb[0].mxu0
        %v4934 = vadd.f32 0.0, %v4933
        %v4935 = vpop.f32.mrb[0].mxu0
        %v4936 = vpop.f32.mrb[0].mxu0
        %v4937 = vadd.f32 0.0, %v4936
        %v4938 = vpop.f32.mrb[0].mxu0
        %4939 = vmatprep.mubr.bf16.mxu0 0
        %4940 = vmatmul.mubr.bf16.gmra.mrb[0].mxu0 %v4851
        %v4941 = vpop.f32.mrb[0].mxu0
        %v4942 = vadd.f32 0.0, %v4941
        %v4943 = vpop.f32.mrb[0].mxu0
        %v4944 = vpop.f32.mrb[0].mxu0
        %v4945 = vadd.f32 0.0, %v4944
        %v4946 = vpop.f32.mrb[0].mxu0
        %4947 = vmatprep.mubr.bf16.mxu0 0
        %4948 = vmatmul.mubr.bf16.gmra.mrb[0].mxu0 %v4854
        %v4949 = vpop.f32.mrb[0].mxu0
        %v4950 = vadd.f32 0.0, %v4949
        %v4951 = vpop.f32.mrb[0].mxu0
        %v4952 = vpop.f32.mrb[0].mxu0
        %v4953 = vadd.f32 0.0, %v4952
        %v4954 = vpop.f32.mrb[0].mxu0
        %4955 = vdwg.mxu0
        %v4956 = vadd.f32 %v4686, %v4894
        %v4957 = vadd.f32 %v4687, %v4897
        %v4958 = vadd.f32 %v4688, %v4902
        %v4959 = vadd.f32 %v4689, %v4905
        %v4960 = vadd.f32 %v4690, %v4910
        %v4961 = vadd.f32 %v4691, %v4913
        %v4962 = vadd.f32 %v4692, %v4918
        %v4963 = vadd.f32 %v4693, %v4921
        %v4964 = vadd.f32 %v4694, %v4926
        %v4965 = vadd.f32 %v4695, %v4929
        %v4966 = vadd.f32 %v4696, %v4934
        %v4967 = vadd.f32 %v4697, %v4937
        %v4968 = vadd.f32 %v4698, %v4942
        %v4969 = vadd.f32 %v4699, %v4945
        %v4970 = vadd.f32 %v4700, %v4950
        %v4971 = vadd.f32 %v4701, %v4953
        %v4972 = vld [vmem:[%s4431 + $0xc] sm:$0x8]
        %v4973 = vld [vmem:[%s4431 + $0x10] sm:$0xf]
        %v4974 = vld [vmem:[%s4431 + $0x14] sm:$0x7]
        %v4975 = vld [vmem:[%s4431 + $0x28] sm:$0x8]
        %v4976 = vld [vmem:[%s4431 + $0x2c] sm:$0xf]
        %v4977 = vld [vmem:[%s4431 + $0x30] sm:$0x7]
        %v4978 = vld [vmem:[%s4431 + $0x44] sm:$0x8]
        %v4979 = vld [vmem:[%s4431 + $0x48] sm:$0xf]
        %v4980 = vld [vmem:[%s4431 + $0x4c] sm:$0x7]
        %v4981 = vld [vmem:[%s4431 + $0x60] sm:$0x8]
        %v4982 = vld [vmem:[%s4431 + $0x64] sm:$0xf]
        %v4983 = vld [vmem:[%s4431 + $0x68] sm:$0x7]
        %v4984 = vld [vmem:[%s4431 + $0x7c] sm:$0x8]
        %v4985 = vld [vmem:[%s4431 + $0x80] sm:$0xf]
        %v4986 = vld [vmem:[%s4431 + $0x84] sm:$0x7]
        %v4987 = vld [vmem:[%s4431 + $0x98] sm:$0x8]
        %v4988 = vld [vmem:[%s4431 + $0x9c] sm:$0xf]
        %v4989 = vld [vmem:[%s4431 + $0xa0] sm:$0x7]
        %v4990 = vld [vmem:[%s4431 + $0xb4] sm:$0x8]
        %v4991 = vld [vmem:[%s4431 + $0xb8] sm:$0xf]
        %v4992 = vld [vmem:[%s4431 + $0xbc] sm:$0x7]
        %v4993 = vld [vmem:[%s4431 + $0xd0] sm:$0x8]
        %v4994 = vld [vmem:[%s4431 + $0xd4] sm:$0xf]
        %v4995 = vld [vmem:[%s4431 + $0xd8] sm:$0x7]
        %v5020 = vrot.slane %v4972, 7
        %v5021 = vrot.slane %v5020, 4
        %v5022 = vrot.slane %v4973, 7
        %v5023 = vsel %vm3040, %v5021, %v5022
        %v5024 = vrot.slane %v5022, 4
        %v5025 = vrot.slane %v4974, 7
        %v5026 = vsel %vm3040, %v5024, %v5025
        %v5027 = vrot.slane %v4975, 7
        %v5028 = vrot.slane %v5027, 4
        %v5029 = vrot.slane %v4976, 7
        %v5030 = vsel %vm3040, %v5028, %v5029
        %v5031 = vrot.slane %v5029, 4
        %v5032 = vrot.slane %v4977, 7
        %v5033 = vsel %vm3040, %v5031, %v5032
        %v5034 = vrot.slane %v4978, 7
        %v5035 = vrot.slane %v5034, 4
        %v5036 = vrot.slane %v4979, 7
        %v5037 = vsel %vm3040, %v5035, %v5036
        %v5038 = vrot.slane %v5036, 4
        %v5039 = vrot.slane %v4980, 7
        %v5040 = vsel %vm3040, %v5038, %v5039
        %v5041 = vrot.slane %v4981, 7
        %v5042 = vrot.slane %v5041, 4
        %v5043 = vrot.slane %v4982, 7
        %v5044 = vsel %vm3040, %v5042, %v5043
        %v5045 = vrot.slane %v5043, 4
        %v5046 = vrot.slane %v4983, 7
        %v5047 = vsel %vm3040, %v5045, %v5046
        %v5048 = vrot.slane %v4984, 7
        %v5049 = vrot.slane %v5048, 4
        %v5050 = vrot.slane %v4985, 7
        %v5051 = vsel %vm3040, %v5049, %v5050
        %v5052 = vrot.slane %v5050, 4
        %v5053 = vrot.slane %v4986, 7
        %v5054 = vsel %vm3040, %v5052, %v5053
        %v5055 = vrot.slane %v4987, 7
        %v5056 = vrot.slane %v5055, 4
        %v5057 = vrot.slane %v4988, 7
        %v5058 = vsel %vm3040, %v5056, %v5057
        %v5059 = vrot.slane %v5057, 4
        %v5060 = vrot.slane %v4989, 7
        %v5061 = vsel %vm3040, %v5059, %v5060
        %v5062 = vrot.slane %v4990, 7
        %v5063 = vrot.slane %v5062, 4
        %v5064 = vrot.slane %v4991, 7
        %v5065 = vsel %vm3040, %v5063, %v5064
        %v5066 = vrot.slane %v5064, 4
        %v5067 = vrot.slane %v4992, 7
        %v5068 = vsel %vm3040, %v5066, %v5067
        %v5069 = vrot.slane %v4993, 7
        %v5070 = vrot.slane %v5069, 4
        %v5071 = vrot.slane %v4994, 7
        %v5072 = vsel %vm3040, %v5070, %v5071
        %v5073 = vrot.slane %v5071, 4
        %v5074 = vrot.slane %v4995, 7
        %v5075 = vsel %vm3040, %v5073, %v5074
        %s5076 = scalar_lea.vmem %s3, 32
        %v5077 = vld [vmem:[%s5076] sm:$0xf]
        %v5078 = vunpack.c.l.b16 %v5023
        %v5079 = vunpack.c.l.b16 %v5026
        %v5080 = vunpack.c.l.b16 %v5030
        %v5081 = vunpack.c.l.b16 %v5033
        %v5082 = vunpack.c.l.b16 %v5037
        %v5083 = vunpack.c.l.b16 %v5040
        %v5084 = vunpack.c.l.b16 %v5044
        %v5085 = vunpack.c.l.b16 %v5047
        %v5086 = vunpack.c.l.b16 %v5051
        %v5087 = vunpack.c.l.b16 %v5054
        %v5088 = vunpack.c.l.b16 %v5058
        %v5089 = vunpack.c.l.b16 %v5061
        %v5090 = vunpack.c.l.b16 %v5065
        %v5091 = vunpack.c.l.b16 %v5068
        %v5092 = vunpack.c.l.b16 %v5072
        %v5093 = vunpack.c.l.b16 %v5075
        %v5094 = vpack.c.b16 %v5079, %v5078
        %v5095 = vpack.c.b16 %v5081, %v5080
        %v5096 = vpack.c.b16 %v5083, %v5082
        %v5097 = vpack.c.b16 %v5085, %v5084
        %v5098 = vpack.c.b16 %v5087, %v5086
        %v5099 = vpack.c.b16 %v5089, %v5088
        %v5100 = vpack.c.b16 %v5091, %v5090
        %v5101 = vpack.c.b16 %v5093, %v5092
        %v5103 = vsel %vm476, %v5094, 0
        %v5106 = vsel %vm476, %v5095, 0
        %v5109 = vsel %vm476, %v5096, 0
        %v5112 = vsel %vm476, %v5097, 0
        %v5115 = vsel %vm476, %v5098, 0
        %v5118 = vsel %vm476, %v5099, 0
        %v5121 = vsel %vm476, %v5100, 0
        %v5124 = vsel %vm476, %v5101, 0
        %v5127 = vsel %vm501, %v5077, 0
        %5129 = vmatprep.subr.bf16.mxu0 0
        %5130 = vmatpush1.bf16.msra.mxu0 %v5127
        %5131 = vmatprep.subr.bf16.mxu0 0
        %5132 = vmatpush1.bf16.msra.mxu0 0
        %5133 = vmatprep.subr.bf16.mxu0 0
        %5134 = vmatpush1.bf16.msra.mxu0 0
        %5135 = vmatprep.subr.bf16.mxu0 0
        %5136 = vmatpush1.bf16.msra.mxu0 0
        %5137 = vmatprep.subr.bf16.mxu0 0
        %5138 = vmatpush1.bf16.msra.mxu0 0
        %5139 = vmatprep.subr.bf16.mxu0 0
        %5140 = vmatpush1.bf16.msra.mxu0 0
        %5141 = vmatprep.subr.bf16.mxu0 0
        %5142 = vmatpush1.bf16.msra.mxu0 0
        %5143 = vmatprep.subr.bf16.mxu0 0
        %5144 = vmatpush1.bf16.msra.mxu0 0
        %5145 = vmatprep.subr.bf16.mxu0 0
        %5146 = vmatpush1.bf16.msra.mxu0 0
        %5147 = vmatprep.subr.bf16.mxu0 0
        %5148 = vmatpush1.bf16.msra.mxu0 0
        %5149 = vmatprep.subr.bf16.mxu0 0
        %5150 = vmatpush1.bf16.msra.mxu0 0
        %5151 = vmatprep.subr.bf16.mxu0 0
        %5152 = vmatpush1.bf16.msra.mxu0 0
        %5153 = vmatprep.subr.bf16.mxu0 0
        %5154 = vmatpush1.bf16.msra.mxu0 0
        %5155 = vmatprep.subr.bf16.mxu0 0
        %5156 = vmatpush1.bf16.msra.mxu0 0
        %5157 = vmatprep.subr.bf16.mxu0 0
        %5158 = vmatpush1.bf16.msra.mxu0 0
        %5159 = vmatprep.subr.bf16.mxu0 0
        %5160 = vmatpush1.bf16.msra.mxu0 0
        %5161 = vmatprep.mubr.bf16.mxu0 0
        %5162 = vmatmul.mubr.bf16.gmra.mrb[0].mxu0 %v5103
        %v5163 = vpop.f32.mrb[0].mxu0
        %v5164 = vadd.f32 0.0, %v5163
        %v5165 = vpop.f32.mrb[0].mxu0
        %v5166 = vpop.f32.mrb[0].mxu0
        %v5167 = vadd.f32 0.0, %v5166
        %v5168 = vpop.f32.mrb[0].mxu0
        %5169 = vmatprep.mubr.bf16.mxu0 0
        %5170 = vmatmul.mubr.bf16.gmra.mrb[0].mxu0 %v5106
        %v5171 = vpop.f32.mrb[0].mxu0
        %v5172 = vadd.f32 0.0, %v5171
        %v5173 = vpop.f32.mrb[0].mxu0
        %v5174 = vpop.f32.mrb[0].mxu0
        %v5175 = vadd.f32 0.0, %v5174
        %v5176 = vpop.f32.mrb[0].mxu0
        %5177 = vmatprep.mubr.bf16.mxu0 0
        %5178 = vmatmul.mubr.bf16.gmra.mrb[0].mxu0 %v5109
        %v5179 = vpop.f32.mrb[0].mxu0
        %v5180 = vadd.f32 0.0, %v5179
        %v5181 = vpop.f32.mrb[0].mxu0
        %v5182 = vpop.f32.mrb[0].mxu0
        %v5183 = vadd.f32 0.0, %v5182
        %v5184 = vpop.f32.mrb[0].mxu0
        %5185 = vmatprep.mubr.bf16.mxu0 0
        %5186 = vmatmul.mubr.bf16.gmra.mrb[0].mxu0 %v5112
        %v5187 = vpop.f32.mrb[0].mxu0
        %v5188 = vadd.f32 0.0, %v5187
        %v5189 = vpop.f32.mrb[0].mxu0
        %v5190 = vpop.f32.mrb[0].mxu0
        %v5191 = vadd.f32 0.0, %v5190
        %v5192 = vpop.f32.mrb[0].mxu0
        %5193 = vmatprep.mubr.bf16.mxu0 0
        %5194 = vmatmul.mubr.bf16.gmra.mrb[0].mxu0 %v5115
        %v5195 = vpop.f32.mrb[0].mxu0
        %v5196 = vadd.f32 0.0, %v5195
        %v5197 = vpop.f32.mrb[0].mxu0
        %v5198 = vpop.f32.mrb[0].mxu0
        %v5199 = vadd.f32 0.0, %v5198
        %v5200 = vpop.f32.mrb[0].mxu0
        %5201 = vmatprep.mubr.bf16.mxu0 0
        %5202 = vmatmul.mubr.bf16.gmra.mrb[0].mxu0 %v5118
        %v5203 = vpop.f32.mrb[0].mxu0
        %v5204 = vadd.f32 0.0, %v5203
        %v5205 = vpop.f32.mrb[0].mxu0
        %v5206 = vpop.f32.mrb[0].mxu0
        %v5207 = vadd.f32 0.0, %v5206
        %v5208 = vpop.f32.mrb[0].mxu0
        %5209 = vmatprep.mubr.bf16.mxu0 0
        %5210 = vmatmul.mubr.bf16.gmra.mrb[0].mxu0 %v5121
        %v5211 = vpop.f32.mrb[0].mxu0
        %v5212 = vadd.f32 0.0, %v5211
        %v5213 = vpop.f32.mrb[0].mxu0
        %v5214 = vpop.f32.mrb[0].mxu0
        %v5215 = vadd.f32 0.0, %v5214
        %v5216 = vpop.f32.mrb[0].mxu0
        %5217 = vmatprep.mubr.bf16.mxu0 0
        %5218 = vmatmul.mubr.bf16.gmra.mrb[0].mxu0 %v5124
        %v5219 = vpop.f32.mrb[0].mxu0
        %v5220 = vadd.f32 0.0, %v5219
        %v5221 = vpop.f32.mrb[0].mxu0
        %v5222 = vpop.f32.mrb[0].mxu0
        %v5223 = vadd.f32 0.0, %v5222
        %v5224 = vpop.f32.mrb[0].mxu0
        %5225 = vdwg.mxu0
        %v5226 = vadd.f32 %v4956, %v5164
        %v5227 = vadd.f32 %v4957, %v5167
        %v5228 = vadd.f32 %v4958, %v5172
        %v5229 = vadd.f32 %v4959, %v5175
        %v5230 = vadd.f32 %v4960, %v5180
        %v5231 = vadd.f32 %v4961, %v5183
        %v5232 = vadd.f32 %v4962, %v5188
        %v5233 = vadd.f32 %v4963, %v5191
        %v5234 = vadd.f32 %v4964, %v5196
        %v5235 = vadd.f32 %v4965, %v5199
        %v5236 = vadd.f32 %v4966, %v5204
        %v5237 = vadd.f32 %v4967, %v5207
        %v5238 = vadd.f32 %v4968, %v5212
        %v5239 = vadd.f32 %v4969, %v5215
        %v5240 = vadd.f32 %v4970, %v5220
        %v5241 = vadd.f32 %v4971, %v5223
        %v5242 = vld [vmem:[%s6 + $0x2] sm:$0x1]
        %v5243 = vlaneseq
        %v5244 = vshrl.u32 %v5243, 7
        %v5245 = vsub.s32 0, %v5244
        %v5246 = vrot.slane %v5242, %v5245
        %v5247 = vadd.f32 %v5226, %v5246
        %v5248 = vadd.f32 %v5227, %v5246
        %v5249 = vadd.f32 %v5228, %v5246
        %v5250 = vadd.f32 %v5229, %v5246
        %v5251 = vadd.f32 %v5230, %v5246
        %v5252 = vadd.f32 %v5231, %v5246
        %v5253 = vadd.f32 %v5232, %v5246
        %v5254 = vadd.f32 %v5233, %v5246
        %v5255 = vadd.f32 %v5234, %v5246
        %v5256 = vadd.f32 %v5235, %v5246
        %v5257 = vadd.f32 %v5236, %v5246
        %v5258 = vadd.f32 %v5237, %v5246
        %v5259 = vadd.f32 %v5238, %v5246
        %v5260 = vadd.f32 %v5239, %v5246
        %v5261 = vadd.f32 %v5240, %v5246
        %v5262 = vadd.f32 %v5241, %v5246
        %v5263 = vmax.f32 %v5247, 0.0
        %v5264 = vmax.f32 %v5248, 0.0
        %v5265 = vmax.f32 %v5249, 0.0
        %v5266 = vmax.f32 %v5250, 0.0
        %v5267 = vmax.f32 %v5251, 0.0
        %v5268 = vmax.f32 %v5252, 0.0
        %v5269 = vmax.f32 %v5253, 0.0
        %v5270 = vmax.f32 %v5254, 0.0
        %v5271 = vmax.f32 %v5255, 0.0
        %v5272 = vmax.f32 %v5256, 0.0
        %v5273 = vmax.f32 %v5257, 0.0
        %v5274 = vmax.f32 %v5258, 0.0
        %v5275 = vmax.f32 %v5259, 0.0
        %v5276 = vmax.f32 %v5260, 0.0
        %v5277 = vmax.f32 %v5261, 0.0
        %v5278 = vmax.f32 %v5262, 0.0
        %v5279 = vpack.c.bf16 %v5264, %v5263
        %v5280 = vpack.c.bf16 %v5266, %v5265
        %v5281 = vpack.c.bf16 %v5268, %v5267
        %v5282 = vpack.c.bf16 %v5270, %v5269
        %v5283 = vpack.c.bf16 %v5272, %v5271
        %v5284 = vpack.c.bf16 %v5274, %v5273
        %v5285 = vpack.c.bf16 %v5276, %v5275
        %v5286 = vpack.c.bf16 %v5278, %v5277
        %s5287 = scalar_lea.vmem %s5, 128
        %v5288 = vld [vmem:[%s5287] sm:$0xf]
        %v5289 = vld [vmem:[%s5287 + $0x4] sm:$0xf]
        %v5290 = vld [vmem:[%s5287 + $0x8] sm:$0xf]
        %v5291 = vld [vmem:[%s5287 + $0xc] sm:$0xf]
        %v5292 = vld [vmem:[%s5287 + $0x10] sm:$0xf]
        %v5293 = vld [vmem:[%s5287 + $0x14] sm:$0xf]
        %v5294 = vld [vmem:[%s5287 + $0x18] sm:$0xf]
        %v5295 = vld [vmem:[%s5287 + $0x1c] sm:$0xf]
        %v5296 = vld [vmem:[%s5287 + $0x20] sm:$0xf]
        %v5297 = vld [vmem:[%s5287 + $0x24] sm:$0xf]
        %v5298 = vld [vmem:[%s5287 + $0x28] sm:$0xf]
        %v5299 = vld [vmem:[%s5287 + $0x2c] sm:$0xf]
        %v5300 = vld [vmem:[%s5287 + $0x30] sm:$0xf]
        %v5301 = vld [vmem:[%s5287 + $0x34] sm:$0xf]
        %v5302 = vld [vmem:[%s5287 + $0x38] sm:$0xf]
        %v5303 = vld [vmem:[%s5287 + $0x3c] sm:$0xf]
        %v5320 = vunpack.c.l.b16 %v5288
        %v5321 = vunpack.c.l.b16 %v5289
        %v5322 = vunpack.c.l.b16 %v5290
        %v5323 = vunpack.c.l.b16 %v5291
        %v5324 = vunpack.c.l.b16 %v5292
        %v5325 = vunpack.c.l.b16 %v5293
        %v5326 = vunpack.c.l.b16 %v5294
        %v5327 = vunpack.c.l.b16 %v5295
        %v5328 = vunpack.c.l.b16 %v5296
        %v5329 = vunpack.c.l.b16 %v5297
        %v5330 = vunpack.c.l.b16 %v5298
        %v5331 = vunpack.c.l.b16 %v5299
        %v5332 = vunpack.c.l.b16 %v5300
        %v5333 = vunpack.c.l.b16 %v5301
        %v5334 = vunpack.c.l.b16 %v5302
        %v5335 = vunpack.c.l.b16 %v5303
        %v5336 = vpack.c.b16 %v5321, %v5320
        %v5337 = vpack.c.b16 %v5323, %v5322
        %v5338 = vpack.c.b16 %v5325, %v5324
        %v5339 = vpack.c.b16 %v5327, %v5326
        %v5340 = vpack.c.b16 %v5329, %v5328
        %v5341 = vpack.c.b16 %v5331, %v5330
        %v5342 = vpack.c.b16 %v5333, %v5332
        %v5343 = vpack.c.b16 %v5335, %v5334
        %5352 = vmatprep.subr.bf16.mxu0 0
        %5353 = vmatpush1.bf16.msra.mxu0 %v5336
        %5354 = vmatprep.subr.bf16.mxu0 0
        %5355 = vmatpush1.bf16.msra.mxu0 %v5337
        %5356 = vmatprep.subr.bf16.mxu0 0
        %5357 = vmatpush1.bf16.msra.mxu0 %v5338
        %5358 = vmatprep.subr.bf16.mxu0 0
        %5359 = vmatpush1.bf16.msra.mxu0 %v5339
        %5360 = vmatprep.subr.bf16.mxu0 0
        %5361 = vmatpush1.bf16.msra.mxu0 %v5340
        %5362 = vmatprep.subr.bf16.mxu0 0
        %5363 = vmatpush1.bf16.msra.mxu0 %v5341
        %5364 = vmatprep.subr.bf16.mxu0 0
        %5365 = vmatpush1.bf16.msra.mxu0 %v5342
        %5366 = vmatprep.subr.bf16.mxu0 0
        %5367 = vmatpush1.bf16.msra.mxu0 %v5343
        %5368 = vmatprep.subr.bf16.mxu0 0
        %5369 = vmatpush1.bf16.msra.mxu0 0
        %5370 = vmatprep.subr.bf16.mxu0 0
        %5371 = vmatpush1.bf16.msra.mxu0 0
        %5372 = vmatprep.subr.bf16.mxu0 0
        %5373 = vmatpush1.bf16.msra.mxu0 0
        %5374 = vmatprep.subr.bf16.mxu0 0
        %5375 = vmatpush1.bf16.msra.mxu0 0
        %5376 = vmatprep.subr.bf16.mxu0 0
        %5377 = vmatpush1.bf16.msra.mxu0 0
        %5378 = vmatprep.subr.bf16.mxu0 0
        %5379 = vmatpush1.bf16.msra.mxu0 0
        %5380 = vmatprep.subr.bf16.mxu0 0
        %5381 = vmatpush1.bf16.msra.mxu0 0
        %5382 = vmatprep.subr.bf16.mxu0 0
        %5383 = vmatpush1.bf16.msra.mxu0 0
        %5384 = vmatprep.mubr.bf16.mxu0 0
        %5385 = vmatmul.mubr.bf16.gmra.mrb[0].mxu0 %v5279
        %v5386 = vpop.f32.mrb[0].mxu0
        %v5387 = vadd.f32 0.0, %v5386
        %v5388 = vpop.f32.mrb[0].mxu0
        %v5389 = vpop.f32.mrb[0].mxu0
        %v5390 = vadd.f32 0.0, %v5389
        %v5391 = vpop.f32.mrb[0].mxu0
        %5392 = vmatprep.mubr.bf16.mxu0 0
        %5393 = vmatmul.mubr.bf16.gmra.mrb[0].mxu0 %v5280
        %v5394 = vpop.f32.mrb[0].mxu0
        %v5395 = vadd.f32 0.0, %v5394
        %v5396 = vpop.f32.mrb[0].mxu0
        %v5397 = vpop.f32.mrb[0].mxu0
        %v5398 = vadd.f32 0.0, %v5397
        %v5399 = vpop.f32.mrb[0].mxu0
        %5400 = vmatprep.mubr.bf16.mxu0 0
        %5401 = vmatmul.mubr.bf16.gmra.mrb[0].mxu0 %v5281
        %v5402 = vpop.f32.mrb[0].mxu0
        %v5403 = vadd.f32 0.0, %v5402
        %v5404 = vpop.f32.mrb[0].mxu0
        %v5405 = vpop.f32.mrb[0].mxu0
        %v5406 = vadd.f32 0.0, %v5405
        %v5407 = vpop.f32.mrb[0].mxu0
        %5408 = vmatprep.mubr.bf16.mxu0 0
        %5409 = vmatmul.mubr.bf16.gmra.mrb[0].mxu0 %v5282
        %v5410 = vpop.f32.mrb[0].mxu0
        %v5411 = vadd.f32 0.0, %v5410
        %v5412 = vpop.f32.mrb[0].mxu0
        %v5413 = vpop.f32.mrb[0].mxu0
        %v5414 = vadd.f32 0.0, %v5413
        %v5415 = vpop.f32.mrb[0].mxu0
        %5416 = vmatprep.mubr.bf16.mxu0 0
        %5417 = vmatmul.mubr.bf16.gmra.mrb[0].mxu0 %v5283
        %v5418 = vpop.f32.mrb[0].mxu0
        %v5419 = vadd.f32 0.0, %v5418
        %v5420 = vpop.f32.mrb[0].mxu0
        %v5421 = vpop.f32.mrb[0].mxu0
        %v5422 = vadd.f32 0.0, %v5421
        %v5423 = vpop.f32.mrb[0].mxu0
        %5424 = vmatprep.mubr.bf16.mxu0 0
        %5425 = vmatmul.mubr.bf16.gmra.mrb[0].mxu0 %v5284
        %v5426 = vpop.f32.mrb[0].mxu0
        %v5427 = vadd.f32 0.0, %v5426
        %v5428 = vpop.f32.mrb[0].mxu0
        %v5429 = vpop.f32.mrb[0].mxu0
        %v5430 = vadd.f32 0.0, %v5429
        %v5431 = vpop.f32.mrb[0].mxu0
        %5432 = vmatprep.mubr.bf16.mxu0 0
        %5433 = vmatmul.mubr.bf16.gmra.mrb[0].mxu0 %v5285
        %v5434 = vpop.f32.mrb[0].mxu0
        %v5435 = vadd.f32 0.0, %v5434
        %v5436 = vpop.f32.mrb[0].mxu0
        %v5437 = vpop.f32.mrb[0].mxu0
        %v5438 = vadd.f32 0.0, %v5437
        %v5439 = vpop.f32.mrb[0].mxu0
        %5440 = vmatprep.mubr.bf16.mxu0 0
        %5441 = vmatmul.mubr.bf16.gmra.mrb[0].mxu0 %v5286
        %v5442 = vpop.f32.mrb[0].mxu0
        %v5443 = vadd.f32 0.0, %v5442
        %v5444 = vpop.f32.mrb[0].mxu0
        %v5445 = vpop.f32.mrb[0].mxu0
        %v5446 = vadd.f32 0.0, %v5445
        %v5447 = vpop.f32.mrb[0].mxu0
        %5448 = vdwg.mxu0
        %v5449 = vadd.f32 %v2924, %v5387
        %v5450 = vadd.f32 %v2927, %v5390
        %v5451 = vadd.f32 %v2932, %v5395
        %v5452 = vadd.f32 %v2935, %v5398
        %v5453 = vadd.f32 %v2940, %v5403
        %v5454 = vadd.f32 %v2943, %v5406
        %v5455 = vadd.f32 %v2948, %v5411
        %v5456 = vadd.f32 %v2951, %v5414
        %v5457 = vadd.f32 %v2956, %v5419
        %v5458 = vadd.f32 %v2959, %v5422
        %v5459 = vadd.f32 %v2964, %v5427
        %v5460 = vadd.f32 %v2967, %v5430
        %v5461 = vadd.f32 %v2972, %v5435
        %v5462 = vadd.f32 %v2975, %v5438
        %v5463 = vadd.f32 %v2980, %v5443
        %v5464 = vadd.f32 %v2983, %v5446
        %s5465 = smul.u32 %s334, 7
        %s5466 = smul.addr %s5465, 4
        %s5467 = scalar_lea.vmem %s328, %s5466
        %v5468 = vld [vmem:[%s5467] sm:$0xf]
        %v5469 = vld [vmem:[%s5467 + $0x4] sm:$0xf]
        %v5470 = vld [vmem:[%s5467 + $0x1c] sm:$0xf]
        %v5471 = vld [vmem:[%s5467 + $0x20] sm:$0xf]
        %v5472 = vld [vmem:[%s5467 + $0x38] sm:$0xf]
        %v5473 = vld [vmem:[%s5467 + $0x3c] sm:$0xf]
        %v5474 = vld [vmem:[%s5467 + $0x54] sm:$0xf]
        %v5475 = vld [vmem:[%s5467 + $0x58] sm:$0xf]
        %v5476 = vld [vmem:[%s5467 + $0x70] sm:$0xf]
        %v5477 = vld [vmem:[%s5467 + $0x74] sm:$0xf]
        %v5478 = vld [vmem:[%s5467 + $0x8c] sm:$0xf]
        %v5479 = vld [vmem:[%s5467 + $0x90] sm:$0xf]
        %v5480 = vld [vmem:[%s5467 + $0xa8] sm:$0xf]
        %v5481 = vld [vmem:[%s5467 + $0xac] sm:$0xf]
        %v5482 = vld [vmem:[%s5467 + $0xc4] sm:$0xf]
        %v5483 = vld [vmem:[%s5467 + $0xc8] sm:$0xf]
        %v5484 = vld [vmem:[%s4] sm:$0xf]
        %v5485 = vld [vmem:[%s5467 + $0x8] sm:$0xe]
        %v5486 = vld [vmem:[%s5467 + $0xc] sm:$0xf]
        %v5487 = vld [vmem:[%s5467 + $0x10] sm:$0x1]
        %v5488 = vld [vmem:[%s5467 + $0x24] sm:$0xe]
        %v5489 = vld [vmem:[%s5467 + $0x28] sm:$0xf]
        %v5490 = vld [vmem:[%s5467 + $0x2c] sm:$0x1]
        %v5491 = vld [vmem:[%s5467 + $0x40] sm:$0xe]
        %v5492 = vld [vmem:[%s5467 + $0x44] sm:$0xf]
        %v5493 = vld [vmem:[%s5467 + $0x48] sm:$0x1]
        %v5494 = vld [vmem:[%s5467 + $0x5c] sm:$0xe]
        %v5495 = vld [vmem:[%s5467 + $0x60] sm:$0xf]
        %v5496 = vld [vmem:[%s5467 + $0x64] sm:$0x1]
        %v5497 = vld [vmem:[%s5467 + $0x78] sm:$0xe]
        %v5498 = vld [vmem:[%s5467 + $0x7c] sm:$0xf]
        %v5499 = vld [vmem:[%s5467 + $0x80] sm:$0x1]
        %v5500 = vld [vmem:[%s5467 + $0x94] sm:$0xe]
        %v5501 = vld [vmem:[%s5467 + $0x98] sm:$0xf]
        %v5502 = vld [vmem:[%s5467 + $0x9c] sm:$0x1]
        %v5503 = vld [vmem:[%s5467 + $0xb0] sm:$0xe]
        %v5504 = vld [vmem:[%s5467 + $0xb4] sm:$0xf]
        %v5505 = vld [vmem:[%s5467 + $0xb8] sm:$0x1]
        %v5506 = vld [vmem:[%s5467 + $0xcc] sm:$0xe]
        %v5507 = vld [vmem:[%s5467 + $0xd0] sm:$0xf]
        %v5508 = vld [vmem:[%s5467 + $0xd4] sm:$0x1]
        %v5533 = vrot.slane %v5485, 5
        %v5534 = vrot.slane %v5533, 4
        %v5535 = vrot.slane %v5486, 5
        %v5536 = vsel %vm389, %v5534, %v5535
        %v5537 = vrot.slane %v5535, 4
        %v5538 = vrot.slane %v5487, 5
        %v5539 = vsel %vm389, %v5537, %v5538
        %v5540 = vrot.slane %v5488, 5
        %v5541 = vrot.slane %v5540, 4
        %v5542 = vrot.slane %v5489, 5
        %v5543 = vsel %vm389, %v5541, %v5542
        %v5544 = vrot.slane %v5542, 4
        %v5545 = vrot.slane %v5490, 5
        %v5546 = vsel %vm389, %v5544, %v5545
        %v5547 = vrot.slane %v5491, 5
        %v5548 = vrot.slane %v5547, 4
        %v5549 = vrot.slane %v5492, 5
        %v5550 = vsel %vm389, %v5548, %v5549
        %v5551 = vrot.slane %v5549, 4
        %v5552 = vrot.slane %v5493, 5
        %v5553 = vsel %vm389, %v5551, %v5552
        %v5554 = vrot.slane %v5494, 5
        %v5555 = vrot.slane %v5554, 4
        %v5556 = vrot.slane %v5495, 5
        %v5557 = vsel %vm389, %v5555, %v5556
        %v5558 = vrot.slane %v5556, 4
        %v5559 = vrot.slane %v5496, 5
        %v5560 = vsel %vm389, %v5558, %v5559
        %v5561 = vrot.slane %v5497, 5
        %v5562 = vrot.slane %v5561, 4
        %v5563 = vrot.slane %v5498, 5
        %v5564 = vsel %vm389, %v5562, %v5563
        %v5565 = vrot.slane %v5563, 4
        %v5566 = vrot.slane %v5499, 5
        %v5567 = vsel %vm389, %v5565, %v5566
        %v5568 = vrot.slane %v5500, 5
        %v5569 = vrot.slane %v5568, 4
        %v5570 = vrot.slane %v5501, 5
        %v5571 = vsel %vm389, %v5569, %v5570
        %v5572 = vrot.slane %v5570, 4
        %v5573 = vrot.slane %v5502, 5
        %v5574 = vsel %vm389, %v5572, %v5573
        %v5575 = vrot.slane %v5503, 5
        %v5576 = vrot.slane %v5575, 4
        %v5577 = vrot.slane %v5504, 5
        %v5578 = vsel %vm389, %v5576, %v5577
        %v5579 = vrot.slane %v5577, 4
        %v5580 = vrot.slane %v5505, 5
        %v5581 = vsel %vm389, %v5579, %v5580
        %v5582 = vrot.slane %v5506, 5
        %v5583 = vrot.slane %v5582, 4
        %v5584 = vrot.slane %v5507, 5
        %v5585 = vsel %vm389, %v5583, %v5584
        %v5586 = vrot.slane %v5584, 4
        %v5587 = vrot.slane %v5508, 5
        %v5588 = vsel %vm389, %v5586, %v5587
        %s5589 = scalar_lea.vmem %s4, 4
        %v5590 = vld [vmem:[%s5589] sm:$0xf]
        %v5591 = vunpack.c.l.b16 %v5536
        %v5592 = vunpack.c.l.b16 %v5539
        %v5593 = vunpack.c.l.b16 %v5543
        %v5594 = vunpack.c.l.b16 %v5546
        %v5595 = vunpack.c.l.b16 %v5550
        %v5596 = vunpack.c.l.b16 %v5553
        %v5597 = vunpack.c.l.b16 %v5557
        %v5598 = vunpack.c.l.b16 %v5560
        %v5599 = vunpack.c.l.b16 %v5564
        %v5600 = vunpack.c.l.b16 %v5567
        %v5601 = vunpack.c.l.b16 %v5571
        %v5602 = vunpack.c.l.b16 %v5574
        %v5603 = vunpack.c.l.b16 %v5578
        %v5604 = vunpack.c.l.b16 %v5581
        %v5605 = vunpack.c.l.b16 %v5585
        %v5606 = vunpack.c.l.b16 %v5588
        %v5607 = vpack.c.b16 %v5592, %v5591
        %v5608 = vpack.c.b16 %v5594, %v5593
        %v5609 = vpack.c.b16 %v5596, %v5595
        %v5610 = vpack.c.b16 %v5598, %v5597
        %v5611 = vpack.c.b16 %v5600, %v5599
        %v5612 = vpack.c.b16 %v5602, %v5601
        %v5613 = vpack.c.b16 %v5604, %v5603
        %v5614 = vpack.c.b16 %v5606, %v5605
        %v5616 = vsel %vm476, %v5607, 0
        %v5619 = vsel %vm476, %v5608, 0
        %v5622 = vsel %vm476, %v5609, 0
        %v5625 = vsel %vm476, %v5610, 0
        %v5628 = vsel %vm476, %v5611, 0
        %v5631 = vsel %vm476, %v5612, 0
        %v5634 = vsel %vm476, %v5613, 0
        %v5637 = vsel %vm476, %v5614, 0
        %v5640 = vsel %vm501, %v5590, 0
        %5642 = vmatprep.subr.bf16.mxu0 0
        %5643 = vmatpush1.bf16.msra.mxu0 %v5640
        %5644 = vmatprep.subr.bf16.mxu0 0
        %5645 = vmatpush1.bf16.msra.mxu0 0
        %5646 = vmatprep.subr.bf16.mxu0 0
        %5647 = vmatpush1.bf16.msra.mxu0 0
        %5648 = vmatprep.subr.bf16.mxu0 0
        %5649 = vmatpush1.bf16.msra.mxu0 0
        %5650 = vmatprep.subr.bf16.mxu0 0
        %5651 = vmatpush1.bf16.msra.mxu0 0
        %5652 = vmatprep.subr.bf16.mxu0 0
        %5653 = vmatpush1.bf16.msra.mxu0 0
        %5654 = vmatprep.subr.bf16.mxu0 0
        %5655 = vmatpush1.bf16.msra.mxu0 0
        %5656 = vmatprep.subr.bf16.mxu0 0
        %5657 = vmatpush1.bf16.msra.mxu0 0
        %5658 = vmatprep.subr.bf16.mxu0 0
        %5659 = vmatpush1.bf16.msra.mxu0 0
        %5660 = vmatprep.subr.bf16.mxu0 0
        %5661 = vmatpush1.bf16.msra.mxu0 0
        %5662 = vmatprep.subr.bf16.mxu0 0
        %5663 = vmatpush1.bf16.msra.mxu0 0
        %5664 = vmatprep.subr.bf16.mxu0 0
        %5665 = vmatpush1.bf16.msra.mxu0 0
        %5666 = vmatprep.subr.bf16.mxu0 0
        %5667 = vmatpush1.bf16.msra.mxu0 0
        %5668 = vmatprep.subr.bf16.mxu0 0
        %5669 = vmatpush1.bf16.msra.mxu0 0
        %5670 = vmatprep.subr.bf16.mxu0 0
        %5671 = vmatpush1.bf16.msra.mxu0 0
        %5672 = vmatprep.subr.bf16.mxu0 0
        %5673 = vmatpush1.bf16.msra.mxu0 0
        %5674 = vmatprep.mubr.bf16.mxu0 0
        %5675 = vmatmul.mubr.bf16.gmra.mrb[0].mxu0 %v5616
        %v5676 = vpop.f32.mrb[0].mxu0
        %v5677 = vadd.f32 0.0, %v5676
        %v5678 = vpop.f32.mrb[0].mxu0
        %v5679 = vpop.f32.mrb[0].mxu0
        %v5680 = vadd.f32 0.0, %v5679
        %v5681 = vpop.f32.mrb[0].mxu0
        %5682 = vmatprep.mubr.bf16.mxu0 0
        %5683 = vmatmul.mubr.bf16.gmra.mrb[0].mxu0 %v5619
        %v5684 = vpop.f32.mrb[0].mxu0
        %v5685 = vadd.f32 0.0, %v5684
        %v5686 = vpop.f32.mrb[0].mxu0
        %v5687 = vpop.f32.mrb[0].mxu0
        %v5688 = vadd.f32 0.0, %v5687
        %v5689 = vpop.f32.mrb[0].mxu0
        %5690 = vmatprep.mubr.bf16.mxu0 0
        %5691 = vmatmul.mubr.bf16.gmra.mrb[0].mxu0 %v5622
        %v5692 = vpop.f32.mrb[0].mxu0
        %v5693 = vadd.f32 0.0, %v5692
        %v5694 = vpop.f32.mrb[0].mxu0
        %v5695 = vpop.f32.mrb[0].mxu0
        %v5696 = vadd.f32 0.0, %v5695
        %v5697 = vpop.f32.mrb[0].mxu0
        %5698 = vmatprep.mubr.bf16.mxu0 0
        %5699 = vmatmul.mubr.bf16.gmra.mrb[0].mxu0 %v5625
        %v5700 = vpop.f32.mrb[0].mxu0
        %v5701 = vadd.f32 0.0, %v5700
        %v5702 = vpop.f32.mrb[0].mxu0
        %v5703 = vpop.f32.mrb[0].mxu0
        %v5704 = vadd.f32 0.0, %v5703
        %v5705 = vpop.f32.mrb[0].mxu0
        %5706 = vmatprep.mubr.bf16.mxu0 0
        %5707 = vmatmul.mubr.bf16.gmra.mrb[0].mxu0 %v5628
        %v5708 = vpop.f32.mrb[0].mxu0
        %v5709 = vadd.f32 0.0, %v5708
        %v5710 = vpop.f32.mrb[0].mxu0
        %v5711 = vpop.f32.mrb[0].mxu0
        %v5712 = vadd.f32 0.0, %v5711
        %v5713 = vpop.f32.mrb[0].mxu0
        %5714 = vmatprep.mubr.bf16.mxu0 0
        %5715 = vmatmul.mubr.bf16.gmra.mrb[0].mxu0 %v5631
        %v5716 = vpop.f32.mrb[0].mxu0
        %v5717 = vadd.f32 0.0, %v5716
        %v5718 = vpop.f32.mrb[0].mxu0
        %v5719 = vpop.f32.mrb[0].mxu0
        %v5720 = vadd.f32 0.0, %v5719
        %v5721 = vpop.f32.mrb[0].mxu0
        %5722 = vmatprep.mubr.bf16.mxu0 0
        %5723 = vmatmul.mubr.bf16.gmra.mrb[0].mxu0 %v5634
        %v5724 = vpop.f32.mrb[0].mxu0
        %v5725 = vadd.f32 0.0, %v5724
        %v5726 = vpop.f32.mrb[0].mxu0
        %v5727 = vpop.f32.mrb[0].mxu0
        %v5728 = vadd.f32 0.0, %v5727
        %v5729 = vpop.f32.mrb[0].mxu0
        %5730 = vmatprep.mubr.bf16.mxu0 0
        %5731 = vmatmul.mubr.bf16.gmra.mrb[0].mxu0 %v5637
        %v5732 = vpop.f32.mrb[0].mxu0
        %v5733 = vadd.f32 0.0, %v5732
        %v5734 = vpop.f32.mrb[0].mxu0
        %v5735 = vpop.f32.mrb[0].mxu0
        %v5736 = vadd.f32 0.0, %v5735
        %v5737 = vpop.f32.mrb[0].mxu0
        %5738 = vdwg.mxu0
        %v5755 = vunpack.c.l.b16 %v5468
        %v5756 = vunpack.c.l.b16 %v5469
        %v5757 = vunpack.c.l.b16 %v5470
        %v5758 = vunpack.c.l.b16 %v5471
        %v5759 = vunpack.c.l.b16 %v5472
        %v5760 = vunpack.c.l.b16 %v5473
        %v5761 = vunpack.c.l.b16 %v5474
        %v5762 = vunpack.c.l.b16 %v5475
        %v5763 = vunpack.c.l.b16 %v5476
        %v5764 = vunpack.c.l.b16 %v5477
        %v5765 = vunpack.c.l.b16 %v5478
        %v5766 = vunpack.c.l.b16 %v5479
        %v5767 = vunpack.c.l.b16 %v5480
        %v5768 = vunpack.c.l.b16 %v5481
        %v5769 = vunpack.c.l.b16 %v5482
        %v5770 = vunpack.c.l.b16 %v5483
        %v5771 = vpack.c.b16 %v5756, %v5755
        %v5772 = vpack.c.b16 %v5758, %v5757
        %v5773 = vpack.c.b16 %v5760, %v5759
        %v5774 = vpack.c.b16 %v5762, %v5761
        %v5775 = vpack.c.b16 %v5764, %v5763
        %v5776 = vpack.c.b16 %v5766, %v5765
        %v5777 = vpack.c.b16 %v5768, %v5767
        %v5778 = vpack.c.b16 %v5770, %v5769
        %v5780 = vsel %vm476, %v5771, 0
        %v5783 = vsel %vm476, %v5772, 0
        %v5786 = vsel %vm476, %v5773, 0
        %v5789 = vsel %vm476, %v5774, 0
        %v5792 = vsel %vm476, %v5775, 0
        %v5795 = vsel %vm476, %v5776, 0
        %v5798 = vsel %vm476, %v5777, 0
        %v5801 = vsel %vm476, %v5778, 0
        %v5804 = vsel %vm501, %v5484, 0
        %5806 = vmatprep.subr.bf16.mxu0 0
        %5807 = vmatpush1.bf16.msra.mxu0 %v5804
        %5808 = vmatprep.subr.bf16.mxu0 0
        %5809 = vmatpush1.bf16.msra.mxu0 0
        %5810 = vmatprep.subr.bf16.mxu0 0
        %5811 = vmatpush1.bf16.msra.mxu0 0
        %5812 = vmatprep.subr.bf16.mxu0 0
        %5813 = vmatpush1.bf16.msra.mxu0 0
        %5814 = vmatprep.subr.bf16.mxu0 0
        %5815 = vmatpush1.bf16.msra.mxu0 0
        %5816 = vmatprep.subr.bf16.mxu0 0
        %5817 = vmatpush1.bf16.msra.mxu0 0
        %5818 = vmatprep.subr.bf16.mxu0 0
        %5819 = vmatpush1.bf16.msra.mxu0 0
        %5820 = vmatprep.subr.bf16.mxu0 0
        %5821 = vmatpush1.bf16.msra.mxu0 0
        %5822 = vmatprep.subr.bf16.mxu0 0
        %5823 = vmatpush1.bf16.msra.mxu0 0
        %5824 = vmatprep.subr.bf16.mxu0 0
        %5825 = vmatpush1.bf16.msra.mxu0 0
        %5826 = vmatprep.subr.bf16.mxu0 0
        %5827 = vmatpush1.bf16.msra.mxu0 0
        %5828 = vmatprep.subr.bf16.mxu0 0
        %5829 = vmatpush1.bf16.msra.mxu0 0
        %5830 = vmatprep.subr.bf16.mxu0 0
        %5831 = vmatpush1.bf16.msra.mxu0 0
        %5832 = vmatprep.subr.bf16.mxu0 0
        %5833 = vmatpush1.bf16.msra.mxu0 0
        %5834 = vmatprep.subr.bf16.mxu0 0
        %5835 = vmatpush1.bf16.msra.mxu0 0
        %5836 = vmatprep.subr.bf16.mxu0 0
        %5837 = vmatpush1.bf16.msra.mxu0 0
        %5838 = vmatprep.mubr.bf16.mxu0 0
        %5839 = vmatmul.mubr.bf16.gmra.mrb[0].mxu0 %v5780
        %v5840 = vpop.f32.mrb[0].mxu0
        %v5841 = vadd.f32 %v5677, %v5840
        %v5842 = vpop.f32.mrb[0].mxu0
        %v5843 = vpop.f32.mrb[0].mxu0
        %v5844 = vadd.f32 %v5680, %v5843
        %v5845 = vpop.f32.mrb[0].mxu0
        %5846 = vmatprep.mubr.bf16.mxu0 0
        %5847 = vmatmul.mubr.bf16.gmra.mrb[0].mxu0 %v5783
        %v5848 = vpop.f32.mrb[0].mxu0
        %v5849 = vadd.f32 %v5685, %v5848
        %v5850 = vpop.f32.mrb[0].mxu0
        %v5851 = vpop.f32.mrb[0].mxu0
        %v5852 = vadd.f32 %v5688, %v5851
        %v5853 = vpop.f32.mrb[0].mxu0
        %5854 = vmatprep.mubr.bf16.mxu0 0
        %5855 = vmatmul.mubr.bf16.gmra.mrb[0].mxu0 %v5786
        %v5856 = vpop.f32.mrb[0].mxu0
        %v5857 = vadd.f32 %v5693, %v5856
        %v5858 = vpop.f32.mrb[0].mxu0
        %v5859 = vpop.f32.mrb[0].mxu0
        %v5860 = vadd.f32 %v5696, %v5859
        %v5861 = vpop.f32.mrb[0].mxu0
        %5862 = vmatprep.mubr.bf16.mxu0 0
        %5863 = vmatmul.mubr.bf16.gmra.mrb[0].mxu0 %v5789
        %v5864 = vpop.f32.mrb[0].mxu0
        %v5865 = vadd.f32 %v5701, %v5864
        %v5866 = vpop.f32.mrb[0].mxu0
        %v5867 = vpop.f32.mrb[0].mxu0
        %v5868 = vadd.f32 %v5704, %v5867
        %v5869 = vpop.f32.mrb[0].mxu0
        %5870 = vmatprep.mubr.bf16.mxu0 0
        %5871 = vmatmul.mubr.bf16.gmra.mrb[0].mxu0 %v5792
        %v5872 = vpop.f32.mrb[0].mxu0
        %v5873 = vadd.f32 %v5709, %v5872
        %v5874 = vpop.f32.mrb[0].mxu0
        %v5875 = vpop.f32.mrb[0].mxu0
        %v5876 = vadd.f32 %v5712, %v5875
        %v5877 = vpop.f32.mrb[0].mxu0
        %5878 = vmatprep.mubr.bf16.mxu0 0
        %5879 = vmatmul.mubr.bf16.gmra.mrb[0].mxu0 %v5795
        %v5880 = vpop.f32.mrb[0].mxu0
        %v5881 = vadd.f32 %v5717, %v5880
        %v5882 = vpop.f32.mrb[0].mxu0
        %v5883 = vpop.f32.mrb[0].mxu0
        %v5884 = vadd.f32 %v5720, %v5883
        %v5885 = vpop.f32.mrb[0].mxu0
        %5886 = vmatprep.mubr.bf16.mxu0 0
        %5887 = vmatmul.mubr.bf16.gmra.mrb[0].mxu0 %v5798
        %v5888 = vpop.f32.mrb[0].mxu0
        %v5889 = vadd.f32 %v5725, %v5888
        %v5890 = vpop.f32.mrb[0].mxu0
        %v5891 = vpop.f32.mrb[0].mxu0
        %v5892 = vadd.f32 %v5728, %v5891
        %v5893 = vpop.f32.mrb[0].mxu0
        %5894 = vmatprep.mubr.bf16.mxu0 0
        %5895 = vmatmul.mubr.bf16.gmra.mrb[0].mxu0 %v5801
        %v5896 = vpop.f32.mrb[0].mxu0
        %v5897 = vadd.f32 %v5733, %v5896
        %v5898 = vpop.f32.mrb[0].mxu0
        %v5899 = vpop.f32.mrb[0].mxu0
        %v5900 = vadd.f32 %v5736, %v5899
        %v5901 = vpop.f32.mrb[0].mxu0
        %5902 = vdwg.mxu0
        %v5903 = vld [vmem:[%s5467 + $0x10] sm:$0xc]
        %v5904 = vld [vmem:[%s5467 + $0x14] sm:$0xf]
        %v5905 = vld [vmem:[%s5467 + $0x18] sm:$0x3]
        %v5906 = vld [vmem:[%s5467 + $0x2c] sm:$0xc]
        %v5907 = vld [vmem:[%s5467 + $0x30] sm:$0xf]
        %v5908 = vld [vmem:[%s5467 + $0x34] sm:$0x3]
        %v5909 = vld [vmem:[%s5467 + $0x48] sm:$0xc]
        %v5910 = vld [vmem:[%s5467 + $0x4c] sm:$0xf]
        %v5911 = vld [vmem:[%s5467 + $0x50] sm:$0x3]
        %v5912 = vld [vmem:[%s5467 + $0x64] sm:$0xc]
        %v5913 = vld [vmem:[%s5467 + $0x68] sm:$0xf]
        %v5914 = vld [vmem:[%s5467 + $0x6c] sm:$0x3]
        %v5915 = vld [vmem:[%s5467 + $0x80] sm:$0xc]
        %v5916 = vld [vmem:[%s5467 + $0x84] sm:$0xf]
        %v5917 = vld [vmem:[%s5467 + $0x88] sm:$0x3]
        %v5918 = vld [vmem:[%s5467 + $0x9c] sm:$0xc]
        %v5919 = vld [vmem:[%s5467 + $0xa0] sm:$0xf]
        %v5920 = vld [vmem:[%s5467 + $0xa4] sm:$0x3]
        %v5921 = vld [vmem:[%s5467 + $0xb8] sm:$0xc]
        %v5922 = vld [vmem:[%s5467 + $0xbc] sm:$0xf]
        %v5923 = vld [vmem:[%s5467 + $0xc0] sm:$0x3]
        %v5924 = vld [vmem:[%s5467 + $0xd4] sm:$0xc]
        %v5925 = vld [vmem:[%s5467 + $0xd8] sm:$0xf]
        %v5926 = vld [vmem:[%s5467 + $0xdc] sm:$0x3]
        %v5951 = vrot.slane %v5903, 6
        %v5952 = vrot.slane %v5951, 4
        %v5953 = vrot.slane %v5904, 6
        %v5954 = vsel %vm696, %v5952, %v5953
        %v5955 = vrot.slane %v5953, 4
        %v5956 = vrot.slane %v5905, 6
        %v5957 = vsel %vm696, %v5955, %v5956
        %v5958 = vrot.slane %v5906, 6
        %v5959 = vrot.slane %v5958, 4
        %v5960 = vrot.slane %v5907, 6
        %v5961 = vsel %vm696, %v5959, %v5960
        %v5962 = vrot.slane %v5960, 4
        %v5963 = vrot.slane %v5908, 6
        %v5964 = vsel %vm696, %v5962, %v5963
        %v5965 = vrot.slane %v5909, 6
        %v5966 = vrot.slane %v5965, 4
        %v5967 = vrot.slane %v5910, 6
        %v5968 = vsel %vm696, %v5966, %v5967
        %v5969 = vrot.slane %v5967, 4
        %v5970 = vrot.slane %v5911, 6
        %v5971 = vsel %vm696, %v5969, %v5970
        %v5972 = vrot.slane %v5912, 6
        %v5973 = vrot.slane %v5972, 4
        %v5974 = vrot.slane %v5913, 6
        %v5975 = vsel %vm696, %v5973, %v5974
        %v5976 = vrot.slane %v5974, 4
        %v5977 = vrot.slane %v5914, 6
        %v5978 = vsel %vm696, %v5976, %v5977
        %v5979 = vrot.slane %v5915, 6
        %v5980 = vrot.slane %v5979, 4
        %v5981 = vrot.slane %v5916, 6
        %v5982 = vsel %vm696, %v5980, %v5981
        %v5983 = vrot.slane %v5981, 4
        %v5984 = vrot.slane %v5917, 6
        %v5985 = vsel %vm696, %v5983, %v5984
        %v5986 = vrot.slane %v5918, 6
        %v5987 = vrot.slane %v5986, 4
        %v5988 = vrot.slane %v5919, 6
        %v5989 = vsel %vm696, %v5987, %v5988
        %v5990 = vrot.slane %v5988, 4
        %v5991 = vrot.slane %v5920, 6
        %v5992 = vsel %vm696, %v5990, %v5991
        %v5993 = vrot.slane %v5921, 6
        %v5994 = vrot.slane %v5993, 4
        %v5995 = vrot.slane %v5922, 6
        %v5996 = vsel %vm696, %v5994, %v5995
        %v5997 = vrot.slane %v5995, 4
        %v5998 = vrot.slane %v5923, 6
        %v5999 = vsel %vm696, %v5997, %v5998
        %v6000 = vrot.slane %v5924, 6
        %v6001 = vrot.slane %v6000, 4
        %v6002 = vrot.slane %v5925, 6
        %v6003 = vsel %vm696, %v6001, %v6002
        %v6004 = vrot.slane %v6002, 4
        %v6005 = vrot.slane %v5926, 6
        %v6006 = vsel %vm696, %v6004, %v6005
        %s6007 = scalar_lea.vmem %s4, 8
        %v6008 = vld [vmem:[%s6007] sm:$0xf]
        %v6009 = vunpack.c.l.b16 %v5954
        %v6010 = vunpack.c.l.b16 %v5957
        %v6011 = vunpack.c.l.b16 %v5961
        %v6012 = vunpack.c.l.b16 %v5964
        %v6013 = vunpack.c.l.b16 %v5968
        %v6014 = vunpack.c.l.b16 %v5971
        %v6015 = vunpack.c.l.b16 %v5975
        %v6016 = vunpack.c.l.b16 %v5978
        %v6017 = vunpack.c.l.b16 %v5982
        %v6018 = vunpack.c.l.b16 %v5985
        %v6019 = vunpack.c.l.b16 %v5989
        %v6020 = vunpack.c.l.b16 %v5992
        %v6021 = vunpack.c.l.b16 %v5996
        %v6022 = vunpack.c.l.b16 %v5999
        %v6023 = vunpack.c.l.b16 %v6003
        %v6024 = vunpack.c.l.b16 %v6006
        %v6025 = vpack.c.b16 %v6010, %v6009
        %v6026 = vpack.c.b16 %v6012, %v6011
        %v6027 = vpack.c.b16 %v6014, %v6013
        %v6028 = vpack.c.b16 %v6016, %v6015
        %v6029 = vpack.c.b16 %v6018, %v6017
        %v6030 = vpack.c.b16 %v6020, %v6019
        %v6031 = vpack.c.b16 %v6022, %v6021
        %v6032 = vpack.c.b16 %v6024, %v6023
        %v6034 = vsel %vm476, %v6025, 0
        %v6037 = vsel %vm476, %v6026, 0
        %v6040 = vsel %vm476, %v6027, 0
        %v6043 = vsel %vm476, %v6028, 0
        %v6046 = vsel %vm476, %v6029, 0
        %v6049 = vsel %vm476, %v6030, 0
        %v6052 = vsel %vm476, %v6031, 0
        %v6055 = vsel %vm476, %v6032, 0
        %v6058 = vsel %vm501, %v6008, 0
        %6060 = vmatprep.subr.bf16.mxu0 0
        %6061 = vmatpush1.bf16.msra.mxu0 %v6058
        %6062 = vmatprep.subr.bf16.mxu0 0
        %6063 = vmatpush1.bf16.msra.mxu0 0
        %6064 = vmatprep.subr.bf16.mxu0 0
        %6065 = vmatpush1.bf16.msra.mxu0 0
        %6066 = vmatprep.subr.bf16.mxu0 0
        %6067 = vmatpush1.bf16.msra.mxu0 0
        %6068 = vmatprep.subr.bf16.mxu0 0
        %6069 = vmatpush1.bf16.msra.mxu0 0
        %6070 = vmatprep.subr.bf16.mxu0 0
        %6071 = vmatpush1.bf16.msra.mxu0 0
        %6072 = vmatprep.subr.bf16.mxu0 0
        %6073 = vmatpush1.bf16.msra.mxu0 0
        %6074 = vmatprep.subr.bf16.mxu0 0
        %6075 = vmatpush1.bf16.msra.mxu0 0
        %6076 = vmatprep.subr.bf16.mxu0 0
        %6077 = vmatpush1.bf16.msra.mxu0 0
        %6078 = vmatprep.subr.bf16.mxu0 0
        %6079 = vmatpush1.bf16.msra.mxu0 0
        %6080 = vmatprep.subr.bf16.mxu0 0
        %6081 = vmatpush1.bf16.msra.mxu0 0
        %6082 = vmatprep.subr.bf16.mxu0 0
        %6083 = vmatpush1.bf16.msra.mxu0 0
        %6084 = vmatprep.subr.bf16.mxu0 0
        %6085 = vmatpush1.bf16.msra.mxu0 0
        %6086 = vmatprep.subr.bf16.mxu0 0
        %6087 = vmatpush1.bf16.msra.mxu0 0
        %6088 = vmatprep.subr.bf16.mxu0 0
        %6089 = vmatpush1.bf16.msra.mxu0 0
        %6090 = vmatprep.subr.bf16.mxu0 0
        %6091 = vmatpush1.bf16.msra.mxu0 0
        %6092 = vmatprep.mubr.bf16.mxu0 0
        %6093 = vmatmul.mubr.bf16.gmra.mrb[0].mxu0 %v6034
        %v6094 = vpop.f32.mrb[0].mxu0
        %v6095 = vadd.f32 0.0, %v6094
        %v6096 = vpop.f32.mrb[0].mxu0
        %v6097 = vpop.f32.mrb[0].mxu0
        %v6098 = vadd.f32 0.0, %v6097
        %v6099 = vpop.f32.mrb[0].mxu0
        %6100 = vmatprep.mubr.bf16.mxu0 0
        %6101 = vmatmul.mubr.bf16.gmra.mrb[0].mxu0 %v6037
        %v6102 = vpop.f32.mrb[0].mxu0
        %v6103 = vadd.f32 0.0, %v6102
        %v6104 = vpop.f32.mrb[0].mxu0
        %v6105 = vpop.f32.mrb[0].mxu0
        %v6106 = vadd.f32 0.0, %v6105
        %v6107 = vpop.f32.mrb[0].mxu0
        %6108 = vmatprep.mubr.bf16.mxu0 0
        %6109 = vmatmul.mubr.bf16.gmra.mrb[0].mxu0 %v6040
        %v6110 = vpop.f32.mrb[0].mxu0
        %v6111 = vadd.f32 0.0, %v6110
        %v6112 = vpop.f32.mrb[0].mxu0
        %v6113 = vpop.f32.mrb[0].mxu0
        %v6114 = vadd.f32 0.0, %v6113
        %v6115 = vpop.f32.mrb[0].mxu0
        %6116 = vmatprep.mubr.bf16.mxu0 0
        %6117 = vmatmul.mubr.bf16.gmra.mrb[0].mxu0 %v6043
        %v6118 = vpop.f32.mrb[0].mxu0
        %v6119 = vadd.f32 0.0, %v6118
        %v6120 = vpop.f32.mrb[0].mxu0
        %v6121 = vpop.f32.mrb[0].mxu0
        %v6122 = vadd.f32 0.0, %v6121
        %v6123 = vpop.f32.mrb[0].mxu0
        %6124 = vmatprep.mubr.bf16.mxu0 0
        %6125 = vmatmul.mubr.bf16.gmra.mrb[0].mxu0 %v6046
        %v6126 = vpop.f32.mrb[0].mxu0
        %v6127 = vadd.f32 0.0, %v6126
        %v6128 = vpop.f32.mrb[0].mxu0
        %v6129 = vpop.f32.mrb[0].mxu0
        %v6130 = vadd.f32 0.0, %v6129
        %v6131 = vpop.f32.mrb[0].mxu0
        %6132 = vmatprep.mubr.bf16.mxu0 0
        %6133 = vmatmul.mubr.bf16.gmra.mrb[0].mxu0 %v6049
        %v6134 = vpop.f32.mrb[0].mxu0
        %v6135 = vadd.f32 0.0, %v6134
        %v6136 = vpop.f32.mrb[0].mxu0
        %v6137 = vpop.f32.mrb[0].mxu0
        %v6138 = vadd.f32 0.0, %v6137
        %v6139 = vpop.f32.mrb[0].mxu0
        %6140 = vmatprep.mubr.bf16.mxu0 0
        %6141 = vmatmul.mubr.bf16.gmra.mrb[0].mxu0 %v6052
        %v6142 = vpop.f32.mrb[0].mxu0
        %v6143 = vadd.f32 0.0, %v6142
        %v6144 = vpop.f32.mrb[0].mxu0
        %v6145 = vpop.f32.mrb[0].mxu0
        %v6146 = vadd.f32 0.0, %v6145
        %v6147 = vpop.f32.mrb[0].mxu0
        %6148 = vmatprep.mubr.bf16.mxu0 0
        %6149 = vmatmul.mubr.bf16.gmra.mrb[0].mxu0 %v6055
        %v6150 = vpop.f32.mrb[0].mxu0
        %v6151 = vadd.f32 0.0, %v6150
        %v6152 = vpop.f32.mrb[0].mxu0
        %v6153 = vpop.f32.mrb[0].mxu0
        %v6154 = vadd.f32 0.0, %v6153
        %v6155 = vpop.f32.mrb[0].mxu0
        %6156 = vdwg.mxu0
        %v6157 = vadd.f32 %v5841, %v6095
        %v6158 = vadd.f32 %v5844, %v6098
        %v6159 = vadd.f32 %v5849, %v6103
        %v6160 = vadd.f32 %v5852, %v6106
        %v6161 = vadd.f32 %v5857, %v6111
        %v6162 = vadd.f32 %v5860, %v6114
        %v6163 = vadd.f32 %v5865, %v6119
        %v6164 = vadd.f32 %v5868, %v6122
        %v6165 = vadd.f32 %v5873, %v6127
        %v6166 = vadd.f32 %v5876, %v6130
        %v6167 = vadd.f32 %v5881, %v6135
        %v6168 = vadd.f32 %v5884, %v6138
        %v6169 = vadd.f32 %v5889, %v6143
        %v6170 = vadd.f32 %v5892, %v6146
        %v6171 = vadd.f32 %v5897, %v6151
        %v6172 = vadd.f32 %v5900, %v6154
        %v6173 = vld [vmem:[%s338] sm:$0xf]
        %v6174 = vld [vmem:[%s338 + $0x4] sm:$0xf]
        %v6175 = vld [vmem:[%s338 + $0x1c] sm:$0xf]
        %v6176 = vld [vmem:[%s338 + $0x20] sm:$0xf]
        %v6177 = vld [vmem:[%s338 + $0x38] sm:$0xf]
        %v6178 = vld [vmem:[%s338 + $0x3c] sm:$0xf]
        %v6179 = vld [vmem:[%s338 + $0x54] sm:$0xf]
        %v6180 = vld [vmem:[%s338 + $0x58] sm:$0xf]
        %v6181 = vld [vmem:[%s338 + $0x70] sm:$0xf]
        %v6182 = vld [vmem:[%s338 + $0x74] sm:$0xf]
        %v6183 = vld [vmem:[%s338 + $0x8c] sm:$0xf]
        %v6184 = vld [vmem:[%s338 + $0x90] sm:$0xf]
        %v6185 = vld [vmem:[%s338 + $0xa8] sm:$0xf]
        %v6186 = vld [vmem:[%s338 + $0xac] sm:$0xf]
        %v6187 = vld [vmem:[%s338 + $0xc4] sm:$0xf]
        %v6188 = vld [vmem:[%s338 + $0xc8] sm:$0xf]
        %s6189 = scalar_lea.vmem %s4, 12
        %v6190 = vld [vmem:[%s6189] sm:$0xf]
        %v6207 = vunpack.c.l.b16 %v6173
        %v6208 = vunpack.c.l.b16 %v6174
        %v6209 = vunpack.c.l.b16 %v6175
        %v6210 = vunpack.c.l.b16 %v6176
        %v6211 = vunpack.c.l.b16 %v6177
        %v6212 = vunpack.c.l.b16 %v6178
        %v6213 = vunpack.c.l.b16 %v6179
        %v6214 = vunpack.c.l.b16 %v6180
        %v6215 = vunpack.c.l.b16 %v6181
        %v6216 = vunpack.c.l.b16 %v6182
        %v6217 = vunpack.c.l.b16 %v6183
        %v6218 = vunpack.c.l.b16 %v6184
        %v6219 = vunpack.c.l.b16 %v6185
        %v6220 = vunpack.c.l.b16 %v6186
        %v6221 = vunpack.c.l.b16 %v6187
        %v6222 = vunpack.c.l.b16 %v6188
        %v6223 = vpack.c.b16 %v6208, %v6207
        %v6224 = vpack.c.b16 %v6210, %v6209
        %v6225 = vpack.c.b16 %v6212, %v6211
        %v6226 = vpack.c.b16 %v6214, %v6213
        %v6227 = vpack.c.b16 %v6216, %v6215
        %v6228 = vpack.c.b16 %v6218, %v6217
        %v6229 = vpack.c.b16 %v6220, %v6219
        %v6230 = vpack.c.b16 %v6222, %v6221
        %v6232 = vsel %vm476, %v6223, 0
        %v6235 = vsel %vm476, %v6224, 0
        %v6238 = vsel %vm476, %v6225, 0
        %v6241 = vsel %vm476, %v6226, 0
        %v6244 = vsel %vm476, %v6227, 0
        %v6247 = vsel %vm476, %v6228, 0
        %v6250 = vsel %vm476, %v6229, 0
        %v6253 = vsel %vm476, %v6230, 0
        %v6256 = vsel %vm501, %v6190, 0
        %6258 = vmatprep.subr.bf16.mxu0 0
        %6259 = vmatpush1.bf16.msra.mxu0 %v6256
        %6260 = vmatprep.subr.bf16.mxu0 0
        %6261 = vmatpush1.bf16.msra.mxu0 0
        %6262 = vmatprep.subr.bf16.mxu0 0
        %6263 = vmatpush1.bf16.msra.mxu0 0
        %6264 = vmatprep.subr.bf16.mxu0 0
        %6265 = vmatpush1.bf16.msra.mxu0 0
        %6266 = vmatprep.subr.bf16.mxu0 0
        %6267 = vmatpush1.bf16.msra.mxu0 0
        %6268 = vmatprep.subr.bf16.mxu0 0
        %6269 = vmatpush1.bf16.msra.mxu0 0
        %6270 = vmatprep.subr.bf16.mxu0 0
        %6271 = vmatpush1.bf16.msra.mxu0 0
        %6272 = vmatprep.subr.bf16.mxu0 0
        %6273 = vmatpush1.bf16.msra.mxu0 0
        %6274 = vmatprep.subr.bf16.mxu0 0
        %6275 = vmatpush1.bf16.msra.mxu0 0
        %6276 = vmatprep.subr.bf16.mxu0 0
        %6277 = vmatpush1.bf16.msra.mxu0 0
        %6278 = vmatprep.subr.bf16.mxu0 0
        %6279 = vmatpush1.bf16.msra.mxu0 0
        %6280 = vmatprep.subr.bf16.mxu0 0
        %6281 = vmatpush1.bf16.msra.mxu0 0
        %6282 = vmatprep.subr.bf16.mxu0 0
        %6283 = vmatpush1.bf16.msra.mxu0 0
        %6284 = vmatprep.subr.bf16.mxu0 0
        %6285 = vmatpush1.bf16.msra.mxu0 0
        %6286 = vmatprep.subr.bf16.mxu0 0
        %6287 = vmatpush1.bf16.msra.mxu0 0
        %6288 = vmatprep.subr.bf16.mxu0 0
        %6289 = vmatpush1.bf16.msra.mxu0 0
        %6290 = vmatprep.mubr.bf16.mxu0 0
        %6291 = vmatmul.mubr.bf16.gmra.mrb[0].mxu0 %v6232
        %v6292 = vpop.f32.mrb[0].mxu0
        %v6293 = vadd.f32 0.0, %v6292
        %v6294 = vpop.f32.mrb[0].mxu0
        %v6295 = vpop.f32.mrb[0].mxu0
        %v6296 = vadd.f32 0.0, %v6295
        %v6297 = vpop.f32.mrb[0].mxu0
        %6298 = vmatprep.mubr.bf16.mxu0 0
        %6299 = vmatmul.mubr.bf16.gmra.mrb[0].mxu0 %v6235
        %v6300 = vpop.f32.mrb[0].mxu0
        %v6301 = vadd.f32 0.0, %v6300
        %v6302 = vpop.f32.mrb[0].mxu0
        %v6303 = vpop.f32.mrb[0].mxu0
        %v6304 = vadd.f32 0.0, %v6303
        %v6305 = vpop.f32.mrb[0].mxu0
        %6306 = vmatprep.mubr.bf16.mxu0 0
        %6307 = vmatmul.mubr.bf16.gmra.mrb[0].mxu0 %v6238
        %v6308 = vpop.f32.mrb[0].mxu0
        %v6309 = vadd.f32 0.0, %v6308
        %v6310 = vpop.f32.mrb[0].mxu0
        %v6311 = vpop.f32.mrb[0].mxu0
        %v6312 = vadd.f32 0.0, %v6311
        %v6313 = vpop.f32.mrb[0].mxu0
        %6314 = vmatprep.mubr.bf16.mxu0 0
        %6315 = vmatmul.mubr.bf16.gmra.mrb[0].mxu0 %v6241
        %v6316 = vpop.f32.mrb[0].mxu0
        %v6317 = vadd.f32 0.0, %v6316
        %v6318 = vpop.f32.mrb[0].mxu0
        %v6319 = vpop.f32.mrb[0].mxu0
        %v6320 = vadd.f32 0.0, %v6319
        %v6321 = vpop.f32.mrb[0].mxu0
        %6322 = vmatprep.mubr.bf16.mxu0 0
        %6323 = vmatmul.mubr.bf16.gmra.mrb[0].mxu0 %v6244
        %v6324 = vpop.f32.mrb[0].mxu0
        %v6325 = vadd.f32 0.0, %v6324
        %v6326 = vpop.f32.mrb[0].mxu0
        %v6327 = vpop.f32.mrb[0].mxu0
        %v6328 = vadd.f32 0.0, %v6327
        %v6329 = vpop.f32.mrb[0].mxu0
        %6330 = vmatprep.mubr.bf16.mxu0 0
        %6331 = vmatmul.mubr.bf16.gmra.mrb[0].mxu0 %v6247
        %v6332 = vpop.f32.mrb[0].mxu0
        %v6333 = vadd.f32 0.0, %v6332
        %v6334 = vpop.f32.mrb[0].mxu0
        %v6335 = vpop.f32.mrb[0].mxu0
        %v6336 = vadd.f32 0.0, %v6335
        %v6337 = vpop.f32.mrb[0].mxu0
        %6338 = vmatprep.mubr.bf16.mxu0 0
        %6339 = vmatmul.mubr.bf16.gmra.mrb[0].mxu0 %v6250
        %v6340 = vpop.f32.mrb[0].mxu0
        %v6341 = vadd.f32 0.0, %v6340
        %v6342 = vpop.f32.mrb[0].mxu0
        %v6343 = vpop.f32.mrb[0].mxu0
        %v6344 = vadd.f32 0.0, %v6343
        %v6345 = vpop.f32.mrb[0].mxu0
        %6346 = vmatprep.mubr.bf16.mxu0 0
        %6347 = vmatmul.mubr.bf16.gmra.mrb[0].mxu0 %v6253
        %v6348 = vpop.f32.mrb[0].mxu0
        %v6349 = vadd.f32 0.0, %v6348
        %v6350 = vpop.f32.mrb[0].mxu0
        %v6351 = vpop.f32.mrb[0].mxu0
        %v6352 = vadd.f32 0.0, %v6351
        %v6353 = vpop.f32.mrb[0].mxu0
        %6354 = vdwg.mxu0
        %v6355 = vadd.f32 %v6157, %v6293
        %v6356 = vadd.f32 %v6158, %v6296
        %v6357 = vadd.f32 %v6159, %v6301
        %v6358 = vadd.f32 %v6160, %v6304
        %v6359 = vadd.f32 %v6161, %v6309
        %v6360 = vadd.f32 %v6162, %v6312
        %v6361 = vadd.f32 %v6163, %v6317
        %v6362 = vadd.f32 %v6164, %v6320
        %v6363 = vadd.f32 %v6165, %v6325
        %v6364 = vadd.f32 %v6166, %v6328
        %v6365 = vadd.f32 %v6167, %v6333
        %v6366 = vadd.f32 %v6168, %v6336
        %v6367 = vadd.f32 %v6169, %v6341
        %v6368 = vadd.f32 %v6170, %v6344
        %v6369 = vadd.f32 %v6171, %v6349
        %v6370 = vadd.f32 %v6172, %v6352
        %s6371 = scalar_lea.vmem %s4, 16
        %v6372 = vld [vmem:[%s6371] sm:$0xf]
        %v6374 = vsel %vm501, %v6372, 0
        %6376 = vmatprep.subr.bf16.mxu0 0
        %6377 = vmatpush1.bf16.msra.mxu0 %v6374
        %6378 = vmatprep.subr.bf16.mxu0 0
        %6379 = vmatpush1.bf16.msra.mxu0 0
        %6380 = vmatprep.subr.bf16.mxu0 0
        %6381 = vmatpush1.bf16.msra.mxu0 0
        %6382 = vmatprep.subr.bf16.mxu0 0
        %6383 = vmatpush1.bf16.msra.mxu0 0
        %6384 = vmatprep.subr.bf16.mxu0 0
        %6385 = vmatpush1.bf16.msra.mxu0 0
        %6386 = vmatprep.subr.bf16.mxu0 0
        %6387 = vmatpush1.bf16.msra.mxu0 0
        %6388 = vmatprep.subr.bf16.mxu0 0
        %6389 = vmatpush1.bf16.msra.mxu0 0
        %6390 = vmatprep.subr.bf16.mxu0 0
        %6391 = vmatpush1.bf16.msra.mxu0 0
        %6392 = vmatprep.subr.bf16.mxu0 0
        %6393 = vmatpush1.bf16.msra.mxu0 0
        %6394 = vmatprep.subr.bf16.mxu0 0
        %6395 = vmatpush1.bf16.msra.mxu0 0
        %6396 = vmatprep.subr.bf16.mxu0 0
        %6397 = vmatpush1.bf16.msra.mxu0 0
        %6398 = vmatprep.subr.bf16.mxu0 0
        %6399 = vmatpush1.bf16.msra.mxu0 0
        %6400 = vmatprep.subr.bf16.mxu0 0
        %6401 = vmatpush1.bf16.msra.mxu0 0
        %6402 = vmatprep.subr.bf16.mxu0 0
        %6403 = vmatpush1.bf16.msra.mxu0 0
        %6404 = vmatprep.subr.bf16.mxu0 0
        %6405 = vmatpush1.bf16.msra.mxu0 0
        %6406 = vmatprep.subr.bf16.mxu0 0
        %6407 = vmatpush1.bf16.msra.mxu0 0
        %6408 = vmatprep.mubr.bf16.mxu0 0
        %6409 = vmatmul.mubr.bf16.gmra.mrb[0].mxu0 %v478
        %v6410 = vpop.f32.mrb[0].mxu0
        %v6411 = vadd.f32 0.0, %v6410
        %v6412 = vpop.f32.mrb[0].mxu0
        %v6413 = vpop.f32.mrb[0].mxu0
        %v6414 = vadd.f32 0.0, %v6413
        %v6415 = vpop.f32.mrb[0].mxu0
        %6416 = vmatprep.mubr.bf16.mxu0 0
        %6417 = vmatmul.mubr.bf16.gmra.mrb[0].mxu0 %v481
        %v6418 = vpop.f32.mrb[0].mxu0
        %v6419 = vadd.f32 0.0, %v6418
        %v6420 = vpop.f32.mrb[0].mxu0
        %v6421 = vpop.f32.mrb[0].mxu0
        %v6422 = vadd.f32 0.0, %v6421
        %v6423 = vpop.f32.mrb[0].mxu0
        %6424 = vmatprep.mubr.bf16.mxu0 0
        %6425 = vmatmul.mubr.bf16.gmra.mrb[0].mxu0 %v484
        %v6426 = vpop.f32.mrb[0].mxu0
        %v6427 = vadd.f32 0.0, %v6426
        %v6428 = vpop.f32.mrb[0].mxu0
        %v6429 = vpop.f32.mrb[0].mxu0
        %v6430 = vadd.f32 0.0, %v6429
        %v6431 = vpop.f32.mrb[0].mxu0
        %6432 = vmatprep.mubr.bf16.mxu0 0
        %6433 = vmatmul.mubr.bf16.gmra.mrb[0].mxu0 %v487
        %v6434 = vpop.f32.mrb[0].mxu0
        %v6435 = vadd.f32 0.0, %v6434
        %v6436 = vpop.f32.mrb[0].mxu0
        %v6437 = vpop.f32.mrb[0].mxu0
        %v6438 = vadd.f32 0.0, %v6437
        %v6439 = vpop.f32.mrb[0].mxu0
        %6440 = vmatprep.mubr.bf16.mxu0 0
        %6441 = vmatmul.mubr.bf16.gmra.mrb[0].mxu0 %v490
        %v6442 = vpop.f32.mrb[0].mxu0
        %v6443 = vadd.f32 0.0, %v6442
        %v6444 = vpop.f32.mrb[0].mxu0
        %v6445 = vpop.f32.mrb[0].mxu0
        %v6446 = vadd.f32 0.0, %v6445
        %v6447 = vpop.f32.mrb[0].mxu0
        %6448 = vmatprep.mubr.bf16.mxu0 0
        %6449 = vmatmul.mubr.bf16.gmra.mrb[0].mxu0 %v493
        %v6450 = vpop.f32.mrb[0].mxu0
        %v6451 = vadd.f32 0.0, %v6450
        %v6452 = vpop.f32.mrb[0].mxu0
        %v6453 = vpop.f32.mrb[0].mxu0
        %v6454 = vadd.f32 0.0, %v6453
        %v6455 = vpop.f32.mrb[0].mxu0
        %6456 = vmatprep.mubr.bf16.mxu0 0
        %6457 = vmatmul.mubr.bf16.gmra.mrb[0].mxu0 %v496
        %v6458 = vpop.f32.mrb[0].mxu0
        %v6459 = vadd.f32 0.0, %v6458
        %v6460 = vpop.f32.mrb[0].mxu0
        %v6461 = vpop.f32.mrb[0].mxu0
        %v6462 = vadd.f32 0.0, %v6461
        %v6463 = vpop.f32.mrb[0].mxu0
        %6464 = vmatprep.mubr.bf16.mxu0 0
        %6465 = vmatmul.mubr.bf16.gmra.mrb[0].mxu0 %v499
        %v6466 = vpop.f32.mrb[0].mxu0
        %v6467 = vadd.f32 0.0, %v6466
        %v6468 = vpop.f32.mrb[0].mxu0
        %v6469 = vpop.f32.mrb[0].mxu0
        %v6470 = vadd.f32 0.0, %v6469
        %v6471 = vpop.f32.mrb[0].mxu0
        %6472 = vdwg.mxu0
        %v6473 = vadd.f32 %v6355, %v6411
        %v6474 = vadd.f32 %v6356, %v6414
        %v6475 = vadd.f32 %v6357, %v6419
        %v6476 = vadd.f32 %v6358, %v6422
        %v6477 = vadd.f32 %v6359, %v6427
        %v6478 = vadd.f32 %v6360, %v6430
        %v6479 = vadd.f32 %v6361, %v6435
        %v6480 = vadd.f32 %v6362, %v6438
        %v6481 = vadd.f32 %v6363, %v6443
        %v6482 = vadd.f32 %v6364, %v6446
        %v6483 = vadd.f32 %v6365, %v6451
        %v6484 = vadd.f32 %v6366, %v6454
        %v6485 = vadd.f32 %v6367, %v6459
        %v6486 = vadd.f32 %v6368, %v6462
        %v6487 = vadd.f32 %v6369, %v6467
        %v6488 = vadd.f32 %v6370, %v6470
        %v6489 = vld [vmem:[%s338 + $0x10] sm:$0xc]
        %v6490 = vld [vmem:[%s338 + $0x14] sm:$0xf]
        %v6491 = vld [vmem:[%s338 + $0x18] sm:$0x3]
        %v6492 = vld [vmem:[%s338 + $0x2c] sm:$0xc]
        %v6493 = vld [vmem:[%s338 + $0x30] sm:$0xf]
        %v6494 = vld [vmem:[%s338 + $0x34] sm:$0x3]
        %v6495 = vld [vmem:[%s338 + $0x48] sm:$0xc]
        %v6496 = vld [vmem:[%s338 + $0x4c] sm:$0xf]
        %v6497 = vld [vmem:[%s338 + $0x50] sm:$0x3]
        %v6498 = vld [vmem:[%s338 + $0x64] sm:$0xc]
        %v6499 = vld [vmem:[%s338 + $0x68] sm:$0xf]
        %v6500 = vld [vmem:[%s338 + $0x6c] sm:$0x3]
        %v6501 = vld [vmem:[%s338 + $0x80] sm:$0xc]
        %v6502 = vld [vmem:[%s338 + $0x84] sm:$0xf]
        %v6503 = vld [vmem:[%s338 + $0x88] sm:$0x3]
        %v6504 = vld [vmem:[%s338 + $0x9c] sm:$0xc]
        %v6505 = vld [vmem:[%s338 + $0xa0] sm:$0xf]
        %v6506 = vld [vmem:[%s338 + $0xa4] sm:$0x3]
        %v6507 = vld [vmem:[%s338 + $0xb8] sm:$0xc]
        %v6508 = vld [vmem:[%s338 + $0xbc] sm:$0xf]
        %v6509 = vld [vmem:[%s338 + $0xc0] sm:$0x3]
        %v6510 = vld [vmem:[%s338 + $0xd4] sm:$0xc]
        %v6511 = vld [vmem:[%s338 + $0xd8] sm:$0xf]
        %v6512 = vld [vmem:[%s338 + $0xdc] sm:$0x3]
        %v6537 = vrot.slane %v6489, 6
        %v6538 = vrot.slane %v6537, 4
        %v6539 = vrot.slane %v6490, 6
        %v6540 = vsel %vm696, %v6538, %v6539
        %v6541 = vrot.slane %v6539, 4
        %v6542 = vrot.slane %v6491, 6
        %v6543 = vsel %vm696, %v6541, %v6542
        %v6544 = vrot.slane %v6492, 6
        %v6545 = vrot.slane %v6544, 4
        %v6546 = vrot.slane %v6493, 6
        %v6547 = vsel %vm696, %v6545, %v6546
        %v6548 = vrot.slane %v6546, 4
        %v6549 = vrot.slane %v6494, 6
        %v6550 = vsel %vm696, %v6548, %v6549
        %v6551 = vrot.slane %v6495, 6
        %v6552 = vrot.slane %v6551, 4
        %v6553 = vrot.slane %v6496, 6
        %v6554 = vsel %vm696, %v6552, %v6553
        %v6555 = vrot.slane %v6553, 4
        %v6556 = vrot.slane %v6497, 6
        %v6557 = vsel %vm696, %v6555, %v6556
        %v6558 = vrot.slane %v6498, 6
        %v6559 = vrot.slane %v6558, 4
        %v6560 = vrot.slane %v6499, 6
        %v6561 = vsel %vm696, %v6559, %v6560
        %v6562 = vrot.slane %v6560, 4
        %v6563 = vrot.slane %v6500, 6
        %v6564 = vsel %vm696, %v6562, %v6563
        %v6565 = vrot.slane %v6501, 6
        %v6566 = vrot.slane %v6565, 4
        %v6567 = vrot.slane %v6502, 6
        %v6568 = vsel %vm696, %v6566, %v6567
        %v6569 = vrot.slane %v6567, 4
        %v6570 = vrot.slane %v6503, 6
        %v6571 = vsel %vm696, %v6569, %v6570
        %v6572 = vrot.slane %v6504, 6
        %v6573 = vrot.slane %v6572, 4
        %v6574 = vrot.slane %v6505, 6
        %v6575 = vsel %vm696, %v6573, %v6574
        %v6576 = vrot.slane %v6574, 4
        %v6577 = vrot.slane %v6506, 6
        %v6578 = vsel %vm696, %v6576, %v6577
        %v6579 = vrot.slane %v6507, 6
        %v6580 = vrot.slane %v6579, 4
        %v6581 = vrot.slane %v6508, 6
        %v6582 = vsel %vm696, %v6580, %v6581
        %v6583 = vrot.slane %v6581, 4
        %v6584 = vrot.slane %v6509, 6
        %v6585 = vsel %vm696, %v6583, %v6584
        %v6586 = vrot.slane %v6510, 6
        %v6587 = vrot.slane %v6586, 4
        %v6588 = vrot.slane %v6511, 6
        %v6589 = vsel %vm696, %v6587, %v6588
        %v6590 = vrot.slane %v6588, 4
        %v6591 = vrot.slane %v6512, 6
        %v6592 = vsel %vm696, %v6590, %v6591
        %s6593 = scalar_lea.vmem %s4, 20
        %v6594 = vld [vmem:[%s6593] sm:$0xf]
        %v6595 = vunpack.c.l.b16 %v6540
        %v6596 = vunpack.c.l.b16 %v6543
        %v6597 = vunpack.c.l.b16 %v6547
        %v6598 = vunpack.c.l.b16 %v6550
        %v6599 = vunpack.c.l.b16 %v6554
        %v6600 = vunpack.c.l.b16 %v6557
        %v6601 = vunpack.c.l.b16 %v6561
        %v6602 = vunpack.c.l.b16 %v6564
        %v6603 = vunpack.c.l.b16 %v6568
        %v6604 = vunpack.c.l.b16 %v6571
        %v6605 = vunpack.c.l.b16 %v6575
        %v6606 = vunpack.c.l.b16 %v6578
        %v6607 = vunpack.c.l.b16 %v6582
        %v6608 = vunpack.c.l.b16 %v6585
        %v6609 = vunpack.c.l.b16 %v6589
        %v6610 = vunpack.c.l.b16 %v6592
        %v6611 = vpack.c.b16 %v6596, %v6595
        %v6612 = vpack.c.b16 %v6598, %v6597
        %v6613 = vpack.c.b16 %v6600, %v6599
        %v6614 = vpack.c.b16 %v6602, %v6601
        %v6615 = vpack.c.b16 %v6604, %v6603
        %v6616 = vpack.c.b16 %v6606, %v6605
        %v6617 = vpack.c.b16 %v6608, %v6607
        %v6618 = vpack.c.b16 %v6610, %v6609
        %v6620 = vsel %vm476, %v6611, 0
        %v6623 = vsel %vm476, %v6612, 0
        %v6626 = vsel %vm476, %v6613, 0
        %v6629 = vsel %vm476, %v6614, 0
        %v6632 = vsel %vm476, %v6615, 0
        %v6635 = vsel %vm476, %v6616, 0
        %v6638 = vsel %vm476, %v6617, 0
        %v6641 = vsel %vm476, %v6618, 0
        %v6644 = vsel %vm501, %v6594, 0
        %6646 = vmatprep.subr.bf16.mxu0 0
        %6647 = vmatpush1.bf16.msra.mxu0 %v6644
        %6648 = vmatprep.subr.bf16.mxu0 0
        %6649 = vmatpush1.bf16.msra.mxu0 0
        %6650 = vmatprep.subr.bf16.mxu0 0
        %6651 = vmatpush1.bf16.msra.mxu0 0
        %6652 = vmatprep.subr.bf16.mxu0 0
        %6653 = vmatpush1.bf16.msra.mxu0 0
        %6654 = vmatprep.subr.bf16.mxu0 0
        %6655 = vmatpush1.bf16.msra.mxu0 0
        %6656 = vmatprep.subr.bf16.mxu0 0
        %6657 = vmatpush1.bf16.msra.mxu0 0
        %6658 = vmatprep.subr.bf16.mxu0 0
        %6659 = vmatpush1.bf16.msra.mxu0 0
        %6660 = vmatprep.subr.bf16.mxu0 0
        %6661 = vmatpush1.bf16.msra.mxu0 0
        %6662 = vmatprep.subr.bf16.mxu0 0
        %6663 = vmatpush1.bf16.msra.mxu0 0
        %6664 = vmatprep.subr.bf16.mxu0 0
        %6665 = vmatpush1.bf16.msra.mxu0 0
        %6666 = vmatprep.subr.bf16.mxu0 0
        %6667 = vmatpush1.bf16.msra.mxu0 0
        %6668 = vmatprep.subr.bf16.mxu0 0
        %6669 = vmatpush1.bf16.msra.mxu0 0
        %6670 = vmatprep.subr.bf16.mxu0 0
        %6671 = vmatpush1.bf16.msra.mxu0 0
        %6672 = vmatprep.subr.bf16.mxu0 0
        %6673 = vmatpush1.bf16.msra.mxu0 0
        %6674 = vmatprep.subr.bf16.mxu0 0
        %6675 = vmatpush1.bf16.msra.mxu0 0
        %6676 = vmatprep.subr.bf16.mxu0 0
        %6677 = vmatpush1.bf16.msra.mxu0 0
        %6678 = vmatprep.mubr.bf16.mxu0 0
        %6679 = vmatmul.mubr.bf16.gmra.mrb[0].mxu0 %v6620
        %v6680 = vpop.f32.mrb[0].mxu0
        %v6681 = vadd.f32 0.0, %v6680
        %v6682 = vpop.f32.mrb[0].mxu0
        %v6683 = vpop.f32.mrb[0].mxu0
        %v6684 = vadd.f32 0.0, %v6683
        %v6685 = vpop.f32.mrb[0].mxu0
        %6686 = vmatprep.mubr.bf16.mxu0 0
        %6687 = vmatmul.mubr.bf16.gmra.mrb[0].mxu0 %v6623
        %v6688 = vpop.f32.mrb[0].mxu0
        %v6689 = vadd.f32 0.0, %v6688
        %v6690 = vpop.f32.mrb[0].mxu0
        %v6691 = vpop.f32.mrb[0].mxu0
        %v6692 = vadd.f32 0.0, %v6691
        %v6693 = vpop.f32.mrb[0].mxu0
        %6694 = vmatprep.mubr.bf16.mxu0 0
        %6695 = vmatmul.mubr.bf16.gmra.mrb[0].mxu0 %v6626
        %v6696 = vpop.f32.mrb[0].mxu0
        %v6697 = vadd.f32 0.0, %v6696
        %v6698 = vpop.f32.mrb[0].mxu0
        %v6699 = vpop.f32.mrb[0].mxu0
        %v6700 = vadd.f32 0.0, %v6699
        %v6701 = vpop.f32.mrb[0].mxu0
        %6702 = vmatprep.mubr.bf16.mxu0 0
        %6703 = vmatmul.mubr.bf16.gmra.mrb[0].mxu0 %v6629
        %v6704 = vpop.f32.mrb[0].mxu0
        %v6705 = vadd.f32 0.0, %v6704
        %v6706 = vpop.f32.mrb[0].mxu0
        %v6707 = vpop.f32.mrb[0].mxu0
        %v6708 = vadd.f32 0.0, %v6707
        %v6709 = vpop.f32.mrb[0].mxu0
        %6710 = vmatprep.mubr.bf16.mxu0 0
        %6711 = vmatmul.mubr.bf16.gmra.mrb[0].mxu0 %v6632
        %v6712 = vpop.f32.mrb[0].mxu0
        %v6713 = vadd.f32 0.0, %v6712
        %v6714 = vpop.f32.mrb[0].mxu0
        %v6715 = vpop.f32.mrb[0].mxu0
        %v6716 = vadd.f32 0.0, %v6715
        %v6717 = vpop.f32.mrb[0].mxu0
        %6718 = vmatprep.mubr.bf16.mxu0 0
        %6719 = vmatmul.mubr.bf16.gmra.mrb[0].mxu0 %v6635
        %v6720 = vpop.f32.mrb[0].mxu0
        %v6721 = vadd.f32 0.0, %v6720
        %v6722 = vpop.f32.mrb[0].mxu0
        %v6723 = vpop.f32.mrb[0].mxu0
        %v6724 = vadd.f32 0.0, %v6723
        %v6725 = vpop.f32.mrb[0].mxu0
        %6726 = vmatprep.mubr.bf16.mxu0 0
        %6727 = vmatmul.mubr.bf16.gmra.mrb[0].mxu0 %v6638
        %v6728 = vpop.f32.mrb[0].mxu0
        %v6729 = vadd.f32 0.0, %v6728
        %v6730 = vpop.f32.mrb[0].mxu0
        %v6731 = vpop.f32.mrb[0].mxu0
        %v6732 = vadd.f32 0.0, %v6731
        %v6733 = vpop.f32.mrb[0].mxu0
        %6734 = vmatprep.mubr.bf16.mxu0 0
        %6735 = vmatmul.mubr.bf16.gmra.mrb[0].mxu0 %v6641
        %v6736 = vpop.f32.mrb[0].mxu0
        %v6737 = vadd.f32 0.0, %v6736
        %v6738 = vpop.f32.mrb[0].mxu0
        %v6739 = vpop.f32.mrb[0].mxu0
        %v6740 = vadd.f32 0.0, %v6739
        %v6741 = vpop.f32.mrb[0].mxu0
        %6742 = vdwg.mxu0
        %v6743 = vadd.f32 %v6473, %v6681
        %v6744 = vadd.f32 %v6474, %v6684
        %v6745 = vadd.f32 %v6475, %v6689
        %v6746 = vadd.f32 %v6476, %v6692
        %v6747 = vadd.f32 %v6477, %v6697
        %v6748 = vadd.f32 %v6478, %v6700
        %v6749 = vadd.f32 %v6479, %v6705
        %v6750 = vadd.f32 %v6480, %v6708
        %v6751 = vadd.f32 %v6481, %v6713
        %v6752 = vadd.f32 %v6482, %v6716
        %v6753 = vadd.f32 %v6483, %v6721
        %v6754 = vadd.f32 %v6484, %v6724
        %v6755 = vadd.f32 %v6485, %v6729
        %v6756 = vadd.f32 %v6486, %v6732
        %v6757 = vadd.f32 %v6487, %v6737
        %v6758 = vadd.f32 %v6488, %v6740
        %s6759 = sadd.s32 %s334, 36
        %s6760 = smul.u32 %s6759, 7
        %s6761 = smul.addr %s6760, 4
        %s6762 = scalar_lea.vmem %s328, %s6761
        %v6763 = vld [vmem:[%s6762] sm:$0xf]
        %v6764 = vld [vmem:[%s6762 + $0x4] sm:$0xf]
        %v6765 = vld [vmem:[%s6762 + $0x1c] sm:$0xf]
        %v6766 = vld [vmem:[%s6762 + $0x20] sm:$0xf]
        %v6767 = vld [vmem:[%s6762 + $0x38] sm:$0xf]
        %v6768 = vld [vmem:[%s6762 + $0x3c] sm:$0xf]
        %v6769 = vld [vmem:[%s6762 + $0x54] sm:$0xf]
        %v6770 = vld [vmem:[%s6762 + $0x58] sm:$0xf]
        %v6771 = vld [vmem:[%s6762 + $0x70] sm:$0xf]
        %v6772 = vld [vmem:[%s6762 + $0x74] sm:$0xf]
        %v6773 = vld [vmem:[%s6762 + $0x8c] sm:$0xf]
        %v6774 = vld [vmem:[%s6762 + $0x90] sm:$0xf]
        %v6775 = vld [vmem:[%s6762 + $0xa8] sm:$0xf]
        %v6776 = vld [vmem:[%s6762 + $0xac] sm:$0xf]
        %v6777 = vld [vmem:[%s6762 + $0xc4] sm:$0xf]
        %v6778 = vld [vmem:[%s6762 + $0xc8] sm:$0xf]
        %s6779 = scalar_lea.vmem %s4, 24
        %v6780 = vld [vmem:[%s6779] sm:$0xf]
        %v6797 = vunpack.c.l.b16 %v6763
        %v6798 = vunpack.c.l.b16 %v6764
        %v6799 = vunpack.c.l.b16 %v6765
        %v6800 = vunpack.c.l.b16 %v6766
        %v6801 = vunpack.c.l.b16 %v6767
        %v6802 = vunpack.c.l.b16 %v6768
        %v6803 = vunpack.c.l.b16 %v6769
        %v6804 = vunpack.c.l.b16 %v6770
        %v6805 = vunpack.c.l.b16 %v6771
        %v6806 = vunpack.c.l.b16 %v6772
        %v6807 = vunpack.c.l.b16 %v6773
        %v6808 = vunpack.c.l.b16 %v6774
        %v6809 = vunpack.c.l.b16 %v6775
        %v6810 = vunpack.c.l.b16 %v6776
        %v6811 = vunpack.c.l.b16 %v6777
        %v6812 = vunpack.c.l.b16 %v6778
        %v6813 = vpack.c.b16 %v6798, %v6797
        %v6814 = vpack.c.b16 %v6800, %v6799
        %v6815 = vpack.c.b16 %v6802, %v6801
        %v6816 = vpack.c.b16 %v6804, %v6803
        %v6817 = vpack.c.b16 %v6806, %v6805
        %v6818 = vpack.c.b16 %v6808, %v6807
        %v6819 = vpack.c.b16 %v6810, %v6809
        %v6820 = vpack.c.b16 %v6812, %v6811
        %v6822 = vsel %vm476, %v6813, 0
        %v6825 = vsel %vm476, %v6814, 0
        %v6828 = vsel %vm476, %v6815, 0
        %v6831 = vsel %vm476, %v6816, 0
        %v6834 = vsel %vm476, %v6817, 0
        %v6837 = vsel %vm476, %v6818, 0
        %v6840 = vsel %vm476, %v6819, 0
        %v6843 = vsel %vm476, %v6820, 0
        %v6846 = vsel %vm501, %v6780, 0
        %6848 = vmatprep.subr.bf16.mxu0 0
        %6849 = vmatpush1.bf16.msra.mxu0 %v6846
        %6850 = vmatprep.subr.bf16.mxu0 0
        %6851 = vmatpush1.bf16.msra.mxu0 0
        %6852 = vmatprep.subr.bf16.mxu0 0
        %6853 = vmatpush1.bf16.msra.mxu0 0
        %6854 = vmatprep.subr.bf16.mxu0 0
        %6855 = vmatpush1.bf16.msra.mxu0 0
        %6856 = vmatprep.subr.bf16.mxu0 0
        %6857 = vmatpush1.bf16.msra.mxu0 0
        %6858 = vmatprep.subr.bf16.mxu0 0
        %6859 = vmatpush1.bf16.msra.mxu0 0
        %6860 = vmatprep.subr.bf16.mxu0 0
        %6861 = vmatpush1.bf16.msra.mxu0 0
        %6862 = vmatprep.subr.bf16.mxu0 0
        %6863 = vmatpush1.bf16.msra.mxu0 0
        %6864 = vmatprep.subr.bf16.mxu0 0
        %6865 = vmatpush1.bf16.msra.mxu0 0
        %6866 = vmatprep.subr.bf16.mxu0 0
        %6867 = vmatpush1.bf16.msra.mxu0 0
        %6868 = vmatprep.subr.bf16.mxu0 0
        %6869 = vmatpush1.bf16.msra.mxu0 0
        %6870 = vmatprep.subr.bf16.mxu0 0
        %6871 = vmatpush1.bf16.msra.mxu0 0
        %6872 = vmatprep.subr.bf16.mxu0 0
        %6873 = vmatpush1.bf16.msra.mxu0 0
        %6874 = vmatprep.subr.bf16.mxu0 0
        %6875 = vmatpush1.bf16.msra.mxu0 0
        %6876 = vmatprep.subr.bf16.mxu0 0
        %6877 = vmatpush1.bf16.msra.mxu0 0
        %6878 = vmatprep.subr.bf16.mxu0 0
        %6879 = vmatpush1.bf16.msra.mxu0 0
        %6880 = vmatprep.mubr.bf16.mxu0 0
        %6881 = vmatmul.mubr.bf16.gmra.mrb[0].mxu0 %v6822
        %v6882 = vpop.f32.mrb[0].mxu0
        %v6883 = vadd.f32 0.0, %v6882
        %v6884 = vpop.f32.mrb[0].mxu0
        %v6885 = vpop.f32.mrb[0].mxu0
        %v6886 = vadd.f32 0.0, %v6885
        %v6887 = vpop.f32.mrb[0].mxu0
        %6888 = vmatprep.mubr.bf16.mxu0 0
        %6889 = vmatmul.mubr.bf16.gmra.mrb[0].mxu0 %v6825
        %v6890 = vpop.f32.mrb[0].mxu0
        %v6891 = vadd.f32 0.0, %v6890
        %v6892 = vpop.f32.mrb[0].mxu0
        %v6893 = vpop.f32.mrb[0].mxu0
        %v6894 = vadd.f32 0.0, %v6893
        %v6895 = vpop.f32.mrb[0].mxu0
        %6896 = vmatprep.mubr.bf16.mxu0 0
        %6897 = vmatmul.mubr.bf16.gmra.mrb[0].mxu0 %v6828
        %v6898 = vpop.f32.mrb[0].mxu0
        %v6899 = vadd.f32 0.0, %v6898
        %v6900 = vpop.f32.mrb[0].mxu0
        %v6901 = vpop.f32.mrb[0].mxu0
        %v6902 = vadd.f32 0.0, %v6901
        %v6903 = vpop.f32.mrb[0].mxu0
        %6904 = vmatprep.mubr.bf16.mxu0 0
        %6905 = vmatmul.mubr.bf16.gmra.mrb[0].mxu0 %v6831
        %v6906 = vpop.f32.mrb[0].mxu0
        %v6907 = vadd.f32 0.0, %v6906
        %v6908 = vpop.f32.mrb[0].mxu0
        %v6909 = vpop.f32.mrb[0].mxu0
        %v6910 = vadd.f32 0.0, %v6909
        %v6911 = vpop.f32.mrb[0].mxu0
        %6912 = vmatprep.mubr.bf16.mxu0 0
        %6913 = vmatmul.mubr.bf16.gmra.mrb[0].mxu0 %v6834
        %v6914 = vpop.f32.mrb[0].mxu0
        %v6915 = vadd.f32 0.0, %v6914
        %v6916 = vpop.f32.mrb[0].mxu0
        %v6917 = vpop.f32.mrb[0].mxu0
        %v6918 = vadd.f32 0.0, %v6917
        %v6919 = vpop.f32.mrb[0].mxu0
        %6920 = vmatprep.mubr.bf16.mxu0 0
        %6921 = vmatmul.mubr.bf16.gmra.mrb[0].mxu0 %v6837
        %v6922 = vpop.f32.mrb[0].mxu0
        %v6923 = vadd.f32 0.0, %v6922
        %v6924 = vpop.f32.mrb[0].mxu0
        %v6925 = vpop.f32.mrb[0].mxu0
        %v6926 = vadd.f32 0.0, %v6925
        %v6927 = vpop.f32.mrb[0].mxu0
        %6928 = vmatprep.mubr.bf16.mxu0 0
        %6929 = vmatmul.mubr.bf16.gmra.mrb[0].mxu0 %v6840
        %v6930 = vpop.f32.mrb[0].mxu0
        %v6931 = vadd.f32 0.0, %v6930
        %v6932 = vpop.f32.mrb[0].mxu0
        %v6933 = vpop.f32.mrb[0].mxu0
        %v6934 = vadd.f32 0.0, %v6933
        %v6935 = vpop.f32.mrb[0].mxu0
        %6936 = vmatprep.mubr.bf16.mxu0 0
        %6937 = vmatmul.mubr.bf16.gmra.mrb[0].mxu0 %v6843
        %v6938 = vpop.f32.mrb[0].mxu0
        %v6939 = vadd.f32 0.0, %v6938
        %v6940 = vpop.f32.mrb[0].mxu0
        %v6941 = vpop.f32.mrb[0].mxu0
        %v6942 = vadd.f32 0.0, %v6941
        %v6943 = vpop.f32.mrb[0].mxu0
        %6944 = vdwg.mxu0
        %v6945 = vadd.f32 %v6743, %v6883
        %v6946 = vadd.f32 %v6744, %v6886
        %v6947 = vadd.f32 %v6745, %v6891
        %v6948 = vadd.f32 %v6746, %v6894
        %v6949 = vadd.f32 %v6747, %v6899
        %v6950 = vadd.f32 %v6748, %v6902
        %v6951 = vadd.f32 %v6749, %v6907
        %v6952 = vadd.f32 %v6750, %v6910
        %v6953 = vadd.f32 %v6751, %v6915
        %v6954 = vadd.f32 %v6752, %v6918
        %v6955 = vadd.f32 %v6753, %v6923
        %v6956 = vadd.f32 %v6754, %v6926
        %v6957 = vadd.f32 %v6755, %v6931
        %v6958 = vadd.f32 %v6756, %v6934
        %v6959 = vadd.f32 %v6757, %v6939
        %v6960 = vadd.f32 %v6758, %v6942
        %v6961 = vld [vmem:[%s6762 + $0x8] sm:$0xe]
        %v6962 = vld [vmem:[%s6762 + $0xc] sm:$0xf]
        %v6963 = vld [vmem:[%s6762 + $0x10] sm:$0x1]
        %v6964 = vld [vmem:[%s6762 + $0x24] sm:$0xe]
        %v6965 = vld [vmem:[%s6762 + $0x28] sm:$0xf]
        %v6966 = vld [vmem:[%s6762 + $0x2c] sm:$0x1]
        %v6967 = vld [vmem:[%s6762 + $0x40] sm:$0xe]
        %v6968 = vld [vmem:[%s6762 + $0x44] sm:$0xf]
        %v6969 = vld [vmem:[%s6762 + $0x48] sm:$0x1]
        %v6970 = vld [vmem:[%s6762 + $0x5c] sm:$0xe]
        %v6971 = vld [vmem:[%s6762 + $0x60] sm:$0xf]
        %v6972 = vld [vmem:[%s6762 + $0x64] sm:$0x1]
        %v6973 = vld [vmem:[%s6762 + $0x78] sm:$0xe]
        %v6974 = vld [vmem:[%s6762 + $0x7c] sm:$0xf]
        %v6975 = vld [vmem:[%s6762 + $0x80] sm:$0x1]
        %v6976 = vld [vmem:[%s6762 + $0x94] sm:$0xe]
        %v6977 = vld [vmem:[%s6762 + $0x98] sm:$0xf]
        %v6978 = vld [vmem:[%s6762 + $0x9c] sm:$0x1]
        %v6979 = vld [vmem:[%s6762 + $0xb0] sm:$0xe]
        %v6980 = vld [vmem:[%s6762 + $0xb4] sm:$0xf]
        %v6981 = vld [vmem:[%s6762 + $0xb8] sm:$0x1]
        %v6982 = vld [vmem:[%s6762 + $0xcc] sm:$0xe]
        %v6983 = vld [vmem:[%s6762 + $0xd0] sm:$0xf]
        %v6984 = vld [vmem:[%s6762 + $0xd4] sm:$0x1]
        %v7009 = vrot.slane %v6961, 5
        %v7010 = vrot.slane %v7009, 4
        %v7011 = vrot.slane %v6962, 5
        %v7012 = vsel %vm389, %v7010, %v7011
        %v7013 = vrot.slane %v7011, 4
        %v7014 = vrot.slane %v6963, 5
        %v7015 = vsel %vm389, %v7013, %v7014
        %v7016 = vrot.slane %v6964, 5
        %v7017 = vrot.slane %v7016, 4
        %v7018 = vrot.slane %v6965, 5
        %v7019 = vsel %vm389, %v7017, %v7018
        %v7020 = vrot.slane %v7018, 4
        %v7021 = vrot.slane %v6966, 5
        %v7022 = vsel %vm389, %v7020, %v7021
        %v7023 = vrot.slane %v6967, 5
        %v7024 = vrot.slane %v7023, 4
        %v7025 = vrot.slane %v6968, 5
        %v7026 = vsel %vm389, %v7024, %v7025
        %v7027 = vrot.slane %v7025, 4
        %v7028 = vrot.slane %v6969, 5
        %v7029 = vsel %vm389, %v7027, %v7028
        %v7030 = vrot.slane %v6970, 5
        %v7031 = vrot.slane %v7030, 4
        %v7032 = vrot.slane %v6971, 5
        %v7033 = vsel %vm389, %v7031, %v7032
        %v7034 = vrot.slane %v7032, 4
        %v7035 = vrot.slane %v6972, 5
        %v7036 = vsel %vm389, %v7034, %v7035
        %v7037 = vrot.slane %v6973, 5
        %v7038 = vrot.slane %v7037, 4
        %v7039 = vrot.slane %v6974, 5
        %v7040 = vsel %vm389, %v7038, %v7039
        %v7041 = vrot.slane %v7039, 4
        %v7042 = vrot.slane %v6975, 5
        %v7043 = vsel %vm389, %v7041, %v7042
        %v7044 = vrot.slane %v6976, 5
        %v7045 = vrot.slane %v7044, 4
        %v7046 = vrot.slane %v6977, 5
        %v7047 = vsel %vm389, %v7045, %v7046
        %v7048 = vrot.slane %v7046, 4
        %v7049 = vrot.slane %v6978, 5
        %v7050 = vsel %vm389, %v7048, %v7049
        %v7051 = vrot.slane %v6979, 5
        %v7052 = vrot.slane %v7051, 4
        %v7053 = vrot.slane %v6980, 5
        %v7054 = vsel %vm389, %v7052, %v7053
        %v7055 = vrot.slane %v7053, 4
        %v7056 = vrot.slane %v6981, 5
        %v7057 = vsel %vm389, %v7055, %v7056
        %v7058 = vrot.slane %v6982, 5
        %v7059 = vrot.slane %v7058, 4
        %v7060 = vrot.slane %v6983, 5
        %v7061 = vsel %vm389, %v7059, %v7060
        %v7062 = vrot.slane %v7060, 4
        %v7063 = vrot.slane %v6984, 5
        %v7064 = vsel %vm389, %v7062, %v7063
        %s7065 = scalar_lea.vmem %s4, 28
        %v7066 = vld [vmem:[%s7065] sm:$0xf]
        %v7067 = vunpack.c.l.b16 %v7012
        %v7068 = vunpack.c.l.b16 %v7015
        %v7069 = vunpack.c.l.b16 %v7019
        %v7070 = vunpack.c.l.b16 %v7022
        %v7071 = vunpack.c.l.b16 %v7026
        %v7072 = vunpack.c.l.b16 %v7029
        %v7073 = vunpack.c.l.b16 %v7033
        %v7074 = vunpack.c.l.b16 %v7036
        %v7075 = vunpack.c.l.b16 %v7040
        %v7076 = vunpack.c.l.b16 %v7043
        %v7077 = vunpack.c.l.b16 %v7047
        %v7078 = vunpack.c.l.b16 %v7050
        %v7079 = vunpack.c.l.b16 %v7054
        %v7080 = vunpack.c.l.b16 %v7057
        %v7081 = vunpack.c.l.b16 %v7061
        %v7082 = vunpack.c.l.b16 %v7064
        %v7083 = vpack.c.b16 %v7068, %v7067
        %v7084 = vpack.c.b16 %v7070, %v7069
        %v7085 = vpack.c.b16 %v7072, %v7071
        %v7086 = vpack.c.b16 %v7074, %v7073
        %v7087 = vpack.c.b16 %v7076, %v7075
        %v7088 = vpack.c.b16 %v7078, %v7077
        %v7089 = vpack.c.b16 %v7080, %v7079
        %v7090 = vpack.c.b16 %v7082, %v7081
        %v7092 = vsel %vm476, %v7083, 0
        %v7095 = vsel %vm476, %v7084, 0
        %v7098 = vsel %vm476, %v7085, 0
        %v7101 = vsel %vm476, %v7086, 0
        %v7104 = vsel %vm476, %v7087, 0
        %v7107 = vsel %vm476, %v7088, 0
        %v7110 = vsel %vm476, %v7089, 0
        %v7113 = vsel %vm476, %v7090, 0
        %v7116 = vsel %vm501, %v7066, 0
        %7118 = vmatprep.subr.bf16.mxu0 0
        %7119 = vmatpush1.bf16.msra.mxu0 %v7116
        %7120 = vmatprep.subr.bf16.mxu0 0
        %7121 = vmatpush1.bf16.msra.mxu0 0
        %7122 = vmatprep.subr.bf16.mxu0 0
        %7123 = vmatpush1.bf16.msra.mxu0 0
        %7124 = vmatprep.subr.bf16.mxu0 0
        %7125 = vmatpush1.bf16.msra.mxu0 0
        %7126 = vmatprep.subr.bf16.mxu0 0
        %7127 = vmatpush1.bf16.msra.mxu0 0
        %7128 = vmatprep.subr.bf16.mxu0 0
        %7129 = vmatpush1.bf16.msra.mxu0 0
        %7130 = vmatprep.subr.bf16.mxu0 0
        %7131 = vmatpush1.bf16.msra.mxu0 0
        %7132 = vmatprep.subr.bf16.mxu0 0
        %7133 = vmatpush1.bf16.msra.mxu0 0
        %7134 = vmatprep.subr.bf16.mxu0 0
        %7135 = vmatpush1.bf16.msra.mxu0 0
        %7136 = vmatprep.subr.bf16.mxu0 0
        %7137 = vmatpush1.bf16.msra.mxu0 0
        %7138 = vmatprep.subr.bf16.mxu0 0
        %7139 = vmatpush1.bf16.msra.mxu0 0
        %7140 = vmatprep.subr.bf16.mxu0 0
        %7141 = vmatpush1.bf16.msra.mxu0 0
        %7142 = vmatprep.subr.bf16.mxu0 0
        %7143 = vmatpush1.bf16.msra.mxu0 0
        %7144 = vmatprep.subr.bf16.mxu0 0
        %7145 = vmatpush1.bf16.msra.mxu0 0
        %7146 = vmatprep.subr.bf16.mxu0 0
        %7147 = vmatpush1.bf16.msra.mxu0 0
        %7148 = vmatprep.subr.bf16.mxu0 0
        %7149 = vmatpush1.bf16.msra.mxu0 0
        %7150 = vmatprep.mubr.bf16.mxu0 0
        %7151 = vmatmul.mubr.bf16.gmra.mrb[0].mxu0 %v7092
        %v7152 = vpop.f32.mrb[0].mxu0
        %v7153 = vadd.f32 0.0, %v7152
        %v7154 = vpop.f32.mrb[0].mxu0
        %v7155 = vpop.f32.mrb[0].mxu0
        %v7156 = vadd.f32 0.0, %v7155
        %v7157 = vpop.f32.mrb[0].mxu0
        %7158 = vmatprep.mubr.bf16.mxu0 0
        %7159 = vmatmul.mubr.bf16.gmra.mrb[0].mxu0 %v7095
        %v7160 = vpop.f32.mrb[0].mxu0
        %v7161 = vadd.f32 0.0, %v7160
        %v7162 = vpop.f32.mrb[0].mxu0
        %v7163 = vpop.f32.mrb[0].mxu0
        %v7164 = vadd.f32 0.0, %v7163
        %v7165 = vpop.f32.mrb[0].mxu0
        %7166 = vmatprep.mubr.bf16.mxu0 0
        %7167 = vmatmul.mubr.bf16.gmra.mrb[0].mxu0 %v7098
        %v7168 = vpop.f32.mrb[0].mxu0
        %v7169 = vadd.f32 0.0, %v7168
        %v7170 = vpop.f32.mrb[0].mxu0
        %v7171 = vpop.f32.mrb[0].mxu0
        %v7172 = vadd.f32 0.0, %v7171
        %v7173 = vpop.f32.mrb[0].mxu0
        %7174 = vmatprep.mubr.bf16.mxu0 0
        %7175 = vmatmul.mubr.bf16.gmra.mrb[0].mxu0 %v7101
        %v7176 = vpop.f32.mrb[0].mxu0
        %v7177 = vadd.f32 0.0, %v7176
        %v7178 = vpop.f32.mrb[0].mxu0
        %v7179 = vpop.f32.mrb[0].mxu0
        %v7180 = vadd.f32 0.0, %v7179
        %v7181 = vpop.f32.mrb[0].mxu0
        %7182 = vmatprep.mubr.bf16.mxu0 0
        %7183 = vmatmul.mubr.bf16.gmra.mrb[0].mxu0 %v7104
        %v7184 = vpop.f32.mrb[0].mxu0
        %v7185 = vadd.f32 0.0, %v7184
        %v7186 = vpop.f32.mrb[0].mxu0
        %v7187 = vpop.f32.mrb[0].mxu0
        %v7188 = vadd.f32 0.0, %v7187
        %v7189 = vpop.f32.mrb[0].mxu0
        %7190 = vmatprep.mubr.bf16.mxu0 0
        %7191 = vmatmul.mubr.bf16.gmra.mrb[0].mxu0 %v7107
        %v7192 = vpop.f32.mrb[0].mxu0
        %v7193 = vadd.f32 0.0, %v7192
        %v7194 = vpop.f32.mrb[0].mxu0
        %v7195 = vpop.f32.mrb[0].mxu0
        %v7196 = vadd.f32 0.0, %v7195
        %v7197 = vpop.f32.mrb[0].mxu0
        %7198 = vmatprep.mubr.bf16.mxu0 0
        %7199 = vmatmul.mubr.bf16.gmra.mrb[0].mxu0 %v7110
        %v7200 = vpop.f32.mrb[0].mxu0
        %v7201 = vadd.f32 0.0, %v7200
        %v7202 = vpop.f32.mrb[0].mxu0
        %v7203 = vpop.f32.mrb[0].mxu0
        %v7204 = vadd.f32 0.0, %v7203
        %v7205 = vpop.f32.mrb[0].mxu0
        %7206 = vmatprep.mubr.bf16.mxu0 0
        %7207 = vmatmul.mubr.bf16.gmra.mrb[0].mxu0 %v7113
        %v7208 = vpop.f32.mrb[0].mxu0
        %v7209 = vadd.f32 0.0, %v7208
        %v7210 = vpop.f32.mrb[0].mxu0
        %v7211 = vpop.f32.mrb[0].mxu0
        %v7212 = vadd.f32 0.0, %v7211
        %v7213 = vpop.f32.mrb[0].mxu0
        %7214 = vdwg.mxu0
        %v7215 = vadd.f32 %v6945, %v7153
        %v7216 = vadd.f32 %v6946, %v7156
        %v7217 = vadd.f32 %v6947, %v7161
        %v7218 = vadd.f32 %v6948, %v7164
        %v7219 = vadd.f32 %v6949, %v7169
        %v7220 = vadd.f32 %v6950, %v7172
        %v7221 = vadd.f32 %v6951, %v7177
        %v7222 = vadd.f32 %v6952, %v7180
        %v7223 = vadd.f32 %v6953, %v7185
        %v7224 = vadd.f32 %v6954, %v7188
        %v7225 = vadd.f32 %v6955, %v7193
        %v7226 = vadd.f32 %v6956, %v7196
        %v7227 = vadd.f32 %v6957, %v7201
        %v7228 = vadd.f32 %v6958, %v7204
        %v7229 = vadd.f32 %v6959, %v7209
        %v7230 = vadd.f32 %v6960, %v7212
        %v7231 = vld [vmem:[%s6762 + $0x10] sm:$0xc]
        %v7232 = vld [vmem:[%s6762 + $0x14] sm:$0xf]
        %v7233 = vld [vmem:[%s6762 + $0x18] sm:$0x3]
        %v7234 = vld [vmem:[%s6762 + $0x2c] sm:$0xc]
        %v7235 = vld [vmem:[%s6762 + $0x30] sm:$0xf]
        %v7236 = vld [vmem:[%s6762 + $0x34] sm:$0x3]
        %v7237 = vld [vmem:[%s6762 + $0x48] sm:$0xc]
        %v7238 = vld [vmem:[%s6762 + $0x4c] sm:$0xf]
        %v7239 = vld [vmem:[%s6762 + $0x50] sm:$0x3]
        %v7240 = vld [vmem:[%s6762 + $0x64] sm:$0xc]
        %v7241 = vld [vmem:[%s6762 + $0x68] sm:$0xf]
        %v7242 = vld [vmem:[%s6762 + $0x6c] sm:$0x3]
        %v7243 = vld [vmem:[%s6762 + $0x80] sm:$0xc]
        %v7244 = vld [vmem:[%s6762 + $0x84] sm:$0xf]
        %v7245 = vld [vmem:[%s6762 + $0x88] sm:$0x3]
        %v7246 = vld [vmem:[%s6762 + $0x9c] sm:$0xc]
        %v7247 = vld [vmem:[%s6762 + $0xa0] sm:$0xf]
        %v7248 = vld [vmem:[%s6762 + $0xa4] sm:$0x3]
        %v7249 = vld [vmem:[%s6762 + $0xb8] sm:$0xc]
        %v7250 = vld [vmem:[%s6762 + $0xbc] sm:$0xf]
        %v7251 = vld [vmem:[%s6762 + $0xc0] sm:$0x3]
        %v7252 = vld [vmem:[%s6762 + $0xd4] sm:$0xc]
        %v7253 = vld [vmem:[%s6762 + $0xd8] sm:$0xf]
        %v7254 = vld [vmem:[%s6762 + $0xdc] sm:$0x3]
        %v7279 = vrot.slane %v7231, 6
        %v7280 = vrot.slane %v7279, 4
        %v7281 = vrot.slane %v7232, 6
        %v7282 = vsel %vm696, %v7280, %v7281
        %v7283 = vrot.slane %v7281, 4
        %v7284 = vrot.slane %v7233, 6
        %v7285 = vsel %vm696, %v7283, %v7284
        %v7286 = vrot.slane %v7234, 6
        %v7287 = vrot.slane %v7286, 4
        %v7288 = vrot.slane %v7235, 6
        %v7289 = vsel %vm696, %v7287, %v7288
        %v7290 = vrot.slane %v7288, 4
        %v7291 = vrot.slane %v7236, 6
        %v7292 = vsel %vm696, %v7290, %v7291
        %v7293 = vrot.slane %v7237, 6
        %v7294 = vrot.slane %v7293, 4
        %v7295 = vrot.slane %v7238, 6
        %v7296 = vsel %vm696, %v7294, %v7295
        %v7297 = vrot.slane %v7295, 4
        %v7298 = vrot.slane %v7239, 6
        %v7299 = vsel %vm696, %v7297, %v7298
        %v7300 = vrot.slane %v7240, 6
        %v7301 = vrot.slane %v7300, 4
        %v7302 = vrot.slane %v7241, 6
        %v7303 = vsel %vm696, %v7301, %v7302
        %v7304 = vrot.slane %v7302, 4
        %v7305 = vrot.slane %v7242, 6
        %v7306 = vsel %vm696, %v7304, %v7305
        %v7307 = vrot.slane %v7243, 6
        %v7308 = vrot.slane %v7307, 4
        %v7309 = vrot.slane %v7244, 6
        %v7310 = vsel %vm696, %v7308, %v7309
        %v7311 = vrot.slane %v7309, 4
        %v7312 = vrot.slane %v7245, 6
        %v7313 = vsel %vm696, %v7311, %v7312
        %v7314 = vrot.slane %v7246, 6
        %v7315 = vrot.slane %v7314, 4
        %v7316 = vrot.slane %v7247, 6
        %v7317 = vsel %vm696, %v7315, %v7316
        %v7318 = vrot.slane %v7316, 4
        %v7319 = vrot.slane %v7248, 6
        %v7320 = vsel %vm696, %v7318, %v7319
        %v7321 = vrot.slane %v7249, 6
        %v7322 = vrot.slane %v7321, 4
        %v7323 = vrot.slane %v7250, 6
        %v7324 = vsel %vm696, %v7322, %v7323
        %v7325 = vrot.slane %v7323, 4
        %v7326 = vrot.slane %v7251, 6
        %v7327 = vsel %vm696, %v7325, %v7326
        %v7328 = vrot.slane %v7252, 6
        %v7329 = vrot.slane %v7328, 4
        %v7330 = vrot.slane %v7253, 6
        %v7331 = vsel %vm696, %v7329, %v7330
        %v7332 = vrot.slane %v7330, 4
        %v7333 = vrot.slane %v7254, 6
        %v7334 = vsel %vm696, %v7332, %v7333
        %s7335 = scalar_lea.vmem %s4, 32
        %v7336 = vld [vmem:[%s7335] sm:$0xf]
        %v7337 = vunpack.c.l.b16 %v7282
        %v7338 = vunpack.c.l.b16 %v7285
        %v7339 = vunpack.c.l.b16 %v7289
        %v7340 = vunpack.c.l.b16 %v7292
        %v7341 = vunpack.c.l.b16 %v7296
        %v7342 = vunpack.c.l.b16 %v7299
        %v7343 = vunpack.c.l.b16 %v7303
        %v7344 = vunpack.c.l.b16 %v7306
        %v7345 = vunpack.c.l.b16 %v7310
        %v7346 = vunpack.c.l.b16 %v7313
        %v7347 = vunpack.c.l.b16 %v7317
        %v7348 = vunpack.c.l.b16 %v7320
        %v7349 = vunpack.c.l.b16 %v7324
        %v7350 = vunpack.c.l.b16 %v7327
        %v7351 = vunpack.c.l.b16 %v7331
        %v7352 = vunpack.c.l.b16 %v7334
        %v7353 = vpack.c.b16 %v7338, %v7337
        %v7354 = vpack.c.b16 %v7340, %v7339
        %v7355 = vpack.c.b16 %v7342, %v7341
        %v7356 = vpack.c.b16 %v7344, %v7343
        %v7357 = vpack.c.b16 %v7346, %v7345
        %v7358 = vpack.c.b16 %v7348, %v7347
        %v7359 = vpack.c.b16 %v7350, %v7349
        %v7360 = vpack.c.b16 %v7352, %v7351
        %v7362 = vsel %vm476, %v7353, 0
        %v7365 = vsel %vm476, %v7354, 0
        %v7368 = vsel %vm476, %v7355, 0
        %v7371 = vsel %vm476, %v7356, 0
        %v7374 = vsel %vm476, %v7357, 0
        %v7377 = vsel %vm476, %v7358, 0
        %v7380 = vsel %vm476, %v7359, 0
        %v7383 = vsel %vm476, %v7360, 0
        %v7386 = vsel %vm501, %v7336, 0
        %7388 = vmatprep.subr.bf16.mxu0 0
        %7389 = vmatpush1.bf16.msra.mxu0 %v7386
        %7390 = vmatprep.subr.bf16.mxu0 0
        %7391 = vmatpush1.bf16.msra.mxu0 0
        %7392 = vmatprep.subr.bf16.mxu0 0
        %7393 = vmatpush1.bf16.msra.mxu0 0
        %7394 = vmatprep.subr.bf16.mxu0 0
        %7395 = vmatpush1.bf16.msra.mxu0 0
        %7396 = vmatprep.subr.bf16.mxu0 0
        %7397 = vmatpush1.bf16.msra.mxu0 0
        %7398 = vmatprep.subr.bf16.mxu0 0
        %7399 = vmatpush1.bf16.msra.mxu0 0
        %7400 = vmatprep.subr.bf16.mxu0 0
        %7401 = vmatpush1.bf16.msra.mxu0 0
        %7402 = vmatprep.subr.bf16.mxu0 0
        %7403 = vmatpush1.bf16.msra.mxu0 0
        %7404 = vmatprep.subr.bf16.mxu0 0
        %7405 = vmatpush1.bf16.msra.mxu0 0
        %7406 = vmatprep.subr.bf16.mxu0 0
        %7407 = vmatpush1.bf16.msra.mxu0 0
        %7408 = vmatprep.subr.bf16.mxu0 0
        %7409 = vmatpush1.bf16.msra.mxu0 0
        %7410 = vmatprep.subr.bf16.mxu0 0
        %7411 = vmatpush1.bf16.msra.mxu0 0
        %7412 = vmatprep.subr.bf16.mxu0 0
        %7413 = vmatpush1.bf16.msra.mxu0 0
        %7414 = vmatprep.subr.bf16.mxu0 0
        %7415 = vmatpush1.bf16.msra.mxu0 0
        %7416 = vmatprep.subr.bf16.mxu0 0
        %7417 = vmatpush1.bf16.msra.mxu0 0
        %7418 = vmatprep.subr.bf16.mxu0 0
        %7419 = vmatpush1.bf16.msra.mxu0 0
        %7420 = vmatprep.mubr.bf16.mxu0 0
        %7421 = vmatmul.mubr.bf16.gmra.mrb[0].mxu0 %v7362
        %v7422 = vpop.f32.mrb[0].mxu0
        %v7423 = vadd.f32 0.0, %v7422
        %v7424 = vpop.f32.mrb[0].mxu0
        %v7425 = vpop.f32.mrb[0].mxu0
        %v7426 = vadd.f32 0.0, %v7425
        %v7427 = vpop.f32.mrb[0].mxu0
        %7428 = vmatprep.mubr.bf16.mxu0 0
        %7429 = vmatmul.mubr.bf16.gmra.mrb[0].mxu0 %v7365
        %v7430 = vpop.f32.mrb[0].mxu0
        %v7431 = vadd.f32 0.0, %v7430
        %v7432 = vpop.f32.mrb[0].mxu0
        %v7433 = vpop.f32.mrb[0].mxu0
        %v7434 = vadd.f32 0.0, %v7433
        %v7435 = vpop.f32.mrb[0].mxu0
        %7436 = vmatprep.mubr.bf16.mxu0 0
        %7437 = vmatmul.mubr.bf16.gmra.mrb[0].mxu0 %v7368
        %v7438 = vpop.f32.mrb[0].mxu0
        %v7439 = vadd.f32 0.0, %v7438
        %v7440 = vpop.f32.mrb[0].mxu0
        %v7441 = vpop.f32.mrb[0].mxu0
        %v7442 = vadd.f32 0.0, %v7441
        %v7443 = vpop.f32.mrb[0].mxu0
        %7444 = vmatprep.mubr.bf16.mxu0 0
        %7445 = vmatmul.mubr.bf16.gmra.mrb[0].mxu0 %v7371
        %v7446 = vpop.f32.mrb[0].mxu0
        %v7447 = vadd.f32 0.0, %v7446
        %v7448 = vpop.f32.mrb[0].mxu0
        %v7449 = vpop.f32.mrb[0].mxu0
        %v7450 = vadd.f32 0.0, %v7449
        %v7451 = vpop.f32.mrb[0].mxu0
        %7452 = vmatprep.mubr.bf16.mxu0 0
        %7453 = vmatmul.mubr.bf16.gmra.mrb[0].mxu0 %v7374
        %v7454 = vpop.f32.mrb[0].mxu0
        %v7455 = vadd.f32 0.0, %v7454
        %v7456 = vpop.f32.mrb[0].mxu0
        %v7457 = vpop.f32.mrb[0].mxu0
        %v7458 = vadd.f32 0.0, %v7457
        %v7459 = vpop.f32.mrb[0].mxu0
        %7460 = vmatprep.mubr.bf16.mxu0 0
        %7461 = vmatmul.mubr.bf16.gmra.mrb[0].mxu0 %v7377
        %v7462 = vpop.f32.mrb[0].mxu0
        %v7463 = vadd.f32 0.0, %v7462
        %v7464 = vpop.f32.mrb[0].mxu0
        %v7465 = vpop.f32.mrb[0].mxu0
        %v7466 = vadd.f32 0.0, %v7465
        %v7467 = vpop.f32.mrb[0].mxu0
        %7468 = vmatprep.mubr.bf16.mxu0 0
        %7469 = vmatmul.mubr.bf16.gmra.mrb[0].mxu0 %v7380
        %v7470 = vpop.f32.mrb[0].mxu0
        %v7471 = vadd.f32 0.0, %v7470
        %v7472 = vpop.f32.mrb[0].mxu0
        %v7473 = vpop.f32.mrb[0].mxu0
        %v7474 = vadd.f32 0.0, %v7473
        %v7475 = vpop.f32.mrb[0].mxu0
        %7476 = vmatprep.mubr.bf16.mxu0 0
        %7477 = vmatmul.mubr.bf16.gmra.mrb[0].mxu0 %v7383
        %v7478 = vpop.f32.mrb[0].mxu0
        %v7479 = vadd.f32 0.0, %v7478
        %v7480 = vpop.f32.mrb[0].mxu0
        %v7481 = vpop.f32.mrb[0].mxu0
        %v7482 = vadd.f32 0.0, %v7481
        %v7483 = vpop.f32.mrb[0].mxu0
        %7484 = vdwg.mxu0
        %v7485 = vadd.f32 %v7215, %v7423
        %v7486 = vadd.f32 %v7216, %v7426
        %v7487 = vadd.f32 %v7217, %v7431
        %v7488 = vadd.f32 %v7218, %v7434
        %v7489 = vadd.f32 %v7219, %v7439
        %v7490 = vadd.f32 %v7220, %v7442
        %v7491 = vadd.f32 %v7221, %v7447
        %v7492 = vadd.f32 %v7222, %v7450
        %v7493 = vadd.f32 %v7223, %v7455
        %v7494 = vadd.f32 %v7224, %v7458
        %v7495 = vadd.f32 %v7225, %v7463
        %v7496 = vadd.f32 %v7226, %v7466
        %v7497 = vadd.f32 %v7227, %v7471
        %v7498 = vadd.f32 %v7228, %v7474
        %v7499 = vadd.f32 %v7229, %v7479
        %v7500 = vadd.f32 %v7230, %v7482
        %v7501 = vld [vmem:[%s6 + $0x3] sm:$0x1]
        %v7502 = vlaneseq
        %v7503 = vshrl.u32 %v7502, 7
        %v7504 = vsub.s32 0, %v7503
        %v7505 = vrot.slane %v7501, %v7504
        %v7506 = vadd.f32 %v7485, %v7505
        %v7507 = vadd.f32 %v7486, %v7505
        %v7508 = vadd.f32 %v7487, %v7505
        %v7509 = vadd.f32 %v7488, %v7505
        %v7510 = vadd.f32 %v7489, %v7505
        %v7511 = vadd.f32 %v7490, %v7505
        %v7512 = vadd.f32 %v7491, %v7505
        %v7513 = vadd.f32 %v7492, %v7505
        %v7514 = vadd.f32 %v7493, %v7505
        %v7515 = vadd.f32 %v7494, %v7505
        %v7516 = vadd.f32 %v7495, %v7505
        %v7517 = vadd.f32 %v7496, %v7505
        %v7518 = vadd.f32 %v7497, %v7505
        %v7519 = vadd.f32 %v7498, %v7505
        %v7520 = vadd.f32 %v7499, %v7505
        %v7521 = vadd.f32 %v7500, %v7505
        %v7522 = vmax.f32 %v7506, 0.0
        %v7523 = vmax.f32 %v7507, 0.0
        %v7524 = vmax.f32 %v7508, 0.0
        %v7525 = vmax.f32 %v7509, 0.0
        %v7526 = vmax.f32 %v7510, 0.0
        %v7527 = vmax.f32 %v7511, 0.0
        %v7528 = vmax.f32 %v7512, 0.0
        %v7529 = vmax.f32 %v7513, 0.0
        %v7530 = vmax.f32 %v7514, 0.0
        %v7531 = vmax.f32 %v7515, 0.0
        %v7532 = vmax.f32 %v7516, 0.0
        %v7533 = vmax.f32 %v7517, 0.0
        %v7534 = vmax.f32 %v7518, 0.0
        %v7535 = vmax.f32 %v7519, 0.0
        %v7536 = vmax.f32 %v7520, 0.0
        %v7537 = vmax.f32 %v7521, 0.0
        %v7538 = vpack.c.bf16 %v7523, %v7522
        %v7539 = vpack.c.bf16 %v7525, %v7524
        %v7540 = vpack.c.bf16 %v7527, %v7526
        %v7541 = vpack.c.bf16 %v7529, %v7528
        %v7542 = vpack.c.bf16 %v7531, %v7530
        %v7543 = vpack.c.bf16 %v7533, %v7532
        %v7544 = vpack.c.bf16 %v7535, %v7534
        %v7545 = vpack.c.bf16 %v7537, %v7536
        %s7546 = scalar_lea.vmem %s5, 192
        %v7547 = vld [vmem:[%s7546] sm:$0xf]
        %v7548 = vld [vmem:[%s7546 + $0x4] sm:$0xf]
        %v7549 = vld [vmem:[%s7546 + $0x8] sm:$0xf]
        %v7550 = vld [vmem:[%s7546 + $0xc] sm:$0xf]
        %v7551 = vld [vmem:[%s7546 + $0x10] sm:$0xf]
        %v7552 = vld [vmem:[%s7546 + $0x14] sm:$0xf]
        %v7553 = vld [vmem:[%s7546 + $0x18] sm:$0xf]
        %v7554 = vld [vmem:[%s7546 + $0x1c] sm:$0xf]
        %v7555 = vld [vmem:[%s7546 + $0x20] sm:$0xf]
        %v7556 = vld [vmem:[%s7546 + $0x24] sm:$0xf]
        %v7557 = vld [vmem:[%s7546 + $0x28] sm:$0xf]
        %v7558 = vld [vmem:[%s7546 + $0x2c] sm:$0xf]
        %v7559 = vld [vmem:[%s7546 + $0x30] sm:$0xf]
        %v7560 = vld [vmem:[%s7546 + $0x34] sm:$0xf]
        %v7561 = vld [vmem:[%s7546 + $0x38] sm:$0xf]
        %v7562 = vld [vmem:[%s7546 + $0x3c] sm:$0xf]
        %v7579 = vunpack.c.l.b16 %v7547
        %v7580 = vunpack.c.l.b16 %v7548
        %v7581 = vunpack.c.l.b16 %v7549
        %v7582 = vunpack.c.l.b16 %v7550
        %v7583 = vunpack.c.l.b16 %v7551
        %v7584 = vunpack.c.l.b16 %v7552
        %v7585 = vunpack.c.l.b16 %v7553
        %v7586 = vunpack.c.l.b16 %v7554
        %v7587 = vunpack.c.l.b16 %v7555
        %v7588 = vunpack.c.l.b16 %v7556
        %v7589 = vunpack.c.l.b16 %v7557
        %v7590 = vunpack.c.l.b16 %v7558
        %v7591 = vunpack.c.l.b16 %v7559
        %v7592 = vunpack.c.l.b16 %v7560
        %v7593 = vunpack.c.l.b16 %v7561
        %v7594 = vunpack.c.l.b16 %v7562
        %v7595 = vpack.c.b16 %v7580, %v7579
        %v7596 = vpack.c.b16 %v7582, %v7581
        %v7597 = vpack.c.b16 %v7584, %v7583
        %v7598 = vpack.c.b16 %v7586, %v7585
        %v7599 = vpack.c.b16 %v7588, %v7587
        %v7600 = vpack.c.b16 %v7590, %v7589
        %v7601 = vpack.c.b16 %v7592, %v7591
        %v7602 = vpack.c.b16 %v7594, %v7593
        %7611 = vmatprep.subr.bf16.mxu0 0
        %7612 = vmatpush1.bf16.msra.mxu0 %v7595
        %7613 = vmatprep.subr.bf16.mxu0 0
        %7614 = vmatpush1.bf16.msra.mxu0 %v7596
        %7615 = vmatprep.subr.bf16.mxu0 0
        %7616 = vmatpush1.bf16.msra.mxu0 %v7597
        %7617 = vmatprep.subr.bf16.mxu0 0
        %7618 = vmatpush1.bf16.msra.mxu0 %v7598
        %7619 = vmatprep.subr.bf16.mxu0 0
        %7620 = vmatpush1.bf16.msra.mxu0 %v7599
        %7621 = vmatprep.subr.bf16.mxu0 0
        %7622 = vmatpush1.bf16.msra.mxu0 %v7600
        %7623 = vmatprep.subr.bf16.mxu0 0
        %7624 = vmatpush1.bf16.msra.mxu0 %v7601
        %7625 = vmatprep.subr.bf16.mxu0 0
        %7626 = vmatpush1.bf16.msra.mxu0 %v7602
        %7627 = vmatprep.subr.bf16.mxu0 0
        %7628 = vmatpush1.bf16.msra.mxu0 0
        %7629 = vmatprep.subr.bf16.mxu0 0
        %7630 = vmatpush1.bf16.msra.mxu0 0
        %7631 = vmatprep.subr.bf16.mxu0 0
        %7632 = vmatpush1.bf16.msra.mxu0 0
        %7633 = vmatprep.subr.bf16.mxu0 0
        %7634 = vmatpush1.bf16.msra.mxu0 0
        %7635 = vmatprep.subr.bf16.mxu0 0
        %7636 = vmatpush1.bf16.msra.mxu0 0
        %7637 = vmatprep.subr.bf16.mxu0 0
        %7638 = vmatpush1.bf16.msra.mxu0 0
        %7639 = vmatprep.subr.bf16.mxu0 0
        %7640 = vmatpush1.bf16.msra.mxu0 0
        %7641 = vmatprep.subr.bf16.mxu0 0
        %7642 = vmatpush1.bf16.msra.mxu0 0
        %7643 = vmatprep.mubr.bf16.mxu0 0
        %7644 = vmatmul.mubr.bf16.gmra.mrb[0].mxu0 %v7538
        %v7645 = vpop.f32.mrb[0].mxu0
        %v7646 = vadd.f32 0.0, %v7645
        %v7647 = vpop.f32.mrb[0].mxu0
        %v7648 = vpop.f32.mrb[0].mxu0
        %v7649 = vadd.f32 0.0, %v7648
        %v7650 = vpop.f32.mrb[0].mxu0
        %7651 = vmatprep.mubr.bf16.mxu0 0
        %7652 = vmatmul.mubr.bf16.gmra.mrb[0].mxu0 %v7539
        %v7653 = vpop.f32.mrb[0].mxu0
        %v7654 = vadd.f32 0.0, %v7653
        %v7655 = vpop.f32.mrb[0].mxu0
        %v7656 = vpop.f32.mrb[0].mxu0
        %v7657 = vadd.f32 0.0, %v7656
        %v7658 = vpop.f32.mrb[0].mxu0
        %7659 = vmatprep.mubr.bf16.mxu0 0
        %7660 = vmatmul.mubr.bf16.gmra.mrb[0].mxu0 %v7540
        %v7661 = vpop.f32.mrb[0].mxu0
        %v7662 = vadd.f32 0.0, %v7661
        %v7663 = vpop.f32.mrb[0].mxu0
        %v7664 = vpop.f32.mrb[0].mxu0
        %v7665 = vadd.f32 0.0, %v7664
        %v7666 = vpop.f32.mrb[0].mxu0
        %7667 = vmatprep.mubr.bf16.mxu0 0
        %7668 = vmatmul.mubr.bf16.gmra.mrb[0].mxu0 %v7541
        %v7669 = vpop.f32.mrb[0].mxu0
        %v7670 = vadd.f32 0.0, %v7669
        %v7671 = vpop.f32.mrb[0].mxu0
        %v7672 = vpop.f32.mrb[0].mxu0
        %v7673 = vadd.f32 0.0, %v7672
        %v7674 = vpop.f32.mrb[0].mxu0
        %7675 = vmatprep.mubr.bf16.mxu0 0
        %7676 = vmatmul.mubr.bf16.gmra.mrb[0].mxu0 %v7542
        %v7677 = vpop.f32.mrb[0].mxu0
        %v7678 = vadd.f32 0.0, %v7677
        %v7679 = vpop.f32.mrb[0].mxu0
        %v7680 = vpop.f32.mrb[0].mxu0
        %v7681 = vadd.f32 0.0, %v7680
        %v7682 = vpop.f32.mrb[0].mxu0
        %7683 = vmatprep.mubr.bf16.mxu0 0
        %7684 = vmatmul.mubr.bf16.gmra.mrb[0].mxu0 %v7543
        %v7685 = vpop.f32.mrb[0].mxu0
        %v7686 = vadd.f32 0.0, %v7685
        %v7687 = vpop.f32.mrb[0].mxu0
        %v7688 = vpop.f32.mrb[0].mxu0
        %v7689 = vadd.f32 0.0, %v7688
        %v7690 = vpop.f32.mrb[0].mxu0
        %7691 = vmatprep.mubr.bf16.mxu0 0
        %7692 = vmatmul.mubr.bf16.gmra.mrb[0].mxu0 %v7544
        %v7693 = vpop.f32.mrb[0].mxu0
        %v7694 = vadd.f32 0.0, %v7693
        %v7695 = vpop.f32.mrb[0].mxu0
        %v7696 = vpop.f32.mrb[0].mxu0
        %v7697 = vadd.f32 0.0, %v7696
        %v7698 = vpop.f32.mrb[0].mxu0
        %7699 = vmatprep.mubr.bf16.mxu0 0
        %7700 = vmatmul.mubr.bf16.gmra.mrb[0].mxu0 %v7545
        %v7701 = vpop.f32.mrb[0].mxu0
        %v7702 = vadd.f32 0.0, %v7701
        %v7703 = vpop.f32.mrb[0].mxu0
        %v7704 = vpop.f32.mrb[0].mxu0
        %v7705 = vadd.f32 0.0, %v7704
        %v7706 = vpop.f32.mrb[0].mxu0
        %7707 = vdwg.mxu0
        %v7708 = vadd.f32 %v5449, %v7646
        %v7709 = vadd.f32 %v5450, %v7649
        %v7710 = vadd.f32 %v5451, %v7654
        %v7711 = vadd.f32 %v5452, %v7657
        %v7712 = vadd.f32 %v5453, %v7662
        %v7713 = vadd.f32 %v5454, %v7665
        %v7714 = vadd.f32 %v5455, %v7670
        %v7715 = vadd.f32 %v5456, %v7673
        %v7716 = vadd.f32 %v5457, %v7678
        %v7717 = vadd.f32 %v5458, %v7681
        %v7718 = vadd.f32 %v5459, %v7686
        %v7719 = vadd.f32 %v5460, %v7689
        %v7720 = vadd.f32 %v5461, %v7694
        %v7721 = vadd.f32 %v5462, %v7697
        %v7722 = vadd.f32 %v5463, %v7702
        %v7723 = vadd.f32 %v5464, %v7705
        %v7724 = vld [vmem:[%s331] sm:$0x1]
        %v7726 = vlaneseq
        %v7727 = vshrl.u32 %v7726, 7
        %v7728 = vsub.s32 0, %v7727
        %v7729 = vrot.slane %v7724, %v7728
        %v7731 = vadd.f32 %v7708, %v7729
        %v7732 = vadd.f32 %v7709, %v7729
        %v7733 = vadd.f32 %v7710, %v7729
        %v7734 = vadd.f32 %v7711, %v7729
        %v7735 = vadd.f32 %v7712, %v7729
        %v7736 = vadd.f32 %v7713, %v7729
        %v7737 = vadd.f32 %v7714, %v7729
        %v7738 = vadd.f32 %v7715, %v7729
        %v7739 = vadd.f32 %v7716, %v7729
        %v7740 = vadd.f32 %v7717, %v7729
        %v7741 = vadd.f32 %v7718, %v7729
        %v7742 = vadd.f32 %v7719, %v7729
        %v7743 = vadd.f32 %v7720, %v7729
        %v7744 = vadd.f32 %v7721, %v7729
        %v7745 = vadd.f32 %v7722, %v7729
        %v7746 = vadd.f32 %v7723, %v7729
        %v7747 = vld [vmem:[%s6 + $0x4] sm:$0x1]
        %v7748 = vlaneseq
        %v7749 = vshrl.u32 %v7748, 7
        %v7750 = vsub.s32 0, %v7749
        %v7751 = vrot.slane %v7747, %v7750
        %v7752 = vadd.f32 %v7731, %v7751
        %v7753 = vadd.f32 %v7732, %v7751
        %v7754 = vadd.f32 %v7733, %v7751
        %v7755 = vadd.f32 %v7734, %v7751
        %v7756 = vadd.f32 %v7735, %v7751
        %v7757 = vadd.f32 %v7736, %v7751
        %v7758 = vadd.f32 %v7737, %v7751
        %v7759 = vadd.f32 %v7738, %v7751
        %v7760 = vadd.f32 %v7739, %v7751
        %v7761 = vadd.f32 %v7740, %v7751
        %v7762 = vadd.f32 %v7741, %v7751
        %v7763 = vadd.f32 %v7742, %v7751
        %v7764 = vadd.f32 %v7743, %v7751
        %v7765 = vadd.f32 %v7744, %v7751
        %v7766 = vadd.f32 %v7745, %v7751
        %v7767 = vadd.f32 %v7746, %v7751
        %v7768 = vmax.f32 %v7752, 0.0
        %v7769 = vmax.f32 %v7753, 0.0
        %v7770 = vmax.f32 %v7754, 0.0
        %v7771 = vmax.f32 %v7755, 0.0
        %v7772 = vmax.f32 %v7756, 0.0
        %v7773 = vmax.f32 %v7757, 0.0
        %v7774 = vmax.f32 %v7758, 0.0
        %v7775 = vmax.f32 %v7759, 0.0
        %v7776 = vmax.f32 %v7760, 0.0
        %v7777 = vmax.f32 %v7761, 0.0
        %v7778 = vmax.f32 %v7762, 0.0
        %v7779 = vmax.f32 %v7763, 0.0
        %v7780 = vmax.f32 %v7764, 0.0
        %v7781 = vmax.f32 %v7765, 0.0
        %v7782 = vmax.f32 %v7766, 0.0
        %v7783 = vmax.f32 %v7767, 0.0
        %7784 = vst [vmem:[%s323] sm:$0xff] %v7768
        %7785 = vst [vmem:[%s323 + $0x8] sm:$0xff] %v7769
        %7786 = vst [vmem:[%s323 + $0x10] sm:$0xff] %v7770
        %7787 = vst [vmem:[%s323 + $0x18] sm:$0xff] %v7771
        %7788 = vst [vmem:[%s323 + $0x20] sm:$0xff] %v7772
        %7789 = vst [vmem:[%s323 + $0x28] sm:$0xff] %v7773
        %7790 = vst [vmem:[%s323 + $0x30] sm:$0xff] %v7774
        %7791 = vst [vmem:[%s323 + $0x38] sm:$0xff] %v7775
        %7792 = vst [vmem:[%s323 + $0x40] sm:$0xff] %v7776
        %7793 = vst [vmem:[%s323 + $0x48] sm:$0xff] %v7777
        %7794 = vst [vmem:[%s323 + $0x50] sm:$0xff] %v7778
        %7795 = vst [vmem:[%s323 + $0x58] sm:$0xff] %v7779
        %7796 = vst [vmem:[%s323 + $0x60] sm:$0xff] %v7780
        %7797 = vst [vmem:[%s323 + $0x68] sm:$0xff] %v7781
        %7798 = vst [vmem:[%s323 + $0x70] sm:$0xff] %v7782
        %7799 = vst [vmem:[%s323 + $0x78] sm:$0xff] %v7783
        %s7800 = sand.u32 %s222, 1
        %s7801 = scalar_lea.sflag [#allocation3], %s7800
        %s7802 = sand.u32 %s222, 1
        %s7803 = smul.addr %s7802, 128
        %s7804 = scalar_lea.vmem [#allocation2], %s7803
        // Predicated region
        $region53: #{assp_forward.1} parent=51 // pred_check
          %p7805 = pneg %p232
        $region54: #{assp_forward.1} parent=51 // pred_check_branch
          %7807 = sbr.rel (%p7805) target = $region56
        $region55: #{assp_forward.1} parent=51 // pred_region
          %s7808 = smul.u32 16, %s27
          %s7810 = ssub.s32 2048, 2048
          %7811 = vsyncadd %s7801, %s7810
          %s7812 = smul.addr %s26, 32
          %s7813 = sadd.s32 %s7808, %s7812
          %s7814 = smul.addr %s7813, 128
          %s7815 = scalar_lea.hbm %s8, %s7814
          %s7816 = sshll.u32 %s7804, 4
          %s7817 = int_to_ptr.vmem [resolvable:$true] %s7816
          %7822 = dma.vmem_to_hbm [thread:$0]  %s7817, 2048, %s7815, %s7801, 128, 128, 8
        $region56: #{assp_forward.1} parent=51 // pred_fallthru
          _
      $region52: #{assp_forward.1} parent=5 // pred_fallthru
        _
      %p7823 = scmp.le.s32.totalorder 2, %s17
      // Predicated region
      $region57: #{assp_forward.1} parent=5 // pred_check
        %p7824 = pneg %p7823
      $region58: #{assp_forward.1} parent=5 // pred_check_branch
        %7826 = sbr.rel (%p7824) target = $region60
      $region59: #{assp_forward.1} parent=5 // pred_region
        %s7827 = ssub.s32 %s17, 2
        // Predicated region
        $region61: #{assp_forward.1} parent=59 // pred_check
          %p7828 = pneg %p238
        $region62: #{assp_forward.1} parent=59 // pred_check_branch
          %7830 = sbr.rel (%p7828) target = $region64
        $region63: #{assp_forward.1} parent=59 // pred_region
          %s7831 = sand.u32 %s223, 1
          %s7832 = scalar_lea.sflag [#allocation3], %s7831
          %s7833 = sand.u32 %s223, 1
          %s7834 = smul.addr %s7833, 128
          %s7835 = scalar_lea.vmem [#allocation2], %s7834
          %7836 = dma.done %s7832, 2048
        $region64: #{assp_forward.1} parent=59 // pred_fallthru
          _
      $region60: #{assp_forward.1} parent=5 // pred_fallthru
        _
    $region6: #{assp_forward.1} parent=1 // loop_footer
      %s21 = sadd.s32 1, %s17
    $region7: #{assp_forward.1} parent=1 // loop_footer_branch
      %16 = sbr.rel target = $region3
    $region8: #{assp_forward.1} parent=1 // loop_exit
      _
    %7837 = vsyncpa [#allocation3], 1
    %s7838 = scalar_lea.sflag [#allocation3], 1
    %7839 = vsyncpa %s7838, 1

</llo_original>
